<compile_context>
chip_gen: v7x
topology: tpu7x:2x2x1
jax: 0.10.0
libtpu: 0.0.40
codegen_flags: <defaults>
</compile_context>

<pallas_src>
import functools

import numpy as np
import jax
import jax.numpy as jnp
from jax.experimental import pallas as pl
from jax.experimental.pallas import tpu as pltpu

# ---- model hyper-params (small, consistent with the module's __init__) -------
E = 128            # emb_size
NHEAD = 4
DH = E // NHEAD    # head dim
DFF = 128          # dim_feedforward
N_ENC = 2          # num_encoder_layers
N_DEC = 2          # num_decoder_layers
SRC_VOCAB = 64
DST_VOCAB = 80
DST_VOCAB_PAD = 128   # generator output padded to full lane width
MAXLEN = 64
PAD_IDX = 1        # special_symbols_idx['<pad>']
BOS_IDX = 2
EOS_IDX = 3
LN_EPS = 1e-5
EMB_FACTOR = float(np.sqrt(E))
ATTN_SCALE = 1.0 / float(np.sqrt(DH))
NEG_BIG = -1e9     # finite "-inf": identical softmax, no NaN for all-masked rows


# =========================== in-kernel building blocks ========================

def _ln(x, g, b):
    """LayerNorm over the last axis, f32 math."""
    mean = jnp.mean(x, axis=-1, keepdims=True)
    xc = x - mean
    var = jnp.mean(xc * xc, axis=-1, keepdims=True)
    return xc * jax.lax.rsqrt(var + LN_EPS) * g + b


def _attention_core(q, k, v, bias, wo, bo):
    """Multi-head attention on VMEM-resident values.

    q: (Mq, E) f32 (already scaled by 1/sqrt(DH)), k/v: (Mk, E) f32.
    bias: (Mq, Mk) f32 additive mask.  Rows/cols are batch-major flattened
    (b*S + s); `bias` is block-diagonal over batch, so attending over all Mk
    keys at once is exact (cross-batch scores get -1e9 -> weight 0).
    wo: (E, E) bf16 out-projection, bo: (1, E) f32."""
    ctx_heads = []
    for h in range(NHEAD):                      # static unroll, all inside kernel
        lo = h * DH
        qh = q[:, lo:lo + DH].astype(jnp.bfloat16)
        kh = k[:, lo:lo + DH].astype(jnp.bfloat16)
        vh = v[:, lo:lo + DH].astype(jnp.bfloat16)
        # q @ k^T without materializing a transpose (contract dim 1 of both)
        s = jax.lax.dot_general(qh, kh, (((1,), (1,)), ((), ())),
                                preferred_element_type=jnp.float32)
        s = s + bias
        m = jnp.max(s, axis=-1, keepdims=True)
        p = jnp.exp(s - m)
        denom = jnp.sum(p, axis=-1, keepdims=True)
        attn = (p * pl.reciprocal(denom, approx=True)).astype(jnp.bfloat16)
        ctx_heads.append(jnp.dot(attn, vh, preferred_element_type=jnp.float32))
    ctx = jnp.concatenate(ctx_heads, axis=-1)   # (Mq, E)
    return jnp.dot(ctx.astype(jnp.bfloat16), wo,
                   preferred_element_type=jnp.float32) + bo


def _mm(x_f32, w_bf16, b_f32):
    """x @ W + b with bf16 MXU operands and f32 accumulation."""
    return jnp.dot(x_f32.astype(jnp.bfloat16), w_bf16,
                   preferred_element_type=jnp.float32) + b_f32


# ================================ fused kernels ===============================

def _enc_layer_kernel(x_ref, bias_ref,
                      wqkv_ref, bqkv_ref, wo_ref, bo_ref, n1g_ref, n1b_ref,
                      w1_ref, b1_ref, w2_ref, b2_ref, n2g_ref, n2b_ref,
                      o_ref):
    x = x_ref[...]                                   # (B*Ss, E) f32
    qkv = _mm(x, wqkv_ref[...], bqkv_ref[...])       # fused QKV: (B*Ss, 3E)
    q = qkv[:, :E] * ATTN_SCALE
    k = qkv[:, E:2 * E]
    v = qkv[:, 2 * E:]
    a = _attention_core(q, k, v, bias_ref[...], wo_ref[...], bo_ref[...])
    x = _ln(x + a, n1g_ref[...], n1b_ref[...])       # residual + LN fused
    h = jnp.maximum(_mm(x, w1_ref[...], b1_ref[...]), 0.0)
    h = _mm(h, w2_ref[...], b2_ref[...])
    o_ref[...] = _ln(x + h, n2g_ref[...], n2b_ref[...])


def _dec_layer_kernel(y_ref, mem_ref, sbias_ref, cbias_ref,
                      sa_wqkv_ref, sa_bqkv_ref, sa_wo_ref, sa_bo_ref,
                      n1g_ref, n1b_ref,
                      ca_wq_ref, ca_bq_ref, ca_wkv_ref, ca_bkv_ref,
                      ca_wo_ref, ca_bo_ref, n2g_ref, n2b_ref,
                      w1_ref, b1_ref, w2_ref, b2_ref, n3g_ref, n3b_ref,
                      o_ref):
    y = y_ref[...]                                   # (B*Sd, E) f32
    mem = mem_ref[...]                               # (B*Ss, E) f32

    # --- masked (causal + pad) self-attention ---
    qkv = _mm(y, sa_wqkv_ref[...], sa_bqkv_ref[...])
    q = qkv[:, :E] * ATTN_SCALE
    k = qkv[:, E:2 * E]
    v = qkv[:, 2 * E:]
    a = _attention_core(q, k, v, sbias_ref[...], sa_wo_ref[...], sa_bo_ref[...])
    y = _ln(y + a, n1g_ref[...], n1b_ref[...])

    # --- cross-attention over encoder memory ---
    q = _mm(y, ca_wq_ref[...], ca_bq_ref[...]) * ATTN_SCALE
    kv = _mm(mem, ca_wkv_ref[...], ca_bkv_ref[...])  # fused K|V: (B*Ss, 2E)
    k = kv[:, :E]
    v = kv[:, E:]
    a = _attention_core(q, k, v, cbias_ref[...], ca_wo_ref[...], ca_bo_ref[...])
    y = _ln(y + a, n2g_ref[...], n2b_ref[...])

    # --- feed-forward ---
    h = jnp.maximum(_mm(y, w1_ref[...], b1_ref[...]), 0.0)
    h = _mm(h, w2_ref[...], b2_ref[...])
    o_ref[...] = _ln(y + h, n3g_ref[...], n3b_ref[...])


def _layernorm_kernel(x_ref, g_ref, b_ref, o_ref):
    o_ref[...] = _ln(x_ref[...], g_ref[...], b_ref[...])


def _head_kernel(y_ref, g_ref, b_ref, w_ref, bias_ref, o_ref):
    # final decoder LayerNorm + generator linear (output padded to 128 lanes)
    y = _ln(y_ref[...], g_ref[...], b_ref[...])
    o_ref[...] = _mm(y, w_ref[...], bias_ref[...])


# ============================== pallas_call glue ==============================

def _fused_call(kernel, args, out_shape):
    """Single-step pallas_call; every operand is a full-array 2D VMEM block."""
    return pl.pallas_call(
        kernel,
        out_shape=jax.ShapeDtypeStruct(out_shape, jnp.float32),
        grid=(1,),
        in_specs=[pl.BlockSpec(a.shape, lambda i: (0, 0)) for a in args],
        out_specs=pl.BlockSpec(out_shape, lambda i: (0, 0)),
        compiler_params=pltpu.CompilerParams(dimension_semantics=("arbitrary",)),
    )(*args)


def encoder_layer(x, bias, p):
    args = [x, bias, p["wqkv"], p["bqkv"], p["wo"], p["bo"], p["n1g"], p["n1b"],
            p["w1"], p["b1"], p["w2"], p["b2"], p["n2g"], p["n2b"]]
    return _fused_call(_enc_layer_kernel, args, x.shape)


def decoder_layer(y, memory, self_bias, cross_bias, p):
    args = [y, memory, self_bias, cross_bias,
            p["sa_wqkv"], p["sa_bqkv"], p["sa_wo"], p["sa_bo"], p["n1g"], p["n1b"],
            p["ca_wq"], p["ca_bq"], p["ca_wkv"], p["ca_bkv"], p["ca_wo"], p["ca_bo"],
            p["n2g"], p["n2b"],
            p["w1"], p["b1"], p["w2"], p["b2"], p["n3g"], p["n3b"]]
    return _fused_call(_dec_layer_kernel, args, y.shape)


def layernorm(x, g, b):
    return _fused_call(_layernorm_kernel, [x, g, b], x.shape)


def generator_head(y, g, b, w, bias):
    return _fused_call(_head_kernel, [y, g, b, w, bias],
                       (y.shape[0], DST_VOCAB_PAD))


# =============================== forward pass =================================

def _make_bias(B, Sq, Sk, key_pad, causal=False):
    """Head-independent additive mask over batch-major flattened rows/cols.

    Allowed iff same batch AND key not padded AND (not causal or k <= q)."""
    rq = jnp.arange(B * Sq)
    rk = jnp.arange(B * Sk)
    allow = (rq[:, None] // Sq) == (rk[None, :] // Sk)        # block-diag batch
    allow = allow & (~key_pad.reshape(-1))[None, :]           # key padding
    if causal:
        allow = allow & ((rq[:, None] % Sq) >= (rk[None, :] % Sk))
    return jnp.where(allow, 0.0, NEG_BIG).astype(jnp.float32)


def seq2seq_forward(params, src, dst):
    """Equivalent of Seq2SeqTransformer.forward(src, dst).

    src: (Ss, B) int32 token ids, dst: (Sd, B) int32 token ids.
    Returns logits (Sd, B, DST_VOCAB)."""
    Ss, B = src.shape
    Sd = dst.shape[0]
    src_b = src.T                                              # (B, Ss)
    dst_b = dst.T                                              # (B, Sd)

    # embeddings: gather + scale + sinusoidal pos-add (tiny elementwise -> XLA)
    # TODO(synk): dropout after embedding is stochastic in train mode; identity here (eval).
    pos = params["pos_embedding"][:, 0, :]                     # (MAXLEN, E)
    src_emb = jnp.take(params["src_tok_emb"], src_b, axis=0) * EMB_FACTOR + pos[:Ss][None]
    dst_emb = jnp.take(params["dst_tok_emb"], dst_b, axis=0) * EMB_FACTOR + pos[:Sd][None]
    x = src_emb.reshape(B * Ss, E).astype(jnp.float32)
    y = dst_emb.reshape(B * Sd, E).astype(jnp.float32)

    # additive masks (same semantics as the torch module), built once, reused
    src_pad = src_b == PAD_IDX
    dst_pad = dst_b == PAD_IDX
    enc_bias = _make_bias(B, Ss, Ss, src_pad)                  # src_mask == zeros
    dec_self_bias = _make_bias(B, Sd, Sd, dst_pad, causal=True)
    cross_bias = _make_bias(B, Sd, Ss, src_pad)                # memory_mask=None

    # encoder stack (1 pallas_call / layer) + final encoder norm
    for lp in params["enc_layers"]:
        x = encoder_layer(x, enc_bias, lp)
    memory = layernorm(x, params["enc_norm_g"], params["enc_norm_b"])

    # decoder stack (1 pallas_call / layer) + fused final norm + generator
    for lp in params["dec_layers"]:
        y = decoder_layer(y, memory, dec_self_bias, cross_bias, lp)
    logits_pad = generator_head(y, params["dec_norm_g"], params["dec_norm_b"],
                                params["gen_w"], params["gen_b"])
    logits = logits_pad[:, :DST_VOCAB].reshape(B, Sd, DST_VOCAB)
    return logits.transpose(1, 0, 2)                           # (Sd, B, V)


# ============================ deterministic params ============================

def init_params(key):
    keys = iter(jax.random.split(key, 128))

    def nxt():
        return next(keys)

    def w(in_dim, out_dim):     # matmul weights: stored bf16 (MXU operands)
        bound = 1.0 / np.sqrt(in_dim)
        return jax.random.uniform(nxt(), (in_dim, out_dim), jnp.float32,
                                  -bound, bound).astype(jnp.bfloat16)

    def b(in_dim, out_dim):     # biases: f32, row vectors for in-kernel broadcast
        bound = 1.0 / np.sqrt(in_dim)
        return jax.random.uniform(nxt(), (1, out_dim), jnp.float32, -bound, bound)

    ones = lambda: jnp.ones((1, E), jnp.float32)
    zeros = lambda: jnp.zeros((1, E), jnp.float32)

    def enc_layer_params():
        return dict(
            wqkv=w(E, 3 * E), bqkv=b(E, 3 * E),
            wo=w(E, E), bo=b(E, E),
            n1g=ones(), n1b=zeros(),
            w1=w(E, DFF), b1=b(E, DFF),
            w2=w(DFF, E), b2=b(DFF, E),
            n2g=ones(), n2b=zeros(),
        )

    def dec_layer_params():
        return dict(
            sa_wqkv=w(E, 3 * E), sa_bqkv=b(E, 3 * E),
            sa_wo=w(E, E), sa_bo=b(E, E),
            n1g=ones(), n1b=zeros(),
            ca_wq=w(E, E), ca_bq=b(E, E),
            ca_wkv=w(E, 2 * E), ca_bkv=b(E, 2 * E),
            ca_wo=w(E, E), ca_bo=b(E, E),
            n2g=ones(), n2b=zeros(),
            w1=w(E, DFF), b1=b(E, DFF),
            w2=w(DFF, E), b2=b(DFF, E),
            n3g=ones(), n3b=zeros(),
        )

    initrange = 1.0 / np.sqrt(E)   # module's init_weights() for the embeddings
    params = dict(
        src_tok_emb=jax.random.uniform(nxt(), (SRC_VOCAB, E), jnp.float32,
                                       -initrange, initrange),
        dst_tok_emb=jax.random.uniform(nxt(), (DST_VOCAB, E), jnp.float32,
                                       -initrange, initrange),
        enc_layers=[enc_layer_params() for _ in range(N_ENC)],
        dec_layers=[dec_layer_params() for _ in range(N_DEC)],
        enc_norm_g=jnp.ones((1, E), jnp.float32),
        enc_norm_b=jnp.zeros((1, E), jnp.float32),
        dec_norm_g=jnp.ones((1, E), jnp.float32),
        dec_norm_b=jnp.zeros((1, E), jnp.float32),
    )

    # generator head, zero-padded to 128 output lanes (lane-dense stores)
    gw = w(E, DST_VOCAB)
    gb = b(E, DST_VOCAB)
    params["gen_w"] = jnp.pad(gw, ((0, 0), (0, DST_VOCAB_PAD - DST_VOCAB)))
    params["gen_b"] = jnp.pad(gb, ((0, 0), (0, DST_VOCAB_PAD - DST_VOCAB)))

    # sinusoidal positional-embedding buffer, exactly as in the torch module
    tmp0 = np.exp(-np.arange(0, E, 2) * np.log(10000.0) / E)
    tmp1 = np.arange(MAXLEN)[:, np.newaxis] * tmp0
    pos = np.stack([np.sin(tmp1), np.cos(tmp1)], axis=2).reshape(MAXLEN, 1, E)
    params["pos_embedding"] = jnp.asarray(pos, dtype=jnp.float32)
    return params


# ==================================== main ====================================

if __name__ == "__main__":
    key = jax.random.PRNGKey(0)
    pkey, skey, dkey = jax.random.split(key, 3)
    params = init_params(pkey)

    B, Ss, Sd = 2, 10, 8
    src = jax.random.randint(skey, (Ss, B), 4, SRC_VOCAB, dtype=jnp.int32)
    dst = jax.random.randint(dkey, (Sd, B), 4, DST_VOCAB, dtype=jnp.int32)
    # make the batch look like tokenized sentences: bos / eos / trailing pad
    src = src.at[0, :].set(BOS_IDX).at[Ss - 2, :].set(EOS_IDX).at[Ss - 1, :].set(PAD_IDX)
    dst = dst.at[0, :].set(BOS_IDX).at[Sd - 1, :].set(PAD_IDX)

    fwd = jax.jit(seq2seq_forward)
    logits = fwd(params, src, dst)
    jax.block_until_ready(logits)

    assert logits.shape == (Sd, B, DST_VOCAB)
    assert bool(jnp.all(jnp.isfinite(logits)))
    print("KERNEL_OK")
</pallas_src>

<mosaic_0001>
module attributes {stable_mosaic.version = 11 : i64} {
  func.func @_layernorm_kernel(%arg0: i32, %arg1: memref<20x128xf32, #tpu.memory_space<vmem>>, %arg2: memref<1x128xf32, #tpu.memory_space<vmem>>, %arg3: memref<1x128xf32, #tpu.memory_space<vmem>>, %arg4: memref<20x128xf32, #tpu.memory_space<vmem>>) attributes {dimension_semantics = [#tpu.dimension_semantics<arbitrary>], iteration_bounds = array<i64: 1>, scalar_prefetch = 0 : i64, scratch_operands = 0 : i64, tpu.core_type = #tpu.core_type<tc>, window_params = [{pipeline_mode = #tpu.pipeline_mode<synchronous>, transform_indices = @transform_0, window_bounds = array<i64: 20, 128>}, {pipeline_mode = #tpu.pipeline_mode<synchronous>, transform_indices = @transform_1, window_bounds = array<i64: 1, 128>}, {pipeline_mode = #tpu.pipeline_mode<synchronous>, transform_indices = @transform_2, window_bounds = array<i64: 1, 128>}, {pipeline_mode = #tpu.pipeline_mode<synchronous>, transform_indices = @transform_3, window_bounds = array<i64: 20, 128>}]} {
    %c0 = arith.constant 0 : index
    %c0_0 = arith.constant 0 : index
    %0 = vector.load %arg1[%c0, %c0_0] : memref<20x128xf32, #tpu.memory_space<vmem>>, vector<20x128xf32>
    %c0_1 = arith.constant 0 : index
    %c0_2 = arith.constant 0 : index
    %1 = vector.load %arg2[%c0_1, %c0_2] : memref<1x128xf32, #tpu.memory_space<vmem>>, vector<1x128xf32>
    %c0_3 = arith.constant 0 : index
    %c0_4 = arith.constant 0 : index
    %2 = vector.load %arg3[%c0_3, %c0_4] : memref<1x128xf32, #tpu.memory_space<vmem>>, vector<1x128xf32>
    %cst = arith.constant dense<0.000000e+00> : vector<20xf32>
    %3 = vector.multi_reduction <add>, %0, %cst [1] : vector<20x128xf32> to vector<20xf32>
    %4 = vector.shape_cast %3 : vector<20xf32> to vector<20x1xf32>
    %cst_5 = arith.constant 1.280000e+02 : f32
    %5 = vector.broadcast %cst_5 : f32 to vector<20x1xf32>
    %6 = arith.divf %4, %5 : vector<20x1xf32>
    %7 = vector.broadcast %6 : vector<20x1xf32> to vector<20x128xf32>
    %8 = arith.subf %0, %7 : vector<20x128xf32>
    %9 = arith.mulf %8, %8 : vector<20x128xf32>
    %cst_6 = arith.constant dense<0.000000e+00> : vector<20xf32>
    %10 = vector.multi_reduction <add>, %9, %cst_6 [1] : vector<20x128xf32> to vector<20xf32>
    %11 = vector.shape_cast %10 : vector<20xf32> to vector<20x1xf32>
    %cst_7 = arith.constant 1.280000e+02 : f32
    %12 = vector.broadcast %cst_7 : f32 to vector<20x1xf32>
    %13 = arith.divf %11, %12 : vector<20x1xf32>
    %cst_8 = arith.constant 9.99999974E-6 : f32
    %14 = vector.broadcast %cst_8 : f32 to vector<20x1xf32>
    %15 = arith.addf %13, %14 : vector<20x1xf32>
    %16 = math.rsqrt %15 : vector<20x1xf32>
    %17 = vector.broadcast %16 : vector<20x1xf32> to vector<20x128xf32>
    %18 = arith.mulf %8, %17 : vector<20x128xf32>
    %19 = vector.broadcast %1 : vector<1x128xf32> to vector<20x128xf32>
    %20 = arith.mulf %18, %19 : vector<20x128xf32>
    %21 = vector.broadcast %2 : vector<1x128xf32> to vector<20x128xf32>
    %22 = arith.addf %20, %21 : vector<20x128xf32>
    %c0_9 = arith.constant 0 : index
    %c0_10 = arith.constant 0 : index
    %23 = vector.load %arg4[%c0_9, %c0_10] : memref<20x128xf32, #tpu.memory_space<vmem>>, vector<20x128xf32>
    tpu.vector_store %arg4[%c0_9, %c0_10], %22 {strides = array<i32>} : memref<20x128xf32, #tpu.memory_space<vmem>>, vector<20x128xf32>,
    return
  }
  func.func @transform_0(%arg0: i32) -> (i32, i32) {
    %c0_i32 = arith.constant 0 : i32
    %c0_i32_0 = arith.constant 0 : i32
    %c0_i32_1 = arith.constant 0 : i32
    return %c0_i32, %c0_i32_0 : i32, i32
  }
  func.func @transform_1(%arg0: i32) -> (i32, i32) {
    %c0_i32 = arith.constant 0 : i32
    %c0_i32_0 = arith.constant 0 : i32
    %c0_i32_1 = arith.constant 0 : i32
    return %c0_i32, %c0_i32_0 : i32, i32
  }
  func.func @transform_2(%arg0: i32) -> (i32, i32) {
    %c0_i32 = arith.constant 0 : i32
    %c0_i32_0 = arith.constant 0 : i32
    %c0_i32_1 = arith.constant 0 : i32
    return %c0_i32, %c0_i32_0 : i32, i32
  }
  func.func @transform_3(%arg0: i32) -> (i32, i32) {
    %c0_i32 = arith.constant 0 : i32
    %c0_i32_0 = arith.constant 0 : i32
    %c0_i32_1 = arith.constant 0 : i32
    return %c0_i32, %c0_i32_0 : i32, i32
  }
}

module attributes {stable_mosaic.version = 11 : i64} {
  func.func @_enc_layer_kernel(%arg0: i32, %arg1: memref<20x128xf32, #tpu.memory_space<vmem>>, %arg2: memref<20x20xf32, #tpu.memory_space<vmem>>, %arg3: memref<128x384xbf16, #tpu.memory_space<vmem>>, %arg4: memref<1x384xf32, #tpu.memory_space<vmem>>, %arg5: memref<128x128xbf16, #tpu.memory_space<vmem>>, %arg6: memref<1x128xf32, #tpu.memory_space<vmem>>, %arg7: memref<1x128xf32, #tpu.memory_space<vmem>>, %arg8: memref<1x128xf32, #tpu.memory_space<vmem>>, %arg9: memref<128x128xbf16, #tpu.memory_space<vmem>>, %arg10: memref<1x128xf32, #tpu.memory_space<vmem>>, %arg11: memref<128x128xbf16, #tpu.memory_space<vmem>>, %arg12: memref<1x128xf32, #tpu.memory_space<vmem>>, %arg13: memref<1x128xf32, #tpu.memory_space<vmem>>, %arg14: memref<1x128xf32, #tpu.memory_space<vmem>>, %arg15: memref<20x128xf32, #tpu.memory_space<vmem>>) attributes {dimension_semantics = [#tpu.dimension_semantics<arbitrary>], iteration_bounds = array<i64: 1>, scalar_prefetch = 0 : i64, scratch_operands = 0 : i64, tpu.core_type = #tpu.core_type<tc>, window_params = [{pipeline_mode = #tpu.pipeline_mode<synchronous>, transform_indices = @transform_0, window_bounds = array<i64: 20, 128>}, {pipeline_mode = #tpu.pipeline_mode<synchronous>, transform_indices = @transform_1, window_bounds = array<i64: 20, 20>}, {pipeline_mode = #tpu.pipeline_mode<synchronous>, transform_indices = @transform_2, window_bounds = array<i64: 128, 384>}, {pipeline_mode = #tpu.pipeline_mode<synchronous>, transform_indices = @transform_3, window_bounds = array<i64: 1, 384>}, {pipeline_mode = #tpu.pipeline_mode<synchronous>, transform_indices = @transform_4, window_bounds = array<i64: 128, 128>}, {pipeline_mode = #tpu.pipeline_mode<synchronous>, transform_indices = @transform_5, window_bounds = array<i64: 1, 128>}, {pipeline_mode = #tpu.pipeline_mode<synchronous>, transform_indices = @transform_6, window_bounds = array<i64: 1, 128>}, {pipeline_mode = #tpu.pipeline_mode<synchronous>, transform_indices = @transform_7, window_bounds = array<i64: 1, 128>}, {pipeline_mode = #tpu.pipeline_mode<synchronous>, transform_indices = @transform_8, window_bounds = array<i64: 128, 128>}, {pipeline_mode = #tpu.pipeline_mode<synchronous>, transform_indices = @transform_9, window_bounds = array<i64: 1, 128>}, {pipeline_mode = #tpu.pipeline_mode<synchronous>, transform_indices = @transform_10, window_bounds = array<i64: 128, 128>}, {pipeline_mode = #tpu.pipeline_mode<synchronous>, transform_indices = @transform_11, window_bounds = array<i64: 1, 128>}, {pipeline_mode = #tpu.pipeline_mode<synchronous>, transform_indices = @transform_12, window_bounds = array<i64: 1, 128>}, {pipeline_mode = #tpu.pipeline_mode<synchronous>, transform_indices = @transform_13, window_bounds = array<i64: 1, 128>}, {pipeline_mode = #tpu.pipeline_mode<synchronous>, transform_indices = @transform_14, window_bounds = array<i64: 20, 128>}]} {
    %c0 = arith.constant 0 : index
    %c0_0 = arith.constant 0 : index
    %0 = vector.load %arg1[%c0, %c0_0] : memref<20x128xf32, #tpu.memory_space<vmem>>, vector<20x128xf32>
    %c0_1 = arith.constant 0 : index
    %c0_2 = arith.constant 0 : index
    %1 = vector.load %arg3[%c0_1, %c0_2] : memref<128x384xbf16, #tpu.memory_space<vmem>>, vector<128x384xbf16>
    %c0_3 = arith.constant 0 : index
    %c0_4 = arith.constant 0 : index
    %2 = vector.load %arg4[%c0_3, %c0_4] : memref<1x384xf32, #tpu.memory_space<vmem>>, vector<1x384xf32>
    %3 = arith.truncf %0 : vector<20x128xf32> to vector<20x128xbf16>
    %cst = arith.constant dense<0.000000e+00> : vector<20x384xf32>
    %4 = tpu.matmul %3, %1, %cst {dimension_numbers = #tpu.dot_dimension_numbers<[1], [0], [0], [1], [0, 0, 1, 1], [], []>} : vector<20x128xbf16>, vector<128x384xbf16>, vector<20x384xf32> -> vector<20x384xf32>
    %5 = vector.broadcast %2 : vector<1x384xf32> to vector<20x384xf32>
    %6 = arith.addf %4, %5 : vector<20x384xf32>
    %7 = vector.extract_strided_slice %6 {offsets = [0, 0], sizes = [20, 128], strides = [1, 1]} : vector<20x384xf32> to vector<20x128xf32>
    %cst_5 = arith.constant 0.176776692 : f32
    %8 = vector.broadcast %cst_5 : f32 to vector<20x128xf32>
    %9 = arith.mulf %7, %8 : vector<20x128xf32>
    %10 = vector.extract_strided_slice %6 {offsets = [0, 128], sizes = [20, 128], strides = [1, 1]} : vector<20x384xf32> to vector<20x128xf32>
    %11 = vector.extract_strided_slice %6 {offsets = [0, 256], sizes = [20, 128], strides = [1, 1]} : vector<20x384xf32> to vector<20x128xf32>
    %c0_6 = arith.constant 0 : index
    %c0_7 = arith.constant 0 : index
    %12 = vector.load %arg2[%c0_6, %c0_7] : memref<20x20xf32, #tpu.memory_space<vmem>>, vector<20x20xf32>
    %c0_8 = arith.constant 0 : index
    %c0_9 = arith.constant 0 : index
    %13 = vector.load %arg5[%c0_8, %c0_9] : memref<128x128xbf16, #tpu.memory_space<vmem>>, vector<128x128xbf16>
    %c0_10 = arith.constant 0 : index
    %c0_11 = arith.constant 0 : index
    %14 = vector.load %arg6[%c0_10, %c0_11] : memref<1x128xf32, #tpu.memory_space<vmem>>, vector<1x128xf32>
    %15 = vector.extract_strided_slice %9 {offsets = [0, 0], sizes = [20, 32], strides = [1, 1]} : vector<20x128xf32> to vector<20x32xf32>
    %16 = arith.truncf %15 : vector<20x32xf32> to vector<20x32xbf16>
    %17 = vector.extract_strided_slice %10 {offsets = [0, 0], sizes = [20, 32], strides = [1, 1]} : vector<20x128xf32> to vector<20x32xf32>
    %18 = arith.truncf %17 : vector<20x32xf32> to vector<20x32xbf16>
    %19 = vector.extract_strided_slice %11 {offsets = [0, 0], sizes = [20, 32], strides = [1, 1]} : vector<20x128xf32> to vector<20x32xf32>
    %20 = arith.truncf %19 : vector<20x32xf32> to vector<20x32xbf16>
    %cst_12 = arith.constant dense<0.000000e+00> : vector<20x20xf32>
    %21 = tpu.matmul %16, %18, %cst_12 {dimension_numbers = #tpu.dot_dimension_numbers<[1], [1], [0], [0], [0, 0, 1, 0], [], []>} : vector<20x32xbf16>, vector<20x32xbf16>, vector<20x20xf32> -> vector<20x20xf32>
    %22 = arith.addf %21, %12 : vector<20x20xf32>
    %cst_13 = arith.constant dense<0xFF800000> : vector<20xf32>
    %23 = vector.multi_reduction <maximumf>, %22, %cst_13 [1] : vector<20x20xf32> to vector<20xf32>
    %24 = vector.shape_cast %23 : vector<20xf32> to vector<20x1xf32>
    %25 = vector.broadcast %24 : vector<20x1xf32> to vector<20x20xf32>
    %26 = arith.subf %22, %25 : vector<20x20xf32>
    %27 = math.exp %26 : vector<20x20xf32>
    %cst_14 = arith.constant dense<0.000000e+00> : vector<20xf32>
    %28 = vector.multi_reduction <add>, %27, %cst_14 [1] : vector<20x20xf32> to vector<20xf32>
    %29 = vector.shape_cast %28 : vector<20xf32> to vector<20x1xf32>
    %30 = tpu.reciprocal %29 {approx = true} : vector<20x1xf32> -> vector<20x1xf32>
    %31 = vector.broadcast %30 : vector<20x1xf32> to vector<20x20xf32>
    %32 = arith.mulf %27, %31 : vector<20x20xf32>
    %33 = arith.truncf %32 : vector<20x20xf32> to vector<20x20xbf16>
    %cst_15 = arith.constant dense<0.000000e+00> : vector<20x32xf32>
    %34 = tpu.matmul %33, %20, %cst_15 {dimension_numbers = #tpu.dot_dimension_numbers<[1], [0], [0], [1], [0, 0, 1, 1], [], []>} : vector<20x20xbf16>, vector<20x32xbf16>, vector<20x32xf32> -> vector<20x32xf32>
    %35 = vector.extract_strided_slice %9 {offsets = [0, 32], sizes = [20, 32], strides = [1, 1]} : vector<20x128xf32> to vector<20x32xf32>
    %36 = arith.truncf %35 : vector<20x32xf32> to vector<20x32xbf16>
    %37 = vector.extract_strided_slice %10 {offsets = [0, 32], sizes = [20, 32], strides = [1, 1]} : vector<20x128xf32> to vector<20x32xf32>
    %38 = arith.truncf %37 : vector<20x32xf32> to vector<20x32xbf16>
    %39 = vector.extract_strided_slice %11 {offsets = [0, 32], sizes = [20, 32], strides = [1, 1]} : vector<20x128xf32> to vector<20x32xf32>
    %40 = arith.truncf %39 : vector<20x32xf32> to vector<20x32xbf16>
    %cst_16 = arith.constant dense<0.000000e+00> : vector<20x20xf32>
    %41 = tpu.matmul %36, %38, %cst_16 {dimension_numbers = #tpu.dot_dimension_numbers<[1], [1], [0], [0], [0, 0, 1, 0], [], []>} : vector<20x32xbf16>, vector<20x32xbf16>, vector<20x20xf32> -> vector<20x20xf32>
    %42 = arith.addf %41, %12 : vector<20x20xf32>
    %cst_17 = arith.constant dense<0xFF800000> : vector<20xf32>
    %43 = vector.multi_reduction <maximumf>, %42, %cst_17 [1] : vector<20x20xf32> to vector<20xf32>
    %44 = vector.shape_cast %43 : vector<20xf32> to vector<20x1xf32>
    %45 = vector.broadcast %44 : vector<20x1xf32> to vector<20x20xf32>
    %46 = arith.subf %42, %45 : vector<20x20xf32>
    %47 = math.exp %46 : vector<20x20xf32>
    %cst_18 = arith.constant dense<0.000000e+00> : vector<20xf32>
    %48 = vector.multi_reduction <add>, %47, %cst_18 [1] : vector<20x20xf32> to vector<20xf32>
    %49 = vector.shape_cast %48 : vector<20xf32> to vector<20x1xf32>
    %50 = tpu.reciprocal %49 {approx = true} : vector<20x1xf32> -> vector<20x1xf32>
    %51 = vector.broadcast %50 : vector<20x1xf32> to vector<20x20xf32>
    %52 = arith.mulf %47, %51 : vector<20x20xf32>
    %53 = arith.truncf %52 : vector<20x20xf32> to vector<20x20xbf16>
    %cst_19 = arith.constant dense<0.000000e+00> : vector<20x32xf32>
    %54 = tpu.matmul %53, %40, %cst_19 {dimension_numbers = #tpu.dot_dimension_numbers<[1], [0], [0], [1], [0, 0, 1, 1], [], []>} : vector<20x20xbf16>, vector<20x32xbf16>, vector<20x32xf32> -> vector<20x32xf32>
    %55 = vector.extract_strided_slice %9 {offsets = [0, 64], sizes = [20, 32], strides = [1, 1]} : vector<20x128xf32> to vector<20x32xf32>
    %56 = arith.truncf %55 : vector<20x32xf32> to vector<20x32xbf16>
    %57 = vector.extract_strided_slice %10 {offsets = [0, 64], sizes = [20, 32], strides = [1, 1]} : vector<20x128xf32> to vector<20x32xf32>
    %58 = arith.truncf %57 : vector<20x32xf32> to vector<20x32xbf16>
    %59 = vector.extract_strided_slice %11 {offsets = [0, 64], sizes = [20, 32], strides = [1, 1]} : vector<20x128xf32> to vector<20x32xf32>
    %60 = arith.truncf %59 : vector<20x32xf32> to vector<20x32xbf16>
    %cst_20 = arith.constant dense<0.000000e+00> : vector<20x20xf32>
    %61 = tpu.matmul %56, %58, %cst_20 {dimension_numbers = #tpu.dot_dimension_numbers<[1], [1], [0], [0], [0, 0, 1, 0], [], []>} : vector<20x32xbf16>, vector<20x32xbf16>, vector<20x20xf32> -> vector<20x20xf32>
    %62 = arith.addf %61, %12 : vector<20x20xf32>
    %cst_21 = arith.constant dense<0xFF800000> : vector<20xf32>
    %63 = vector.multi_reduction <maximumf>, %62, %cst_21 [1] : vector<20x20xf32> to vector<20xf32>
    %64 = vector.shape_cast %63 : vector<20xf32> to vector<20x1xf32>
    %65 = vector.broadcast %64 : vector<20x1xf32> to vector<20x20xf32>
    %66 = arith.subf %62, %65 : vector<20x20xf32>
    %67 = math.exp %66 : vector<20x20xf32>
    %cst_22 = arith.constant dense<0.000000e+00> : vector<20xf32>
    %68 = vector.multi_reduction <add>, %67, %cst_22 [1] : vector<20x20xf32> to vector<20xf32>
    %69 = vector.shape_cast %68 : vector<20xf32> to vector<20x1xf32>
    %70 = tpu.reciprocal %69 {approx = true} : vector<20x1xf32> -> vector<20x1xf32>
    %71 = vector.broadcast %70 : vector<20x1xf32> to vector<20x20xf32>
    %72 = arith.mulf %67, %71 : vector<20x20xf32>
    %73 = arith.truncf %72 : vector<20x20xf32> to vector<20x20xbf16>
    %cst_23 = arith.constant dense<0.000000e+00> : vector<20x32xf32>
    %74 = tpu.matmul %73, %60, %cst_23 {dimension_numbers = #tpu.dot_dimension_numbers<[1], [0], [0], [1], [0, 0, 1, 1], [], []>} : vector<20x20xbf16>, vector<20x32xbf16>, vector<20x32xf32> -> vector<20x32xf32>
    %75 = vector.extract_strided_slice %9 {offsets = [0, 96], sizes = [20, 32], strides = [1, 1]} : vector<20x128xf32> to vector<20x32xf32>
    %76 = arith.truncf %75 : vector<20x32xf32> to vector<20x32xbf16>
    %77 = vector.extract_strided_slice %10 {offsets = [0, 96], sizes = [20, 32], strides = [1, 1]} : vector<20x128xf32> to vector<20x32xf32>
    %78 = arith.truncf %77 : vector<20x32xf32> to vector<20x32xbf16>
    %79 = vector.extract_strided_slice %11 {offsets = [0, 96], sizes = [20, 32], strides = [1, 1]} : vector<20x128xf32> to vector<20x32xf32>
    %80 = arith.truncf %79 : vector<20x32xf32> to vector<20x32xbf16>
    %cst_24 = arith.constant dense<0.000000e+00> : vector<20x20xf32>
    %81 = tpu.matmul %76, %78, %cst_24 {dimension_numbers = #tpu.dot_dimension_numbers<[1], [1], [0], [0], [0, 0, 1, 0], [], []>} : vector<20x32xbf16>, vector<20x32xbf16>, vector<20x20xf32> -> vector<20x20xf32>
    %82 = arith.addf %81, %12 : vector<20x20xf32>
    %cst_25 = arith.constant dense<0xFF800000> : vector<20xf32>
    %83 = vector.multi_reduction <maximumf>, %82, %cst_25 [1] : vector<20x20xf32> to vector<20xf32>
    %84 = vector.shape_cast %83 : vector<20xf32> to vector<20x1xf32>
    %85 = vector.broadcast %84 : vector<20x1xf32> to vector<20x20xf32>
    %86 = arith.subf %82, %85 : vector<20x20xf32>
    %87 = math.exp %86 : vector<20x20xf32>
    %cst_26 = arith.constant dense<0.000000e+00> : vector<20xf32>
    %88 = vector.multi_reduction <add>, %87, %cst_26 [1] : vector<20x20xf32> to vector<20xf32>
    %89 = vector.shape_cast %88 : vector<20xf32> to vector<20x1xf32>
    %90 = tpu.reciprocal %89 {approx = true} : vector<20x1xf32> -> vector<20x1xf32>
    %91 = vector.broadcast %90 : vector<20x1xf32> to vector<20x20xf32>
    %92 = arith.mulf %87, %91 : vector<20x20xf32>
    %93 = arith.truncf %92 : vector<20x20xf32> to vector<20x20xbf16>
    %cst_27 = arith.constant dense<0.000000e+00> : vector<20x32xf32>
    %94 = tpu.matmul %93, %80, %cst_27 {dimension_numbers = #tpu.dot_dimension_numbers<[1], [0], [0], [1], [0, 0, 1, 1], [], []>} : vector<20x20xbf16>, vector<20x32xbf16>, vector<20x32xf32> -> vector<20x32xf32>
    %95 = tpu.concatenate %34, %54, %74, %94 in 1 : vector<20x32xf32>, vector<20x32xf32>, vector<20x32xf32>, vector<20x32xf32> -> vector<20x128xf32>
    %96 = arith.truncf %95 : vector<20x128xf32> to vector<20x128xbf16>
    %cst_28 = arith.constant dense<0.000000e+00> : vector<20x128xf32>
    %97 = tpu.matmul %96, %13, %cst_28 {dimension_numbers = #tpu.dot_dimension_numbers<[1], [0], [0], [1], [0, 0, 1, 1], [], []>} : vector<20x128xbf16>, vector<128x128xbf16>, vector<20x128xf32> -> vector<20x128xf32>
    %98 = vector.broadcast %14 : vector<1x128xf32> to vector<20x128xf32>
    %99 = arith.addf %97, %98 : vector<20x128xf32>
    %100 = arith.addf %0, %99 : vector<20x128xf32>
    %c0_29 = arith.constant 0 : index
    %c0_30 = arith.constant 0 : index
    %101 = vector.load %arg7[%c0_29, %c0_30] : memref<1x128xf32, #tpu.memory_space<vmem>>, vector<1x128xf32>
    %c0_31 = arith.constant 0 : index
    %c0_32 = arith.constant 0 : index
    %102 = vector.load %arg8[%c0_31, %c0_32] : memref<1x128xf32, #tpu.memory_space<vmem>>, vector<1x128xf32>
    %cst_33 = arith.constant dense<0.000000e+00> : vector<20xf32>
    %103 = vector.multi_reduction <add>, %100, %cst_33 [1] : vector<20x128xf32> to vector<20xf32>
    %104 = vector.shape_cast %103 : vector<20xf32> to vector<20x1xf32>
    %cst_34 = arith.constant 1.280000e+02 : f32
    %105 = vector.broadcast %cst_34 : f32 to vector<20x1xf32>
    %106 = arith.divf %104, %105 : vector<20x1xf32>
    %107 = vector.broadcast %106 : vector<20x1xf32> to vector<20x128xf32>
    %108 = arith.subf %100, %107 : vector<20x128xf32>
    %109 = arith.mulf %108, %108 : vector<20x128xf32>
    %cst_35 = arith.constant dense<0.000000e+00> : vector<20xf32>
    %110 = vector.multi_reduction <add>, %109, %cst_35 [1] : vector<20x128xf32> to vector<20xf32>
    %111 = vector.shape_cast %110 : vector<20xf32> to vector<20x1xf32>
    %cst_36 = arith.constant 1.280000e+02 : f32
    %112 = vector.broadcast %cst_36 : f32 to vector<20x1xf32>
    %113 = arith.divf %111, %112 : vector<20x1xf32>
    %cst_37 = arith.constant 9.99999974E-6 : f32
    %114 = vector.broadcast %cst_37 : f32 to vector<20x1xf32>
    %115 = arith.addf %113, %114 : vector<20x1xf32>
    %116 = math.rsqrt %115 : vector<20x1xf32>
    %117 = vector.broadcast %116 : vector<20x1xf32> to vector<20x128xf32>
    %118 = arith.mulf %108, %117 : vector<20x128xf32>
    %119 = vector.broadcast %101 : vector<1x128xf32> to vector<20x128xf32>
    %120 = arith.mulf %118, %119 : vector<20x128xf32>
    %121 = vector.broadcast %102 : vector<1x128xf32> to vector<20x128xf32>
    %122 = arith.addf %120, %121 : vector<20x128xf32>
    %c0_38 = arith.constant 0 : index
    %c0_39 = arith.constant 0 : index
    %123 = vector.load %arg9[%c0_38, %c0_39] : memref<128x128xbf16, #tpu.memory_space<vmem>>, vector<128x128xbf16>
    %c0_40 = arith.constant 0 : index
    %c0_41 = arith.constant 0 : index
    %124 = vector.load %arg10[%c0_40, %c0_41] : memref<1x128xf32, #tpu.memory_space<vmem>>, vector<1x128xf32>
    %125 = arith.truncf %122 : vector<20x128xf32> to vector<20x128xbf16>
    %cst_42 = arith.constant dense<0.000000e+00> : vector<20x128xf32>
    %126 = tpu.matmul %125, %123, %cst_42 {dimension_numbers = #tpu.dot_dimension_numbers<[1], [0], [0], [1], [0, 0, 1, 1], [], []>} : vector<20x128xbf16>, vector<128x128xbf16>, vector<20x128xf32> -> vector<20x128xf32>
    %127 = vector.broadcast %124 : vector<1x128xf32> to vector<20x128xf32>
    %128 = arith.addf %126, %127 : vector<20x128xf32>
    %cst_43 = arith.constant 0.000000e+00 : f32
    %129 = vector.broadcast %cst_43 : f32 to vector<20x128xf32>
    %130 = arith.maximumf %128, %129 : vector<20x128xf32>
    %c0_44 = arith.constant 0 : index
    %c0_45 = arith.constant 0 : index
    %131 = vector.load %arg11[%c0_44, %c0_45] : memref<128x128xbf16, #tpu.memory_space<vmem>>, vector<128x128xbf16>
    %c0_46 = arith.constant 0 : index
    %c0_47 = arith.constant 0 : index
    %132 = vector.load %arg12[%c0_46, %c0_47] : memref<1x128xf32, #tpu.memory_space<vmem>>, vector<1x128xf32>
    %133 = arith.truncf %130 : vector<20x128xf32> to vector<20x128xbf16>
    %cst_48 = arith.constant dense<0.000000e+00> : vector<20x128xf32>
    %134 = tpu.matmul %133, %131, %cst_48 {dimension_numbers = #tpu.dot_dimension_numbers<[1], [0], [0], [1], [0, 0, 1, 1], [], []>} : vector<20x128xbf16>, vector<128x128xbf16>, vector<20x128xf32> -> vector<20x128xf32>
    %135 = vector.broadcast %132 : vector<1x128xf32> to vector<20x128xf32>
    %136 = arith.addf %134, %135 : vector<20x128xf32>
    %137 = arith.addf %122, %136 : vector<20x128xf32>
    %c0_49 = arith.constant 0 : index
    %c0_50 = arith.constant 0 : index
    %138 = vector.load %arg13[%c0_49, %c0_50] : memref<1x128xf32, #tpu.memory_space<vmem>>, vector<1x128xf32>
    %c0_51 = arith.constant 0 : index
    %c0_52 = arith.constant 0 : index
    %139 = vector.load %arg14[%c0_51, %c0_52] : memref<1x128xf32, #tpu.memory_space<vmem>>, vector<1x128xf32>
    %cst_53 = arith.constant dense<0.000000e+00> : vector<20xf32>
    %140 = vector.multi_reduction <add>, %137, %cst_53 [1] : vector<20x128xf32> to vector<20xf32>
    %141 = vector.shape_cast %140 : vector<20xf32> to vector<20x1xf32>
    %cst_54 = arith.constant 1.280000e+02 : f32
    %142 = vector.broadcast %cst_54 : f32 to vector<20x1xf32>
    %143 = arith.divf %141, %142 : vector<20x1xf32>
    %144 = vector.broadcast %143 : vector<20x1xf32> to vector<20x128xf32>
    %145 = arith.subf %137, %144 : vector<20x128xf32>
    %146 = arith.mulf %145, %145 : vector<20x128xf32>
    %cst_55 = arith.constant dense<0.000000e+00> : vector<20xf32>
    %147 = vector.multi_reduction <add>, %146, %cst_55 [1] : vector<20x128xf32> to vector<20xf32>
    %148 = vector.shape_cast %147 : vector<20xf32> to vector<20x1xf32>
    %cst_56 = arith.constant 1.280000e+02 : f32
    %149 = vector.broadcast %cst_56 : f32 to vector<20x1xf32>
    %150 = arith.divf %148, %149 : vector<20x1xf32>
    %cst_57 = arith.constant 9.99999974E-6 : f32
    %151 = vector.broadcast %cst_57 : f32 to vector<20x1xf32>
    %152 = arith.addf %150, %151 : vector<20x1xf32>
    %153 = math.rsqrt %152 : vector<20x1xf32>
    %154 = vector.broadcast %153 : vector<20x1xf32> to vector<20x128xf32>
    %155 = arith.mulf %145, %154 : vector<20x128xf32>
    %156 = vector.broadcast %138 : vector<1x128xf32> to vector<20x128xf32>
    %157 = arith.mulf %155, %156 : vector<20x128xf32>
    %158 = vector.broadcast %139 : vector<1x128xf32> to vector<20x128xf32>
    %159 = arith.addf %157, %158 : vector<20x128xf32>
    %c0_58 = arith.constant 0 : index
    %c0_59 = arith.constant 0 : index
    %160 = vector.load %arg15[%c0_58, %c0_59] : memref<20x128xf32, #tpu.memory_space<vmem>>, vector<20x128xf32>
    tpu.vector_store %arg15[%c0_58, %c0_59], %159 {strides = array<i32>} : memref<20x128xf32, #tpu.memory_space<vmem>>, vector<20x128xf32>,
    return
  }
  func.func @transform_0(%arg0: i32) -> (i32, i32) {
    %c0_i32 = arith.constant 0 : i32
    %c0_i32_0 = arith.constant 0 : i32
    %c0_i32_1 = arith.constant 0 : i32
    return %c0_i32, %c0_i32_0 : i32, i32
  }
  func.func @transform_1(%arg0: i32) -> (i32, i32) {
    %c0_i32 = arith.constant 0 : i32
    %c0_i32_0 = arith.constant 0 : i32
    %c0_i32_1 = arith.constant 0 : i32
    return %c0_i32, %c0_i32_0 : i32, i32
  }
  func.func @transform_2(%arg0: i32) -> (i32, i32) {
    %c0_i32 = arith.constant 0 : i32
    %c0_i32_0 = arith.constant 0 : i32
    %c0_i32_1 = arith.constant 0 : i32
    return %c0_i32, %c0_i32_0 : i32, i32
  }
  func.func @transform_3(%arg0: i32) -> (i32, i32) {
    %c0_i32 = arith.constant 0 : i32
    %c0_i32_0 = arith.constant 0 : i32
    %c0_i32_1 = arith.constant 0 : i32
    return %c0_i32, %c0_i32_0 : i32, i32
  }
  func.func @transform_4(%arg0: i32) -> (i32, i32) {
    %c0_i32 = arith.constant 0 : i32
    %c0_i32_0 = arith.constant 0 : i32
    %c0_i32_1 = arith.constant 0 : i32
    return %c0_i32, %c0_i32_0 : i32, i32
  }
  func.func @transform_5(%arg0: i32) -> (i32, i32) {
    %c0_i32 = arith.constant 0 : i32
    %c0_i32_0 = arith.constant 0 : i32
    %c0_i32_1 = arith.constant 0 : i32
    return %c0_i32, %c0_i32_0 : i32, i32
  }
  func.func @transform_6(%arg0: i32) -> (i32, i32) {
    %c0_i32 = arith.constant 0 : i32
    %c0_i32_0 = arith.constant 0 : i32
    %c0_i32_1 = arith.constant 0 : i32
    return %c0_i32, %c0_i32_0 : i32, i32
  }
  func.func @transform_7(%arg0: i32) -> (i32, i32) {
    %c0_i32 = arith.constant 0 : i32
    %c0_i32_0 = arith.constant 0 : i32
    %c0_i32_1 = arith.constant 0 : i32
    return %c0_i32, %c0_i32_0 : i32, i32
  }
  func.func @transform_8(%arg0: i32) -> (i32, i32) {
    %c0_i32 = arith.constant 0 : i32
    %c0_i32_0 = arith.constant 0 : i32
    %c0_i32_1 = arith.constant 0 : i32
    return %c0_i32, %c0_i32_0 : i32, i32
  }
  func.func @transform_9(%arg0: i32) -> (i32, i32) {
    %c0_i32 = arith.constant 0 : i32
    %c0_i32_0 = arith.constant 0 : i32
    %c0_i32_1 = arith.constant 0 : i32
    return %c0_i32, %c0_i32_0 : i32, i32
  }
  func.func @transform_10(%arg0: i32) -> (i32, i32) {
    %c0_i32 = arith.constant 0 : i32
    %c0_i32_0 = arith.constant 0 : i32
    %c0_i32_1 = arith.constant 0 : i32
    return %c0_i32, %c0_i32_0 : i32, i32
  }
  func.func @transform_11(%arg0: i32) -> (i32, i32) {
    %c0_i32 = arith.constant 0 : i32
    %c0_i32_0 = arith.constant 0 : i32
    %c0_i32_1 = arith.constant 0 : i32
    return %c0_i32, %c0_i32_0 : i32, i32
  }
  func.func @transform_12(%arg0: i32) -> (i32, i32) {
    %c0_i32 = arith.constant 0 : i32
    %c0_i32_0 = arith.constant 0 : i32
    %c0_i32_1 = arith.constant 0 : i32
    return %c0_i32, %c0_i32_0 : i32, i32
  }
  func.func @transform_13(%arg0: i32) -> (i32, i32) {
    %c0_i32 = arith.constant 0 : i32
    %c0_i32_0 = arith.constant 0 : i32
    %c0_i32_1 = arith.constant 0 : i32
    return %c0_i32, %c0_i32_0 : i32, i32
  }
  func.func @transform_14(%arg0: i32) -> (i32, i32) {
    %c0_i32 = arith.constant 0 : i32
    %c0_i32_0 = arith.constant 0 : i32
    %c0_i32_1 = arith.constant 0 : i32
    return %c0_i32, %c0_i32_0 : i32, i32
  }
}

module attributes {stable_mosaic.version = 11 : i64} {
  func.func @_dec_layer_kernel(%arg0: i32, %arg1: memref<16x128xf32, #tpu.memory_space<vmem>>, %arg2: memref<20x128xf32, #tpu.memory_space<vmem>>, %arg3: memref<16x16xf32, #tpu.memory_space<vmem>>, %arg4: memref<16x20xf32, #tpu.memory_space<vmem>>, %arg5: memref<128x384xbf16, #tpu.memory_space<vmem>>, %arg6: memref<1x384xf32, #tpu.memory_space<vmem>>, %arg7: memref<128x128xbf16, #tpu.memory_space<vmem>>, %arg8: memref<1x128xf32, #tpu.memory_space<vmem>>, %arg9: memref<1x128xf32, #tpu.memory_space<vmem>>, %arg10: memref<1x128xf32, #tpu.memory_space<vmem>>, %arg11: memref<128x128xbf16, #tpu.memory_space<vmem>>, %arg12: memref<1x128xf32, #tpu.memory_space<vmem>>, %arg13: memref<128x256xbf16, #tpu.memory_space<vmem>>, %arg14: memref<1x256xf32, #tpu.memory_space<vmem>>, %arg15: memref<128x128xbf16, #tpu.memory_space<vmem>>, %arg16: memref<1x128xf32, #tpu.memory_space<vmem>>, %arg17: memref<1x128xf32, #tpu.memory_space<vmem>>, %arg18: memref<1x128xf32, #tpu.memory_space<vmem>>, %arg19: memref<128x128xbf16, #tpu.memory_space<vmem>>, %arg20: memref<1x128xf32, #tpu.memory_space<vmem>>, %arg21: memref<128x128xbf16, #tpu.memory_space<vmem>>, %arg22: memref<1x128xf32, #tpu.memory_space<vmem>>, %arg23: memref<1x128xf32, #tpu.memory_space<vmem>>, %arg24: memref<1x128xf32, #tpu.memory_space<vmem>>, %arg25: memref<16x128xf32, #tpu.memory_space<vmem>>) attributes {dimension_semantics = [#tpu.dimension_semantics<arbitrary>], iteration_bounds = array<i64: 1>, scalar_prefetch = 0 : i64, scratch_operands = 0 : i64, tpu.core_type = #tpu.core_type<tc>, window_params = [{pipeline_mode = #tpu.pipeline_mode<synchronous>, transform_indices = @transform_0, window_bounds = array<i64: 16, 128>}, {pipeline_mode = #tpu.pipeline_mode<synchronous>, transform_indices = @transform_1, window_bounds = array<i64: 20, 128>}, {pipeline_mode = #tpu.pipeline_mode<synchronous>, transform_indices = @transform_2, window_bounds = array<i64: 16, 16>}, {pipeline_mode = #tpu.pipeline_mode<synchronous>, transform_indices = @transform_3, window_bounds = array<i64: 16, 20>}, {pipeline_mode = #tpu.pipeline_mode<synchronous>, transform_indices = @transform_4, window_bounds = array<i64: 128, 384>}, {pipeline_mode = #tpu.pipeline_mode<synchronous>, transform_indices = @transform_5, window_bounds = array<i64: 1, 384>}, {pipeline_mode = #tpu.pipeline_mode<synchronous>, transform_indices = @transform_6, window_bounds = array<i64: 128, 128>}, {pipeline_mode = #tpu.pipeline_mode<synchronous>, transform_indices = @transform_7, window_bounds = array<i64: 1, 128>}, {pipeline_mode = #tpu.pipeline_mode<synchronous>, transform_indices = @transform_8, window_bounds = array<i64: 1, 128>}, {pipeline_mode = #tpu.pipeline_mode<synchronous>, transform_indices = @transform_9, window_bounds = array<i64: 1, 128>}, {pipeline_mode = #tpu.pipeline_mode<synchronous>, transform_indices = @transform_10, window_bounds = array<i64: 128, 128>}, {pipeline_mode = #tpu.pipeline_mode<synchronous>, transform_indices = @transform_11, window_bounds = array<i64: 1, 128>}, {pipeline_mode = #tpu.pipeline_mode<synchronous>, transform_indices = @transform_12, window_bounds = array<i64: 128, 256>}, {pipeline_mode = #tpu.pipeline_mode<synchronous>, transform_indices = @transform_13, window_bounds = array<i64: 1, 256>}, {pipeline_mode = #tpu.pipeline_mode<synchronous>, transform_indices = @transform_14, window_bounds = array<i64: 128, 128>}, {pipeline_mode = #tpu.pipeline_mode<synchronous>, transform_indices = @transform_15, window_bounds = array<i64: 1, 128>}, {pipeline_mode = #tpu.pipeline_mode<synchronous>, transform_indices = @transform_16, window_bounds = array<i64: 1, 128>}, {pipeline_mode = #tpu.pipeline_mode<synchronous>, transform_indices = @transform_17, window_bounds = array<i64: 1, 128>}, {pipeline_mode = #tpu.pipeline_mode<synchronous>, transform_indices = @transform_18, window_bounds = array<i64: 128, 128>}, {pipeline_mode = #tpu.pipeline_mode<synchronous>, transform_indices = @transform_19, window_bounds = array<i64: 1, 128>}, {pipeline_mode = #tpu.pipeline_mode<synchronous>, transform_indices = @transform_20, window_bounds = array<i64: 128, 128>}, {pipeline_mode = #tpu.pipeline_mode<synchronous>, transform_indices = @transform_21, window_bounds = array<i64: 1, 128>}, {pipeline_mode = #tpu.pipeline_mode<synchronous>, transform_indices = @transform_22, window_bounds = array<i64: 1, 128>}, {pipeline_mode = #tpu.pipeline_mode<synchronous>, transform_indices = @transform_23, window_bounds = array<i64: 1, 128>}, {pipeline_mode = #tpu.pipeline_mode<synchronous>, transform_indices = @transform_24, window_bounds = array<i64: 16, 128>}]} {
    %c0 = arith.constant 0 : index
    %c0_0 = arith.constant 0 : index
    %0 = vector.load %arg1[%c0, %c0_0] : memref<16x128xf32, #tpu.memory_space<vmem>>, vector<16x128xf32>
    %c0_1 = arith.constant 0 : index
    %c0_2 = arith.constant 0 : index
    %1 = vector.load %arg2[%c0_1, %c0_2] : memref<20x128xf32, #tpu.memory_space<vmem>>, vector<20x128xf32>
    %c0_3 = arith.constant 0 : index
    %c0_4 = arith.constant 0 : index
    %2 = vector.load %arg5[%c0_3, %c0_4] : memref<128x384xbf16, #tpu.memory_space<vmem>>, vector<128x384xbf16>
    %c0_5 = arith.constant 0 : index
    %c0_6 = arith.constant 0 : index
    %3 = vector.load %arg6[%c0_5, %c0_6] : memref<1x384xf32, #tpu.memory_space<vmem>>, vector<1x384xf32>
    %4 = arith.truncf %0 : vector<16x128xf32> to vector<16x128xbf16>
    %cst = arith.constant dense<0.000000e+00> : vector<16x384xf32>
    %5 = tpu.matmul %4, %2, %cst {dimension_numbers = #tpu.dot_dimension_numbers<[1], [0], [0], [1], [0, 0, 1, 1], [], []>} : vector<16x128xbf16>, vector<128x384xbf16>, vector<16x384xf32> -> vector<16x384xf32>
    %6 = vector.broadcast %3 : vector<1x384xf32> to vector<16x384xf32>
    %7 = arith.addf %5, %6 : vector<16x384xf32>
    %8 = vector.extract_strided_slice %7 {offsets = [0, 0], sizes = [16, 128], strides = [1, 1]} : vector<16x384xf32> to vector<16x128xf32>
    %cst_7 = arith.constant 0.176776692 : f32
    %9 = vector.broadcast %cst_7 : f32 to vector<16x128xf32>
    %10 = arith.mulf %8, %9 : vector<16x128xf32>
    %11 = vector.extract_strided_slice %7 {offsets = [0, 128], sizes = [16, 128], strides = [1, 1]} : vector<16x384xf32> to vector<16x128xf32>
    %12 = vector.extract_strided_slice %7 {offsets = [0, 256], sizes = [16, 128], strides = [1, 1]} : vector<16x384xf32> to vector<16x128xf32>
    %c0_8 = arith.constant 0 : index
    %c0_9 = arith.constant 0 : index
    %13 = vector.load %arg3[%c0_8, %c0_9] : memref<16x16xf32, #tpu.memory_space<vmem>>, vector<16x16xf32>
    %c0_10 = arith.constant 0 : index
    %c0_11 = arith.constant 0 : index
    %14 = vector.load %arg7[%c0_10, %c0_11] : memref<128x128xbf16, #tpu.memory_space<vmem>>, vector<128x128xbf16>
    %c0_12 = arith.constant 0 : index
    %c0_13 = arith.constant 0 : index
    %15 = vector.load %arg8[%c0_12, %c0_13] : memref<1x128xf32, #tpu.memory_space<vmem>>, vector<1x128xf32>
    %16 = vector.extract_strided_slice %10 {offsets = [0, 0], sizes = [16, 32], strides = [1, 1]} : vector<16x128xf32> to vector<16x32xf32>
    %17 = arith.truncf %16 : vector<16x32xf32> to vector<16x32xbf16>
    %18 = vector.extract_strided_slice %11 {offsets = [0, 0], sizes = [16, 32], strides = [1, 1]} : vector<16x128xf32> to vector<16x32xf32>
    %19 = arith.truncf %18 : vector<16x32xf32> to vector<16x32xbf16>
    %20 = vector.extract_strided_slice %12 {offsets = [0, 0], sizes = [16, 32], strides = [1, 1]} : vector<16x128xf32> to vector<16x32xf32>
    %21 = arith.truncf %20 : vector<16x32xf32> to vector<16x32xbf16>
    %cst_14 = arith.constant dense<0.000000e+00> : vector<16x16xf32>
    %22 = tpu.matmul %17, %19, %cst_14 {dimension_numbers = #tpu.dot_dimension_numbers<[1], [1], [0], [0], [0, 0, 1, 0], [], []>} : vector<16x32xbf16>, vector<16x32xbf16>, vector<16x16xf32> -> vector<16x16xf32>
    %23 = arith.addf %22, %13 : vector<16x16xf32>
    %cst_15 = arith.constant dense<0xFF800000> : vector<16xf32>
    %24 = vector.multi_reduction <maximumf>, %23, %cst_15 [1] : vector<16x16xf32> to vector<16xf32>
    %25 = vector.shape_cast %24 : vector<16xf32> to vector<16x1xf32>
    %26 = vector.broadcast %25 : vector<16x1xf32> to vector<16x16xf32>
    %27 = arith.subf %23, %26 : vector<16x16xf32>
    %28 = math.exp %27 : vector<16x16xf32>
    %cst_16 = arith.constant dense<0.000000e+00> : vector<16xf32>
    %29 = vector.multi_reduction <add>, %28, %cst_16 [1] : vector<16x16xf32> to vector<16xf32>
    %30 = vector.shape_cast %29 : vector<16xf32> to vector<16x1xf32>
    %31 = tpu.reciprocal %30 {approx = true} : vector<16x1xf32> -> vector<16x1xf32>
    %32 = vector.broadcast %31 : vector<16x1xf32> to vector<16x16xf32>
    %33 = arith.mulf %28, %32 : vector<16x16xf32>
    %34 = arith.truncf %33 : vector<16x16xf32> to vector<16x16xbf16>
    %cst_17 = arith.constant dense<0.000000e+00> : vector<16x32xf32>
    %35 = tpu.matmul %34, %21, %cst_17 {dimension_numbers = #tpu.dot_dimension_numbers<[1], [0], [0], [1], [0, 0, 1, 1], [], []>} : vector<16x16xbf16>, vector<16x32xbf16>, vector<16x32xf32> -> vector<16x32xf32>
    %36 = vector.extract_strided_slice %10 {offsets = [0, 32], sizes = [16, 32], strides = [1, 1]} : vector<16x128xf32> to vector<16x32xf32>
    %37 = arith.truncf %36 : vector<16x32xf32> to vector<16x32xbf16>
    %38 = vector.extract_strided_slice %11 {offsets = [0, 32], sizes = [16, 32], strides = [1, 1]} : vector<16x128xf32> to vector<16x32xf32>
    %39 = arith.truncf %38 : vector<16x32xf32> to vector<16x32xbf16>
    %40 = vector.extract_strided_slice %12 {offsets = [0, 32], sizes = [16, 32], strides = [1, 1]} : vector<16x128xf32> to vector<16x32xf32>
    %41 = arith.truncf %40 : vector<16x32xf32> to vector<16x32xbf16>
    %cst_18 = arith.constant dense<0.000000e+00> : vector<16x16xf32>
    %42 = tpu.matmul %37, %39, %cst_18 {dimension_numbers = #tpu.dot_dimension_numbers<[1], [1], [0], [0], [0, 0, 1, 0], [], []>} : vector<16x32xbf16>, vector<16x32xbf16>, vector<16x16xf32> -> vector<16x16xf32>
    %43 = arith.addf %42, %13 : vector<16x16xf32>
    %cst_19 = arith.constant dense<0xFF800000> : vector<16xf32>
    %44 = vector.multi_reduction <maximumf>, %43, %cst_19 [1] : vector<16x16xf32> to vector<16xf32>
    %45 = vector.shape_cast %44 : vector<16xf32> to vector<16x1xf32>
    %46 = vector.broadcast %45 : vector<16x1xf32> to vector<16x16xf32>
    %47 = arith.subf %43, %46 : vector<16x16xf32>
    %48 = math.exp %47 : vector<16x16xf32>
    %cst_20 = arith.constant dense<0.000000e+00> : vector<16xf32>
    %49 = vector.multi_reduction <add>, %48, %cst_20 [1] : vector<16x16xf32> to vector<16xf32>
    %50 = vector.shape_cast %49 : vector<16xf32> to vector<16x1xf32>
    %51 = tpu.reciprocal %50 {approx = true} : vector<16x1xf32> -> vector<16x1xf32>
    %52 = vector.broadcast %51 : vector<16x1xf32> to vector<16x16xf32>
    %53 = arith.mulf %48, %52 : vector<16x16xf32>
    %54 = arith.truncf %53 : vector<16x16xf32> to vector<16x16xbf16>
    %cst_21 = arith.constant dense<0.000000e+00> : vector<16x32xf32>
    %55 = tpu.matmul %54, %41, %cst_21 {dimension_numbers = #tpu.dot_dimension_numbers<[1], [0], [0], [1], [0, 0, 1, 1], [], []>} : vector<16x16xbf16>, vector<16x32xbf16>, vector<16x32xf32> -> vector<16x32xf32>
    %56 = vector.extract_strided_slice %10 {offsets = [0, 64], sizes = [16, 32], strides = [1, 1]} : vector<16x128xf32> to vector<16x32xf32>
    %57 = arith.truncf %56 : vector<16x32xf32> to vector<16x32xbf16>
    %58 = vector.extract_strided_slice %11 {offsets = [0, 64], sizes = [16, 32], strides = [1, 1]} : vector<16x128xf32> to vector<16x32xf32>
    %59 = arith.truncf %58 : vector<16x32xf32> to vector<16x32xbf16>
    %60 = vector.extract_strided_slice %12 {offsets = [0, 64], sizes = [16, 32], strides = [1, 1]} : vector<16x128xf32> to vector<16x32xf32>
    %61 = arith.truncf %60 : vector<16x32xf32> to vector<16x32xbf16>
    %cst_22 = arith.constant dense<0.000000e+00> : vector<16x16xf32>
    %62 = tpu.matmul %57, %59, %cst_22 {dimension_numbers = #tpu.dot_dimension_numbers<[1], [1], [0], [0], [0, 0, 1, 0], [], []>} : vector<16x32xbf16>, vector<16x32xbf16>, vector<16x16xf32> -> vector<16x16xf32>
    %63 = arith.addf %62, %13 : vector<16x16xf32>
    %cst_23 = arith.constant dense<0xFF800000> : vector<16xf32>
    %64 = vector.multi_reduction <maximumf>, %63, %cst_23 [1] : vector<16x16xf32> to vector<16xf32>
    %65 = vector.shape_cast %64 : vector<16xf32> to vector<16x1xf32>
    %66 = vector.broadcast %65 : vector<16x1xf32> to vector<16x16xf32>
    %67 = arith.subf %63, %66 : vector<16x16xf32>
    %68 = math.exp %67 : vector<16x16xf32>
    %cst_24 = arith.constant dense<0.000000e+00> : vector<16xf32>
    %69 = vector.multi_reduction <add>, %68, %cst_24 [1] : vector<16x16xf32> to vector<16xf32>
    %70 = vector.shape_cast %69 : vector<16xf32> to vector<16x1xf32>
    %71 = tpu.reciprocal %70 {approx = true} : vector<16x1xf32> -> vector<16x1xf32>
    %72 = vector.broadcast %71 : vector<16x1xf32> to vector<16x16xf32>
    %73 = arith.mulf %68, %72 : vector<16x16xf32>
    %74 = arith.truncf %73 : vector<16x16xf32> to vector<16x16xbf16>
    %cst_25 = arith.constant dense<0.000000e+00> : vector<16x32xf32>
    %75 = tpu.matmul %74, %61, %cst_25 {dimension_numbers = #tpu.dot_dimension_numbers<[1], [0], [0], [1], [0, 0, 1, 1], [], []>} : vector<16x16xbf16>, vector<16x32xbf16>, vector<16x32xf32> -> vector<16x32xf32>
    %76 = vector.extract_strided_slice %10 {offsets = [0, 96], sizes = [16, 32], strides = [1, 1]} : vector<16x128xf32> to vector<16x32xf32>
    %77 = arith.truncf %76 : vector<16x32xf32> to vector<16x32xbf16>
    %78 = vector.extract_strided_slice %11 {offsets = [0, 96], sizes = [16, 32], strides = [1, 1]} : vector<16x128xf32> to vector<16x32xf32>
    %79 = arith.truncf %78 : vector<16x32xf32> to vector<16x32xbf16>
    %80 = vector.extract_strided_slice %12 {offsets = [0, 96], sizes = [16, 32], strides = [1, 1]} : vector<16x128xf32> to vector<16x32xf32>
    %81 = arith.truncf %80 : vector<16x32xf32> to vector<16x32xbf16>
    %cst_26 = arith.constant dense<0.000000e+00> : vector<16x16xf32>
    %82 = tpu.matmul %77, %79, %cst_26 {dimension_numbers = #tpu.dot_dimension_numbers<[1], [1], [0], [0], [0, 0, 1, 0], [], []>} : vector<16x32xbf16>, vector<16x32xbf16>, vector<16x16xf32> -> vector<16x16xf32>
    %83 = arith.addf %82, %13 : vector<16x16xf32>
    %cst_27 = arith.constant dense<0xFF800000> : vector<16xf32>
    %84 = vector.multi_reduction <maximumf>, %83, %cst_27 [1] : vector<16x16xf32> to vector<16xf32>
    %85 = vector.shape_cast %84 : vector<16xf32> to vector<16x1xf32>
    %86 = vector.broadcast %85 : vector<16x1xf32> to vector<16x16xf32>
    %87 = arith.subf %83, %86 : vector<16x16xf32>
    %88 = math.exp %87 : vector<16x16xf32>
    %cst_28 = arith.constant dense<0.000000e+00> : vector<16xf32>
    %89 = vector.multi_reduction <add>, %88, %cst_28 [1] : vector<16x16xf32> to vector<16xf32>
    %90 = vector.shape_cast %89 : vector<16xf32> to vector<16x1xf32>
    %91 = tpu.reciprocal %90 {approx = true} : vector<16x1xf32> -> vector<16x1xf32>
    %92 = vector.broadcast %91 : vector<16x1xf32> to vector<16x16xf32>
    %93 = arith.mulf %88, %92 : vector<16x16xf32>
    %94 = arith.truncf %93 : vector<16x16xf32> to vector<16x16xbf16>
    %cst_29 = arith.constant dense<0.000000e+00> : vector<16x32xf32>
    %95 = tpu.matmul %94, %81, %cst_29 {dimension_numbers = #tpu.dot_dimension_numbers<[1], [0], [0], [1], [0, 0, 1, 1], [], []>} : vector<16x16xbf16>, vector<16x32xbf16>, vector<16x32xf32> -> vector<16x32xf32>
    %96 = tpu.concatenate %35, %55, %75, %95 in 1 : vector<16x32xf32>, vector<16x32xf32>, vector<16x32xf32>, vector<16x32xf32> -> vector<16x128xf32>
    %97 = arith.truncf %96 : vector<16x128xf32> to vector<16x128xbf16>
    %cst_30 = arith.constant dense<0.000000e+00> : vector<16x128xf32>
    %98 = tpu.matmul %97, %14, %cst_30 {dimension_numbers = #tpu.dot_dimension_numbers<[1], [0], [0], [1], [0, 0, 1, 1], [], []>} : vector<16x128xbf16>, vector<128x128xbf16>, vector<16x128xf32> -> vector<16x128xf32>
    %99 = vector.broadcast %15 : vector<1x128xf32> to vector<16x128xf32>
    %100 = arith.addf %98, %99 : vector<16x128xf32>
    %101 = arith.addf %0, %100 : vector<16x128xf32>
    %c0_31 = arith.constant 0 : index
    %c0_32 = arith.constant 0 : index
    %102 = vector.load %arg9[%c0_31, %c0_32] : memref<1x128xf32, #tpu.memory_space<vmem>>, vector<1x128xf32>
    %c0_33 = arith.constant 0 : index
    %c0_34 = arith.constant 0 : index
    %103 = vector.load %arg10[%c0_33, %c0_34] : memref<1x128xf32, #tpu.memory_space<vmem>>, vector<1x128xf32>
    %cst_35 = arith.constant dense<0.000000e+00> : vector<16xf32>
    %104 = vector.multi_reduction <add>, %101, %cst_35 [1] : vector<16x128xf32> to vector<16xf32>
    %105 = vector.shape_cast %104 : vector<16xf32> to vector<16x1xf32>
    %cst_36 = arith.constant 1.280000e+02 : f32
    %106 = vector.broadcast %cst_36 : f32 to vector<16x1xf32>
    %107 = arith.divf %105, %106 : vector<16x1xf32>
    %108 = vector.broadcast %107 : vector<16x1xf32> to vector<16x128xf32>
    %109 = arith.subf %101, %108 : vector<16x128xf32>
    %110 = arith.mulf %109, %109 : vector<16x128xf32>
    %cst_37 = arith.constant dense<0.000000e+00> : vector<16xf32>
    %111 = vector.multi_reduction <add>, %110, %cst_37 [1] : vector<16x128xf32> to vector<16xf32>
    %112 = vector.shape_cast %111 : vector<16xf32> to vector<16x1xf32>
    %cst_38 = arith.constant 1.280000e+02 : f32
    %113 = vector.broadcast %cst_38 : f32 to vector<16x1xf32>
    %114 = arith.divf %112, %113 : vector<16x1xf32>
    %cst_39 = arith.constant 9.99999974E-6 : f32
    %115 = vector.broadcast %cst_39 : f32 to vector<16x1xf32>
    %116 = arith.addf %114, %115 : vector<16x1xf32>
    %117 = math.rsqrt %116 : vector<16x1xf32>
    %118 = vector.broadcast %117 : vector<16x1xf32> to vector<16x128xf32>
    %119 = arith.mulf %109, %118 : vector<16x128xf32>
    %120 = vector.broadcast %102 : vector<1x128xf32> to vector<16x128xf32>
    %121 = arith.mulf %119, %120 : vector<16x128xf32>
    %122 = vector.broadcast %103 : vector<1x128xf32> to vector<16x128xf32>
    %123 = arith.addf %121, %122 : vector<16x128xf32>
    %c0_40 = arith.constant 0 : index
    %c0_41 = arith.constant 0 : index
    %124 = vector.load %arg11[%c0_40, %c0_41] : memref<128x128xbf16, #tpu.memory_space<vmem>>, vector<128x128xbf16>
    %c0_42 = arith.constant 0 : index
    %c0_43 = arith.constant 0 : index
    %125 = vector.load %arg12[%c0_42, %c0_43] : memref<1x128xf32, #tpu.memory_space<vmem>>, vector<1x128xf32>
    %126 = arith.truncf %123 : vector<16x128xf32> to vector<16x128xbf16>
    %cst_44 = arith.constant dense<0.000000e+00> : vector<16x128xf32>
    %127 = tpu.matmul %126, %124, %cst_44 {dimension_numbers = #tpu.dot_dimension_numbers<[1], [0], [0], [1], [0, 0, 1, 1], [], []>} : vector<16x128xbf16>, vector<128x128xbf16>, vector<16x128xf32> -> vector<16x128xf32>
    %128 = vector.broadcast %125 : vector<1x128xf32> to vector<16x128xf32>
    %129 = arith.addf %127, %128 : vector<16x128xf32>
    %cst_45 = arith.constant 0.176776692 : f32
    %130 = vector.broadcast %cst_45 : f32 to vector<16x128xf32>
    %131 = arith.mulf %129, %130 : vector<16x128xf32>
    %c0_46 = arith.constant 0 : index
    %c0_47 = arith.constant 0 : index
    %132 = vector.load %arg13[%c0_46, %c0_47] : memref<128x256xbf16, #tpu.memory_space<vmem>>, vector<128x256xbf16>
    %c0_48 = arith.constant 0 : index
    %c0_49 = arith.constant 0 : index
    %133 = vector.load %arg14[%c0_48, %c0_49] : memref<1x256xf32, #tpu.memory_space<vmem>>, vector<1x256xf32>
    %134 = arith.truncf %1 : vector<20x128xf32> to vector<20x128xbf16>
    %cst_50 = arith.constant dense<0.000000e+00> : vector<20x256xf32>
    %135 = tpu.matmul %134, %132, %cst_50 {dimension_numbers = #tpu.dot_dimension_numbers<[1], [0], [0], [1], [0, 0, 1, 1], [], []>} : vector<20x128xbf16>, vector<128x256xbf16>, vector<20x256xf32> -> vector<20x256xf32>
    %136 = vector.broadcast %133 : vector<1x256xf32> to vector<20x256xf32>
    %137 = arith.addf %135, %136 : vector<20x256xf32>
    %138 = vector.extract_strided_slice %137 {offsets = [0, 0], sizes = [20, 128], strides = [1, 1]} : vector<20x256xf32> to vector<20x128xf32>
    %139 = vector.extract_strided_slice %137 {offsets = [0, 128], sizes = [20, 128], strides = [1, 1]} : vector<20x256xf32> to vector<20x128xf32>
    %c0_51 = arith.constant 0 : index
    %c0_52 = arith.constant 0 : index
    %140 = vector.load %arg4[%c0_51, %c0_52] : memref<16x20xf32, #tpu.memory_space<vmem>>, vector<16x20xf32>
    %c0_53 = arith.constant 0 : index
    %c0_54 = arith.constant 0 : index
    %141 = vector.load %arg15[%c0_53, %c0_54] : memref<128x128xbf16, #tpu.memory_space<vmem>>, vector<128x128xbf16>
    %c0_55 = arith.constant 0 : index
    %c0_56 = arith.constant 0 : index
    %142 = vector.load %arg16[%c0_55, %c0_56] : memref<1x128xf32, #tpu.memory_space<vmem>>, vector<1x128xf32>
    %143 = vector.extract_strided_slice %131 {offsets = [0, 0], sizes = [16, 32], strides = [1, 1]} : vector<16x128xf32> to vector<16x32xf32>
    %144 = arith.truncf %143 : vector<16x32xf32> to vector<16x32xbf16>
    %145 = vector.extract_strided_slice %138 {offsets = [0, 0], sizes = [20, 32], strides = [1, 1]} : vector<20x128xf32> to vector<20x32xf32>
    %146 = arith.truncf %145 : vector<20x32xf32> to vector<20x32xbf16>
    %147 = vector.extract_strided_slice %139 {offsets = [0, 0], sizes = [20, 32], strides = [1, 1]} : vector<20x128xf32> to vector<20x32xf32>
    %148 = arith.truncf %147 : vector<20x32xf32> to vector<20x32xbf16>
    %cst_57 = arith.constant dense<0.000000e+00> : vector<16x20xf32>
    %149 = tpu.matmul %144, %146, %cst_57 {dimension_numbers = #tpu.dot_dimension_numbers<[1], [1], [0], [0], [0, 0, 1, 0], [], []>} : vector<16x32xbf16>, vector<20x32xbf16>, vector<16x20xf32> -> vector<16x20xf32>
    %150 = arith.addf %149, %140 : vector<16x20xf32>
    %cst_58 = arith.constant dense<0xFF800000> : vector<16xf32>
    %151 = vector.multi_reduction <maximumf>, %150, %cst_58 [1] : vector<16x20xf32> to vector<16xf32>
    %152 = vector.shape_cast %151 : vector<16xf32> to vector<16x1xf32>
    %153 = vector.broadcast %152 : vector<16x1xf32> to vector<16x20xf32>
    %154 = arith.subf %150, %153 : vector<16x20xf32>
    %155 = math.exp %154 : vector<16x20xf32>
    %cst_59 = arith.constant dense<0.000000e+00> : vector<16xf32>
    %156 = vector.multi_reduction <add>, %155, %cst_59 [1] : vector<16x20xf32> to vector<16xf32>
    %157 = vector.shape_cast %156 : vector<16xf32> to vector<16x1xf32>
    %158 = tpu.reciprocal %157 {approx = true} : vector<16x1xf32> -> vector<16x1xf32>
    %159 = vector.broadcast %158 : vector<16x1xf32> to vector<16x20xf32>
    %160 = arith.mulf %155, %159 : vector<16x20xf32>
    %161 = arith.truncf %160 : vector<16x20xf32> to vector<16x20xbf16>
    %cst_60 = arith.constant dense<0.000000e+00> : vector<16x32xf32>
    %162 = tpu.matmul %161, %148, %cst_60 {dimension_numbers = #tpu.dot_dimension_numbers<[1], [0], [0], [1], [0, 0, 1, 1], [], []>} : vector<16x20xbf16>, vector<20x32xbf16>, vector<16x32xf32> -> vector<16x32xf32>
    %163 = vector.extract_strided_slice %131 {offsets = [0, 32], sizes = [16, 32], strides = [1, 1]} : vector<16x128xf32> to vector<16x32xf32>
    %164 = arith.truncf %163 : vector<16x32xf32> to vector<16x32xbf16>
    %165 = vector.extract_strided_slice %138 {offsets = [0, 32], sizes = [20, 32], strides = [1, 1]} : vector<20x128xf32> to vector<20x32xf32>
    %166 = arith.truncf %165 : vector<20x32xf32> to vector<20x32xbf16>
    %167 = vector.extract_strided_slice %139 {offsets = [0, 32], sizes = [20, 32], strides = [1, 1]} : vector<20x128xf32> to vector<20x32xf32>
    %168 = arith.truncf %167 : vector<20x32xf32> to vector<20x32xbf16>
    %cst_61 = arith.constant dense<0.000000e+00> : vector<16x20xf32>
    %169 = tpu.matmul %164, %166, %cst_61 {dimension_numbers = #tpu.dot_dimension_numbers<[1], [1], [0], [0], [0, 0, 1, 0], [], []>} : vector<16x32xbf16>, vector<20x32xbf16>, vector<16x20xf32> -> vector<16x20xf32>
    %170 = arith.addf %169, %140 : vector<16x20xf32>
    %cst_62 = arith.constant dense<0xFF800000> : vector<16xf32>
    %171 = vector.multi_reduction <maximumf>, %170, %cst_62 [1] : vector<16x20xf32> to vector<16xf32>
    %172 = vector.shape_cast %171 : vector<16xf32> to vector<16x1xf32>
    %173 = vector.broadcast %172 : vector<16x1xf32> to vector<16x20xf32>
    %174 = arith.subf %170, %173 : vector<16x20xf32>
    %175 = math.exp %174 : vector<16x20xf32>
    %cst_63 = arith.constant dense<0.000000e+00> : vector<16xf32>
    %176 = vector.multi_reduction <add>, %175, %cst_63 [1] : vector<16x20xf32> to vector<16xf32>
    %177 = vector.shape_cast %176 : vector<16xf32> to vector<16x1xf32>
    %178 = tpu.reciprocal %177 {approx = true} : vector<16x1xf32> -> vector<16x1xf32>
    %179 = vector.broadcast %178 : vector<16x1xf32> to vector<16x20xf32>
    %180 = arith.mulf %175, %179 : vector<16x20xf32>
    %181 = arith.truncf %180 : vector<16x20xf32> to vector<16x20xbf16>
    %cst_64 = arith.constant dense<0.000000e+00> : vector<16x32xf32>
    %182 = tpu.matmul %181, %168, %cst_64 {dimension_numbers = #tpu.dot_dimension_numbers<[1], [0], [0], [1], [0, 0, 1, 1], [], []>} : vector<16x20xbf16>, vector<20x32xbf16>, vector<16x32xf32> -> vector<16x32xf32>
    %183 = vector.extract_strided_slice %131 {offsets = [0, 64], sizes = [16, 32], strides = [1, 1]} : vector<16x128xf32> to vector<16x32xf32>
    %184 = arith.truncf %183 : vector<16x32xf32> to vector<16x32xbf16>
    %185 = vector.extract_strided_slice %138 {offsets = [0, 64], sizes = [20, 32], strides = [1, 1]} : vector<20x128xf32> to vector<20x32xf32>
    %186 = arith.truncf %185 : vector<20x32xf32> to vector<20x32xbf16>
    %187 = vector.extract_strided_slice %139 {offsets = [0, 64], sizes = [20, 32], strides = [1, 1]} : vector<20x128xf32> to vector<20x32xf32>
    %188 = arith.truncf %187 : vector<20x32xf32> to vector<20x32xbf16>
    %cst_65 = arith.constant dense<0.000000e+00> : vector<16x20xf32>
    %189 = tpu.matmul %184, %186, %cst_65 {dimension_numbers = #tpu.dot_dimension_numbers<[1], [1], [0], [0], [0, 0, 1, 0], [], []>} : vector<16x32xbf16>, vector<20x32xbf16>, vector<16x20xf32> -> vector<16x20xf32>
    %190 = arith.addf %189, %140 : vector<16x20xf32>
    %cst_66 = arith.constant dense<0xFF800000> : vector<16xf32>
    %191 = vector.multi_reduction <maximumf>, %190, %cst_66 [1] : vector<16x20xf32> to vector<16xf32>
    %192 = vector.shape_cast %191 : vector<16xf32> to vector<16x1xf32>
    %193 = vector.broadcast %192 : vector<16x1xf32> to vector<16x20xf32>
    %194 = arith.subf %190, %193 : vector<16x20xf32>
    %195 = math.exp %194 : vector<16x20xf32>
    %cst_67 = arith.constant dense<0.000000e+00> : vector<16xf32>
    %196 = vector.multi_reduction <add>, %195, %cst_67 [1] : vector<16x20xf32> to vector<16xf32>
    %197 = vector.shape_cast %196 : vector<16xf32> to vector<16x1xf32>
    %198 = tpu.reciprocal %197 {approx = true} : vector<16x1xf32> -> vector<16x1xf32>
    %199 = vector.broadcast %198 : vector<16x1xf32> to vector<16x20xf32>
    %200 = arith.mulf %195, %199 : vector<16x20xf32>
    %201 = arith.truncf %200 : vector<16x20xf32> to vector<16x20xbf16>
    %cst_68 = arith.constant dense<0.000000e+00> : vector<16x32xf32>
    %202 = tpu.matmul %201, %188, %cst_68 {dimension_numbers = #tpu.dot_dimension_numbers<[1], [0], [0], [1], [0, 0, 1, 1], [], []>} : vector<16x20xbf16>, vector<20x32xbf16>, vector<16x32xf32> -> vector<16x32xf32>
    %203 = vector.extract_strided_slice %131 {offsets = [0, 96], sizes = [16, 32], strides = [1, 1]} : vector<16x128xf32> to vector<16x32xf32>
    %204 = arith.truncf %203 : vector<16x32xf32> to vector<16x32xbf16>
    %205 = vector.extract_strided_slice %138 {offsets = [0, 96], sizes = [20, 32], strides = [1, 1]} : vector<20x128xf32> to vector<20x32xf32>
    %206 = arith.truncf %205 : vector<20x32xf32> to vector<20x32xbf16>
    %207 = vector.extract_strided_slice %139 {offsets = [0, 96], sizes = [20, 32], strides = [1, 1]} : vector<20x128xf32> to vector<20x32xf32>
    %208 = arith.truncf %207 : vector<20x32xf32> to vector<20x32xbf16>
    %cst_69 = arith.constant dense<0.000000e+00> : vector<16x20xf32>
    %209 = tpu.matmul %204, %206, %cst_69 {dimension_numbers = #tpu.dot_dimension_numbers<[1], [1], [0], [0], [0, 0, 1, 0], [], []>} : vector<16x32xbf16>, vector<20x32xbf16>, vector<16x20xf32> -> vector<16x20xf32>
    %210 = arith.addf %209, %140 : vector<16x20xf32>
    %cst_70 = arith.constant dense<0xFF800000> : vector<16xf32>
    %211 = vector.multi_reduction <maximumf>, %210, %cst_70 [1] : vector<16x20xf32> to vector<16xf32>
    %212 = vector.shape_cast %211 : vector<16xf32> to vector<16x1xf32>
    %213 = vector.broadcast %212 : vector<16x1xf32> to vector<16x20xf32>
    %214 = arith.subf %210, %213 : vector<16x20xf32>
    %215 = math.exp %214 : vector<16x20xf32>
    %cst_71 = arith.constant dense<0.000000e+00> : vector<16xf32>
    %216 = vector.multi_reduction <add>, %215, %cst_71 [1] : vector<16x20xf32> to vector<16xf32>
    %217 = vector.shape_cast %216 : vector<16xf32> to vector<16x1xf32>
    %218 = tpu.reciprocal %217 {approx = true} : vector<16x1xf32> -> vector<16x1xf32>
    %219 = vector.broadcast %218 : vector<16x1xf32> to vector<16x20xf32>
    %220 = arith.mulf %215, %219 : vector<16x20xf32>
    %221 = arith.truncf %220 : vector<16x20xf32> to vector<16x20xbf16>
    %cst_72 = arith.constant dense<0.000000e+00> : vector<16x32xf32>
    %222 = tpu.matmul %221, %208, %cst_72 {dimension_numbers = #tpu.dot_dimension_numbers<[1], [0], [0], [1], [0, 0, 1, 1], [], []>} : vector<16x20xbf16>, vector<20x32xbf16>, vector<16x32xf32> -> vector<16x32xf32>
    %223 = tpu.concatenate %162, %182, %202, %222 in 1 : vector<16x32xf32>, vector<16x32xf32>, vector<16x32xf32>, vector<16x32xf32> -> vector<16x128xf32>
    %224 = arith.truncf %223 : vector<16x128xf32> to vector<16x128xbf16>
    %cst_73 = arith.constant dense<0.000000e+00> : vector<16x128xf32>
    %225 = tpu.matmul %224, %141, %cst_73 {dimension_numbers = #tpu.dot_dimension_numbers<[1], [0], [0], [1], [0, 0, 1, 1], [], []>} : vector<16x128xbf16>, vector<128x128xbf16>, vector<16x128xf32> -> vector<16x128xf32>
    %226 = vector.broadcast %142 : vector<1x128xf32> to vector<16x128xf32>
    %227 = arith.addf %225, %226 : vector<16x128xf32>
    %228 = arith.addf %123, %227 : vector<16x128xf32>
    %c0_74 = arith.constant 0 : index
    %c0_75 = arith.constant 0 : index
    %229 = vector.load %arg17[%c0_74, %c0_75] : memref<1x128xf32, #tpu.memory_space<vmem>>, vector<1x128xf32>
    %c0_76 = arith.constant 0 : index
    %c0_77 = arith.constant 0 : index
    %230 = vector.load %arg18[%c0_76, %c0_77] : memref<1x128xf32, #tpu.memory_space<vmem>>, vector<1x128xf32>
    %cst_78 = arith.constant dense<0.000000e+00> : vector<16xf32>
    %231 = vector.multi_reduction <add>, %228, %cst_78 [1] : vector<16x128xf32> to vector<16xf32>
    %232 = vector.shape_cast %231 : vector<16xf32> to vector<16x1xf32>
    %cst_79 = arith.constant 1.280000e+02 : f32
    %233 = vector.broadcast %cst_79 : f32 to vector<16x1xf32>
    %234 = arith.divf %232, %233 : vector<16x1xf32>
    %235 = vector.broadcast %234 : vector<16x1xf32> to vector<16x128xf32>
    %236 = arith.subf %228, %235 : vector<16x128xf32>
    %237 = arith.mulf %236, %236 : vector<16x128xf32>
    %cst_80 = arith.constant dense<0.000000e+00> : vector<16xf32>
    %238 = vector.multi_reduction <add>, %237, %cst_80 [1] : vector<16x128xf32> to vector<16xf32>
    %239 = vector.shape_cast %238 : vector<16xf32> to vector<16x1xf32>
    %cst_81 = arith.constant 1.280000e+02 : f32
    %240 = vector.broadcast %cst_81 : f32 to vector<16x1xf32>
    %241 = arith.divf %239, %240 : vector<16x1xf32>
    %cst_82 = arith.constant 9.99999974E-6 : f32
    %242 = vector.broadcast %cst_82 : f32 to vector<16x1xf32>
    %243 = arith.addf %241, %242 : vector<16x1xf32>
    %244 = math.rsqrt %243 : vector<16x1xf32>
    %245 = vector.broadcast %244 : vector<16x1xf32> to vector<16x128xf32>
    %246 = arith.mulf %236, %245 : vector<16x128xf32>
    %247 = vector.broadcast %229 : vector<1x128xf32> to vector<16x128xf32>
    %248 = arith.mulf %246, %247 : vector<16x128xf32>
    %249 = vector.broadcast %230 : vector<1x128xf32> to vector<16x128xf32>
    %250 = arith.addf %248, %249 : vector<16x128xf32>
    %c0_83 = arith.constant 0 : index
    %c0_84 = arith.constant 0 : index
    %251 = vector.load %arg19[%c0_83, %c0_84] : memref<128x128xbf16, #tpu.memory_space<vmem>>, vector<128x128xbf16>
    %c0_85 = arith.constant 0 : index
    %c0_86 = arith.constant 0 : index
    %252 = vector.load %arg20[%c0_85, %c0_86] : memref<1x128xf32, #tpu.memory_space<vmem>>, vector<1x128xf32>
    %253 = arith.truncf %250 : vector<16x128xf32> to vector<16x128xbf16>
    %cst_87 = arith.constant dense<0.000000e+00> : vector<16x128xf32>
    %254 = tpu.matmul %253, %251, %cst_87 {dimension_numbers = #tpu.dot_dimension_numbers<[1], [0], [0], [1], [0, 0, 1, 1], [], []>} : vector<16x128xbf16>, vector<128x128xbf16>, vector<16x128xf32> -> vector<16x128xf32>
    %255 = vector.broadcast %252 : vector<1x128xf32> to vector<16x128xf32>
    %256 = arith.addf %254, %255 : vector<16x128xf32>
    %cst_88 = arith.constant 0.000000e+00 : f32
    %257 = vector.broadcast %cst_88 : f32 to vector<16x128xf32>
    %258 = arith.maximumf %256, %257 : vector<16x128xf32>
    %c0_89 = arith.constant 0 : index
    %c0_90 = arith.constant 0 : index
    %259 = vector.load %arg21[%c0_89, %c0_90] : memref<128x128xbf16, #tpu.memory_space<vmem>>, vector<128x128xbf16>
    %c0_91 = arith.constant 0 : index
    %c0_92 = arith.constant 0 : index
    %260 = vector.load %arg22[%c0_91, %c0_92] : memref<1x128xf32, #tpu.memory_space<vmem>>, vector<1x128xf32>
    %261 = arith.truncf %258 : vector<16x128xf32> to vector<16x128xbf16>
    %cst_93 = arith.constant dense<0.000000e+00> : vector<16x128xf32>
    %262 = tpu.matmul %261, %259, %cst_93 {dimension_numbers = #tpu.dot_dimension_numbers<[1], [0], [0], [1], [0, 0, 1, 1], [], []>} : vector<16x128xbf16>, vector<128x128xbf16>, vector<16x128xf32> -> vector<16x128xf32>
    %263 = vector.broadcast %260 : vector<1x128xf32> to vector<16x128xf32>
    %264 = arith.addf %262, %263 : vector<16x128xf32>
    %265 = arith.addf %250, %264 : vector<16x128xf32>
    %c0_94 = arith.constant 0 : index
    %c0_95 = arith.constant 0 : index
    %266 = vector.load %arg23[%c0_94, %c0_95] : memref<1x128xf32, #tpu.memory_space<vmem>>, vector<1x128xf32>
    %c0_96 = arith.constant 0 : index
    %c0_97 = arith.constant 0 : index
    %267 = vector.load %arg24[%c0_96, %c0_97] : memref<1x128xf32, #tpu.memory_space<vmem>>, vector<1x128xf32>
    %cst_98 = arith.constant dense<0.000000e+00> : vector<16xf32>
    %268 = vector.multi_reduction <add>, %265, %cst_98 [1] : vector<16x128xf32> to vector<16xf32>
    %269 = vector.shape_cast %268 : vector<16xf32> to vector<16x1xf32>
    %cst_99 = arith.constant 1.280000e+02 : f32
    %270 = vector.broadcast %cst_99 : f32 to vector<16x1xf32>
    %271 = arith.divf %269, %270 : vector<16x1xf32>
    %272 = vector.broadcast %271 : vector<16x1xf32> to vector<16x128xf32>
    %273 = arith.subf %265, %272 : vector<16x128xf32>
    %274 = arith.mulf %273, %273 : vector<16x128xf32>
    %cst_100 = arith.constant dense<0.000000e+00> : vector<16xf32>
    %275 = vector.multi_reduction <add>, %274, %cst_100 [1] : vector<16x128xf32> to vector<16xf32>
    %276 = vector.shape_cast %275 : vector<16xf32> to vector<16x1xf32>
    %cst_101 = arith.constant 1.280000e+02 : f32
    %277 = vector.broadcast %cst_101 : f32 to vector<16x1xf32>
    %278 = arith.divf %276, %277 : vector<16x1xf32>
    %cst_102 = arith.constant 9.99999974E-6 : f32
    %279 = vector.broadcast %cst_102 : f32 to vector<16x1xf32>
    %280 = arith.addf %278, %279 : vector<16x1xf32>
    %281 = math.rsqrt %280 : vector<16x1xf32>
    %282 = vector.broadcast %281 : vector<16x1xf32> to vector<16x128xf32>
    %283 = arith.mulf %273, %282 : vector<16x128xf32>
    %284 = vector.broadcast %266 : vector<1x128xf32> to vector<16x128xf32>
    %285 = arith.mulf %283, %284 : vector<16x128xf32>
    %286 = vector.broadcast %267 : vector<1x128xf32> to vector<16x128xf32>
    %287 = arith.addf %285, %286 : vector<16x128xf32>
    %c0_103 = arith.constant 0 : index
    %c0_104 = arith.constant 0 : index
    %288 = vector.load %arg25[%c0_103, %c0_104] : memref<16x128xf32, #tpu.memory_space<vmem>>, vector<16x128xf32>
    tpu.vector_store %arg25[%c0_103, %c0_104], %287 {strides = array<i32>} : memref<16x128xf32, #tpu.memory_space<vmem>>, vector<16x128xf32>,
    return
  }
  func.func @transform_0(%arg0: i32) -> (i32, i32) {
    %c0_i32 = arith.constant 0 : i32
    %c0_i32_0 = arith.constant 0 : i32
    %c0_i32_1 = arith.constant 0 : i32
    return %c0_i32, %c0_i32_0 : i32, i32
  }
  func.func @transform_1(%arg0: i32) -> (i32, i32) {
    %c0_i32 = arith.constant 0 : i32
    %c0_i32_0 = arith.constant 0 : i32
    %c0_i32_1 = arith.constant 0 : i32
    return %c0_i32, %c0_i32_0 : i32, i32
  }
  func.func @transform_2(%arg0: i32) -> (i32, i32) {
    %c0_i32 = arith.constant 0 : i32
    %c0_i32_0 = arith.constant 0 : i32
    %c0_i32_1 = arith.constant 0 : i32
    return %c0_i32, %c0_i32_0 : i32, i32
  }
  func.func @transform_3(%arg0: i32) -> (i32, i32) {
    %c0_i32 = arith.constant 0 : i32
    %c0_i32_0 = arith.constant 0 : i32
    %c0_i32_1 = arith.constant 0 : i32
    return %c0_i32, %c0_i32_0 : i32, i32
  }
  func.func @transform_4(%arg0: i32) -> (i32, i32) {
    %c0_i32 = arith.constant 0 : i32
    %c0_i32_0 = arith.constant 0 : i32
    %c0_i32_1 = arith.constant 0 : i32
    return %c0_i32, %c0_i32_0 : i32, i32
  }
  func.func @transform_5(%arg0: i32) -> (i32, i32) {
    %c0_i32 = arith.constant 0 : i32
    %c0_i32_0 = arith.constant 0 : i32
    %c0_i32_1 = arith.constant 0 : i32
    return %c0_i32, %c0_i32_0 : i32, i32
  }
  func.func @transform_6(%arg0: i32) -> (i32, i32) {
    %c0_i32 = arith.constant 0 : i32
    %c0_i32_0 = arith.constant 0 : i32
    %c0_i32_1 = arith.constant 0 : i32
    return %c0_i32, %c0_i32_0 : i32, i32
  }
  func.func @transform_7(%arg0: i32) -> (i32, i32) {
    %c0_i32 = arith.constant 0 : i32
    %c0_i32_0 = arith.constant 0 : i32
    %c0_i32_1 = arith.constant 0 : i32
    return %c0_i32, %c0_i32_0 : i32, i32
  }
  func.func @transform_8(%arg0: i32) -> (i32, i32) {
    %c0_i32 = arith.constant 0 : i32
    %c0_i32_0 = arith.constant 0 : i32
    %c0_i32_1 = arith.constant 0 : i32
    return %c0_i32, %c0_i32_0 : i32, i32
  }
  func.func @transform_9(%arg0: i32) -> (i32, i32) {
    %c0_i32 = arith.constant 0 : i32
    %c0_i32_0 = arith.constant 0 : i32
    %c0_i32_1 = arith.constant 0 : i32
    return %c0_i32, %c0_i32_0 : i32, i32
  }
  func.func @transform_10(%arg0: i32) -> (i32, i32) {
    %c0_i32 = arith.constant 0 : i32
    %c0_i32_0 = arith.constant 0 : i32
    %c0_i32_1 = arith.constant 0 : i32
    return %c0_i32, %c0_i32_0 : i32, i32
  }
  func.func @transform_11(%arg0: i32) -> (i32, i32) {
    %c0_i32 = arith.constant 0 : i32
    %c0_i32_0 = arith.constant 0 : i32
    %c0_i32_1 = arith.constant 0 : i32
    return %c0_i32, %c0_i32_0 : i32, i32
  }
  func.func @transform_12(%arg0: i32) -> (i32, i32) {
    %c0_i32 = arith.constant 0 : i32
    %c0_i32_0 = arith.constant 0 : i32
    %c0_i32_1 = arith.constant 0 : i32
    return %c0_i32, %c0_i32_0 : i32, i32
  }
  func.func @transform_13(%arg0: i32) -> (i32, i32) {
    %c0_i32 = arith.constant 0 : i32
    %c0_i32_0 = arith.constant 0 : i32
    %c0_i32_1 = arith.constant 0 : i32
    return %c0_i32, %c0_i32_0 : i32, i32
  }
  func.func @transform_14(%arg0: i32) -> (i32, i32) {
    %c0_i32 = arith.constant 0 : i32
    %c0_i32_0 = arith.constant 0 : i32
    %c0_i32_1 = arith.constant 0 : i32
    return %c0_i32, %c0_i32_0 : i32, i32
  }
  func.func @transform_15(%arg0: i32) -> (i32, i32) {
    %c0_i32 = arith.constant 0 : i32
    %c0_i32_0 = arith.constant 0 : i32
    %c0_i32_1 = arith.constant 0 : i32
    return %c0_i32, %c0_i32_0 : i32, i32
  }
  func.func @transform_16(%arg0: i32) -> (i32, i32) {
    %c0_i32 = arith.constant 0 : i32
    %c0_i32_0 = arith.constant 0 : i32
    %c0_i32_1 = arith.constant 0 : i32
    return %c0_i32, %c0_i32_0 : i32, i32
  }
  func.func @transform_17(%arg0: i32) -> (i32, i32) {
    %c0_i32 = arith.constant 0 : i32
    %c0_i32_0 = arith.constant 0 : i32
    %c0_i32_1 = arith.constant 0 : i32
    return %c0_i32, %c0_i32_0 : i32, i32
  }
  func.func @transform_18(%arg0: i32) -> (i32, i32) {
    %c0_i32 = arith.constant 0 : i32
    %c0_i32_0 = arith.constant 0 : i32
    %c0_i32_1 = arith.constant 0 : i32
    return %c0_i32, %c0_i32_0 : i32, i32
  }
  func.func @transform_19(%arg0: i32) -> (i32, i32) {
    %c0_i32 = arith.constant 0 : i32
    %c0_i32_0 = arith.constant 0 : i32
    %c0_i32_1 = arith.constant 0 : i32
    return %c0_i32, %c0_i32_0 : i32, i32
  }
  func.func @transform_20(%arg0: i32) -> (i32, i32) {
    %c0_i32 = arith.constant 0 : i32
    %c0_i32_0 = arith.constant 0 : i32
    %c0_i32_1 = arith.constant 0 : i32
    return %c0_i32, %c0_i32_0 : i32, i32
  }
  func.func @transform_21(%arg0: i32) -> (i32, i32) {
    %c0_i32 = arith.constant 0 : i32
    %c0_i32_0 = arith.constant 0 : i32
    %c0_i32_1 = arith.constant 0 : i32
    return %c0_i32, %c0_i32_0 : i32, i32
  }
  func.func @transform_22(%arg0: i32) -> (i32, i32) {
    %c0_i32 = arith.constant 0 : i32
    %c0_i32_0 = arith.constant 0 : i32
    %c0_i32_1 = arith.constant 0 : i32
    return %c0_i32, %c0_i32_0 : i32, i32
  }
  func.func @transform_23(%arg0: i32) -> (i32, i32) {
    %c0_i32 = arith.constant 0 : i32
    %c0_i32_0 = arith.constant 0 : i32
    %c0_i32_1 = arith.constant 0 : i32
    return %c0_i32, %c0_i32_0 : i32, i32
  }
  func.func @transform_24(%arg0: i32) -> (i32, i32) {
    %c0_i32 = arith.constant 0 : i32
    %c0_i32_0 = arith.constant 0 : i32
    %c0_i32_1 = arith.constant 0 : i32
    return %c0_i32, %c0_i32_0 : i32, i32
  }
}

module attributes {stable_mosaic.version = 11 : i64} {
  func.func @_dec_layer_kernel(%arg0: i32, %arg1: memref<16x128xf32, #tpu.memory_space<vmem>>, %arg2: memref<20x128xf32, #tpu.memory_space<vmem>>, %arg3: memref<16x16xf32, #tpu.memory_space<vmem>>, %arg4: memref<16x20xf32, #tpu.memory_space<vmem>>, %arg5: memref<128x384xbf16, #tpu.memory_space<vmem>>, %arg6: memref<1x384xf32, #tpu.memory_space<vmem>>, %arg7: memref<128x128xbf16, #tpu.memory_space<vmem>>, %arg8: memref<1x128xf32, #tpu.memory_space<vmem>>, %arg9: memref<1x128xf32, #tpu.memory_space<vmem>>, %arg10: memref<1x128xf32, #tpu.memory_space<vmem>>, %arg11: memref<128x128xbf16, #tpu.memory_space<vmem>>, %arg12: memref<1x128xf32, #tpu.memory_space<vmem>>, %arg13: memref<128x256xbf16, #tpu.memory_space<vmem>>, %arg14: memref<1x256xf32, #tpu.memory_space<vmem>>, %arg15: memref<128x128xbf16, #tpu.memory_space<vmem>>, %arg16: memref<1x128xf32, #tpu.memory_space<vmem>>, %arg17: memref<1x128xf32, #tpu.memory_space<vmem>>, %arg18: memref<1x128xf32, #tpu.memory_space<vmem>>, %arg19: memref<128x128xbf16, #tpu.memory_space<vmem>>, %arg20: memref<1x128xf32, #tpu.memory_space<vmem>>, %arg21: memref<128x128xbf16, #tpu.memory_space<vmem>>, %arg22: memref<1x128xf32, #tpu.memory_space<vmem>>, %arg23: memref<1x128xf32, #tpu.memory_space<vmem>>, %arg24: memref<1x128xf32, #tpu.memory_space<vmem>>, %arg25: memref<16x128xf32, #tpu.memory_space<vmem>>) attributes {dimension_semantics = [#tpu.dimension_semantics<arbitrary>], iteration_bounds = array<i64: 1>, scalar_prefetch = 0 : i64, scratch_operands = 0 : i64, tpu.core_type = #tpu.core_type<tc>, window_params = [{pipeline_mode = #tpu.pipeline_mode<synchronous>, transform_indices = @transform_0, window_bounds = array<i64: 16, 128>}, {pipeline_mode = #tpu.pipeline_mode<synchronous>, transform_indices = @transform_1, window_bounds = array<i64: 20, 128>}, {pipeline_mode = #tpu.pipeline_mode<synchronous>, transform_indices = @transform_2, window_bounds = array<i64: 16, 16>}, {pipeline_mode = #tpu.pipeline_mode<synchronous>, transform_indices = @transform_3, window_bounds = array<i64: 16, 20>}, {pipeline_mode = #tpu.pipeline_mode<synchronous>, transform_indices = @transform_4, window_bounds = array<i64: 128, 384>}, {pipeline_mode = #tpu.pipeline_mode<synchronous>, transform_indices = @transform_5, window_bounds = array<i64: 1, 384>}, {pipeline_mode = #tpu.pipeline_mode<synchronous>, transform_indices = @transform_6, window_bounds = array<i64: 128, 128>}, {pipeline_mode = #tpu.pipeline_mode<synchronous>, transform_indices = @transform_7, window_bounds = array<i64: 1, 128>}, {pipeline_mode = #tpu.pipeline_mode<synchronous>, transform_indices = @transform_8, window_bounds = array<i64: 1, 128>}, {pipeline_mode = #tpu.pipeline_mode<synchronous>, transform_indices = @transform_9, window_bounds = array<i64: 1, 128>}, {pipeline_mode = #tpu.pipeline_mode<synchronous>, transform_indices = @transform_10, window_bounds = array<i64: 128, 128>}, {pipeline_mode = #tpu.pipeline_mode<synchronous>, transform_indices = @transform_11, window_bounds = array<i64: 1, 128>}, {pipeline_mode = #tpu.pipeline_mode<synchronous>, transform_indices = @transform_12, window_bounds = array<i64: 128, 256>}, {pipeline_mode = #tpu.pipeline_mode<synchronous>, transform_indices = @transform_13, window_bounds = array<i64: 1, 256>}, {pipeline_mode = #tpu.pipeline_mode<synchronous>, transform_indices = @transform_14, window_bounds = array<i64: 128, 128>}, {pipeline_mode = #tpu.pipeline_mode<synchronous>, transform_indices = @transform_15, window_bounds = array<i64: 1, 128>}, {pipeline_mode = #tpu.pipeline_mode<synchronous>, transform_indices = @transform_16, window_bounds = array<i64: 1, 128>}, {pipeline_mode = #tpu.pipeline_mode<synchronous>, transform_indices = @transform_17, window_bounds = array<i64: 1, 128>}, {pipeline_mode = #tpu.pipeline_mode<synchronous>, transform_indices = @transform_18, window_bounds = array<i64: 128, 128>}, {pipeline_mode = #tpu.pipeline_mode<synchronous>, transform_indices = @transform_19, window_bounds = array<i64: 1, 128>}, {pipeline_mode = #tpu.pipeline_mode<synchronous>, transform_indices = @transform_20, window_bounds = array<i64: 128, 128>}, {pipeline_mode = #tpu.pipeline_mode<synchronous>, transform_indices = @transform_21, window_bounds = array<i64: 1, 128>}, {pipeline_mode = #tpu.pipeline_mode<synchronous>, transform_indices = @transform_22, window_bounds = array<i64: 1, 128>}, {pipeline_mode = #tpu.pipeline_mode<synchronous>, transform_indices = @transform_23, window_bounds = array<i64: 1, 128>}, {pipeline_mode = #tpu.pipeline_mode<synchronous>, transform_indices = @transform_24, window_bounds = array<i64: 16, 128>}]} {
    %c0 = arith.constant 0 : index
    %c0_0 = arith.constant 0 : index
    %0 = vector.load %arg1[%c0, %c0_0] : memref<16x128xf32, #tpu.memory_space<vmem>>, vector<16x128xf32>
    %c0_1 = arith.constant 0 : index
    %c0_2 = arith.constant 0 : index
    %1 = vector.load %arg2[%c0_1, %c0_2] : memref<20x128xf32, #tpu.memory_space<vmem>>, vector<20x128xf32>
    %c0_3 = arith.constant 0 : index
    %c0_4 = arith.constant 0 : index
    %2 = vector.load %arg5[%c0_3, %c0_4] : memref<128x384xbf16, #tpu.memory_space<vmem>>, vector<128x384xbf16>
    %c0_5 = arith.constant 0 : index
    %c0_6 = arith.constant 0 : index
    %3 = vector.load %arg6[%c0_5, %c0_6] : memref<1x384xf32, #tpu.memory_space<vmem>>, vector<1x384xf32>
    %4 = arith.truncf %0 : vector<16x128xf32> to vector<16x128xbf16>
    %cst = arith.constant dense<0.000000e+00> : vector<16x384xf32>
    %5 = tpu.matmul %4, %2, %cst {dimension_numbers = #tpu.dot_dimension_numbers<[1], [0], [0], [1], [0, 0, 1, 1], [], []>} : vector<16x128xbf16>, vector<128x384xbf16>, vector<16x384xf32> -> vector<16x384xf32>
    %6 = vector.broadcast %3 : vector<1x384xf32> to vector<16x384xf32>
    %7 = arith.addf %5, %6 : vector<16x384xf32>
    %8 = vector.extract_strided_slice %7 {offsets = [0, 0], sizes = [16, 128], strides = [1, 1]} : vector<16x384xf32> to vector<16x128xf32>
    %cst_7 = arith.constant 0.176776692 : f32
    %9 = vector.broadcast %cst_7 : f32 to vector<16x128xf32>
    %10 = arith.mulf %8, %9 : vector<16x128xf32>
    %11 = vector.extract_strided_slice %7 {offsets = [0, 128], sizes = [16, 128], strides = [1, 1]} : vector<16x384xf32> to vector<16x128xf32>
    %12 = vector.extract_strided_slice %7 {offsets = [0, 256], sizes = [16, 128], strides = [1, 1]} : vector<16x384xf32> to vector<16x128xf32>
    %c0_8 = arith.constant 0 : index
    %c0_9 = arith.constant 0 : index
    %13 = vector.load %arg3[%c0_8, %c0_9] : memref<16x16xf32, #tpu.memory_space<vmem>>, vector<16x16xf32>
    %c0_10 = arith.constant 0 : index
    %c0_11 = arith.constant 0 : index
    %14 = vector.load %arg7[%c0_10, %c0_11] : memref<128x128xbf16, #tpu.memory_space<vmem>>, vector<128x128xbf16>
    %c0_12 = arith.constant 0 : index
    %c0_13 = arith.constant 0 : index
    %15 = vector.load %arg8[%c0_12, %c0_13] : memref<1x128xf32, #tpu.memory_space<vmem>>, vector<1x128xf32>
    %16 = vector.extract_strided_slice %10 {offsets = [0, 0], sizes = [16, 32], strides = [1, 1]} : vector<16x128xf32> to vector<16x32xf32>
    %17 = arith.truncf %16 : vector<16x32xf32> to vector<16x32xbf16>
    %18 = vector.extract_strided_slice %11 {offsets = [0, 0], sizes = [16, 32], strides = [1, 1]} : vector<16x128xf32> to vector<16x32xf32>
    %19 = arith.truncf %18 : vector<16x32xf32> to vector<16x32xbf16>
    %20 = vector.extract_strided_slice %12 {offsets = [0, 0], sizes = [16, 32], strides = [1, 1]} : vector<16x128xf32> to vector<16x32xf32>
    %21 = arith.truncf %20 : vector<16x32xf32> to vector<16x32xbf16>
    %cst_14 = arith.constant dense<0.000000e+00> : vector<16x16xf32>
    %22 = tpu.matmul %17, %19, %cst_14 {dimension_numbers = #tpu.dot_dimension_numbers<[1], [1], [0], [0], [0, 0, 1, 0], [], []>} : vector<16x32xbf16>, vector<16x32xbf16>, vector<16x16xf32> -> vector<16x16xf32>
    %23 = arith.addf %22, %13 : vector<16x16xf32>
    %cst_15 = arith.constant dense<0xFF800000> : vector<16xf32>
    %24 = vector.multi_reduction <maximumf>, %23, %cst_15 [1] : vector<16x16xf32> to vector<16xf32>
    %25 = vector.shape_cast %24 : vector<16xf32> to vector<16x1xf32>
    %26 = vector.broadcast %25 : vector<16x1xf32> to vector<16x16xf32>
    %27 = arith.subf %23, %26 : vector<16x16xf32>
    %28 = math.exp %27 : vector<16x16xf32>
    %cst_16 = arith.constant dense<0.000000e+00> : vector<16xf32>
    %29 = vector.multi_reduction <add>, %28, %cst_16 [1] : vector<16x16xf32> to vector<16xf32>
    %30 = vector.shape_cast %29 : vector<16xf32> to vector<16x1xf32>
    %31 = tpu.reciprocal %30 {approx = true} : vector<16x1xf32> -> vector<16x1xf32>
    %32 = vector.broadcast %31 : vector<16x1xf32> to vector<16x16xf32>
    %33 = arith.mulf %28, %32 : vector<16x16xf32>
    %34 = arith.truncf %33 : vector<16x16xf32> to vector<16x16xbf16>
    %cst_17 = arith.constant dense<0.000000e+00> : vector<16x32xf32>
    %35 = tpu.matmul %34, %21, %cst_17 {dimension_numbers = #tpu.dot_dimension_numbers<[1], [0], [0], [1], [0, 0, 1, 1], [], []>} : vector<16x16xbf16>, vector<16x32xbf16>, vector<16x32xf32> -> vector<16x32xf32>
    %36 = vector.extract_strided_slice %10 {offsets = [0, 32], sizes = [16, 32], strides = [1, 1]} : vector<16x128xf32> to vector<16x32xf32>
    %37 = arith.truncf %36 : vector<16x32xf32> to vector<16x32xbf16>
    %38 = vector.extract_strided_slice %11 {offsets = [0, 32], sizes = [16, 32], strides = [1, 1]} : vector<16x128xf32> to vector<16x32xf32>
    %39 = arith.truncf %38 : vector<16x32xf32> to vector<16x32xbf16>
    %40 = vector.extract_strided_slice %12 {offsets = [0, 32], sizes = [16, 32], strides = [1, 1]} : vector<16x128xf32> to vector<16x32xf32>
    %41 = arith.truncf %40 : vector<16x32xf32> to vector<16x32xbf16>
    %cst_18 = arith.constant dense<0.000000e+00> : vector<16x16xf32>
    %42 = tpu.matmul %37, %39, %cst_18 {dimension_numbers = #tpu.dot_dimension_numbers<[1], [1], [0], [0], [0, 0, 1, 0], [], []>} : vector<16x32xbf16>, vector<16x32xbf16>, vector<16x16xf32> -> vector<16x16xf32>
    %43 = arith.addf %42, %13 : vector<16x16xf32>
    %cst_19 = arith.constant dense<0xFF800000> : vector<16xf32>
    %44 = vector.multi_reduction <maximumf>, %43, %cst_19 [1] : vector<16x16xf32> to vector<16xf32>
    %45 = vector.shape_cast %44 : vector<16xf32> to vector<16x1xf32>
    %46 = vector.broadcast %45 : vector<16x1xf32> to vector<16x16xf32>
    %47 = arith.subf %43, %46 : vector<16x16xf32>
    %48 = math.exp %47 : vector<16x16xf32>
    %cst_20 = arith.constant dense<0.000000e+00> : vector<16xf32>
    %49 = vector.multi_reduction <add>, %48, %cst_20 [1] : vector<16x16xf32> to vector<16xf32>
    %50 = vector.shape_cast %49 : vector<16xf32> to vector<16x1xf32>
    %51 = tpu.reciprocal %50 {approx = true} : vector<16x1xf32> -> vector<16x1xf32>
    %52 = vector.broadcast %51 : vector<16x1xf32> to vector<16x16xf32>
    %53 = arith.mulf %48, %52 : vector<16x16xf32>
    %54 = arith.truncf %53 : vector<16x16xf32> to vector<16x16xbf16>
    %cst_21 = arith.constant dense<0.000000e+00> : vector<16x32xf32>
    %55 = tpu.matmul %54, %41, %cst_21 {dimension_numbers = #tpu.dot_dimension_numbers<[1], [0], [0], [1], [0, 0, 1, 1], [], []>} : vector<16x16xbf16>, vector<16x32xbf16>, vector<16x32xf32> -> vector<16x32xf32>
    %56 = vector.extract_strided_slice %10 {offsets = [0, 64], sizes = [16, 32], strides = [1, 1]} : vector<16x128xf32> to vector<16x32xf32>
    %57 = arith.truncf %56 : vector<16x32xf32> to vector<16x32xbf16>
    %58 = vector.extract_strided_slice %11 {offsets = [0, 64], sizes = [16, 32], strides = [1, 1]} : vector<16x128xf32> to vector<16x32xf32>
    %59 = arith.truncf %58 : vector<16x32xf32> to vector<16x32xbf16>
    %60 = vector.extract_strided_slice %12 {offsets = [0, 64], sizes = [16, 32], strides = [1, 1]} : vector<16x128xf32> to vector<16x32xf32>
    %61 = arith.truncf %60 : vector<16x32xf32> to vector<16x32xbf16>
    %cst_22 = arith.constant dense<0.000000e+00> : vector<16x16xf32>
    %62 = tpu.matmul %57, %59, %cst_22 {dimension_numbers = #tpu.dot_dimension_numbers<[1], [1], [0], [0], [0, 0, 1, 0], [], []>} : vector<16x32xbf16>, vector<16x32xbf16>, vector<16x16xf32> -> vector<16x16xf32>
    %63 = arith.addf %62, %13 : vector<16x16xf32>
    %cst_23 = arith.constant dense<0xFF800000> : vector<16xf32>
    %64 = vector.multi_reduction <maximumf>, %63, %cst_23 [1] : vector<16x16xf32> to vector<16xf32>
    %65 = vector.shape_cast %64 : vector<16xf32> to vector<16x1xf32>
    %66 = vector.broadcast %65 : vector<16x1xf32> to vector<16x16xf32>
    %67 = arith.subf %63, %66 : vector<16x16xf32>
    %68 = math.exp %67 : vector<16x16xf32>
    %cst_24 = arith.constant dense<0.000000e+00> : vector<16xf32>
    %69 = vector.multi_reduction <add>, %68, %cst_24 [1] : vector<16x16xf32> to vector<16xf32>
    %70 = vector.shape_cast %69 : vector<16xf32> to vector<16x1xf32>
    %71 = tpu.reciprocal %70 {approx = true} : vector<16x1xf32> -> vector<16x1xf32>
    %72 = vector.broadcast %71 : vector<16x1xf32> to vector<16x16xf32>
    %73 = arith.mulf %68, %72 : vector<16x16xf32>
    %74 = arith.truncf %73 : vector<16x16xf32> to vector<16x16xbf16>
    %cst_25 = arith.constant dense<0.000000e+00> : vector<16x32xf32>
    %75 = tpu.matmul %74, %61, %cst_25 {dimension_numbers = #tpu.dot_dimension_numbers<[1], [0], [0], [1], [0, 0, 1, 1], [], []>} : vector<16x16xbf16>, vector<16x32xbf16>, vector<16x32xf32> -> vector<16x32xf32>
    %76 = vector.extract_strided_slice %10 {offsets = [0, 96], sizes = [16, 32], strides = [1, 1]} : vector<16x128xf32> to vector<16x32xf32>
    %77 = arith.truncf %76 : vector<16x32xf32> to vector<16x32xbf16>
    %78 = vector.extract_strided_slice %11 {offsets = [0, 96], sizes = [16, 32], strides = [1, 1]} : vector<16x128xf32> to vector<16x32xf32>
    %79 = arith.truncf %78 : vector<16x32xf32> to vector<16x32xbf16>
    %80 = vector.extract_strided_slice %12 {offsets = [0, 96], sizes = [16, 32], strides = [1, 1]} : vector<16x128xf32> to vector<16x32xf32>
    %81 = arith.truncf %80 : vector<16x32xf32> to vector<16x32xbf16>
    %cst_26 = arith.constant dense<0.000000e+00> : vector<16x16xf32>
    %82 = tpu.matmul %77, %79, %cst_26 {dimension_numbers = #tpu.dot_dimension_numbers<[1], [1], [0], [0], [0, 0, 1, 0], [], []>} : vector<16x32xbf16>, vector<16x32xbf16>, vector<16x16xf32> -> vector<16x16xf32>
    %83 = arith.addf %82, %13 : vector<16x16xf32>
    %cst_27 = arith.constant dense<0xFF800000> : vector<16xf32>
    %84 = vector.multi_reduction <maximumf>, %83, %cst_27 [1] : vector<16x16xf32> to vector<16xf32>
    %85 = vector.shape_cast %84 : vector<16xf32> to vector<16x1xf32>
    %86 = vector.broadcast %85 : vector<16x1xf32> to vector<16x16xf32>
    %87 = arith.subf %83, %86 : vector<16x16xf32>
    %88 = math.exp %87 : vector<16x16xf32>
    %cst_28 = arith.constant dense<0.000000e+00> : vector<16xf32>
    %89 = vector.multi_reduction <add>, %88, %cst_28 [1] : vector<16x16xf32> to vector<16xf32>
    %90 = vector.shape_cast %89 : vector<16xf32> to vector<16x1xf32>
    %91 = tpu.reciprocal %90 {approx = true} : vector<16x1xf32> -> vector<16x1xf32>
    %92 = vector.broadcast %91 : vector<16x1xf32> to vector<16x16xf32>
    %93 = arith.mulf %88, %92 : vector<16x16xf32>
    %94 = arith.truncf %93 : vector<16x16xf32> to vector<16x16xbf16>
    %cst_29 = arith.constant dense<0.000000e+00> : vector<16x32xf32>
    %95 = tpu.matmul %94, %81, %cst_29 {dimension_numbers = #tpu.dot_dimension_numbers<[1], [0], [0], [1], [0, 0, 1, 1], [], []>} : vector<16x16xbf16>, vector<16x32xbf16>, vector<16x32xf32> -> vector<16x32xf32>
    %96 = tpu.concatenate %35, %55, %75, %95 in 1 : vector<16x32xf32>, vector<16x32xf32>, vector<16x32xf32>, vector<16x32xf32> -> vector<16x128xf32>
    %97 = arith.truncf %96 : vector<16x128xf32> to vector<16x128xbf16>
    %cst_30 = arith.constant dense<0.000000e+00> : vector<16x128xf32>
    %98 = tpu.matmul %97, %14, %cst_30 {dimension_numbers = #tpu.dot_dimension_numbers<[1], [0], [0], [1], [0, 0, 1, 1], [], []>} : vector<16x128xbf16>, vector<128x128xbf16>, vector<16x128xf32> -> vector<16x128xf32>
    %99 = vector.broadcast %15 : vector<1x128xf32> to vector<16x128xf32>
    %100 = arith.addf %98, %99 : vector<16x128xf32>
    %101 = arith.addf %0, %100 : vector<16x128xf32>
    %c0_31 = arith.constant 0 : index
    %c0_32 = arith.constant 0 : index
    %102 = vector.load %arg9[%c0_31, %c0_32] : memref<1x128xf32, #tpu.memory_space<vmem>>, vector<1x128xf32>
    %c0_33 = arith.constant 0 : index
    %c0_34 = arith.constant 0 : index
    %103 = vector.load %arg10[%c0_33, %c0_34] : memref<1x128xf32, #tpu.memory_space<vmem>>, vector<1x128xf32>
    %cst_35 = arith.constant dense<0.000000e+00> : vector<16xf32>
    %104 = vector.multi_reduction <add>, %101, %cst_35 [1] : vector<16x128xf32> to vector<16xf32>
    %105 = vector.shape_cast %104 : vector<16xf32> to vector<16x1xf32>
    %cst_36 = arith.constant 1.280000e+02 : f32
    %106 = vector.broadcast %cst_36 : f32 to vector<16x1xf32>
    %107 = arith.divf %105, %106 : vector<16x1xf32>
    %108 = vector.broadcast %107 : vector<16x1xf32> to vector<16x128xf32>
    %109 = arith.subf %101, %108 : vector<16x128xf32>
    %110 = arith.mulf %109, %109 : vector<16x128xf32>
    %cst_37 = arith.constant dense<0.000000e+00> : vector<16xf32>
    %111 = vector.multi_reduction <add>, %110, %cst_37 [1] : vector<16x128xf32> to vector<16xf32>
    %112 = vector.shape_cast %111 : vector<16xf32> to vector<16x1xf32>
    %cst_38 = arith.constant 1.280000e+02 : f32
    %113 = vector.broadcast %cst_38 : f32 to vector<16x1xf32>
    %114 = arith.divf %112, %113 : vector<16x1xf32>
    %cst_39 = arith.constant 9.99999974E-6 : f32
    %115 = vector.broadcast %cst_39 : f32 to vector<16x1xf32>
    %116 = arith.addf %114, %115 : vector<16x1xf32>
    %117 = math.rsqrt %116 : vector<16x1xf32>
    %118 = vector.broadcast %117 : vector<16x1xf32> to vector<16x128xf32>
    %119 = arith.mulf %109, %118 : vector<16x128xf32>
    %120 = vector.broadcast %102 : vector<1x128xf32> to vector<16x128xf32>
    %121 = arith.mulf %119, %120 : vector<16x128xf32>
    %122 = vector.broadcast %103 : vector<1x128xf32> to vector<16x128xf32>
    %123 = arith.addf %121, %122 : vector<16x128xf32>
    %c0_40 = arith.constant 0 : index
    %c0_41 = arith.constant 0 : index
    %124 = vector.load %arg11[%c0_40, %c0_41] : memref<128x128xbf16, #tpu.memory_space<vmem>>, vector<128x128xbf16>
    %c0_42 = arith.constant 0 : index
    %c0_43 = arith.constant 0 : index
    %125 = vector.load %arg12[%c0_42, %c0_43] : memref<1x128xf32, #tpu.memory_space<vmem>>, vector<1x128xf32>
    %126 = arith.truncf %123 : vector<16x128xf32> to vector<16x128xbf16>
    %cst_44 = arith.constant dense<0.000000e+00> : vector<16x128xf32>
    %127 = tpu.matmul %126, %124, %cst_44 {dimension_numbers = #tpu.dot_dimension_numbers<[1], [0], [0], [1], [0, 0, 1, 1], [], []>} : vector<16x128xbf16>, vector<128x128xbf16>, vector<16x128xf32> -> vector<16x128xf32>
    %128 = vector.broadcast %125 : vector<1x128xf32> to vector<16x128xf32>
    %129 = arith.addf %127, %128 : vector<16x128xf32>
    %cst_45 = arith.constant 0.176776692 : f32
    %130 = vector.broadcast %cst_45 : f32 to vector<16x128xf32>
    %131 = arith.mulf %129, %130 : vector<16x128xf32>
    %c0_46 = arith.constant 0 : index
    %c0_47 = arith.constant 0 : index
    %132 = vector.load %arg13[%c0_46, %c0_47] : memref<128x256xbf16, #tpu.memory_space<vmem>>, vector<128x256xbf16>
    %c0_48 = arith.constant 0 : index
    %c0_49 = arith.constant 0 : index
    %133 = vector.load %arg14[%c0_48, %c0_49] : memref<1x256xf32, #tpu.memory_space<vmem>>, vector<1x256xf32>
    %134 = arith.truncf %1 : vector<20x128xf32> to vector<20x128xbf16>
    %cst_50 = arith.constant dense<0.000000e+00> : vector<20x256xf32>
    %135 = tpu.matmul %134, %132, %cst_50 {dimension_numbers = #tpu.dot_dimension_numbers<[1], [0], [0], [1], [0, 0, 1, 1], [], []>} : vector<20x128xbf16>, vector<128x256xbf16>, vector<20x256xf32> -> vector<20x256xf32>
    %136 = vector.broadcast %133 : vector<1x256xf32> to vector<20x256xf32>
    %137 = arith.addf %135, %136 : vector<20x256xf32>
    %138 = vector.extract_strided_slice %137 {offsets = [0, 0], sizes = [20, 128], strides = [1, 1]} : vector<20x256xf32> to vector<20x128xf32>
    %139 = vector.extract_strided_slice %137 {offsets = [0, 128], sizes = [20, 128], strides = [1, 1]} : vector<20x256xf32> to vector<20x128xf32>
    %c0_51 = arith.constant 0 : index
    %c0_52 = arith.constant 0 : index
    %140 = vector.load %arg4[%c0_51, %c0_52] : memref<16x20xf32, #tpu.memory_space<vmem>>, vector<16x20xf32>
    %c0_53 = arith.constant 0 : index
    %c0_54 = arith.constant 0 : index
    %141 = vector.load %arg15[%c0_53, %c0_54] : memref<128x128xbf16, #tpu.memory_space<vmem>>, vector<128x128xbf16>
    %c0_55 = arith.constant 0 : index
    %c0_56 = arith.constant 0 : index
    %142 = vector.load %arg16[%c0_55, %c0_56] : memref<1x128xf32, #tpu.memory_space<vmem>>, vector<1x128xf32>
    %143 = vector.extract_strided_slice %131 {offsets = [0, 0], sizes = [16, 32], strides = [1, 1]} : vector<16x128xf32> to vector<16x32xf32>
    %144 = arith.truncf %143 : vector<16x32xf32> to vector<16x32xbf16>
    %145 = vector.extract_strided_slice %138 {offsets = [0, 0], sizes = [20, 32], strides = [1, 1]} : vector<20x128xf32> to vector<20x32xf32>
    %146 = arith.truncf %145 : vector<20x32xf32> to vector<20x32xbf16>
    %147 = vector.extract_strided_slice %139 {offsets = [0, 0], sizes = [20, 32], strides = [1, 1]} : vector<20x128xf32> to vector<20x32xf32>
    %148 = arith.truncf %147 : vector<20x32xf32> to vector<20x32xbf16>
    %cst_57 = arith.constant dense<0.000000e+00> : vector<16x20xf32>
    %149 = tpu.matmul %144, %146, %cst_57 {dimension_numbers = #tpu.dot_dimension_numbers<[1], [1], [0], [0], [0, 0, 1, 0], [], []>} : vector<16x32xbf16>, vector<20x32xbf16>, vector<16x20xf32> -> vector<16x20xf32>
    %150 = arith.addf %149, %140 : vector<16x20xf32>
    %cst_58 = arith.constant dense<0xFF800000> : vector<16xf32>
    %151 = vector.multi_reduction <maximumf>, %150, %cst_58 [1] : vector<16x20xf32> to vector<16xf32>
    %152 = vector.shape_cast %151 : vector<16xf32> to vector<16x1xf32>
    %153 = vector.broadcast %152 : vector<16x1xf32> to vector<16x20xf32>
    %154 = arith.subf %150, %153 : vector<16x20xf32>
    %155 = math.exp %154 : vector<16x20xf32>
    %cst_59 = arith.constant dense<0.000000e+00> : vector<16xf32>
    %156 = vector.multi_reduction <add>, %155, %cst_59 [1] : vector<16x20xf32> to vector<16xf32>
    %157 = vector.shape_cast %156 : vector<16xf32> to vector<16x1xf32>
    %158 = tpu.reciprocal %157 {approx = true} : vector<16x1xf32> -> vector<16x1xf32>
    %159 = vector.broadcast %158 : vector<16x1xf32> to vector<16x20xf32>
    %160 = arith.mulf %155, %159 : vector<16x20xf32>
    %161 = arith.truncf %160 : vector<16x20xf32> to vector<16x20xbf16>
    %cst_60 = arith.constant dense<0.000000e+00> : vector<16x32xf32>
    %162 = tpu.matmul %161, %148, %cst_60 {dimension_numbers = #tpu.dot_dimension_numbers<[1], [0], [0], [1], [0, 0, 1, 1], [], []>} : vector<16x20xbf16>, vector<20x32xbf16>, vector<16x32xf32> -> vector<16x32xf32>
    %163 = vector.extract_strided_slice %131 {offsets = [0, 32], sizes = [16, 32], strides = [1, 1]} : vector<16x128xf32> to vector<16x32xf32>
    %164 = arith.truncf %163 : vector<16x32xf32> to vector<16x32xbf16>
    %165 = vector.extract_strided_slice %138 {offsets = [0, 32], sizes = [20, 32], strides = [1, 1]} : vector<20x128xf32> to vector<20x32xf32>
    %166 = arith.truncf %165 : vector<20x32xf32> to vector<20x32xbf16>
    %167 = vector.extract_strided_slice %139 {offsets = [0, 32], sizes = [20, 32], strides = [1, 1]} : vector<20x128xf32> to vector<20x32xf32>
    %168 = arith.truncf %167 : vector<20x32xf32> to vector<20x32xbf16>
    %cst_61 = arith.constant dense<0.000000e+00> : vector<16x20xf32>
    %169 = tpu.matmul %164, %166, %cst_61 {dimension_numbers = #tpu.dot_dimension_numbers<[1], [1], [0], [0], [0, 0, 1, 0], [], []>} : vector<16x32xbf16>, vector<20x32xbf16>, vector<16x20xf32> -> vector<16x20xf32>
    %170 = arith.addf %169, %140 : vector<16x20xf32>
    %cst_62 = arith.constant dense<0xFF800000> : vector<16xf32>
    %171 = vector.multi_reduction <maximumf>, %170, %cst_62 [1] : vector<16x20xf32> to vector<16xf32>
    %172 = vector.shape_cast %171 : vector<16xf32> to vector<16x1xf32>
    %173 = vector.broadcast %172 : vector<16x1xf32> to vector<16x20xf32>
    %174 = arith.subf %170, %173 : vector<16x20xf32>
    %175 = math.exp %174 : vector<16x20xf32>
    %cst_63 = arith.constant dense<0.000000e+00> : vector<16xf32>
    %176 = vector.multi_reduction <add>, %175, %cst_63 [1] : vector<16x20xf32> to vector<16xf32>
    %177 = vector.shape_cast %176 : vector<16xf32> to vector<16x1xf32>
    %178 = tpu.reciprocal %177 {approx = true} : vector<16x1xf32> -> vector<16x1xf32>
    %179 = vector.broadcast %178 : vector<16x1xf32> to vector<16x20xf32>
    %180 = arith.mulf %175, %179 : vector<16x20xf32>
    %181 = arith.truncf %180 : vector<16x20xf32> to vector<16x20xbf16>
    %cst_64 = arith.constant dense<0.000000e+00> : vector<16x32xf32>
    %182 = tpu.matmul %181, %168, %cst_64 {dimension_numbers = #tpu.dot_dimension_numbers<[1], [0], [0], [1], [0, 0, 1, 1], [], []>} : vector<16x20xbf16>, vector<20x32xbf16>, vector<16x32xf32> -> vector<16x32xf32>
    %183 = vector.extract_strided_slice %131 {offsets = [0, 64], sizes = [16, 32], strides = [1, 1]} : vector<16x128xf32> to vector<16x32xf32>
    %184 = arith.truncf %183 : vector<16x32xf32> to vector<16x32xbf16>
    %185 = vector.extract_strided_slice %138 {offsets = [0, 64], sizes = [20, 32], strides = [1, 1]} : vector<20x128xf32> to vector<20x32xf32>
    %186 = arith.truncf %185 : vector<20x32xf32> to vector<20x32xbf16>
    %187 = vector.extract_strided_slice %139 {offsets = [0, 64], sizes = [20, 32], strides = [1, 1]} : vector<20x128xf32> to vector<20x32xf32>
    %188 = arith.truncf %187 : vector<20x32xf32> to vector<20x32xbf16>
    %cst_65 = arith.constant dense<0.000000e+00> : vector<16x20xf32>
    %189 = tpu.matmul %184, %186, %cst_65 {dimension_numbers = #tpu.dot_dimension_numbers<[1], [1], [0], [0], [0, 0, 1, 0], [], []>} : vector<16x32xbf16>, vector<20x32xbf16>, vector<16x20xf32> -> vector<16x20xf32>
    %190 = arith.addf %189, %140 : vector<16x20xf32>
    %cst_66 = arith.constant dense<0xFF800000> : vector<16xf32>
    %191 = vector.multi_reduction <maximumf>, %190, %cst_66 [1] : vector<16x20xf32> to vector<16xf32>
    %192 = vector.shape_cast %191 : vector<16xf32> to vector<16x1xf32>
    %193 = vector.broadcast %192 : vector<16x1xf32> to vector<16x20xf32>
    %194 = arith.subf %190, %193 : vector<16x20xf32>
    %195 = math.exp %194 : vector<16x20xf32>
    %cst_67 = arith.constant dense<0.000000e+00> : vector<16xf32>
    %196 = vector.multi_reduction <add>, %195, %cst_67 [1] : vector<16x20xf32> to vector<16xf32>
    %197 = vector.shape_cast %196 : vector<16xf32> to vector<16x1xf32>
    %198 = tpu.reciprocal %197 {approx = true} : vector<16x1xf32> -> vector<16x1xf32>
    %199 = vector.broadcast %198 : vector<16x1xf32> to vector<16x20xf32>
    %200 = arith.mulf %195, %199 : vector<16x20xf32>
    %201 = arith.truncf %200 : vector<16x20xf32> to vector<16x20xbf16>
    %cst_68 = arith.constant dense<0.000000e+00> : vector<16x32xf32>
    %202 = tpu.matmul %201, %188, %cst_68 {dimension_numbers = #tpu.dot_dimension_numbers<[1], [0], [0], [1], [0, 0, 1, 1], [], []>} : vector<16x20xbf16>, vector<20x32xbf16>, vector<16x32xf32> -> vector<16x32xf32>
    %203 = vector.extract_strided_slice %131 {offsets = [0, 96], sizes = [16, 32], strides = [1, 1]} : vector<16x128xf32> to vector<16x32xf32>
    %204 = arith.truncf %203 : vector<16x32xf32> to vector<16x32xbf16>
    %205 = vector.extract_strided_slice %138 {offsets = [0, 96], sizes = [20, 32], strides = [1, 1]} : vector<20x128xf32> to vector<20x32xf32>
    %206 = arith.truncf %205 : vector<20x32xf32> to vector<20x32xbf16>
    %207 = vector.extract_strided_slice %139 {offsets = [0, 96], sizes = [20, 32], strides = [1, 1]} : vector<20x128xf32> to vector<20x32xf32>
    %208 = arith.truncf %207 : vector<20x32xf32> to vector<20x32xbf16>
    %cst_69 = arith.constant dense<0.000000e+00> : vector<16x20xf32>
    %209 = tpu.matmul %204, %206, %cst_69 {dimension_numbers = #tpu.dot_dimension_numbers<[1], [1], [0], [0], [0, 0, 1, 0], [], []>} : vector<16x32xbf16>, vector<20x32xbf16>, vector<16x20xf32> -> vector<16x20xf32>
    %210 = arith.addf %209, %140 : vector<16x20xf32>
    %cst_70 = arith.constant dense<0xFF800000> : vector<16xf32>
    %211 = vector.multi_reduction <maximumf>, %210, %cst_70 [1] : vector<16x20xf32> to vector<16xf32>
    %212 = vector.shape_cast %211 : vector<16xf32> to vector<16x1xf32>
    %213 = vector.broadcast %212 : vector<16x1xf32> to vector<16x20xf32>
    %214 = arith.subf %210, %213 : vector<16x20xf32>
    %215 = math.exp %214 : vector<16x20xf32>
    %cst_71 = arith.constant dense<0.000000e+00> : vector<16xf32>
    %216 = vector.multi_reduction <add>, %215, %cst_71 [1] : vector<16x20xf32> to vector<16xf32>
    %217 = vector.shape_cast %216 : vector<16xf32> to vector<16x1xf32>
    %218 = tpu.reciprocal %217 {approx = true} : vector<16x1xf32> -> vector<16x1xf32>
    %219 = vector.broadcast %218 : vector<16x1xf32> to vector<16x20xf32>
    %220 = arith.mulf %215, %219 : vector<16x20xf32>
    %221 = arith.truncf %220 : vector<16x20xf32> to vector<16x20xbf16>
    %cst_72 = arith.constant dense<0.000000e+00> : vector<16x32xf32>
    %222 = tpu.matmul %221, %208, %cst_72 {dimension_numbers = #tpu.dot_dimension_numbers<[1], [0], [0], [1], [0, 0, 1, 1], [], []>} : vector<16x20xbf16>, vector<20x32xbf16>, vector<16x32xf32> -> vector<16x32xf32>
    %223 = tpu.concatenate %162, %182, %202, %222 in 1 : vector<16x32xf32>, vector<16x32xf32>, vector<16x32xf32>, vector<16x32xf32> -> vector<16x128xf32>
    %224 = arith.truncf %223 : vector<16x128xf32> to vector<16x128xbf16>
    %cst_73 = arith.constant dense<0.000000e+00> : vector<16x128xf32>
    %225 = tpu.matmul %224, %141, %cst_73 {dimension_numbers = #tpu.dot_dimension_numbers<[1], [0], [0], [1], [0, 0, 1, 1], [], []>} : vector<16x128xbf16>, vector<128x128xbf16>, vector<16x128xf32> -> vector<16x128xf32>
    %226 = vector.broadcast %142 : vector<1x128xf32> to vector<16x128xf32>
    %227 = arith.addf %225, %226 : vector<16x128xf32>
    %228 = arith.addf %123, %227 : vector<16x128xf32>
    %c0_74 = arith.constant 0 : index
    %c0_75 = arith.constant 0 : index
    %229 = vector.load %arg17[%c0_74, %c0_75] : memref<1x128xf32, #tpu.memory_space<vmem>>, vector<1x128xf32>
    %c0_76 = arith.constant 0 : index
    %c0_77 = arith.constant 0 : index
    %230 = vector.load %arg18[%c0_76, %c0_77] : memref<1x128xf32, #tpu.memory_space<vmem>>, vector<1x128xf32>
    %cst_78 = arith.constant dense<0.000000e+00> : vector<16xf32>
    %231 = vector.multi_reduction <add>, %228, %cst_78 [1] : vector<16x128xf32> to vector<16xf32>
    %232 = vector.shape_cast %231 : vector<16xf32> to vector<16x1xf32>
    %cst_79 = arith.constant 1.280000e+02 : f32
    %233 = vector.broadcast %cst_79 : f32 to vector<16x1xf32>
    %234 = arith.divf %232, %233 : vector<16x1xf32>
    %235 = vector.broadcast %234 : vector<16x1xf32> to vector<16x128xf32>
    %236 = arith.subf %228, %235 : vector<16x128xf32>
    %237 = arith.mulf %236, %236 : vector<16x128xf32>
    %cst_80 = arith.constant dense<0.000000e+00> : vector<16xf32>
    %238 = vector.multi_reduction <add>, %237, %cst_80 [1] : vector<16x128xf32> to vector<16xf32>
    %239 = vector.shape_cast %238 : vector<16xf32> to vector<16x1xf32>
    %cst_81 = arith.constant 1.280000e+02 : f32
    %240 = vector.broadcast %cst_81 : f32 to vector<16x1xf32>
    %241 = arith.divf %239, %240 : vector<16x1xf32>
    %cst_82 = arith.constant 9.99999974E-6 : f32
    %242 = vector.broadcast %cst_82 : f32 to vector<16x1xf32>
    %243 = arith.addf %241, %242 : vector<16x1xf32>
    %244 = math.rsqrt %243 : vector<16x1xf32>
    %245 = vector.broadcast %244 : vector<16x1xf32> to vector<16x128xf32>
    %246 = arith.mulf %236, %245 : vector<16x128xf32>
    %247 = vector.broadcast %229 : vector<1x128xf32> to vector<16x128xf32>
    %248 = arith.mulf %246, %247 : vector<16x128xf32>
    %249 = vector.broadcast %230 : vector<1x128xf32> to vector<16x128xf32>
    %250 = arith.addf %248, %249 : vector<16x128xf32>
    %c0_83 = arith.constant 0 : index
    %c0_84 = arith.constant 0 : index
    %251 = vector.load %arg19[%c0_83, %c0_84] : memref<128x128xbf16, #tpu.memory_space<vmem>>, vector<128x128xbf16>
    %c0_85 = arith.constant 0 : index
    %c0_86 = arith.constant 0 : index
    %252 = vector.load %arg20[%c0_85, %c0_86] : memref<1x128xf32, #tpu.memory_space<vmem>>, vector<1x128xf32>
    %253 = arith.truncf %250 : vector<16x128xf32> to vector<16x128xbf16>
    %cst_87 = arith.constant dense<0.000000e+00> : vector<16x128xf32>
    %254 = tpu.matmul %253, %251, %cst_87 {dimension_numbers = #tpu.dot_dimension_numbers<[1], [0], [0], [1], [0, 0, 1, 1], [], []>} : vector<16x128xbf16>, vector<128x128xbf16>, vector<16x128xf32> -> vector<16x128xf32>
    %255 = vector.broadcast %252 : vector<1x128xf32> to vector<16x128xf32>
    %256 = arith.addf %254, %255 : vector<16x128xf32>
    %cst_88 = arith.constant 0.000000e+00 : f32
    %257 = vector.broadcast %cst_88 : f32 to vector<16x128xf32>
    %258 = arith.maximumf %256, %257 : vector<16x128xf32>
    %c0_89 = arith.constant 0 : index
    %c0_90 = arith.constant 0 : index
    %259 = vector.load %arg21[%c0_89, %c0_90] : memref<128x128xbf16, #tpu.memory_space<vmem>>, vector<128x128xbf16>
    %c0_91 = arith.constant 0 : index
    %c0_92 = arith.constant 0 : index
    %260 = vector.load %arg22[%c0_91, %c0_92] : memref<1x128xf32, #tpu.memory_space<vmem>>, vector<1x128xf32>
    %261 = arith.truncf %258 : vector<16x128xf32> to vector<16x128xbf16>
    %cst_93 = arith.constant dense<0.000000e+00> : vector<16x128xf32>
    %262 = tpu.matmul %261, %259, %cst_93 {dimension_numbers = #tpu.dot_dimension_numbers<[1], [0], [0], [1], [0, 0, 1, 1], [], []>} : vector<16x128xbf16>, vector<128x128xbf16>, vector<16x128xf32> -> vector<16x128xf32>
    %263 = vector.broadcast %260 : vector<1x128xf32> to vector<16x128xf32>
    %264 = arith.addf %262, %263 : vector<16x128xf32>
    %265 = arith.addf %250, %264 : vector<16x128xf32>
    %c0_94 = arith.constant 0 : index
    %c0_95 = arith.constant 0 : index
    %266 = vector.load %arg23[%c0_94, %c0_95] : memref<1x128xf32, #tpu.memory_space<vmem>>, vector<1x128xf32>
    %c0_96 = arith.constant 0 : index
    %c0_97 = arith.constant 0 : index
    %267 = vector.load %arg24[%c0_96, %c0_97] : memref<1x128xf32, #tpu.memory_space<vmem>>, vector<1x128xf32>
    %cst_98 = arith.constant dense<0.000000e+00> : vector<16xf32>
    %268 = vector.multi_reduction <add>, %265, %cst_98 [1] : vector<16x128xf32> to vector<16xf32>
    %269 = vector.shape_cast %268 : vector<16xf32> to vector<16x1xf32>
    %cst_99 = arith.constant 1.280000e+02 : f32
    %270 = vector.broadcast %cst_99 : f32 to vector<16x1xf32>
    %271 = arith.divf %269, %270 : vector<16x1xf32>
    %272 = vector.broadcast %271 : vector<16x1xf32> to vector<16x128xf32>
    %273 = arith.subf %265, %272 : vector<16x128xf32>
    %274 = arith.mulf %273, %273 : vector<16x128xf32>
    %cst_100 = arith.constant dense<0.000000e+00> : vector<16xf32>
    %275 = vector.multi_reduction <add>, %274, %cst_100 [1] : vector<16x128xf32> to vector<16xf32>
    %276 = vector.shape_cast %275 : vector<16xf32> to vector<16x1xf32>
    %cst_101 = arith.constant 1.280000e+02 : f32
    %277 = vector.broadcast %cst_101 : f32 to vector<16x1xf32>
    %278 = arith.divf %276, %277 : vector<16x1xf32>
    %cst_102 = arith.constant 9.99999974E-6 : f32
    %279 = vector.broadcast %cst_102 : f32 to vector<16x1xf32>
    %280 = arith.addf %278, %279 : vector<16x1xf32>
    %281 = math.rsqrt %280 : vector<16x1xf32>
    %282 = vector.broadcast %281 : vector<16x1xf32> to vector<16x128xf32>
    %283 = arith.mulf %273, %282 : vector<16x128xf32>
    %284 = vector.broadcast %266 : vector<1x128xf32> to vector<16x128xf32>
    %285 = arith.mulf %283, %284 : vector<16x128xf32>
    %286 = vector.broadcast %267 : vector<1x128xf32> to vector<16x128xf32>
    %287 = arith.addf %285, %286 : vector<16x128xf32>
    %c0_103 = arith.constant 0 : index
    %c0_104 = arith.constant 0 : index
    %288 = vector.load %arg25[%c0_103, %c0_104] : memref<16x128xf32, #tpu.memory_space<vmem>>, vector<16x128xf32>
    tpu.vector_store %arg25[%c0_103, %c0_104], %287 {strides = array<i32>} : memref<16x128xf32, #tpu.memory_space<vmem>>, vector<16x128xf32>,
    return
  }
  func.func @transform_0(%arg0: i32) -> (i32, i32) {
    %c0_i32 = arith.constant 0 : i32
    %c0_i32_0 = arith.constant 0 : i32
    %c0_i32_1 = arith.constant 0 : i32
    return %c0_i32, %c0_i32_0 : i32, i32
  }
  func.func @transform_1(%arg0: i32) -> (i32, i32) {
    %c0_i32 = arith.constant 0 : i32
    %c0_i32_0 = arith.constant 0 : i32
    %c0_i32_1 = arith.constant 0 : i32
    return %c0_i32, %c0_i32_0 : i32, i32
  }
  func.func @transform_2(%arg0: i32) -> (i32, i32) {
    %c0_i32 = arith.constant 0 : i32
    %c0_i32_0 = arith.constant 0 : i32
    %c0_i32_1 = arith.constant 0 : i32
    return %c0_i32, %c0_i32_0 : i32, i32
  }
  func.func @transform_3(%arg0: i32) -> (i32, i32) {
    %c0_i32 = arith.constant 0 : i32
    %c0_i32_0 = arith.constant 0 : i32
    %c0_i32_1 = arith.constant 0 : i32
    return %c0_i32, %c0_i32_0 : i32, i32
  }
  func.func @transform_4(%arg0: i32) -> (i32, i32) {
    %c0_i32 = arith.constant 0 : i32
    %c0_i32_0 = arith.constant 0 : i32
    %c0_i32_1 = arith.constant 0 : i32
    return %c0_i32, %c0_i32_0 : i32, i32
  }
  func.func @transform_5(%arg0: i32) -> (i32, i32) {
    %c0_i32 = arith.constant 0 : i32
    %c0_i32_0 = arith.constant 0 : i32
    %c0_i32_1 = arith.constant 0 : i32
    return %c0_i32, %c0_i32_0 : i32, i32
  }
  func.func @transform_6(%arg0: i32) -> (i32, i32) {
    %c0_i32 = arith.constant 0 : i32
    %c0_i32_0 = arith.constant 0 : i32
    %c0_i32_1 = arith.constant 0 : i32
    return %c0_i32, %c0_i32_0 : i32, i32
  }
  func.func @transform_7(%arg0: i32) -> (i32, i32) {
    %c0_i32 = arith.constant 0 : i32
    %c0_i32_0 = arith.constant 0 : i32
    %c0_i32_1 = arith.constant 0 : i32
    return %c0_i32, %c0_i32_0 : i32, i32
  }
  func.func @transform_8(%arg0: i32) -> (i32, i32) {
    %c0_i32 = arith.constant 0 : i32
    %c0_i32_0 = arith.constant 0 : i32
    %c0_i32_1 = arith.constant 0 : i32
    return %c0_i32, %c0_i32_0 : i32, i32
  }
  func.func @transform_9(%arg0: i32) -> (i32, i32) {
    %c0_i32 = arith.constant 0 : i32
    %c0_i32_0 = arith.constant 0 : i32
    %c0_i32_1 = arith.constant 0 : i32
    return %c0_i32, %c0_i32_0 : i32, i32
  }
  func.func @transform_10(%arg0: i32) -> (i32, i32) {
    %c0_i32 = arith.constant 0 : i32
    %c0_i32_0 = arith.constant 0 : i32
    %c0_i32_1 = arith.constant 0 : i32
    return %c0_i32, %c0_i32_0 : i32, i32
  }
  func.func @transform_11(%arg0: i32) -> (i32, i32) {
    %c0_i32 = arith.constant 0 : i32
    %c0_i32_0 = arith.constant 0 : i32
    %c0_i32_1 = arith.constant 0 : i32
    return %c0_i32, %c0_i32_0 : i32, i32
  }
  func.func @transform_12(%arg0: i32) -> (i32, i32) {
    %c0_i32 = arith.constant 0 : i32
    %c0_i32_0 = arith.constant 0 : i32
    %c0_i32_1 = arith.constant 0 : i32
    return %c0_i32, %c0_i32_0 : i32, i32
  }
  func.func @transform_13(%arg0: i32) -> (i32, i32) {
    %c0_i32 = arith.constant 0 : i32
    %c0_i32_0 = arith.constant 0 : i32
    %c0_i32_1 = arith.constant 0 : i32
    return %c0_i32, %c0_i32_0 : i32, i32
  }
  func.func @transform_14(%arg0: i32) -> (i32, i32) {
    %c0_i32 = arith.constant 0 : i32
    %c0_i32_0 = arith.constant 0 : i32
    %c0_i32_1 = arith.constant 0 : i32
    return %c0_i32, %c0_i32_0 : i32, i32
  }
  func.func @transform_15(%arg0: i32) -> (i32, i32) {
    %c0_i32 = arith.constant 0 : i32
    %c0_i32_0 = arith.constant 0 : i32
    %c0_i32_1 = arith.constant 0 : i32
    return %c0_i32, %c0_i32_0 : i32, i32
  }
  func.func @transform_16(%arg0: i32) -> (i32, i32) {
    %c0_i32 = arith.constant 0 : i32
    %c0_i32_0 = arith.constant 0 : i32
    %c0_i32_1 = arith.constant 0 : i32
    return %c0_i32, %c0_i32_0 : i32, i32
  }
  func.func @transform_17(%arg0: i32) -> (i32, i32) {
    %c0_i32 = arith.constant 0 : i32
    %c0_i32_0 = arith.constant 0 : i32
    %c0_i32_1 = arith.constant 0 : i32
    return %c0_i32, %c0_i32_0 : i32, i32
  }
  func.func @transform_18(%arg0: i32) -> (i32, i32) {
    %c0_i32 = arith.constant 0 : i32
    %c0_i32_0 = arith.constant 0 : i32
    %c0_i32_1 = arith.constant 0 : i32
    return %c0_i32, %c0_i32_0 : i32, i32
  }
  func.func @transform_19(%arg0: i32) -> (i32, i32) {
    %c0_i32 = arith.constant 0 : i32
    %c0_i32_0 = arith.constant 0 : i32
    %c0_i32_1 = arith.constant 0 : i32
    return %c0_i32, %c0_i32_0 : i32, i32
  }
  func.func @transform_20(%arg0: i32) -> (i32, i32) {
    %c0_i32 = arith.constant 0 : i32
    %c0_i32_0 = arith.constant 0 : i32
    %c0_i32_1 = arith.constant 0 : i32
    return %c0_i32, %c0_i32_0 : i32, i32
  }
  func.func @transform_21(%arg0: i32) -> (i32, i32) {
    %c0_i32 = arith.constant 0 : i32
    %c0_i32_0 = arith.constant 0 : i32
    %c0_i32_1 = arith.constant 0 : i32
    return %c0_i32, %c0_i32_0 : i32, i32
  }
  func.func @transform_22(%arg0: i32) -> (i32, i32) {
    %c0_i32 = arith.constant 0 : i32
    %c0_i32_0 = arith.constant 0 : i32
    %c0_i32_1 = arith.constant 0 : i32
    return %c0_i32, %c0_i32_0 : i32, i32
  }
  func.func @transform_23(%arg0: i32) -> (i32, i32) {
    %c0_i32 = arith.constant 0 : i32
    %c0_i32_0 = arith.constant 0 : i32
    %c0_i32_1 = arith.constant 0 : i32
    return %c0_i32, %c0_i32_0 : i32, i32
  }
  func.func @transform_24(%arg0: i32) -> (i32, i32) {
    %c0_i32 = arith.constant 0 : i32
    %c0_i32_0 = arith.constant 0 : i32
    %c0_i32_1 = arith.constant 0 : i32
    return %c0_i32, %c0_i32_0 : i32, i32
  }
}

module attributes {stable_mosaic.version = 11 : i64} {
  func.func @_head_kernel(%arg0: i32, %arg1: memref<16x128xf32, #tpu.memory_space<vmem>>, %arg2: memref<1x128xf32, #tpu.memory_space<vmem>>, %arg3: memref<1x128xf32, #tpu.memory_space<vmem>>, %arg4: memref<128x128xbf16, #tpu.memory_space<vmem>>, %arg5: memref<1x128xf32, #tpu.memory_space<vmem>>, %arg6: memref<16x128xf32, #tpu.memory_space<vmem>>) attributes {dimension_semantics = [#tpu.dimension_semantics<arbitrary>], iteration_bounds = array<i64: 1>, scalar_prefetch = 0 : i64, scratch_operands = 0 : i64, tpu.core_type = #tpu.core_type<tc>, window_params = [{pipeline_mode = #tpu.pipeline_mode<synchronous>, transform_indices = @transform_0, window_bounds = array<i64: 16, 128>}, {pipeline_mode = #tpu.pipeline_mode<synchronous>, transform_indices = @transform_1, window_bounds = array<i64: 1, 128>}, {pipeline_mode = #tpu.pipeline_mode<synchronous>, transform_indices = @transform_2, window_bounds = array<i64: 1, 128>}, {pipeline_mode = #tpu.pipeline_mode<synchronous>, transform_indices = @transform_3, window_bounds = array<i64: 128, 128>}, {pipeline_mode = #tpu.pipeline_mode<synchronous>, transform_indices = @transform_4, window_bounds = array<i64: 1, 128>}, {pipeline_mode = #tpu.pipeline_mode<synchronous>, transform_indices = @transform_5, window_bounds = array<i64: 16, 128>}]} {
    %c0 = arith.constant 0 : index
    %c0_0 = arith.constant 0 : index
    %0 = vector.load %arg1[%c0, %c0_0] : memref<16x128xf32, #tpu.memory_space<vmem>>, vector<16x128xf32>
    %c0_1 = arith.constant 0 : index
    %c0_2 = arith.constant 0 : index
    %1 = vector.load %arg2[%c0_1, %c0_2] : memref<1x128xf32, #tpu.memory_space<vmem>>, vector<1x128xf32>
    %c0_3 = arith.constant 0 : index
    %c0_4 = arith.constant 0 : index
    %2 = vector.load %arg3[%c0_3, %c0_4] : memref<1x128xf32, #tpu.memory_space<vmem>>, vector<1x128xf32>
    %cst = arith.constant dense<0.000000e+00> : vector<16xf32>
    %3 = vector.multi_reduction <add>, %0, %cst [1] : vector<16x128xf32> to vector<16xf32>
    %4 = vector.shape_cast %3 : vector<16xf32> to vector<16x1xf32>
    %cst_5 = arith.constant 1.280000e+02 : f32
    %5 = vector.broadcast %cst_5 : f32 to vector<16x1xf32>
    %6 = arith.divf %4, %5 : vector<16x1xf32>
    %7 = vector.broadcast %6 : vector<16x1xf32> to vector<16x128xf32>
    %8 = arith.subf %0, %7 : vector<16x128xf32>
    %9 = arith.mulf %8, %8 : vector<16x128xf32>
    %cst_6 = arith.constant dense<0.000000e+00> : vector<16xf32>
    %10 = vector.multi_reduction <add>, %9, %cst_6 [1] : vector<16x128xf32> to vector<16xf32>
    %11 = vector.shape_cast %10 : vector<16xf32> to vector<16x1xf32>
    %cst_7 = arith.constant 1.280000e+02 : f32
    %12 = vector.broadcast %cst_7 : f32 to vector<16x1xf32>
    %13 = arith.divf %11, %12 : vector<16x1xf32>
    %cst_8 = arith.constant 9.99999974E-6 : f32
    %14 = vector.broadcast %cst_8 : f32 to vector<16x1xf32>
    %15 = arith.addf %13, %14 : vector<16x1xf32>
    %16 = math.rsqrt %15 : vector<16x1xf32>
    %17 = vector.broadcast %16 : vector<16x1xf32> to vector<16x128xf32>
    %18 = arith.mulf %8, %17 : vector<16x128xf32>
    %19 = vector.broadcast %1 : vector<1x128xf32> to vector<16x128xf32>
    %20 = arith.mulf %18, %19 : vector<16x128xf32>
    %21 = vector.broadcast %2 : vector<1x128xf32> to vector<16x128xf32>
    %22 = arith.addf %20, %21 : vector<16x128xf32>
    %c0_9 = arith.constant 0 : index
    %c0_10 = arith.constant 0 : index
    %23 = vector.load %arg4[%c0_9, %c0_10] : memref<128x128xbf16, #tpu.memory_space<vmem>>, vector<128x128xbf16>
    %c0_11 = arith.constant 0 : index
    %c0_12 = arith.constant 0 : index
    %24 = vector.load %arg5[%c0_11, %c0_12] : memref<1x128xf32, #tpu.memory_space<vmem>>, vector<1x128xf32>
    %25 = arith.truncf %22 : vector<16x128xf32> to vector<16x128xbf16>
    %cst_13 = arith.constant dense<0.000000e+00> : vector<16x128xf32>
    %26 = tpu.matmul %25, %23, %cst_13 {dimension_numbers = #tpu.dot_dimension_numbers<[1], [0], [0], [1], [0, 0, 1, 1], [], []>} : vector<16x128xbf16>, vector<128x128xbf16>, vector<16x128xf32> -> vector<16x128xf32>
    %27 = vector.broadcast %24 : vector<1x128xf32> to vector<16x128xf32>
    %28 = arith.addf %26, %27 : vector<16x128xf32>
    %c0_14 = arith.constant 0 : index
    %c0_15 = arith.constant 0 : index
    %29 = vector.load %arg6[%c0_14, %c0_15] : memref<16x128xf32, #tpu.memory_space<vmem>>, vector<16x128xf32>
    tpu.vector_store %arg6[%c0_14, %c0_15], %28 {strides = array<i32>} : memref<16x128xf32, #tpu.memory_space<vmem>>, vector<16x128xf32>,
    return
  }
  func.func @transform_0(%arg0: i32) -> (i32, i32) {
    %c0_i32 = arith.constant 0 : i32
    %c0_i32_0 = arith.constant 0 : i32
    %c0_i32_1 = arith.constant 0 : i32
    return %c0_i32, %c0_i32_0 : i32, i32
  }
  func.func @transform_1(%arg0: i32) -> (i32, i32) {
    %c0_i32 = arith.constant 0 : i32
    %c0_i32_0 = arith.constant 0 : i32
    %c0_i32_1 = arith.constant 0 : i32
    return %c0_i32, %c0_i32_0 : i32, i32
  }
  func.func @transform_2(%arg0: i32) -> (i32, i32) {
    %c0_i32 = arith.constant 0 : i32
    %c0_i32_0 = arith.constant 0 : i32
    %c0_i32_1 = arith.constant 0 : i32
    return %c0_i32, %c0_i32_0 : i32, i32
  }
  func.func @transform_3(%arg0: i32) -> (i32, i32) {
    %c0_i32 = arith.constant 0 : i32
    %c0_i32_0 = arith.constant 0 : i32
    %c0_i32_1 = arith.constant 0 : i32
    return %c0_i32, %c0_i32_0 : i32, i32
  }
  func.func @transform_4(%arg0: i32) -> (i32, i32) {
    %c0_i32 = arith.constant 0 : i32
    %c0_i32_0 = arith.constant 0 : i32
    %c0_i32_1 = arith.constant 0 : i32
    return %c0_i32, %c0_i32_0 : i32, i32
  }
  func.func @transform_5(%arg0: i32) -> (i32, i32) {
    %c0_i32 = arith.constant 0 : i32
    %c0_i32_0 = arith.constant 0 : i32
    %c0_i32_1 = arith.constant 0 : i32
    return %c0_i32, %c0_i32_0 : i32, i32
  }
}

</mosaic_0001>

<llo_original>
// kernel: seq2seq_forward.8
$region0: #{seq2seq_forward.8}
  #allocation0 [shape = 'u32[]', space=smem, size = 0x4, offset = 0x4, fixed_abs, tag = 'smem constant byte address 0x4 - core index']
  #allocation1 [shape = 'u32[144,128]{1,0:T(1,128)}', space=vmem, size = 0x12000, scoped, tag = 'internal scratch']
  %s0 = inlined_call_operand.vmem [shape: f32[20,128], index: 0, kind: input, shape index: {}]
  %s1 = inlined_call_operand.vmem [shape: f32[1,128], index: 1, kind: input, shape index: {}]
  %s2 = inlined_call_operand.vmem [shape: f32[1,128], index: 2, kind: input, shape index: {}]
  %s3 = inlined_call_operand.vmem [shape: f32[20,128], index: 3, kind: output, shape index: {}]
  %s4 = sld [smem:[#allocation0]]
  $region22: #{seq2seq_forward.8} parent=0
    _
  %s6 = ssub.s32 1, %s4
  %s7 = scalar_select 0, %s6, %s4
  // Predicated region
  $region2: #{seq2seq_forward.8} parent=0 // pred_check
    _
  $region3: #{seq2seq_forward.8} parent=0 // pred_check_branch
    %9 = sbr.rel (0) target = $region5
  $region4: #{seq2seq_forward.8} parent=0 // pred_region
    _
  $region5: #{seq2seq_forward.8} parent=0 // pred_fallthru
    _
  // Predicated region
  $region6: #{seq2seq_forward.8} parent=0 // pred_check
    _
  $region7: #{seq2seq_forward.8} parent=0 // pred_check_branch
    %11 = sbr.rel (0) target = $region9
  $region8: #{seq2seq_forward.8} parent=0 // pred_region
    _
  $region9: #{seq2seq_forward.8} parent=0 // pred_fallthru
    _
  // Predicated region
  $region10: #{seq2seq_forward.8} parent=0 // pred_check
    _
  $region11: #{seq2seq_forward.8} parent=0 // pred_check_branch
    %13 = sbr.rel (0) target = $region13
  $region12: #{seq2seq_forward.8} parent=0 // pred_region
    _
  $region13: #{seq2seq_forward.8} parent=0 // pred_fallthru
    _
  %v14 = vld [vmem:[%s0] sm:$0xff]
  %v15 = vld [vmem:[%s0 + $0x8] sm:$0xff]
  %v16 = vld [vmem:[%s0 + $0x10] sm:$0xf]
  %v17 = vld [vmem:[%s1] sm:$0x1]
  %v18 = vld [vmem:[%s2] sm:$0x1]
  %19 = vadd.xlane.f32.xlu0 %v14
  %v20 = vpop.xlane.xlu0 %19
  %21 = vadd.xlane.f32.xlu0 %v15
  %v22 = vpop.xlane.xlu0 %21
  %vm23 = vcmask 1043456
  %v24 = vsel %vm23, %v16, 0.0
  %25 = vadd.xlane.f32.xlu0 %v24
  %v26 = vpop.xlane.xlu0 %25
  %v27 = vrcp.pop 128.0
  %v28 = vmul.f32 %v20, %v27
  %v29 = vmul.f32 %v22, %v27
  %v30 = vmul.f32 %v26, %v27
  %v31 = vsub.f32 %v14, %v28
  %v32 = vsub.f32 %v15, %v29
  %v33 = vsub.f32 %v16, %v30
  %v34 = vmul.f32 %v31, %v31
  %v35 = vmul.f32 %v32, %v32
  %v36 = vmul.f32 %v33, %v33
  %37 = vadd.xlane.f32.xlu0 %v34
  %v38 = vpop.xlane.xlu0 %37
  %39 = vadd.xlane.f32.xlu0 %v35
  %v40 = vpop.xlane.xlu0 %39
  %v41 = vsel %vm23, %v36, 0.0
  %42 = vadd.xlane.f32.xlu0 %v41
  %v43 = vpop.xlane.xlu0 %42
  %v44 = vmul.f32 %v38, %v27
  %v45 = vmul.f32 %v40, %v27
  %v46 = vmul.f32 %v43, %v27
  %v47 = vadd.f32 %v44, 1e-05
  %v48 = vadd.f32 %v45, 1e-05
  %v49 = vadd.f32 %v46, 1e-05
  %v50 = vrsqrt.pop %v47
  %v51 = vrsqrt.pop %v48
  %v52 = vrsqrt.pop %v49
  %v53 = vmul.f32 %v31, %v50
  %v54 = vmul.f32 %v32, %v51
  %v55 = vmul.f32 %v33, %v52
  %v57 = vlaneseq
  %v58 = vshrl.u32 %v57, 7
  %v59 = vsub.s32 0, %v58
  %v60 = vrot.slane %v17, %v59
  %v62 = vmul.f32 %v53, %v60
  %v63 = vmul.f32 %v54, %v60
  %v64 = vmul.f32 %v55, %v60
  %v66 = vlaneseq
  %v67 = vshrl.u32 %v66, 7
  %v68 = vsub.s32 0, %v67
  %v69 = vrot.slane %v18, %v68
  %v71 = vadd.f32 %v62, %v69
  %v72 = vadd.f32 %v63, %v69
  %v73 = vadd.f32 %v64, %v69
  %74 = vst [vmem:[%s3] sm:$0xff] %v71
  %75 = vst [vmem:[%s3 + $0x8] sm:$0xff] %v72
  %76 = vst [vmem:[%s3 + $0x10] sm:$0xf] %v73
  // Predicated region
  $region14: #{seq2seq_forward.8} parent=0 // pred_check
    _
  $region15: #{seq2seq_forward.8} parent=0 // pred_check_branch
    %78 = sbr.rel (0) target = $region17
  $region16: #{seq2seq_forward.8} parent=0 // pred_region
    _
  $region17: #{seq2seq_forward.8} parent=0 // pred_fallthru
    _
  // Predicated region
  $region18: #{seq2seq_forward.8} parent=0 // pred_check
    _
  $region19: #{seq2seq_forward.8} parent=0 // pred_check_branch
    %80 = sbr.rel (0) target = $region21
  $region20: #{seq2seq_forward.8} parent=0 // pred_region
    _
  $region21: #{seq2seq_forward.8} parent=0 // pred_fallthru
    _

// kernel: seq2seq_forward.6
$region0: #{seq2seq_forward.6}
  #allocation0 [shape = 'u32[]', space=smem, size = 0x4, offset = 0x4, fixed_abs, tag = 'smem constant byte address 0x4 - core index']
  #allocation1 [shape = 'u32[144,128]{1,0:T(1,128)}', space=vmem, size = 0x12000, scoped, tag = 'internal scratch']
  %s0 = inlined_call_operand.vmem [shape: f32[20,128], index: 0, kind: input, shape index: {}]
  %s1 = inlined_call_operand.vmem [shape: f32[20,20], index: 1, kind: input, shape index: {}]
  %s2 = inlined_call_operand.vmem [shape: bf16[128,384], index: 2, kind: input, shape index: {}]
  %s3 = inlined_call_operand.vmem [shape: f32[1,384], index: 3, kind: input, shape index: {}]
  %s4 = inlined_call_operand.vmem [shape: bf16[128,128], index: 4, kind: input, shape index: {}]
  %s5 = inlined_call_operand.vmem [shape: f32[1,128], index: 5, kind: input, shape index: {}]
  %s6 = inlined_call_operand.vmem [shape: f32[1,128], index: 6, kind: input, shape index: {}]
  %s7 = inlined_call_operand.vmem [shape: f32[1,128], index: 7, kind: input, shape index: {}]
  %s8 = inlined_call_operand.vmem [shape: bf16[128,128], index: 8, kind: input, shape index: {}]
  %s9 = inlined_call_operand.vmem [shape: f32[1,128], index: 9, kind: input, shape index: {}]
  %s10 = inlined_call_operand.vmem [shape: bf16[128,128], index: 10, kind: input, shape index: {}]
  %s11 = inlined_call_operand.vmem [shape: f32[1,128], index: 11, kind: input, shape index: {}]
  %s12 = inlined_call_operand.vmem [shape: f32[1,128], index: 12, kind: input, shape index: {}]
  %s13 = inlined_call_operand.vmem [shape: f32[1,128], index: 13, kind: input, shape index: {}]
  %s14 = inlined_call_operand.vmem [shape: f32[20,128], index: 14, kind: output, shape index: {}]
  %s15 = sld [smem:[#allocation0]]
  $region66: #{seq2seq_forward.6} parent=0
    _
  %s17 = ssub.s32 1, %s15
  %s18 = scalar_select 0, %s17, %s15
  // Predicated region
  $region2: #{seq2seq_forward.6} parent=0 // pred_check
    _
  $region3: #{seq2seq_forward.6} parent=0 // pred_check_branch
    %20 = sbr.rel (0) target = $region5
  $region4: #{seq2seq_forward.6} parent=0 // pred_region
    _
  $region5: #{seq2seq_forward.6} parent=0 // pred_fallthru
    _
  // Predicated region
  $region6: #{seq2seq_forward.6} parent=0 // pred_check
    _
  $region7: #{seq2seq_forward.6} parent=0 // pred_check_branch
    %22 = sbr.rel (0) target = $region9
  $region8: #{seq2seq_forward.6} parent=0 // pred_region
    _
  $region9: #{seq2seq_forward.6} parent=0 // pred_fallthru
    _
  // Predicated region
  $region10: #{seq2seq_forward.6} parent=0 // pred_check
    _
  $region11: #{seq2seq_forward.6} parent=0 // pred_check_branch
    %24 = sbr.rel (0) target = $region13
  $region12: #{seq2seq_forward.6} parent=0 // pred_region
    _
  $region13: #{seq2seq_forward.6} parent=0 // pred_fallthru
    _
  // Predicated region
  $region14: #{seq2seq_forward.6} parent=0 // pred_check
    _
  $region15: #{seq2seq_forward.6} parent=0 // pred_check_branch
    %26 = sbr.rel (0) target = $region17
  $region16: #{seq2seq_forward.6} parent=0 // pred_region
    _
  $region17: #{seq2seq_forward.6} parent=0 // pred_fallthru
    _
  // Predicated region
  $region18: #{seq2seq_forward.6} parent=0 // pred_check
    _
  $region19: #{seq2seq_forward.6} parent=0 // pred_check_branch
    %28 = sbr.rel (0) target = $region21
  $region20: #{seq2seq_forward.6} parent=0 // pred_region
    _
  $region21: #{seq2seq_forward.6} parent=0 // pred_fallthru
    _
  // Predicated region
  $region22: #{seq2seq_forward.6} parent=0 // pred_check
    _
  $region23: #{seq2seq_forward.6} parent=0 // pred_check_branch
    %30 = sbr.rel (0) target = $region25
  $region24: #{seq2seq_forward.6} parent=0 // pred_region
    _
  $region25: #{seq2seq_forward.6} parent=0 // pred_fallthru
    _
  // Predicated region
  $region26: #{seq2seq_forward.6} parent=0 // pred_check
    _
  $region27: #{seq2seq_forward.6} parent=0 // pred_check_branch
    %32 = sbr.rel (0) target = $region29
  $region28: #{seq2seq_forward.6} parent=0 // pred_region
    _
  $region29: #{seq2seq_forward.6} parent=0 // pred_fallthru
    _
  // Predicated region
  $region30: #{seq2seq_forward.6} parent=0 // pred_check
    _
  $region31: #{seq2seq_forward.6} parent=0 // pred_check_branch
    %34 = sbr.rel (0) target = $region33
  $region32: #{seq2seq_forward.6} parent=0 // pred_region
    _
  $region33: #{seq2seq_forward.6} parent=0 // pred_fallthru
    _
  // Predicated region
  $region34: #{seq2seq_forward.6} parent=0 // pred_check
    _
  $region35: #{seq2seq_forward.6} parent=0 // pred_check_branch
    %36 = sbr.rel (0) target = $region37
  $region36: #{seq2seq_forward.6} parent=0 // pred_region
    _
  $region37: #{seq2seq_forward.6} parent=0 // pred_fallthru
    _
  // Predicated region
  $region38: #{seq2seq_forward.6} parent=0 // pred_check
    _
  $region39: #{seq2seq_forward.6} parent=0 // pred_check_branch
    %38 = sbr.rel (0) target = $region41
  $region40: #{seq2seq_forward.6} parent=0 // pred_region
    _
  $region41: #{seq2seq_forward.6} parent=0 // pred_fallthru
    _
  // Predicated region
  $region42: #{seq2seq_forward.6} parent=0 // pred_check
    _
  $region43: #{seq2seq_forward.6} parent=0 // pred_check_branch
    %40 = sbr.rel (0) target = $region45
  $region44: #{seq2seq_forward.6} parent=0 // pred_region
    _
  $region45: #{seq2seq_forward.6} parent=0 // pred_fallthru
    _
  // Predicated region
  $region46: #{seq2seq_forward.6} parent=0 // pred_check
    _
  $region47: #{seq2seq_forward.6} parent=0 // pred_check_branch
    %42 = sbr.rel (0) target = $region49
  $region48: #{seq2seq_forward.6} parent=0 // pred_region
    _
  $region49: #{seq2seq_forward.6} parent=0 // pred_fallthru
    _
  // Predicated region
  $region50: #{seq2seq_forward.6} parent=0 // pred_check
    _
  $region51: #{seq2seq_forward.6} parent=0 // pred_check_branch
    %44 = sbr.rel (0) target = $region53
  $region52: #{seq2seq_forward.6} parent=0 // pred_region
    _
  $region53: #{seq2seq_forward.6} parent=0 // pred_fallthru
    _
  // Predicated region
  $region54: #{seq2seq_forward.6} parent=0 // pred_check
    _
  $region55: #{seq2seq_forward.6} parent=0 // pred_check_branch
    %46 = sbr.rel (0) target = $region57
  $region56: #{seq2seq_forward.6} parent=0 // pred_region
    _
  $region57: #{seq2seq_forward.6} parent=0 // pred_fallthru
    _
  %v48 = vld [vmem:[%s0] sm:$0xff]
  %v49 = vld [vmem:[%s0 + $0x8] sm:$0xff]
  %v50 = vld [vmem:[%s0 + $0x10] sm:$0xf]
  %v51 = vld [vmem:[%s2] sm:$0xff]
  %v52 = vld [vmem:[%s2 + $0x8] sm:$0xf]
  %v53 = vld [vmem:[%s2 + $0xc] sm:$0xff]
  %v54 = vld [vmem:[%s2 + $0x14] sm:$0xf]
  %v55 = vld [vmem:[%s2 + $0x18] sm:$0xff]
  %v56 = vld [vmem:[%s2 + $0x20] sm:$0xf]
  %v57 = vld [vmem:[%s2 + $0x24] sm:$0xff]
  %v58 = vld [vmem:[%s2 + $0x2c] sm:$0xf]
  %v59 = vld [vmem:[%s2 + $0x30] sm:$0xff]
  %v60 = vld [vmem:[%s2 + $0x38] sm:$0xf]
  %v61 = vld [vmem:[%s2 + $0x3c] sm:$0xff]
  %v62 = vld [vmem:[%s2 + $0x44] sm:$0xf]
  %v63 = vld [vmem:[%s2 + $0x48] sm:$0xff]
  %v64 = vld [vmem:[%s2 + $0x50] sm:$0xf]
  %v65 = vld [vmem:[%s2 + $0x54] sm:$0xff]
  %v66 = vld [vmem:[%s2 + $0x5c] sm:$0xf]
  %v67 = vld [vmem:[%s2 + $0x60] sm:$0xff]
  %v68 = vld [vmem:[%s2 + $0x68] sm:$0xf]
  %v69 = vld [vmem:[%s2 + $0x6c] sm:$0xff]
  %v70 = vld [vmem:[%s2 + $0x74] sm:$0xf]
  %v71 = vld [vmem:[%s2 + $0x78] sm:$0xff]
  %v72 = vld [vmem:[%s2 + $0x80] sm:$0xf]
  %v73 = vld [vmem:[%s2 + $0x84] sm:$0xff]
  %v74 = vld [vmem:[%s2 + $0x8c] sm:$0xf]
  %v75 = vld [vmem:[%s2 + $0x90] sm:$0xff]
  %v76 = vld [vmem:[%s2 + $0x98] sm:$0xf]
  %v77 = vld [vmem:[%s2 + $0x9c] sm:$0xff]
  %v78 = vld [vmem:[%s2 + $0xa4] sm:$0xf]
  %v79 = vld [vmem:[%s2 + $0xa8] sm:$0xff]
  %v80 = vld [vmem:[%s2 + $0xb0] sm:$0xf]
  %v81 = vld [vmem:[%s2 + $0xb4] sm:$0xff]
  %v82 = vld [vmem:[%s2 + $0xbc] sm:$0xf]
  %v83 = vld [vmem:[%s3] sm:$0x7]
  %v84 = vpack.c.bf16 %v49, %v48
  %v85 = vpack.c.bf16 %v50, %v50
  %v87 = vlaneseq
  %v88 = vshrl.u32 %v87, 7
  %v89 = vsub.s32 0, %v88
  %v90 = vrot.slane %v83, %v89
  %v91 = vlaneseq
  %v92 = vshrl.u32 %v91, 7
  %v93 = vsub.s32 1, %v92
  %v94 = vrot.slane %v83, %v93
  %v95 = vlaneseq
  %v96 = vshrl.u32 %v95, 7
  %v97 = vsub.s32 2, %v96
  %v98 = vrot.slane %v83, %v97
  %v134 = vunpack.c.l.b16 %v51
  %v135 = vunpack.c.h.b16 %v51
  %v136 = vunpack.c.l.b16 %v52
  %v137 = vunpack.c.l.b16 %v53
  %v138 = vunpack.c.h.b16 %v53
  %v139 = vunpack.c.l.b16 %v54
  %v140 = vunpack.c.l.b16 %v55
  %v141 = vunpack.c.h.b16 %v55
  %v142 = vunpack.c.l.b16 %v56
  %v143 = vunpack.c.l.b16 %v57
  %v144 = vunpack.c.h.b16 %v57
  %v145 = vunpack.c.l.b16 %v58
  %v146 = vunpack.c.l.b16 %v59
  %v147 = vunpack.c.h.b16 %v59
  %v148 = vunpack.c.l.b16 %v60
  %v149 = vunpack.c.l.b16 %v61
  %v150 = vunpack.c.h.b16 %v61
  %v151 = vunpack.c.l.b16 %v62
  %v152 = vunpack.c.l.b16 %v63
  %v153 = vunpack.c.h.b16 %v63
  %v154 = vunpack.c.l.b16 %v64
  %v155 = vunpack.c.l.b16 %v65
  %v156 = vunpack.c.h.b16 %v65
  %v157 = vunpack.c.l.b16 %v66
  %v158 = vunpack.c.l.b16 %v67
  %v159 = vunpack.c.h.b16 %v67
  %v160 = vunpack.c.l.b16 %v68
  %v161 = vunpack.c.l.b16 %v69
  %v162 = vunpack.c.h.b16 %v69
  %v163 = vunpack.c.l.b16 %v70
  %v164 = vunpack.c.l.b16 %v71
  %v165 = vunpack.c.h.b16 %v71
  %v166 = vunpack.c.l.b16 %v72
  %v167 = vunpack.c.l.b16 %v73
  %v168 = vunpack.c.h.b16 %v73
  %v169 = vunpack.c.l.b16 %v74
  %v170 = vunpack.c.l.b16 %v75
  %v171 = vunpack.c.h.b16 %v75
  %v172 = vunpack.c.l.b16 %v76
  %v173 = vunpack.c.l.b16 %v77
  %v174 = vunpack.c.h.b16 %v77
  %v175 = vunpack.c.l.b16 %v78
  %v176 = vunpack.c.l.b16 %v79
  %v177 = vunpack.c.h.b16 %v79
  %v178 = vunpack.c.l.b16 %v80
  %v179 = vunpack.c.l.b16 %v81
  %v180 = vunpack.c.h.b16 %v81
  %v181 = vunpack.c.l.b16 %v82
  %v182 = vpack.c.b16 %v137, %v134
  %v183 = vpack.c.b16 %v138, %v135
  %v184 = vpack.c.b16 %v139, %v136
  %v185 = vpack.c.b16 %v143, %v140
  %v186 = vpack.c.b16 %v144, %v141
  %v187 = vpack.c.b16 %v145, %v142
  %v188 = vpack.c.b16 %v149, %v146
  %v189 = vpack.c.b16 %v150, %v147
  %v190 = vpack.c.b16 %v151, %v148
  %v191 = vpack.c.b16 %v155, %v152
  %v192 = vpack.c.b16 %v156, %v153
  %v193 = vpack.c.b16 %v157, %v154
  %v194 = vpack.c.b16 %v161, %v158
  %v195 = vpack.c.b16 %v162, %v159
  %v196 = vpack.c.b16 %v163, %v160
  %v197 = vpack.c.b16 %v167, %v164
  %v198 = vpack.c.b16 %v168, %v165
  %v199 = vpack.c.b16 %v169, %v166
  %v200 = vpack.c.b16 %v173, %v170
  %v201 = vpack.c.b16 %v174, %v171
  %v202 = vpack.c.b16 %v175, %v172
  %v203 = vpack.c.b16 %v179, %v176
  %v204 = vpack.c.b16 %v180, %v177
  %v205 = vpack.c.b16 %v181, %v178
  %230 = vmatprep.subr.bf16.mxu0 %v183
  %231 = vmatpush1.bf16.msra.mxu0 %v182
  %232 = vmatprep.subr.bf16.mxu0 %v186
  %233 = vmatpush1.bf16.msra.mxu0 %v185
  %234 = vmatprep.subr.bf16.mxu0 %v189
  %235 = vmatpush1.bf16.msra.mxu0 %v188
  %236 = vmatprep.subr.bf16.mxu0 %v192
  %237 = vmatpush1.bf16.msra.mxu0 %v191
  %238 = vmatprep.subr.bf16.mxu0 %v195
  %239 = vmatpush1.bf16.msra.mxu0 %v194
  %240 = vmatprep.subr.bf16.mxu0 %v198
  %241 = vmatpush1.bf16.msra.mxu0 %v197
  %242 = vmatprep.subr.bf16.mxu0 %v201
  %243 = vmatpush1.bf16.msra.mxu0 %v200
  %244 = vmatprep.subr.bf16.mxu0 %v204
  %245 = vmatpush1.bf16.msra.mxu0 %v203
  %246 = vmatprep.subr.bf16.mxu0 0
  %247 = vmatpush1.bf16.msra.mxu0 0
  %248 = vmatprep.subr.bf16.mxu0 0
  %249 = vmatpush1.bf16.msra.mxu0 0
  %250 = vmatprep.subr.bf16.mxu0 0
  %251 = vmatpush1.bf16.msra.mxu0 0
  %252 = vmatprep.subr.bf16.mxu0 0
  %253 = vmatpush1.bf16.msra.mxu0 0
  %254 = vmatprep.subr.bf16.mxu0 0
  %255 = vmatpush1.bf16.msra.mxu0 0
  %256 = vmatprep.subr.bf16.mxu0 0
  %257 = vmatpush1.bf16.msra.mxu0 0
  %258 = vmatprep.subr.bf16.mxu0 0
  %259 = vmatpush1.bf16.msra.mxu0 0
  %260 = vmatprep.subr.bf16.mxu0 0
  %261 = vmatpush1.bf16.msra.mxu0 0
  %262 = vmatprep.mubr.bf16.mxu0 0
  %263 = vmatmul.mubr.bf16.gmra.mrb[0].mxu0 %v84
  %v264 = vpop.f32.mrb[0].mxu0
  %v265 = vadd.f32 %v90, %v264
  %v266 = vpop.f32.mrb[0].mxu0
  %v267 = vadd.f32 %v94, %v266
  %v268 = vpop.f32.mrb[0].mxu0
  %v269 = vadd.f32 %v90, %v268
  %v270 = vpop.f32.mrb[0].mxu0
  %v271 = vadd.f32 %v94, %v270
  %272 = vmatprep.mubr.bf16.mxu0 0
  %273 = vmatmul.mubr.bf16.gmra.mrb[0].mxu0 %v85
  %v274 = vpop.f32.mrb[0].mxu0
  %v275 = vadd.f32 %v90, %v274
  %v276 = vpop.f32.mrb[0].mxu0
  %v277 = vadd.f32 %v94, %v276
  %v278 = vpop.f32.mrb[0].mxu0
  %v279 = vpop.f32.mrb[0].mxu0
  %280 = vdwg.mxu0
  %281 = vmatprep.subr.bf16.mxu0 0
  %282 = vmatpush1.bf16.msra.mxu0 %v184
  %283 = vmatprep.subr.bf16.mxu0 0
  %284 = vmatpush1.bf16.msra.mxu0 %v187
  %285 = vmatprep.subr.bf16.mxu0 0
  %286 = vmatpush1.bf16.msra.mxu0 %v190
  %287 = vmatprep.subr.bf16.mxu0 0
  %288 = vmatpush1.bf16.msra.mxu0 %v193
  %289 = vmatprep.subr.bf16.mxu0 0
  %290 = vmatpush1.bf16.msra.mxu0 %v196
  %291 = vmatprep.subr.bf16.mxu0 0
  %292 = vmatpush1.bf16.msra.mxu0 %v199
  %293 = vmatprep.subr.bf16.mxu0 0
  %294 = vmatpush1.bf16.msra.mxu0 %v202
  %295 = vmatprep.subr.bf16.mxu0 0
  %296 = vmatpush1.bf16.msra.mxu0 %v205
  %297 = vmatprep.subr.bf16.mxu0 0
  %298 = vmatpush1.bf16.msra.mxu0 0
  %299 = vmatprep.subr.bf16.mxu0 0
  %300 = vmatpush1.bf16.msra.mxu0 0
  %301 = vmatprep.subr.bf16.mxu0 0
  %302 = vmatpush1.bf16.msra.mxu0 0
  %303 = vmatprep.subr.bf16.mxu0 0
  %304 = vmatpush1.bf16.msra.mxu0 0
  %305 = vmatprep.subr.bf16.mxu0 0
  %306 = vmatpush1.bf16.msra.mxu0 0
  %307 = vmatprep.subr.bf16.mxu0 0
  %308 = vmatpush1.bf16.msra.mxu0 0
  %309 = vmatprep.subr.bf16.mxu0 0
  %310 = vmatpush1.bf16.msra.mxu0 0
  %311 = vmatprep.subr.bf16.mxu0 0
  %312 = vmatpush1.bf16.msra.mxu0 0
  %313 = vmatprep.mubr.bf16.mxu0 0
  %314 = vmatmul.mubr.bf16.gmra.mrb[0].mxu0 %v84
  %v315 = vpop.f32.mrb[0].mxu0
  %v316 = vadd.f32 %v98, %v315
  %v317 = vpop.f32.mrb[0].mxu0
  %v318 = vpop.f32.mrb[0].mxu0
  %v319 = vadd.f32 %v98, %v318
  %v320 = vpop.f32.mrb[0].mxu0
  %321 = vmatprep.mubr.bf16.mxu0 0
  %322 = vmatmul.mubr.bf16.gmra.mrb[0].mxu0 %v85
  %v323 = vpop.f32.mrb[0].mxu0
  %v324 = vadd.f32 %v98, %v323
  %v325 = vpop.f32.mrb[0].mxu0
  %v326 = vpop.f32.mrb[0].mxu0
  %v327 = vpop.f32.mrb[0].mxu0
  %328 = vdwg.mxu0
  %v329 = vmul.f32 %v265, 0.17677669
  %v330 = vmul.f32 %v269, 0.17677669
  %v331 = vmul.f32 %v275, 0.17677669
  %v332 = vld [vmem:[%s1] sm:$0xff]
  %v333 = vld [vmem:[%s1 + $0x8] sm:$0xff]
  %v334 = vld [vmem:[%s1 + $0x10] sm:$0xf]
  %v335 = vld [vmem:[%s4] sm:$0xf]
  %v336 = vld [vmem:[%s4 + $0x4] sm:$0xf]
  %v337 = vld [vmem:[%s4 + $0x8] sm:$0xf]
  %v338 = vld [vmem:[%s4 + $0xc] sm:$0xf]
  %v339 = vld [vmem:[%s4 + $0x10] sm:$0xf]
  %v340 = vld [vmem:[%s4 + $0x14] sm:$0xf]
  %v341 = vld [vmem:[%s4 + $0x18] sm:$0xf]
  %v342 = vld [vmem:[%s4 + $0x1c] sm:$0xf]
  %v343 = vld [vmem:[%s4 + $0x20] sm:$0xf]
  %v344 = vld [vmem:[%s4 + $0x24] sm:$0xf]
  %v345 = vld [vmem:[%s4 + $0x28] sm:$0xf]
  %v346 = vld [vmem:[%s4 + $0x2c] sm:$0xf]
  %v347 = vld [vmem:[%s4 + $0x30] sm:$0xf]
  %v348 = vld [vmem:[%s4 + $0x34] sm:$0xf]
  %v349 = vld [vmem:[%s4 + $0x38] sm:$0xf]
  %v350 = vld [vmem:[%s4 + $0x3c] sm:$0xf]
  %v351 = vld [vmem:[%s5] sm:$0x1]
  %v352 = vpack.c.bf16 %v330, %v329
  %v353 = vpack.c.bf16 %v331, %v331
  %v354 = vpack.c.bf16 %v271, %v267
  %v355 = vpack.c.bf16 %v277, %v277
  %v356 = vpack.c.bf16 %v319, %v316
  %v357 = vpack.c.bf16 %v324, %v324
  %vm358 = vcmask 261120
  %v360 = vsel %vm358, %v352, 0
  %v363 = vsel %vm358, %v353, 0
  %v366 = vsel %vm358, %v354, 0
  %v369 = vsel %vm358, %v355, 0
  %371 = vmatprep.subr.bf16.mxu0 0
  %372 = vmatpush1.bf16.xpose.msra.mxu0 %v366
  %373 = vmatprep.subr.bf16.mxu0 0
  %374 = vmatpush1.bf16.xpose.msra.mxu0 %v369
  %375 = vmatprep.subr.bf16.mxu0 0
  %376 = vmatpush1.bf16.xpose.msra.mxu0 0
  %377 = vmatprep.subr.bf16.mxu0 0
  %378 = vmatpush1.bf16.xpose.msra.mxu0 0
  %379 = vmatprep.subr.bf16.mxu0 0
  %380 = vmatpush1.bf16.xpose.msra.mxu0 0
  %381 = vmatprep.subr.bf16.mxu0 0
  %382 = vmatpush1.bf16.xpose.msra.mxu0 0
  %383 = vmatprep.subr.bf16.mxu0 0
  %384 = vmatpush1.bf16.xpose.msra.mxu0 0
  %385 = vmatprep.subr.bf16.mxu0 0
  %386 = vmatpush1.bf16.xpose.msra.mxu0 0
  %387 = vmatprep.subr.bf16.mxu0 0
  %388 = vmatpush1.bf16.xpose.msra.mxu0 0
  %389 = vmatprep.subr.bf16.mxu0 0
  %390 = vmatpush1.bf16.xpose.msra.mxu0 0
  %391 = vmatprep.subr.bf16.mxu0 0
  %392 = vmatpush1.bf16.xpose.msra.mxu0 0
  %393 = vmatprep.subr.bf16.mxu0 0
  %394 = vmatpush1.bf16.xpose.msra.mxu0 0
  %395 = vmatprep.subr.bf16.mxu0 0
  %396 = vmatpush1.bf16.xpose.msra.mxu0 0
  %397 = vmatprep.subr.bf16.mxu0 0
  %398 = vmatpush1.bf16.xpose.msra.mxu0 0
  %399 = vmatprep.subr.bf16.mxu0 0
  %400 = vmatpush1.bf16.xpose.msra.mxu0 0
  %401 = vmatprep.subr.bf16.mxu0 0
  %402 = vmatpush1.bf16.xpose.msra.mxu0 0
  %403 = vmatprep.mubr.bf16.mxu0 0
  %404 = vmatmul.mubr.bf16.gmra.mrb[0].mxu0 %v360
  %v405 = vpop.f32.mrb[0].mxu0
  %v406 = vadd.f32 %v332, %v405
  %v407 = vpop.f32.mrb[0].mxu0
  %v408 = vpop.f32.mrb[0].mxu0
  %v409 = vadd.f32 %v333, %v408
  %v410 = vpop.f32.mrb[0].mxu0
  %411 = vmatprep.mubr.bf16.mxu0 0
  %412 = vmatmul.mubr.bf16.gmra.mrb[0].mxu0 %v363
  %v413 = vpop.f32.mrb[0].mxu0
  %v414 = vadd.f32 %v334, %v413
  %v415 = vpop.f32.mrb[0].mxu0
  %v416 = vpop.f32.mrb[0].mxu0
  %v417 = vpop.f32.mrb[0].mxu0
  %418 = vdwg.mxu0
  %vm419 = vcmask 162816
  %v420 = vsel %vm419, %v406, -inf
  %421 = vmax.xlane.f32.xlu0 %v420
  %v422 = vpop.xlane.xlu0 %421
  %v423 = vsel %vm419, %v409, -inf
  %424 = vmax.xlane.f32.xlu0 %v423
  %v425 = vpop.xlane.xlu0 %424
  %vm426 = vcmask 158720
  %v427 = vsel %vm426, %v414, -inf
  %428 = vmax.xlane.f32.xlu0 %v427
  %v429 = vpop.xlane.xlu0 %428
  %v430 = vsub.f32 %v406, %v422
  %v431 = vsub.f32 %v409, %v425
  %v432 = vsub.f32 %v414, %v429
  %v433 = vmul.f32 %v430, 1.442695
  %v434 = vpow.pop %v433
  %v435 = vmul.f32 %v431, 1.442695
  %v436 = vpow.pop %v435
  %v437 = vmul.f32 %v432, 1.442695
  %v438 = vpow.pop %v437
  %v439 = vsel %vm419, %v434, 0.0
  %440 = vadd.xlane.f32.xlu0 %v439
  %v441 = vpop.xlane.xlu0 %440
  %v442 = vsel %vm419, %v436, 0.0
  %443 = vadd.xlane.f32.xlu0 %v442
  %v444 = vpop.xlane.xlu0 %443
  %v445 = vsel %vm426, %v438, 0.0
  %446 = vadd.xlane.f32.xlu0 %v445
  %v447 = vpop.xlane.xlu0 %446
  %v448 = vrcp.pop %v441
  %v449 = vrcp.pop %v444
  %v450 = vrcp.pop %v447
  %v451 = vmul.f32 %v434, %v448
  %v452 = vmul.f32 %v436, %v449
  %v453 = vmul.f32 %v438, %v450
  %v454 = vpack.c.bf16 %v452, %v451
  %v455 = vpack.c.bf16 %v453, %v453
  %v457 = vsel %vm419, %v454, 0
  %v460 = vsel %vm419, %v455, 0
  %vm462 = vcmask 1041408
  %v464 = vsel %vm462, %v357, 0
  %466 = vmatprep.subr.bf16.mxu0 0
  %467 = vmatpush1.bf16.msra.mxu0 %v356
  %468 = vmatprep.subr.bf16.mxu0 0
  %469 = vmatpush1.bf16.msra.mxu0 %v464
  %470 = vmatprep.subr.bf16.mxu0 0
  %471 = vmatpush1.bf16.msra.mxu0 0
  %472 = vmatprep.subr.bf16.mxu0 0
  %473 = vmatpush1.bf16.msra.mxu0 0
  %474 = vmatprep.subr.bf16.mxu0 0
  %475 = vmatpush1.bf16.msra.mxu0 0
  %476 = vmatprep.subr.bf16.mxu0 0
  %477 = vmatpush1.bf16.msra.mxu0 0
  %478 = vmatprep.subr.bf16.mxu0 0
  %479 = vmatpush1.bf16.msra.mxu0 0
  %480 = vmatprep.subr.bf16.mxu0 0
  %481 = vmatpush1.bf16.msra.mxu0 0
  %482 = vmatprep.subr.bf16.mxu0 0
  %483 = vmatpush1.bf16.msra.mxu0 0
  %484 = vmatprep.subr.bf16.mxu0 0
  %485 = vmatpush1.bf16.msra.mxu0 0
  %486 = vmatprep.subr.bf16.mxu0 0
  %487 = vmatpush1.bf16.msra.mxu0 0
  %488 = vmatprep.subr.bf16.mxu0 0
  %489 = vmatpush1.bf16.msra.mxu0 0
  %490 = vmatprep.subr.bf16.mxu0 0
  %491 = vmatpush1.bf16.msra.mxu0 0
  %492 = vmatprep.subr.bf16.mxu0 0
  %493 = vmatpush1.bf16.msra.mxu0 0
  %494 = vmatprep.subr.bf16.mxu0 0
  %495 = vmatpush1.bf16.msra.mxu0 0
  %496 = vmatprep.subr.bf16.mxu0 0
  %497 = vmatpush1.bf16.msra.mxu0 0
  %498 = vmatprep.mubr.bf16.mxu0 0
  %499 = vmatmul.mubr.bf16.gmra.mrb[0].mxu0 %v457
  %v500 = vpop.f32.mrb[0].mxu0
  %v501 = vadd.f32 0.0, %v500
  %v502 = vpop.f32.mrb[0].mxu0
  %v503 = vpop.f32.mrb[0].mxu0
  %v504 = vadd.f32 0.0, %v503
  %v505 = vpop.f32.mrb[0].mxu0
  %506 = vmatprep.mubr.bf16.mxu0 0
  %507 = vmatmul.mubr.bf16.gmra.mrb[0].mxu0 %v460
  %v508 = vpop.f32.mrb[0].mxu0
  %v509 = vadd.f32 0.0, %v508
  %v510 = vpop.f32.mrb[0].mxu0
  %v511 = vpop.f32.mrb[0].mxu0
  %v512 = vpop.f32.mrb[0].mxu0
  %513 = vdwg.mxu0
  %516 = vrot.lane.b32.xlu0 %v352, 96
  %v517 = vpop.permute.xlu0 %516
  %518 = vrot.lane.b32.xlu0 %v353, 96
  %v519 = vpop.permute.xlu0 %518
  %522 = vrot.lane.b32.xlu0 %v354, 96
  %v523 = vpop.permute.xlu0 %522
  %524 = vrot.lane.b32.xlu0 %v355, 96
  %v525 = vpop.permute.xlu0 %524
  %v527 = vsel %vm358, %v517, 0
  %v530 = vsel %vm358, %v519, 0
  %v533 = vsel %vm358, %v523, 0
  %v536 = vsel %vm358, %v525, 0
  %538 = vmatprep.subr.bf16.mxu0 0
  %539 = vmatpush1.bf16.xpose.msra.mxu0 %v533
  %540 = vmatprep.subr.bf16.mxu0 0
  %541 = vmatpush1.bf16.xpose.msra.mxu0 %v536
  %542 = vmatprep.subr.bf16.mxu0 0
  %543 = vmatpush1.bf16.xpose.msra.mxu0 0
  %544 = vmatprep.subr.bf16.mxu0 0
  %545 = vmatpush1.bf16.xpose.msra.mxu0 0
  %546 = vmatprep.subr.bf16.mxu0 0
  %547 = vmatpush1.bf16.xpose.msra.mxu0 0
  %548 = vmatprep.subr.bf16.mxu0 0
  %549 = vmatpush1.bf16.xpose.msra.mxu0 0
  %550 = vmatprep.subr.bf16.mxu0 0
  %551 = vmatpush1.bf16.xpose.msra.mxu0 0
  %552 = vmatprep.subr.bf16.mxu0 0
  %553 = vmatpush1.bf16.xpose.msra.mxu0 0
  %554 = vmatprep.subr.bf16.mxu0 0
  %555 = vmatpush1.bf16.xpose.msra.mxu0 0
  %556 = vmatprep.subr.bf16.mxu0 0
  %557 = vmatpush1.bf16.xpose.msra.mxu0 0
  %558 = vmatprep.subr.bf16.mxu0 0
  %559 = vmatpush1.bf16.xpose.msra.mxu0 0
  %560 = vmatprep.subr.bf16.mxu0 0
  %561 = vmatpush1.bf16.xpose.msra.mxu0 0
  %562 = vmatprep.subr.bf16.mxu0 0
  %563 = vmatpush1.bf16.xpose.msra.mxu0 0
  %564 = vmatprep.subr.bf16.mxu0 0
  %565 = vmatpush1.bf16.xpose.msra.mxu0 0
  %566 = vmatprep.subr.bf16.mxu0 0
  %567 = vmatpush1.bf16.xpose.msra.mxu0 0
  %568 = vmatprep.subr.bf16.mxu0 0
  %569 = vmatpush1.bf16.xpose.msra.mxu0 0
  %570 = vmatprep.mubr.bf16.mxu0 0
  %571 = vmatmul.mubr.bf16.gmra.mrb[0].mxu0 %v527
  %v572 = vpop.f32.mrb[0].mxu0
  %v573 = vadd.f32 %v332, %v572
  %v574 = vpop.f32.mrb[0].mxu0
  %v575 = vpop.f32.mrb[0].mxu0
  %v576 = vadd.f32 %v333, %v575
  %v577 = vpop.f32.mrb[0].mxu0
  %578 = vmatprep.mubr.bf16.mxu0 0
  %579 = vmatmul.mubr.bf16.gmra.mrb[0].mxu0 %v530
  %v580 = vpop.f32.mrb[0].mxu0
  %v581 = vadd.f32 %v334, %v580
  %v582 = vpop.f32.mrb[0].mxu0
  %v583 = vpop.f32.mrb[0].mxu0
  %v584 = vpop.f32.mrb[0].mxu0
  %585 = vdwg.mxu0
  %v586 = vsel %vm419, %v573, -inf
  %587 = vmax.xlane.f32.xlu0 %v586
  %v588 = vpop.xlane.xlu0 %587
  %v589 = vsel %vm419, %v576, -inf
  %590 = vmax.xlane.f32.xlu0 %v589
  %v591 = vpop.xlane.xlu0 %590
  %v592 = vsel %vm426, %v581, -inf
  %593 = vmax.xlane.f32.xlu0 %v592
  %v594 = vpop.xlane.xlu0 %593
  %v595 = vsub.f32 %v573, %v588
  %v596 = vsub.f32 %v576, %v591
  %v597 = vsub.f32 %v581, %v594
  %v598 = vmul.f32 %v595, 1.442695
  %v599 = vpow.pop %v598
  %v600 = vmul.f32 %v596, 1.442695
  %v601 = vpow.pop %v600
  %v602 = vmul.f32 %v597, 1.442695
  %v603 = vpow.pop %v602
  %v604 = vsel %vm419, %v599, 0.0
  %605 = vadd.xlane.f32.xlu0 %v604
  %v606 = vpop.xlane.xlu0 %605
  %v607 = vsel %vm419, %v601, 0.0
  %608 = vadd.xlane.f32.xlu0 %v607
  %v609 = vpop.xlane.xlu0 %608
  %v610 = vsel %vm426, %v603, 0.0
  %611 = vadd.xlane.f32.xlu0 %v610
  %v612 = vpop.xlane.xlu0 %611
  %v613 = vrcp.pop %v606
  %v614 = vrcp.pop %v609
  %v615 = vrcp.pop %v612
  %v616 = vmul.f32 %v599, %v613
  %v617 = vmul.f32 %v601, %v614
  %v618 = vmul.f32 %v603, %v615
  %v619 = vpack.c.bf16 %v617, %v616
  %v620 = vpack.c.bf16 %v618, %v618
  %623 = vrot.lane.b32.xlu0 %v356, 96
  %v624 = vpop.permute.xlu0 %623
  %625 = vrot.lane.b32.xlu0 %v357, 96
  %v626 = vpop.permute.xlu0 %625
  %v629 = vsel %vm419, %v619, 0
  %v632 = vsel %vm419, %v620, 0
  %v635 = vsel %vm462, %v626, 0
  %637 = vmatprep.subr.bf16.mxu0 0
  %638 = vmatpush1.bf16.msra.mxu0 %v624
  %639 = vmatprep.subr.bf16.mxu0 0
  %640 = vmatpush1.bf16.msra.mxu0 %v635
  %641 = vmatprep.subr.bf16.mxu0 0
  %642 = vmatpush1.bf16.msra.mxu0 0
  %643 = vmatprep.subr.bf16.mxu0 0
  %644 = vmatpush1.bf16.msra.mxu0 0
  %645 = vmatprep.subr.bf16.mxu0 0
  %646 = vmatpush1.bf16.msra.mxu0 0
  %647 = vmatprep.subr.bf16.mxu0 0
  %648 = vmatpush1.bf16.msra.mxu0 0
  %649 = vmatprep.subr.bf16.mxu0 0
  %650 = vmatpush1.bf16.msra.mxu0 0
  %651 = vmatprep.subr.bf16.mxu0 0
  %652 = vmatpush1.bf16.msra.mxu0 0
  %653 = vmatprep.subr.bf16.mxu0 0
  %654 = vmatpush1.bf16.msra.mxu0 0
  %655 = vmatprep.subr.bf16.mxu0 0
  %656 = vmatpush1.bf16.msra.mxu0 0
  %657 = vmatprep.subr.bf16.mxu0 0
  %658 = vmatpush1.bf16.msra.mxu0 0
  %659 = vmatprep.subr.bf16.mxu0 0
  %660 = vmatpush1.bf16.msra.mxu0 0
  %661 = vmatprep.subr.bf16.mxu0 0
  %662 = vmatpush1.bf16.msra.mxu0 0
  %663 = vmatprep.subr.bf16.mxu0 0
  %664 = vmatpush1.bf16.msra.mxu0 0
  %665 = vmatprep.subr.bf16.mxu0 0
  %666 = vmatpush1.bf16.msra.mxu0 0
  %667 = vmatprep.subr.bf16.mxu0 0
  %668 = vmatpush1.bf16.msra.mxu0 0
  %669 = vmatprep.mubr.bf16.mxu0 0
  %670 = vmatmul.mubr.bf16.gmra.mrb[0].mxu0 %v629
  %v671 = vpop.f32.mrb[0].mxu0
  %v672 = vadd.f32 0.0, %v671
  %v673 = vpop.f32.mrb[0].mxu0
  %v674 = vpop.f32.mrb[0].mxu0
  %v675 = vadd.f32 0.0, %v674
  %v676 = vpop.f32.mrb[0].mxu0
  %677 = vmatprep.mubr.bf16.mxu0 0
  %678 = vmatmul.mubr.bf16.gmra.mrb[0].mxu0 %v632
  %v679 = vpop.f32.mrb[0].mxu0
  %v680 = vadd.f32 0.0, %v679
  %v681 = vpop.f32.mrb[0].mxu0
  %v682 = vpop.f32.mrb[0].mxu0
  %v683 = vpop.f32.mrb[0].mxu0
  %684 = vdwg.mxu0
  %685 = vrot.lane.b32.xlu0 %v352, 64
  %v686 = vpop.permute.xlu0 %685
  %687 = vrot.lane.b32.xlu0 %v353, 64
  %v688 = vpop.permute.xlu0 %687
  %689 = vrot.lane.b32.xlu0 %v354, 64
  %v690 = vpop.permute.xlu0 %689
  %691 = vrot.lane.b32.xlu0 %v355, 64
  %v692 = vpop.permute.xlu0 %691
  %v694 = vsel %vm358, %v686, 0
  %v697 = vsel %vm358, %v688, 0
  %v700 = vsel %vm358, %v690, 0
  %v703 = vsel %vm358, %v692, 0
  %705 = vmatprep.subr.bf16.mxu0 0
  %706 = vmatpush1.bf16.xpose.msra.mxu0 %v700
  %707 = vmatprep.subr.bf16.mxu0 0
  %708 = vmatpush1.bf16.xpose.msra.mxu0 %v703
  %709 = vmatprep.subr.bf16.mxu0 0
  %710 = vmatpush1.bf16.xpose.msra.mxu0 0
  %711 = vmatprep.subr.bf16.mxu0 0
  %712 = vmatpush1.bf16.xpose.msra.mxu0 0
  %713 = vmatprep.subr.bf16.mxu0 0
  %714 = vmatpush1.bf16.xpose.msra.mxu0 0
  %715 = vmatprep.subr.bf16.mxu0 0
  %716 = vmatpush1.bf16.xpose.msra.mxu0 0
  %717 = vmatprep.subr.bf16.mxu0 0
  %718 = vmatpush1.bf16.xpose.msra.mxu0 0
  %719 = vmatprep.subr.bf16.mxu0 0
  %720 = vmatpush1.bf16.xpose.msra.mxu0 0
  %721 = vmatprep.subr.bf16.mxu0 0
  %722 = vmatpush1.bf16.xpose.msra.mxu0 0
  %723 = vmatprep.subr.bf16.mxu0 0
  %724 = vmatpush1.bf16.xpose.msra.mxu0 0
  %725 = vmatprep.subr.bf16.mxu0 0
  %726 = vmatpush1.bf16.xpose.msra.mxu0 0
  %727 = vmatprep.subr.bf16.mxu0 0
  %728 = vmatpush1.bf16.xpose.msra.mxu0 0
  %729 = vmatprep.subr.bf16.mxu0 0
  %730 = vmatpush1.bf16.xpose.msra.mxu0 0
  %731 = vmatprep.subr.bf16.mxu0 0
  %732 = vmatpush1.bf16.xpose.msra.mxu0 0
  %733 = vmatprep.subr.bf16.mxu0 0
  %734 = vmatpush1.bf16.xpose.msra.mxu0 0
  %735 = vmatprep.subr.bf16.mxu0 0
  %736 = vmatpush1.bf16.xpose.msra.mxu0 0
  %737 = vmatprep.mubr.bf16.mxu0 0
  %738 = vmatmul.mubr.bf16.gmra.mrb[0].mxu0 %v694
  %v739 = vpop.f32.mrb[0].mxu0
  %v740 = vadd.f32 %v332, %v739
  %v741 = vpop.f32.mrb[0].mxu0
  %v742 = vpop.f32.mrb[0].mxu0
  %v743 = vadd.f32 %v333, %v742
  %v744 = vpop.f32.mrb[0].mxu0
  %745 = vmatprep.mubr.bf16.mxu0 0
  %746 = vmatmul.mubr.bf16.gmra.mrb[0].mxu0 %v697
  %v747 = vpop.f32.mrb[0].mxu0
  %v748 = vadd.f32 %v334, %v747
  %v749 = vpop.f32.mrb[0].mxu0
  %v750 = vpop.f32.mrb[0].mxu0
  %v751 = vpop.f32.mrb[0].mxu0
  %752 = vdwg.mxu0
  %v753 = vsel %vm419, %v740, -inf
  %754 = vmax.xlane.f32.xlu0 %v753
  %v755 = vpop.xlane.xlu0 %754
  %v756 = vsel %vm419, %v743, -inf
  %757 = vmax.xlane.f32.xlu0 %v756
  %v758 = vpop.xlane.xlu0 %757
  %v759 = vsel %vm426, %v748, -inf
  %760 = vmax.xlane.f32.xlu0 %v759
  %v761 = vpop.xlane.xlu0 %760
  %v762 = vsub.f32 %v740, %v755
  %v763 = vsub.f32 %v743, %v758
  %v764 = vsub.f32 %v748, %v761
  %v765 = vmul.f32 %v762, 1.442695
  %v766 = vpow.pop %v765
  %v767 = vmul.f32 %v763, 1.442695
  %v768 = vpow.pop %v767
  %v769 = vmul.f32 %v764, 1.442695
  %v770 = vpow.pop %v769
  %v771 = vsel %vm419, %v766, 0.0
  %772 = vadd.xlane.f32.xlu0 %v771
  %v773 = vpop.xlane.xlu0 %772
  %v774 = vsel %vm419, %v768, 0.0
  %775 = vadd.xlane.f32.xlu0 %v774
  %v776 = vpop.xlane.xlu0 %775
  %v777 = vsel %vm426, %v770, 0.0
  %778 = vadd.xlane.f32.xlu0 %v777
  %v779 = vpop.xlane.xlu0 %778
  %v780 = vrcp.pop %v773
  %v781 = vrcp.pop %v776
  %v782 = vrcp.pop %v779
  %v783 = vmul.f32 %v766, %v780
  %v784 = vmul.f32 %v768, %v781
  %v785 = vmul.f32 %v770, %v782
  %v786 = vpack.c.bf16 %v784, %v783
  %v787 = vpack.c.bf16 %v785, %v785
  %788 = vrot.lane.b32.xlu0 %v356, 64
  %v789 = vpop.permute.xlu0 %788
  %790 = vrot.lane.b32.xlu0 %v357, 64
  %v791 = vpop.permute.xlu0 %790
  %v794 = vsel %vm419, %v786, 0
  %v797 = vsel %vm419, %v787, 0
  %v800 = vsel %vm462, %v791, 0
  %802 = vmatprep.subr.bf16.mxu0 0
  %803 = vmatpush1.bf16.msra.mxu0 %v789
  %804 = vmatprep.subr.bf16.mxu0 0
  %805 = vmatpush1.bf16.msra.mxu0 %v800
  %806 = vmatprep.subr.bf16.mxu0 0
  %807 = vmatpush1.bf16.msra.mxu0 0
  %808 = vmatprep.subr.bf16.mxu0 0
  %809 = vmatpush1.bf16.msra.mxu0 0
  %810 = vmatprep.subr.bf16.mxu0 0
  %811 = vmatpush1.bf16.msra.mxu0 0
  %812 = vmatprep.subr.bf16.mxu0 0
  %813 = vmatpush1.bf16.msra.mxu0 0
  %814 = vmatprep.subr.bf16.mxu0 0
  %815 = vmatpush1.bf16.msra.mxu0 0
  %816 = vmatprep.subr.bf16.mxu0 0
  %817 = vmatpush1.bf16.msra.mxu0 0
  %818 = vmatprep.subr.bf16.mxu0 0
  %819 = vmatpush1.bf16.msra.mxu0 0
  %820 = vmatprep.subr.bf16.mxu0 0
  %821 = vmatpush1.bf16.msra.mxu0 0
  %822 = vmatprep.subr.bf16.mxu0 0
  %823 = vmatpush1.bf16.msra.mxu0 0
  %824 = vmatprep.subr.bf16.mxu0 0
  %825 = vmatpush1.bf16.msra.mxu0 0
  %826 = vmatprep.subr.bf16.mxu0 0
  %827 = vmatpush1.bf16.msra.mxu0 0
  %828 = vmatprep.subr.bf16.mxu0 0
  %829 = vmatpush1.bf16.msra.mxu0 0
  %830 = vmatprep.subr.bf16.mxu0 0
  %831 = vmatpush1.bf16.msra.mxu0 0
  %832 = vmatprep.subr.bf16.mxu0 0
  %833 = vmatpush1.bf16.msra.mxu0 0
  %834 = vmatprep.mubr.bf16.mxu0 0
  %835 = vmatmul.mubr.bf16.gmra.mrb[0].mxu0 %v794
  %v836 = vpop.f32.mrb[0].mxu0
  %v837 = vadd.f32 0.0, %v836
  %v838 = vpop.f32.mrb[0].mxu0
  %v839 = vpop.f32.mrb[0].mxu0
  %v840 = vadd.f32 0.0, %v839
  %v841 = vpop.f32.mrb[0].mxu0
  %842 = vmatprep.mubr.bf16.mxu0 0
  %843 = vmatmul.mubr.bf16.gmra.mrb[0].mxu0 %v797
  %v844 = vpop.f32.mrb[0].mxu0
  %v845 = vadd.f32 0.0, %v844
  %v846 = vpop.f32.mrb[0].mxu0
  %v847 = vpop.f32.mrb[0].mxu0
  %v848 = vpop.f32.mrb[0].mxu0
  %849 = vdwg.mxu0
  %850 = vrot.lane.b32.xlu0 %v352, 32
  %v851 = vpop.permute.xlu0 %850
  %852 = vrot.lane.b32.xlu0 %v353, 32
  %v853 = vpop.permute.xlu0 %852
  %854 = vrot.lane.b32.xlu0 %v354, 32
  %v855 = vpop.permute.xlu0 %854
  %856 = vrot.lane.b32.xlu0 %v355, 32
  %v857 = vpop.permute.xlu0 %856
  %v859 = vsel %vm358, %v851, 0
  %v862 = vsel %vm358, %v853, 0
  %v865 = vsel %vm358, %v855, 0
  %v868 = vsel %vm358, %v857, 0
  %870 = vmatprep.subr.bf16.mxu0 0
  %871 = vmatpush1.bf16.xpose.msra.mxu0 %v865
  %872 = vmatprep.subr.bf16.mxu0 0
  %873 = vmatpush1.bf16.xpose.msra.mxu0 %v868
  %874 = vmatprep.subr.bf16.mxu0 0
  %875 = vmatpush1.bf16.xpose.msra.mxu0 0
  %876 = vmatprep.subr.bf16.mxu0 0
  %877 = vmatpush1.bf16.xpose.msra.mxu0 0
  %878 = vmatprep.subr.bf16.mxu0 0
  %879 = vmatpush1.bf16.xpose.msra.mxu0 0
  %880 = vmatprep.subr.bf16.mxu0 0
  %881 = vmatpush1.bf16.xpose.msra.mxu0 0
  %882 = vmatprep.subr.bf16.mxu0 0
  %883 = vmatpush1.bf16.xpose.msra.mxu0 0
  %884 = vmatprep.subr.bf16.mxu0 0
  %885 = vmatpush1.bf16.xpose.msra.mxu0 0
  %886 = vmatprep.subr.bf16.mxu0 0
  %887 = vmatpush1.bf16.xpose.msra.mxu0 0
  %888 = vmatprep.subr.bf16.mxu0 0
  %889 = vmatpush1.bf16.xpose.msra.mxu0 0
  %890 = vmatprep.subr.bf16.mxu0 0
  %891 = vmatpush1.bf16.xpose.msra.mxu0 0
  %892 = vmatprep.subr.bf16.mxu0 0
  %893 = vmatpush1.bf16.xpose.msra.mxu0 0
  %894 = vmatprep.subr.bf16.mxu0 0
  %895 = vmatpush1.bf16.xpose.msra.mxu0 0
  %896 = vmatprep.subr.bf16.mxu0 0
  %897 = vmatpush1.bf16.xpose.msra.mxu0 0
  %898 = vmatprep.subr.bf16.mxu0 0
  %899 = vmatpush1.bf16.xpose.msra.mxu0 0
  %900 = vmatprep.subr.bf16.mxu0 0
  %901 = vmatpush1.bf16.xpose.msra.mxu0 0
  %902 = vmatprep.mubr.bf16.mxu0 0
  %903 = vmatmul.mubr.bf16.gmra.mrb[0].mxu0 %v859
  %v904 = vpop.f32.mrb[0].mxu0
  %v905 = vadd.f32 %v332, %v904
  %v906 = vpop.f32.mrb[0].mxu0
  %v907 = vpop.f32.mrb[0].mxu0
  %v908 = vadd.f32 %v333, %v907
  %v909 = vpop.f32.mrb[0].mxu0
  %910 = vmatprep.mubr.bf16.mxu0 0
  %911 = vmatmul.mubr.bf16.gmra.mrb[0].mxu0 %v862
  %v912 = vpop.f32.mrb[0].mxu0
  %v913 = vadd.f32 %v334, %v912
  %v914 = vpop.f32.mrb[0].mxu0
  %v915 = vpop.f32.mrb[0].mxu0
  %v916 = vpop.f32.mrb[0].mxu0
  %917 = vdwg.mxu0
  %v918 = vsel %vm419, %v905, -inf
  %919 = vmax.xlane.f32.xlu0 %v918
  %v920 = vpop.xlane.xlu0 %919
  %v921 = vsel %vm419, %v908, -inf
  %922 = vmax.xlane.f32.xlu0 %v921
  %v923 = vpop.xlane.xlu0 %922
  %v924 = vsel %vm426, %v913, -inf
  %925 = vmax.xlane.f32.xlu0 %v924
  %v926 = vpop.xlane.xlu0 %925
  %v927 = vsub.f32 %v905, %v920
  %v928 = vsub.f32 %v908, %v923
  %v929 = vsub.f32 %v913, %v926
  %v930 = vmul.f32 %v927, 1.442695
  %v931 = vpow.pop %v930
  %v932 = vmul.f32 %v928, 1.442695
  %v933 = vpow.pop %v932
  %v934 = vmul.f32 %v929, 1.442695
  %v935 = vpow.pop %v934
  %v936 = vsel %vm419, %v931, 0.0
  %937 = vadd.xlane.f32.xlu0 %v936
  %v938 = vpop.xlane.xlu0 %937
  %v939 = vsel %vm419, %v933, 0.0
  %940 = vadd.xlane.f32.xlu0 %v939
  %v941 = vpop.xlane.xlu0 %940
  %v942 = vsel %vm426, %v935, 0.0
  %943 = vadd.xlane.f32.xlu0 %v942
  %v944 = vpop.xlane.xlu0 %943
  %v945 = vrcp.pop %v938
  %v946 = vrcp.pop %v941
  %v947 = vrcp.pop %v944
  %v948 = vmul.f32 %v931, %v945
  %v949 = vmul.f32 %v933, %v946
  %v950 = vmul.f32 %v935, %v947
  %v951 = vpack.c.bf16 %v949, %v948
  %v952 = vpack.c.bf16 %v950, %v950
  %953 = vrot.lane.b32.xlu0 %v356, 32
  %v954 = vpop.permute.xlu0 %953
  %955 = vrot.lane.b32.xlu0 %v357, 32
  %v956 = vpop.permute.xlu0 %955
  %v959 = vsel %vm419, %v951, 0
  %v962 = vsel %vm419, %v952, 0
  %v965 = vsel %vm462, %v956, 0
  %967 = vmatprep.subr.bf16.mxu0 0
  %968 = vmatpush1.bf16.msra.mxu0 %v954
  %969 = vmatprep.subr.bf16.mxu0 0
  %970 = vmatpush1.bf16.msra.mxu0 %v965
  %971 = vmatprep.subr.bf16.mxu0 0
  %972 = vmatpush1.bf16.msra.mxu0 0
  %973 = vmatprep.subr.bf16.mxu0 0
  %974 = vmatpush1.bf16.msra.mxu0 0
  %975 = vmatprep.subr.bf16.mxu0 0
  %976 = vmatpush1.bf16.msra.mxu0 0
  %977 = vmatprep.subr.bf16.mxu0 0
  %978 = vmatpush1.bf16.msra.mxu0 0
  %979 = vmatprep.subr.bf16.mxu0 0
  %980 = vmatpush1.bf16.msra.mxu0 0
  %981 = vmatprep.subr.bf16.mxu0 0
  %982 = vmatpush1.bf16.msra.mxu0 0
  %983 = vmatprep.subr.bf16.mxu0 0
  %984 = vmatpush1.bf16.msra.mxu0 0
  %985 = vmatprep.subr.bf16.mxu0 0
  %986 = vmatpush1.bf16.msra.mxu0 0
  %987 = vmatprep.subr.bf16.mxu0 0
  %988 = vmatpush1.bf16.msra.mxu0 0
  %989 = vmatprep.subr.bf16.mxu0 0
  %990 = vmatpush1.bf16.msra.mxu0 0
  %991 = vmatprep.subr.bf16.mxu0 0
  %992 = vmatpush1.bf16.msra.mxu0 0
  %993 = vmatprep.subr.bf16.mxu0 0
  %994 = vmatpush1.bf16.msra.mxu0 0
  %995 = vmatprep.subr.bf16.mxu0 0
  %996 = vmatpush1.bf16.msra.mxu0 0
  %997 = vmatprep.subr.bf16.mxu0 0
  %998 = vmatpush1.bf16.msra.mxu0 0
  %999 = vmatprep.mubr.bf16.mxu0 0
  %1000 = vmatmul.mubr.bf16.gmra.mrb[0].mxu0 %v959
  %v1001 = vpop.f32.mrb[0].mxu0
  %v1002 = vadd.f32 0.0, %v1001
  %v1003 = vpop.f32.mrb[0].mxu0
  %v1004 = vpop.f32.mrb[0].mxu0
  %v1005 = vadd.f32 0.0, %v1004
  %v1006 = vpop.f32.mrb[0].mxu0
  %1007 = vmatprep.mubr.bf16.mxu0 0
  %1008 = vmatmul.mubr.bf16.gmra.mrb[0].mxu0 %v962
  %v1009 = vpop.f32.mrb[0].mxu0
  %v1010 = vadd.f32 0.0, %v1009
  %v1011 = vpop.f32.mrb[0].mxu0
  %v1012 = vpop.f32.mrb[0].mxu0
  %v1013 = vpop.f32.mrb[0].mxu0
  %1014 = vdwg.mxu0
  %1018 = vrot.lane.b32.xlu0 %v672, 32
  %v1019 = vpop.permute.xlu0 %1018
  %1020 = vrot.lane.b32.xlu0 %v675, 32
  %v1021 = vpop.permute.xlu0 %1020
  %1022 = vrot.lane.b32.xlu0 %v680, 32
  %v1023 = vpop.permute.xlu0 %1022
  %1030 = vrot.lane.b32.xlu0 %v837, 64
  %v1031 = vpop.permute.xlu0 %1030
  %1032 = vrot.lane.b32.xlu0 %v840, 64
  %v1033 = vpop.permute.xlu0 %1032
  %1034 = vrot.lane.b32.xlu0 %v845, 64
  %v1035 = vpop.permute.xlu0 %1034
  %1042 = vrot.lane.b32.xlu0 %v1002, 96
  %v1043 = vpop.permute.xlu0 %1042
  %1044 = vrot.lane.b32.xlu0 %v1005, 96
  %v1045 = vpop.permute.xlu0 %1044
  %1046 = vrot.lane.b32.xlu0 %v1010, 96
  %v1047 = vpop.permute.xlu0 %1046
  %v1051 = vsel %vm358, %v501, %v1019
  %v1052 = vsel %vm358, %v504, %v1021
  %v1053 = vsel %vm358, %v509, %v1023
  %vm1054 = vcmask 523264
  %v1055 = vsel %vm1054, %v1051, %v1031
  %v1056 = vsel %vm1054, %v1052, %v1033
  %v1057 = vsel %vm1054, %v1053, %v1035
  %vm1058 = vcmask 785408
  %v1059 = vsel %vm1058, %v1055, %v1043
  %v1060 = vsel %vm1058, %v1056, %v1045
  %v1061 = vsel %vm1058, %v1057, %v1047
  %v1062 = vpack.c.bf16 %v1060, %v1059
  %v1063 = vpack.c.bf16 %v1061, %v1061
  %v1065 = vlaneseq
  %v1066 = vshrl.u32 %v1065, 7
  %v1067 = vsub.s32 0, %v1066
  %v1068 = vrot.slane %v351, %v1067
  %v1086 = vunpack.c.l.b16 %v335
  %v1087 = vunpack.c.l.b16 %v336
  %v1088 = vunpack.c.l.b16 %v337
  %v1089 = vunpack.c.l.b16 %v338
  %v1090 = vunpack.c.l.b16 %v339
  %v1091 = vunpack.c.l.b16 %v340
  %v1092 = vunpack.c.l.b16 %v341
  %v1093 = vunpack.c.l.b16 %v342
  %v1094 = vunpack.c.l.b16 %v343
  %v1095 = vunpack.c.l.b16 %v344
  %v1096 = vunpack.c.l.b16 %v345
  %v1097 = vunpack.c.l.b16 %v346
  %v1098 = vunpack.c.l.b16 %v347
  %v1099 = vunpack.c.l.b16 %v348
  %v1100 = vunpack.c.l.b16 %v349
  %v1101 = vunpack.c.l.b16 %v350
  %v1102 = vpack.c.b16 %v1087, %v1086
  %v1103 = vpack.c.b16 %v1089, %v1088
  %v1104 = vpack.c.b16 %v1091, %v1090
  %v1105 = vpack.c.b16 %v1093, %v1092
  %v1106 = vpack.c.b16 %v1095, %v1094
  %v1107 = vpack.c.b16 %v1097, %v1096
  %v1108 = vpack.c.b16 %v1099, %v1098
  %v1109 = vpack.c.b16 %v1101, %v1100
  %1118 = vmatprep.subr.bf16.mxu0 0
  %1119 = vmatpush1.bf16.msra.mxu0 %v1102
  %1120 = vmatprep.subr.bf16.mxu0 0
  %1121 = vmatpush1.bf16.msra.mxu0 %v1103
  %1122 = vmatprep.subr.bf16.mxu0 0
  %1123 = vmatpush1.bf16.msra.mxu0 %v1104
  %1124 = vmatprep.subr.bf16.mxu0 0
  %1125 = vmatpush1.bf16.msra.mxu0 %v1105
  %1126 = vmatprep.subr.bf16.mxu0 0
  %1127 = vmatpush1.bf16.msra.mxu0 %v1106
  %1128 = vmatprep.subr.bf16.mxu0 0
  %1129 = vmatpush1.bf16.msra.mxu0 %v1107
  %1130 = vmatprep.subr.bf16.mxu0 0
  %1131 = vmatpush1.bf16.msra.mxu0 %v1108
  %1132 = vmatprep.subr.bf16.mxu0 0
  %1133 = vmatpush1.bf16.msra.mxu0 %v1109
  %1134 = vmatprep.subr.bf16.mxu0 0
  %1135 = vmatpush1.bf16.msra.mxu0 0
  %1136 = vmatprep.subr.bf16.mxu0 0
  %1137 = vmatpush1.bf16.msra.mxu0 0
  %1138 = vmatprep.subr.bf16.mxu0 0
  %1139 = vmatpush1.bf16.msra.mxu0 0
  %1140 = vmatprep.subr.bf16.mxu0 0
  %1141 = vmatpush1.bf16.msra.mxu0 0
  %1142 = vmatprep.subr.bf16.mxu0 0
  %1143 = vmatpush1.bf16.msra.mxu0 0
  %1144 = vmatprep.subr.bf16.mxu0 0
  %1145 = vmatpush1.bf16.msra.mxu0 0
  %1146 = vmatprep.subr.bf16.mxu0 0
  %1147 = vmatpush1.bf16.msra.mxu0 0
  %1148 = vmatprep.subr.bf16.mxu0 0
  %1149 = vmatpush1.bf16.msra.mxu0 0
  %1150 = vmatprep.mubr.bf16.mxu0 0
  %1151 = vmatmul.mubr.bf16.gmra.mrb[0].mxu0 %v1062
  %v1152 = vpop.f32.mrb[0].mxu0
  %v1153 = vadd.f32 %v1068, %v1152
  %v1154 = vpop.f32.mrb[0].mxu0
  %v1155 = vpop.f32.mrb[0].mxu0
  %v1156 = vadd.f32 %v1068, %v1155
  %v1157 = vpop.f32.mrb[0].mxu0
  %1158 = vmatprep.mubr.bf16.mxu0 0
  %1159 = vmatmul.mubr.bf16.gmra.mrb[0].mxu0 %v1063
  %v1160 = vpop.f32.mrb[0].mxu0
  %v1161 = vadd.f32 %v1068, %v1160
  %v1162 = vpop.f32.mrb[0].mxu0
  %v1163 = vpop.f32.mrb[0].mxu0
  %v1164 = vpop.f32.mrb[0].mxu0
  %1165 = vdwg.mxu0
  %v1166 = vadd.f32 %v48, %v1153
  %v1167 = vadd.f32 %v49, %v1156
  %v1168 = vadd.f32 %v50, %v1161
  %v1169 = vld [vmem:[%s6] sm:$0x1]
  %v1170 = vld [vmem:[%s7] sm:$0x1]
  %1171 = vadd.xlane.f32.xlu0 %v1166
  %v1172 = vpop.xlane.xlu0 %1171
  %1173 = vadd.xlane.f32.xlu0 %v1167
  %v1174 = vpop.xlane.xlu0 %1173
  %vm1175 = vcmask 1043456
  %v1176 = vsel %vm1175, %v1168, 0.0
  %1177 = vadd.xlane.f32.xlu0 %v1176
  %v1178 = vpop.xlane.xlu0 %1177
  %v1179 = vrcp.pop 128.0
  %v1180 = vmul.f32 %v1172, %v1179
  %v1181 = vmul.f32 %v1174, %v1179
  %v1182 = vmul.f32 %v1178, %v1179
  %v1183 = vsub.f32 %v1166, %v1180
  %v1184 = vsub.f32 %v1167, %v1181
  %v1185 = vsub.f32 %v1168, %v1182
  %v1186 = vmul.f32 %v1183, %v1183
  %v1187 = vmul.f32 %v1184, %v1184
  %v1188 = vmul.f32 %v1185, %v1185
  %1189 = vadd.xlane.f32.xlu0 %v1186
  %v1190 = vpop.xlane.xlu0 %1189
  %1191 = vadd.xlane.f32.xlu0 %v1187
  %v1192 = vpop.xlane.xlu0 %1191
  %v1193 = vsel %vm1175, %v1188, 0.0
  %1194 = vadd.xlane.f32.xlu0 %v1193
  %v1195 = vpop.xlane.xlu0 %1194
  %v1196 = vmul.f32 %v1190, %v1179
  %v1197 = vmul.f32 %v1192, %v1179
  %v1198 = vmul.f32 %v1195, %v1179
  %v1199 = vadd.f32 %v1196, 1e-05
  %v1200 = vadd.f32 %v1197, 1e-05
  %v1201 = vadd.f32 %v1198, 1e-05
  %v1202 = vrsqrt.pop %v1199
  %v1203 = vrsqrt.pop %v1200
  %v1204 = vrsqrt.pop %v1201
  %v1205 = vmul.f32 %v1183, %v1202
  %v1206 = vmul.f32 %v1184, %v1203
  %v1207 = vmul.f32 %v1185, %v1204
  %v1209 = vlaneseq
  %v1210 = vshrl.u32 %v1209, 7
  %v1211 = vsub.s32 0, %v1210
  %v1212 = vrot.slane %v1169, %v1211
  %v1214 = vmul.f32 %v1205, %v1212
  %v1215 = vmul.f32 %v1206, %v1212
  %v1216 = vmul.f32 %v1207, %v1212
  %v1218 = vlaneseq
  %v1219 = vshrl.u32 %v1218, 7
  %v1220 = vsub.s32 0, %v1219
  %v1221 = vrot.slane %v1170, %v1220
  %v1223 = vadd.f32 %v1214, %v1221
  %v1224 = vadd.f32 %v1215, %v1221
  %v1225 = vadd.f32 %v1216, %v1221
  %v1226 = vld [vmem:[%s8] sm:$0xf]
  %v1227 = vld [vmem:[%s8 + $0x4] sm:$0xf]
  %v1228 = vld [vmem:[%s8 + $0x8] sm:$0xf]
  %v1229 = vld [vmem:[%s8 + $0xc] sm:$0xf]
  %v1230 = vld [vmem:[%s8 + $0x10] sm:$0xf]
  %v1231 = vld [vmem:[%s8 + $0x14] sm:$0xf]
  %v1232 = vld [vmem:[%s8 + $0x18] sm:$0xf]
  %v1233 = vld [vmem:[%s8 + $0x1c] sm:$0xf]
  %v1234 = vld [vmem:[%s8 + $0x20] sm:$0xf]
  %v1235 = vld [vmem:[%s8 + $0x24] sm:$0xf]
  %v1236 = vld [vmem:[%s8 + $0x28] sm:$0xf]
  %v1237 = vld [vmem:[%s8 + $0x2c] sm:$0xf]
  %v1238 = vld [vmem:[%s8 + $0x30] sm:$0xf]
  %v1239 = vld [vmem:[%s8 + $0x34] sm:$0xf]
  %v1240 = vld [vmem:[%s8 + $0x38] sm:$0xf]
  %v1241 = vld [vmem:[%s8 + $0x3c] sm:$0xf]
  %v1242 = vld [vmem:[%s9] sm:$0x1]
  %v1243 = vpack.c.bf16 %v1224, %v1223
  %v1244 = vpack.c.bf16 %v1225, %v1225
  %v1246 = vlaneseq
  %v1247 = vshrl.u32 %v1246, 7
  %v1248 = vsub.s32 0, %v1247
  %v1249 = vrot.slane %v1242, %v1248
  %v1267 = vunpack.c.l.b16 %v1226
  %v1268 = vunpack.c.l.b16 %v1227
  %v1269 = vunpack.c.l.b16 %v1228
  %v1270 = vunpack.c.l.b16 %v1229
  %v1271 = vunpack.c.l.b16 %v1230
  %v1272 = vunpack.c.l.b16 %v1231
  %v1273 = vunpack.c.l.b16 %v1232
  %v1274 = vunpack.c.l.b16 %v1233
  %v1275 = vunpack.c.l.b16 %v1234
  %v1276 = vunpack.c.l.b16 %v1235
  %v1277 = vunpack.c.l.b16 %v1236
  %v1278 = vunpack.c.l.b16 %v1237
  %v1279 = vunpack.c.l.b16 %v1238
  %v1280 = vunpack.c.l.b16 %v1239
  %v1281 = vunpack.c.l.b16 %v1240
  %v1282 = vunpack.c.l.b16 %v1241
  %v1283 = vpack.c.b16 %v1268, %v1267
  %v1284 = vpack.c.b16 %v1270, %v1269
  %v1285 = vpack.c.b16 %v1272, %v1271
  %v1286 = vpack.c.b16 %v1274, %v1273
  %v1287 = vpack.c.b16 %v1276, %v1275
  %v1288 = vpack.c.b16 %v1278, %v1277
  %v1289 = vpack.c.b16 %v1280, %v1279
  %v1290 = vpack.c.b16 %v1282, %v1281
  %1299 = vmatprep.subr.bf16.mxu0 0
  %1300 = vmatpush1.bf16.msra.mxu0 %v1283
  %1301 = vmatprep.subr.bf16.mxu0 0
  %1302 = vmatpush1.bf16.msra.mxu0 %v1284
  %1303 = vmatprep.subr.bf16.mxu0 0
  %1304 = vmatpush1.bf16.msra.mxu0 %v1285
  %1305 = vmatprep.subr.bf16.mxu0 0
  %1306 = vmatpush1.bf16.msra.mxu0 %v1286
  %1307 = vmatprep.subr.bf16.mxu0 0
  %1308 = vmatpush1.bf16.msra.mxu0 %v1287
  %1309 = vmatprep.subr.bf16.mxu0 0
  %1310 = vmatpush1.bf16.msra.mxu0 %v1288
  %1311 = vmatprep.subr.bf16.mxu0 0
  %1312 = vmatpush1.bf16.msra.mxu0 %v1289
  %1313 = vmatprep.subr.bf16.mxu0 0
  %1314 = vmatpush1.bf16.msra.mxu0 %v1290
  %1315 = vmatprep.subr.bf16.mxu0 0
  %1316 = vmatpush1.bf16.msra.mxu0 0
  %1317 = vmatprep.subr.bf16.mxu0 0
  %1318 = vmatpush1.bf16.msra.mxu0 0
  %1319 = vmatprep.subr.bf16.mxu0 0
  %1320 = vmatpush1.bf16.msra.mxu0 0
  %1321 = vmatprep.subr.bf16.mxu0 0
  %1322 = vmatpush1.bf16.msra.mxu0 0
  %1323 = vmatprep.subr.bf16.mxu0 0
  %1324 = vmatpush1.bf16.msra.mxu0 0
  %1325 = vmatprep.subr.bf16.mxu0 0
  %1326 = vmatpush1.bf16.msra.mxu0 0
  %1327 = vmatprep.subr.bf16.mxu0 0
  %1328 = vmatpush1.bf16.msra.mxu0 0
  %1329 = vmatprep.subr.bf16.mxu0 0
  %1330 = vmatpush1.bf16.msra.mxu0 0
  %1331 = vmatprep.mubr.bf16.mxu0 0
  %1332 = vmatmul.mubr.bf16.gmra.mrb[0].mxu0 %v1243
  %v1333 = vpop.f32.mrb[0].mxu0
  %v1334 = vadd.f32 %v1249, %v1333
  %v1335 = vpop.f32.mrb[0].mxu0
  %v1336 = vpop.f32.mrb[0].mxu0
  %v1337 = vadd.f32 %v1249, %v1336
  %v1338 = vpop.f32.mrb[0].mxu0
  %1339 = vmatprep.mubr.bf16.mxu0 0
  %1340 = vmatmul.mubr.bf16.gmra.mrb[0].mxu0 %v1244
  %v1341 = vpop.f32.mrb[0].mxu0
  %v1342 = vadd.f32 %v1249, %v1341
  %v1343 = vpop.f32.mrb[0].mxu0
  %v1344 = vpop.f32.mrb[0].mxu0
  %v1345 = vpop.f32.mrb[0].mxu0
  %1346 = vdwg.mxu0
  %v1347 = vmax.f32 %v1334, 0.0
  %v1348 = vmax.f32 %v1337, 0.0
  %v1349 = vmax.f32 %v1342, 0.0
  %v1350 = vld [vmem:[%s10] sm:$0xf]
  %v1351 = vld [vmem:[%s10 + $0x4] sm:$0xf]
  %v1352 = vld [vmem:[%s10 + $0x8] sm:$0xf]
  %v1353 = vld [vmem:[%s10 + $0xc] sm:$0xf]
  %v1354 = vld [vmem:[%s10 + $0x10] sm:$0xf]
  %v1355 = vld [vmem:[%s10 + $0x14] sm:$0xf]
  %v1356 = vld [vmem:[%s10 + $0x18] sm:$0xf]
  %v1357 = vld [vmem:[%s10 + $0x1c] sm:$0xf]
  %v1358 = vld [vmem:[%s10 + $0x20] sm:$0xf]
  %v1359 = vld [vmem:[%s10 + $0x24] sm:$0xf]
  %v1360 = vld [vmem:[%s10 + $0x28] sm:$0xf]
  %v1361 = vld [vmem:[%s10 + $0x2c] sm:$0xf]
  %v1362 = vld [vmem:[%s10 + $0x30] sm:$0xf]
  %v1363 = vld [vmem:[%s10 + $0x34] sm:$0xf]
  %v1364 = vld [vmem:[%s10 + $0x38] sm:$0xf]
  %v1365 = vld [vmem:[%s10 + $0x3c] sm:$0xf]
  %v1366 = vld [vmem:[%s11] sm:$0x1]
  %v1367 = vpack.c.bf16 %v1348, %v1347
  %v1368 = vpack.c.bf16 %v1349, %v1349
  %v1370 = vlaneseq
  %v1371 = vshrl.u32 %v1370, 7
  %v1372 = vsub.s32 0, %v1371
  %v1373 = vrot.slane %v1366, %v1372
  %v1391 = vunpack.c.l.b16 %v1350
  %v1392 = vunpack.c.l.b16 %v1351
  %v1393 = vunpack.c.l.b16 %v1352
  %v1394 = vunpack.c.l.b16 %v1353
  %v1395 = vunpack.c.l.b16 %v1354
  %v1396 = vunpack.c.l.b16 %v1355
  %v1397 = vunpack.c.l.b16 %v1356
  %v1398 = vunpack.c.l.b16 %v1357
  %v1399 = vunpack.c.l.b16 %v1358
  %v1400 = vunpack.c.l.b16 %v1359
  %v1401 = vunpack.c.l.b16 %v1360
  %v1402 = vunpack.c.l.b16 %v1361
  %v1403 = vunpack.c.l.b16 %v1362
  %v1404 = vunpack.c.l.b16 %v1363
  %v1405 = vunpack.c.l.b16 %v1364
  %v1406 = vunpack.c.l.b16 %v1365
  %v1407 = vpack.c.b16 %v1392, %v1391
  %v1408 = vpack.c.b16 %v1394, %v1393
  %v1409 = vpack.c.b16 %v1396, %v1395
  %v1410 = vpack.c.b16 %v1398, %v1397
  %v1411 = vpack.c.b16 %v1400, %v1399
  %v1412 = vpack.c.b16 %v1402, %v1401
  %v1413 = vpack.c.b16 %v1404, %v1403
  %v1414 = vpack.c.b16 %v1406, %v1405
  %1423 = vmatprep.subr.bf16.mxu0 0
  %1424 = vmatpush1.bf16.msra.mxu0 %v1407
  %1425 = vmatprep.subr.bf16.mxu0 0
  %1426 = vmatpush1.bf16.msra.mxu0 %v1408
  %1427 = vmatprep.subr.bf16.mxu0 0
  %1428 = vmatpush1.bf16.msra.mxu0 %v1409
  %1429 = vmatprep.subr.bf16.mxu0 0
  %1430 = vmatpush1.bf16.msra.mxu0 %v1410
  %1431 = vmatprep.subr.bf16.mxu0 0
  %1432 = vmatpush1.bf16.msra.mxu0 %v1411
  %1433 = vmatprep.subr.bf16.mxu0 0
  %1434 = vmatpush1.bf16.msra.mxu0 %v1412
  %1435 = vmatprep.subr.bf16.mxu0 0
  %1436 = vmatpush1.bf16.msra.mxu0 %v1413
  %1437 = vmatprep.subr.bf16.mxu0 0
  %1438 = vmatpush1.bf16.msra.mxu0 %v1414
  %1439 = vmatprep.subr.bf16.mxu0 0
  %1440 = vmatpush1.bf16.msra.mxu0 0
  %1441 = vmatprep.subr.bf16.mxu0 0
  %1442 = vmatpush1.bf16.msra.mxu0 0
  %1443 = vmatprep.subr.bf16.mxu0 0
  %1444 = vmatpush1.bf16.msra.mxu0 0
  %1445 = vmatprep.subr.bf16.mxu0 0
  %1446 = vmatpush1.bf16.msra.mxu0 0
  %1447 = vmatprep.subr.bf16.mxu0 0
  %1448 = vmatpush1.bf16.msra.mxu0 0
  %1449 = vmatprep.subr.bf16.mxu0 0
  %1450 = vmatpush1.bf16.msra.mxu0 0
  %1451 = vmatprep.subr.bf16.mxu0 0
  %1452 = vmatpush1.bf16.msra.mxu0 0
  %1453 = vmatprep.subr.bf16.mxu0 0
  %1454 = vmatpush1.bf16.msra.mxu0 0
  %1455 = vmatprep.mubr.bf16.mxu0 0
  %1456 = vmatmul.mubr.bf16.gmra.mrb[0].mxu0 %v1367
  %v1457 = vpop.f32.mrb[0].mxu0
  %v1458 = vadd.f32 %v1373, %v1457
  %v1459 = vpop.f32.mrb[0].mxu0
  %v1460 = vpop.f32.mrb[0].mxu0
  %v1461 = vadd.f32 %v1373, %v1460
  %v1462 = vpop.f32.mrb[0].mxu0
  %1463 = vmatprep.mubr.bf16.mxu0 0
  %1464 = vmatmul.mubr.bf16.gmra.mrb[0].mxu0 %v1368
  %v1465 = vpop.f32.mrb[0].mxu0
  %v1466 = vadd.f32 %v1373, %v1465
  %v1467 = vpop.f32.mrb[0].mxu0
  %v1468 = vpop.f32.mrb[0].mxu0
  %v1469 = vpop.f32.mrb[0].mxu0
  %1470 = vdwg.mxu0
  %v1471 = vadd.f32 %v1223, %v1458
  %v1472 = vadd.f32 %v1224, %v1461
  %v1473 = vadd.f32 %v1225, %v1466
  %v1474 = vld [vmem:[%s12] sm:$0x1]
  %v1475 = vld [vmem:[%s13] sm:$0x1]
  %1476 = vadd.xlane.f32.xlu0 %v1471
  %v1477 = vpop.xlane.xlu0 %1476
  %1478 = vadd.xlane.f32.xlu0 %v1472
  %v1479 = vpop.xlane.xlu0 %1478
  %v1480 = vsel %vm1175, %v1473, 0.0
  %1481 = vadd.xlane.f32.xlu0 %v1480
  %v1482 = vpop.xlane.xlu0 %1481
  %v1483 = vmul.f32 %v1477, %v1179
  %v1484 = vmul.f32 %v1479, %v1179
  %v1485 = vmul.f32 %v1482, %v1179
  %v1486 = vsub.f32 %v1471, %v1483
  %v1487 = vsub.f32 %v1472, %v1484
  %v1488 = vsub.f32 %v1473, %v1485
  %v1489 = vmul.f32 %v1486, %v1486
  %v1490 = vmul.f32 %v1487, %v1487
  %v1491 = vmul.f32 %v1488, %v1488
  %1492 = vadd.xlane.f32.xlu0 %v1489
  %v1493 = vpop.xlane.xlu0 %1492
  %1494 = vadd.xlane.f32.xlu0 %v1490
  %v1495 = vpop.xlane.xlu0 %1494
  %v1496 = vsel %vm1175, %v1491, 0.0
  %1497 = vadd.xlane.f32.xlu0 %v1496
  %v1498 = vpop.xlane.xlu0 %1497
  %v1499 = vmul.f32 %v1493, %v1179
  %v1500 = vmul.f32 %v1495, %v1179
  %v1501 = vmul.f32 %v1498, %v1179
  %v1502 = vadd.f32 %v1499, 1e-05
  %v1503 = vadd.f32 %v1500, 1e-05
  %v1504 = vadd.f32 %v1501, 1e-05
  %v1505 = vrsqrt.pop %v1502
  %v1506 = vrsqrt.pop %v1503
  %v1507 = vrsqrt.pop %v1504
  %v1508 = vmul.f32 %v1486, %v1505
  %v1509 = vmul.f32 %v1487, %v1506
  %v1510 = vmul.f32 %v1488, %v1507
  %v1512 = vlaneseq
  %v1513 = vshrl.u32 %v1512, 7
  %v1514 = vsub.s32 0, %v1513
  %v1515 = vrot.slane %v1474, %v1514
  %v1517 = vmul.f32 %v1508, %v1515
  %v1518 = vmul.f32 %v1509, %v1515
  %v1519 = vmul.f32 %v1510, %v1515
  %v1521 = vlaneseq
  %v1522 = vshrl.u32 %v1521, 7
  %v1523 = vsub.s32 0, %v1522
  %v1524 = vrot.slane %v1475, %v1523
  %v1526 = vadd.f32 %v1517, %v1524
  %v1527 = vadd.f32 %v1518, %v1524
  %v1528 = vadd.f32 %v1519, %v1524
  %1529 = vst [vmem:[%s14] sm:$0xff] %v1526
  %1530 = vst [vmem:[%s14 + $0x8] sm:$0xff] %v1527
  %1531 = vst [vmem:[%s14 + $0x10] sm:$0xf] %v1528
  // Predicated region
  $region58: #{seq2seq_forward.6} parent=0 // pred_check
    _
  $region59: #{seq2seq_forward.6} parent=0 // pred_check_branch
    %1533 = sbr.rel (0) target = $region61
  $region60: #{seq2seq_forward.6} parent=0 // pred_region
    _
  $region61: #{seq2seq_forward.6} parent=0 // pred_fallthru
    _
  // Predicated region
  $region62: #{seq2seq_forward.6} parent=0 // pred_check
    _
  $region63: #{seq2seq_forward.6} parent=0 // pred_check_branch
    %1535 = sbr.rel (0) target = $region65
  $region64: #{seq2seq_forward.6} parent=0 // pred_region
    _
  $region65: #{seq2seq_forward.6} parent=0 // pred_fallthru
    _

// kernel: seq2seq_forward.11
$region0: #{seq2seq_forward.11}
  #allocation0 [shape = 'u32[]', space=smem, size = 0x4, offset = 0x4, fixed_abs, tag = 'smem constant byte address 0x4 - core index']
  #allocation1 [shape = 'u32[144,128]{1,0:T(1,128)}', space=vmem, size = 0x12000, scoped, tag = 'internal scratch']
  %s0 = inlined_call_operand.vmem [shape: f32[16,128], index: 0, kind: input, shape index: {}]
  %s1 = inlined_call_operand.vmem [shape: f32[1,128], index: 1, kind: input, shape index: {}]
  %s2 = inlined_call_operand.hbm [shape: f32[1,128], index: 2, kind: input, shape index: {}]
  %s3 = inlined_call_operand.vmem [shape: bf16[128,128], index: 3, kind: input, shape index: {}]
  %s4 = inlined_call_operand.hbm [shape: f32[1,128], index: 4, kind: input, shape index: {}]
  %s5 = inlined_call_operand.vmem [shape: f32[16,128], index: 5, kind: output, shape index: {}]
  %s6 = sld [smem:[#allocation0]]
  $region38: #{seq2seq_forward.11} parent=0
    _
  %s8 = ssub.s32 1, %s6
  %s9 = scalar_select 0, %s8, %s6
  $region1: #{seq2seq_forward.11} parent=0
    #allocation2 [shape = 'u8[512]{0}', space=vmem, size = 0x400, scoped, tag = 'input window, operand 2, single buffered']
    #allocation3 [shape = 's32[1]{0}', space=sflag, size = 0x4, scoped, tag = 'scoped memory for seq2seq_forward.11']
    #allocation4 [shape = 'u8[512]{0}', space=vmem, size = 0x400, scoped, tag = 'input window, operand 4, single buffered']
    #allocation5 [shape = 's32[1]{0}', space=sflag, size = 0x4, scoped, tag = 'scoped memory for seq2seq_forward.11']
    %10 = vsyncpa [#allocation3], 0
    %11 = vsyncpa [#allocation5], 0
    // Predicated region
    $region2: #{seq2seq_forward.11} parent=1 // pred_check
      _
    $region3: #{seq2seq_forward.11} parent=1 // pred_check_branch
      %13 = sbr.rel (0) target = $region5
    $region4: #{seq2seq_forward.11} parent=1 // pred_region
      _
    $region5: #{seq2seq_forward.11} parent=1 // pred_fallthru
      _
    // Predicated region
    $region6: #{seq2seq_forward.11} parent=1 // pred_check
      _
    $region7: #{seq2seq_forward.11} parent=1 // pred_check_branch
      %15 = sbr.rel (0) target = $region9
    $region8: #{seq2seq_forward.11} parent=1 // pred_region
      _
    $region9: #{seq2seq_forward.11} parent=1 // pred_fallthru
      _
    // Predicated region
    $region10: #{seq2seq_forward.11} parent=1 // pred_check
      _
    $region11: #{seq2seq_forward.11} parent=1 // pred_check_branch
      %17 = sbr.rel (0) target = $region13
    $region12: #{seq2seq_forward.11} parent=1 // pred_region
      %s19 = ssub.s32 16, 16
      %20 = vsyncadd [#allocation3], %s19
      %s22 = sshll.u32 [#allocation2], 4
      %s23 = int_to_ptr.vmem [resolvable:$true] %s22
      %25 = dma.hbm_to_vmem [thread:$0]  %s2, 16, %s23, [#allocation3]
    $region13: #{seq2seq_forward.11} parent=1 // pred_fallthru
      _
    // Predicated region
    $region14: #{seq2seq_forward.11} parent=1 // pred_check
      _
    $region15: #{seq2seq_forward.11} parent=1 // pred_check_branch
      %27 = sbr.rel (0) target = $region17
    $region16: #{seq2seq_forward.11} parent=1 // pred_region
      _
    $region17: #{seq2seq_forward.11} parent=1 // pred_fallthru
      _
    // Predicated region
    $region18: #{seq2seq_forward.11} parent=1 // pred_check
      _
    $region19: #{seq2seq_forward.11} parent=1 // pred_check_branch
      %29 = sbr.rel (0) target = $region21
    $region20: #{seq2seq_forward.11} parent=1 // pred_region
      %s31 = ssub.s32 16, 16
      %32 = vsyncadd [#allocation5], %s31
      %s34 = sshll.u32 [#allocation4], 4
      %s35 = int_to_ptr.vmem [resolvable:$true] %s34
      %37 = dma.hbm_to_vmem [thread:$0]  %s4, 16, %s35, [#allocation5]
    $region21: #{seq2seq_forward.11} parent=1 // pred_fallthru
      _
    // Predicated region
    $region22: #{seq2seq_forward.11} parent=1 // pred_check
      _
    $region23: #{seq2seq_forward.11} parent=1 // pred_check_branch
      %39 = sbr.rel (0) target = $region25
    $region24: #{seq2seq_forward.11} parent=1 // pred_region
      %40 = dma.done [#allocation3], 16
    $region25: #{seq2seq_forward.11} parent=1 // pred_fallthru
      _
    // Predicated region
    $region26: #{seq2seq_forward.11} parent=1 // pred_check
      _
    $region27: #{seq2seq_forward.11} parent=1 // pred_check_branch
      %42 = sbr.rel (0) target = $region29
    $region28: #{seq2seq_forward.11} parent=1 // pred_region
      %43 = dma.done [#allocation5], 16
    $region29: #{seq2seq_forward.11} parent=1 // pred_fallthru
      _
    %v45 = vld [vmem:[%s0] sm:$0xff]
    %v46 = vld [vmem:[%s0 + $0x8] sm:$0xff]
    %v47 = vld [vmem:[%s1] sm:$0x1]
    %v48 = vld [vmem:[#allocation2] sm:$0x1]
    %49 = vadd.xlane.f32.xlu0 %v45
    %v50 = vpop.xlane.xlu0 %49
    %51 = vadd.xlane.f32.xlu0 %v46
    %v52 = vpop.xlane.xlu0 %51
    %v53 = vrcp.pop 128.0
    %v54 = vmul.f32 %v50, %v53
    %v55 = vmul.f32 %v52, %v53
    %v56 = vsub.f32 %v45, %v54
    %v57 = vsub.f32 %v46, %v55
    %v58 = vmul.f32 %v56, %v56
    %v59 = vmul.f32 %v57, %v57
    %60 = vadd.xlane.f32.xlu0 %v58
    %v61 = vpop.xlane.xlu0 %60
    %62 = vadd.xlane.f32.xlu0 %v59
    %v63 = vpop.xlane.xlu0 %62
    %v64 = vmul.f32 %v61, %v53
    %v65 = vmul.f32 %v63, %v53
    %v66 = vadd.f32 %v64, 1e-05
    %v67 = vadd.f32 %v65, 1e-05
    %v68 = vrsqrt.pop %v66
    %v69 = vrsqrt.pop %v67
    %v70 = vmul.f32 %v56, %v68
    %v71 = vmul.f32 %v57, %v69
    %v73 = vlaneseq
    %v74 = vshrl.u32 %v73, 7
    %v75 = vsub.s32 0, %v74
    %v76 = vrot.slane %v47, %v75
    %v78 = vmul.f32 %v70, %v76
    %v79 = vmul.f32 %v71, %v76
    %v81 = vlaneseq
    %v82 = vshrl.u32 %v81, 7
    %v83 = vsub.s32 0, %v82
    %v84 = vrot.slane %v48, %v83
    %v86 = vadd.f32 %v78, %v84
    %v87 = vadd.f32 %v79, %v84
    %v88 = vld [vmem:[%s3] sm:$0xf]
    %v89 = vld [vmem:[%s3 + $0x4] sm:$0xf]
    %v90 = vld [vmem:[%s3 + $0x8] sm:$0xf]
    %v91 = vld [vmem:[%s3 + $0xc] sm:$0xf]
    %v92 = vld [vmem:[%s3 + $0x10] sm:$0xf]
    %v93 = vld [vmem:[%s3 + $0x14] sm:$0xf]
    %v94 = vld [vmem:[%s3 + $0x18] sm:$0xf]
    %v95 = vld [vmem:[%s3 + $0x1c] sm:$0xf]
    %v96 = vld [vmem:[%s3 + $0x20] sm:$0xf]
    %v97 = vld [vmem:[%s3 + $0x24] sm:$0xf]
    %v98 = vld [vmem:[%s3 + $0x28] sm:$0xf]
    %v99 = vld [vmem:[%s3 + $0x2c] sm:$0xf]
    %v100 = vld [vmem:[%s3 + $0x30] sm:$0xf]
    %v101 = vld [vmem:[%s3 + $0x34] sm:$0xf]
    %v102 = vld [vmem:[%s3 + $0x38] sm:$0xf]
    %v103 = vld [vmem:[%s3 + $0x3c] sm:$0xf]
    %v104 = vld [vmem:[#allocation4] sm:$0x1]
    %v105 = vpack.c.bf16 %v87, %v86
    %v107 = vlaneseq
    %v108 = vshrl.u32 %v107, 7
    %v109 = vsub.s32 0, %v108
    %v110 = vrot.slane %v104, %v109
    %v128 = vunpack.c.l.b16 %v88
    %v129 = vunpack.c.l.b16 %v89
    %v130 = vunpack.c.l.b16 %v90
    %v131 = vunpack.c.l.b16 %v91
    %v132 = vunpack.c.l.b16 %v92
    %v133 = vunpack.c.l.b16 %v93
    %v134 = vunpack.c.l.b16 %v94
    %v135 = vunpack.c.l.b16 %v95
    %v136 = vunpack.c.l.b16 %v96
    %v137 = vunpack.c.l.b16 %v97
    %v138 = vunpack.c.l.b16 %v98
    %v139 = vunpack.c.l.b16 %v99
    %v140 = vunpack.c.l.b16 %v100
    %v141 = vunpack.c.l.b16 %v101
    %v142 = vunpack.c.l.b16 %v102
    %v143 = vunpack.c.l.b16 %v103
    %v144 = vpack.c.b16 %v129, %v128
    %v145 = vpack.c.b16 %v131, %v130
    %v146 = vpack.c.b16 %v133, %v132
    %v147 = vpack.c.b16 %v135, %v134
    %v148 = vpack.c.b16 %v137, %v136
    %v149 = vpack.c.b16 %v139, %v138
    %v150 = vpack.c.b16 %v141, %v140
    %v151 = vpack.c.b16 %v143, %v142
    %160 = vmatprep.subr.bf16.mxu0 0
    %161 = vmatpush1.bf16.msra.mxu0 %v144
    %162 = vmatprep.subr.bf16.mxu0 0
    %163 = vmatpush1.bf16.msra.mxu0 %v145
    %164 = vmatprep.subr.bf16.mxu0 0
    %165 = vmatpush1.bf16.msra.mxu0 %v146
    %166 = vmatprep.subr.bf16.mxu0 0
    %167 = vmatpush1.bf16.msra.mxu0 %v147
    %168 = vmatprep.subr.bf16.mxu0 0
    %169 = vmatpush1.bf16.msra.mxu0 %v148
    %170 = vmatprep.subr.bf16.mxu0 0
    %171 = vmatpush1.bf16.msra.mxu0 %v149
    %172 = vmatprep.subr.bf16.mxu0 0
    %173 = vmatpush1.bf16.msra.mxu0 %v150
    %174 = vmatprep.subr.bf16.mxu0 0
    %175 = vmatpush1.bf16.msra.mxu0 %v151
    %176 = vmatprep.subr.bf16.mxu0 0
    %177 = vmatpush1.bf16.msra.mxu0 0
    %178 = vmatprep.subr.bf16.mxu0 0
    %179 = vmatpush1.bf16.msra.mxu0 0
    %180 = vmatprep.subr.bf16.mxu0 0
    %181 = vmatpush1.bf16.msra.mxu0 0
    %182 = vmatprep.subr.bf16.mxu0 0
    %183 = vmatpush1.bf16.msra.mxu0 0
    %184 = vmatprep.subr.bf16.mxu0 0
    %185 = vmatpush1.bf16.msra.mxu0 0
    %186 = vmatprep.subr.bf16.mxu0 0
    %187 = vmatpush1.bf16.msra.mxu0 0
    %188 = vmatprep.subr.bf16.mxu0 0
    %189 = vmatpush1.bf16.msra.mxu0 0
    %190 = vmatprep.subr.bf16.mxu0 0
    %191 = vmatpush1.bf16.msra.mxu0 0
    %192 = vmatprep.mubr.bf16.mxu0 0
    %193 = vmatmul.mubr.bf16.gmra.mrb[0].mxu0 %v105
    %v194 = vpop.f32.mrb[0].mxu0
    %v195 = vadd.f32 %v110, %v194
    %v196 = vpop.f32.mrb[0].mxu0
    %v197 = vpop.f32.mrb[0].mxu0
    %v198 = vadd.f32 %v110, %v197
    %v199 = vpop.f32.mrb[0].mxu0
    %200 = vdwg.mxu0
    %201 = vst [vmem:[%s5] sm:$0xff] %v195
    %202 = vst [vmem:[%s5 + $0x8] sm:$0xff] %v198
    // Predicated region
    $region30: #{seq2seq_forward.11} parent=1 // pred_check
      _
    $region31: #{seq2seq_forward.11} parent=1 // pred_check_branch
      %204 = sbr.rel (0) target = $region33
    $region32: #{seq2seq_forward.11} parent=1 // pred_region
      _
    $region33: #{seq2seq_forward.11} parent=1 // pred_fallthru
      _
    // Predicated region
    $region34: #{seq2seq_forward.11} parent=1 // pred_check
      _
    $region35: #{seq2seq_forward.11} parent=1 // pred_check_branch
      %206 = sbr.rel (0) target = $region37
    $region36: #{seq2seq_forward.11} parent=1 // pred_region
      _
    $region37: #{seq2seq_forward.11} parent=1 // pred_fallthru
      _
    %207 = vsyncpa [#allocation3], 1
    %208 = vsyncpa [#allocation5], 1

// kernel: seq2seq_forward.10
$region0: #{seq2seq_forward.10}
  #allocation0 [shape = 'u32[]', space=smem, size = 0x4, offset = 0x4, fixed_abs, tag = 'smem constant byte address 0x4 - core index']
  #allocation1 [shape = 'u32[144,128]{1,0:T(1,128)}', space=vmem, size = 0x12000, scoped, tag = 'internal scratch']
  %s0 = inlined_call_operand.vmem [shape: f32[16,128], index: 0, kind: input, shape index: {}]
  %s1 = inlined_call_operand.vmem [shape: f32[20,128], index: 1, kind: input, shape index: {}]
  %s2 = inlined_call_operand.vmem [shape: f32[16,16], index: 2, kind: input, shape index: {}]
  %s3 = inlined_call_operand.vmem [shape: f32[16,20], index: 3, kind: input, shape index: {}]
  %s4 = inlined_call_operand.vmem [shape: bf16[128,384], index: 4, kind: input, shape index: {}]
  %s5 = inlined_call_operand.vmem [shape: f32[1,384], index: 5, kind: input, shape index: {}]
  %s6 = inlined_call_operand.vmem [shape: bf16[128,128], index: 6, kind: input, shape index: {}]
  %s7 = inlined_call_operand.vmem [shape: f32[1,128], index: 7, kind: input, shape index: {}]
  %s8 = inlined_call_operand.vmem [shape: f32[1,128], index: 8, kind: input, shape index: {}]
  %s9 = inlined_call_operand.vmem [shape: f32[1,128], index: 9, kind: input, shape index: {}]
  %s10 = inlined_call_operand.vmem [shape: bf16[128,128], index: 10, kind: input, shape index: {}]
  %s11 = inlined_call_operand.vmem [shape: f32[1,128], index: 11, kind: input, shape index: {}]
  %s12 = inlined_call_operand.vmem [shape: bf16[128,256], index: 12, kind: input, shape index: {}]
  %s13 = inlined_call_operand.vmem [shape: f32[1,256], index: 13, kind: input, shape index: {}]
  %s14 = inlined_call_operand.vmem [shape: bf16[128,128], index: 14, kind: input, shape index: {}]
  %s15 = inlined_call_operand.vmem [shape: f32[1,128], index: 15, kind: input, shape index: {}]
  %s16 = inlined_call_operand.vmem [shape: f32[1,128], index: 16, kind: input, shape index: {}]
  %s17 = inlined_call_operand.vmem [shape: f32[1,128], index: 17, kind: input, shape index: {}]
  %s18 = inlined_call_operand.vmem [shape: bf16[128,128], index: 18, kind: input, shape index: {}]
  %s19 = inlined_call_operand.vmem [shape: f32[1,128], index: 19, kind: input, shape index: {}]
  %s20 = inlined_call_operand.vmem [shape: bf16[128,128], index: 20, kind: input, shape index: {}]
  %s21 = inlined_call_operand.vmem [shape: f32[1,128], index: 21, kind: input, shape index: {}]
  %s22 = inlined_call_operand.hbm [shape: f32[1,128], index: 22, kind: input, shape index: {}]
  %s23 = inlined_call_operand.hbm [shape: f32[1,128], index: 23, kind: input, shape index: {}]
  %s24 = inlined_call_operand.vmem [shape: f32[16,128], index: 24, kind: output, shape index: {}]
  %s25 = sld [smem:[#allocation0]]
  $region114: #{seq2seq_forward.10} parent=0
    _
  %s27 = ssub.s32 1, %s25
  %s28 = scalar_select 0, %s27, %s25
  $region1: #{seq2seq_forward.10} parent=0
    #allocation2 [shape = 'u8[512]{0}', space=vmem, size = 0x400, scoped, tag = 'input window, operand 22, single buffered']
    #allocation3 [shape = 's32[1]{0}', space=sflag, size = 0x4, scoped, tag = 'scoped memory for seq2seq_forward.10']
    #allocation4 [shape = 'u8[512]{0}', space=vmem, size = 0x400, scoped, tag = 'input window, operand 23, single buffered']
    #allocation5 [shape = 's32[1]{0}', space=sflag, size = 0x4, scoped, tag = 'scoped memory for seq2seq_forward.10']
    %29 = vsyncpa [#allocation3], 0
    %30 = vsyncpa [#allocation5], 0
    // Predicated region
    $region2: #{seq2seq_forward.10} parent=1 // pred_check
      _
    $region3: #{seq2seq_forward.10} parent=1 // pred_check_branch
      %32 = sbr.rel (0) target = $region5
    $region4: #{seq2seq_forward.10} parent=1 // pred_region
      _
    $region5: #{seq2seq_forward.10} parent=1 // pred_fallthru
      _
    // Predicated region
    $region6: #{seq2seq_forward.10} parent=1 // pred_check
      _
    $region7: #{seq2seq_forward.10} parent=1 // pred_check_branch
      %34 = sbr.rel (0) target = $region9
    $region8: #{seq2seq_forward.10} parent=1 // pred_region
      _
    $region9: #{seq2seq_forward.10} parent=1 // pred_fallthru
      _
    // Predicated region
    $region10: #{seq2seq_forward.10} parent=1 // pred_check
      _
    $region11: #{seq2seq_forward.10} parent=1 // pred_check_branch
      %36 = sbr.rel (0) target = $region13
    $region12: #{seq2seq_forward.10} parent=1 // pred_region
      _
    $region13: #{seq2seq_forward.10} parent=1 // pred_fallthru
      _
    // Predicated region
    $region14: #{seq2seq_forward.10} parent=1 // pred_check
      _
    $region15: #{seq2seq_forward.10} parent=1 // pred_check_branch
      %38 = sbr.rel (0) target = $region17
    $region16: #{seq2seq_forward.10} parent=1 // pred_region
      _
    $region17: #{seq2seq_forward.10} parent=1 // pred_fallthru
      _
    // Predicated region
    $region18: #{seq2seq_forward.10} parent=1 // pred_check
      _
    $region19: #{seq2seq_forward.10} parent=1 // pred_check_branch
      %40 = sbr.rel (0) target = $region21
    $region20: #{seq2seq_forward.10} parent=1 // pred_region
      _
    $region21: #{seq2seq_forward.10} parent=1 // pred_fallthru
      _
    // Predicated region
    $region22: #{seq2seq_forward.10} parent=1 // pred_check
      _
    $region23: #{seq2seq_forward.10} parent=1 // pred_check_branch
      %42 = sbr.rel (0) target = $region25
    $region24: #{seq2seq_forward.10} parent=1 // pred_region
      _
    $region25: #{seq2seq_forward.10} parent=1 // pred_fallthru
      _
    // Predicated region
    $region26: #{seq2seq_forward.10} parent=1 // pred_check
      _
    $region27: #{seq2seq_forward.10} parent=1 // pred_check_branch
      %44 = sbr.rel (0) target = $region29
    $region28: #{seq2seq_forward.10} parent=1 // pred_region
      _
    $region29: #{seq2seq_forward.10} parent=1 // pred_fallthru
      _
    // Predicated region
    $region30: #{seq2seq_forward.10} parent=1 // pred_check
      _
    $region31: #{seq2seq_forward.10} parent=1 // pred_check_branch
      %46 = sbr.rel (0) target = $region33
    $region32: #{seq2seq_forward.10} parent=1 // pred_region
      _
    $region33: #{seq2seq_forward.10} parent=1 // pred_fallthru
      _
    // Predicated region
    $region34: #{seq2seq_forward.10} parent=1 // pred_check
      _
    $region35: #{seq2seq_forward.10} parent=1 // pred_check_branch
      %48 = sbr.rel (0) target = $region37
    $region36: #{seq2seq_forward.10} parent=1 // pred_region
      _
    $region37: #{seq2seq_forward.10} parent=1 // pred_fallthru
      _
    // Predicated region
    $region38: #{seq2seq_forward.10} parent=1 // pred_check
      _
    $region39: #{seq2seq_forward.10} parent=1 // pred_check_branch
      %50 = sbr.rel (0) target = $region41
    $region40: #{seq2seq_forward.10} parent=1 // pred_region
      _
    $region41: #{seq2seq_forward.10} parent=1 // pred_fallthru
      _
    // Predicated region
    $region42: #{seq2seq_forward.10} parent=1 // pred_check
      _
    $region43: #{seq2seq_forward.10} parent=1 // pred_check_branch
      %52 = sbr.rel (0) target = $region45
    $region44: #{seq2seq_forward.10} parent=1 // pred_region
      _
    $region45: #{seq2seq_forward.10} parent=1 // pred_fallthru
      _
    // Predicated region
    $region46: #{seq2seq_forward.10} parent=1 // pred_check
      _
    $region47: #{seq2seq_forward.10} parent=1 // pred_check_branch
      %54 = sbr.rel (0) target = $region49
    $region48: #{seq2seq_forward.10} parent=1 // pred_region
      _
    $region49: #{seq2seq_forward.10} parent=1 // pred_fallthru
      _
    // Predicated region
    $region50: #{seq2seq_forward.10} parent=1 // pred_check
      _
    $region51: #{seq2seq_forward.10} parent=1 // pred_check_branch
      %56 = sbr.rel (0) target = $region53
    $region52: #{seq2seq_forward.10} parent=1 // pred_region
      _
    $region53: #{seq2seq_forward.10} parent=1 // pred_fallthru
      _
    // Predicated region
    $region54: #{seq2seq_forward.10} parent=1 // pred_check
      _
    $region55: #{seq2seq_forward.10} parent=1 // pred_check_branch
      %58 = sbr.rel (0) target = $region57
    $region56: #{seq2seq_forward.10} parent=1 // pred_region
      _
    $region57: #{seq2seq_forward.10} parent=1 // pred_fallthru
      _
    // Predicated region
    $region58: #{seq2seq_forward.10} parent=1 // pred_check
      _
    $region59: #{seq2seq_forward.10} parent=1 // pred_check_branch
      %60 = sbr.rel (0) target = $region61
    $region60: #{seq2seq_forward.10} parent=1 // pred_region
      _
    $region61: #{seq2seq_forward.10} parent=1 // pred_fallthru
      _
    // Predicated region
    $region62: #{seq2seq_forward.10} parent=1 // pred_check
      _
    $region63: #{seq2seq_forward.10} parent=1 // pred_check_branch
      %62 = sbr.rel (0) target = $region65
    $region64: #{seq2seq_forward.10} parent=1 // pred_region
      _
    $region65: #{seq2seq_forward.10} parent=1 // pred_fallthru
      _
    // Predicated region
    $region66: #{seq2seq_forward.10} parent=1 // pred_check
      _
    $region67: #{seq2seq_forward.10} parent=1 // pred_check_branch
      %64 = sbr.rel (0) target = $region69
    $region68: #{seq2seq_forward.10} parent=1 // pred_region
      _
    $region69: #{seq2seq_forward.10} parent=1 // pred_fallthru
      _
    // Predicated region
    $region70: #{seq2seq_forward.10} parent=1 // pred_check
      _
    $region71: #{seq2seq_forward.10} parent=1 // pred_check_branch
      %66 = sbr.rel (0) target = $region73
    $region72: #{seq2seq_forward.10} parent=1 // pred_region
      _
    $region73: #{seq2seq_forward.10} parent=1 // pred_fallthru
      _
    // Predicated region
    $region74: #{seq2seq_forward.10} parent=1 // pred_check
      _
    $region75: #{seq2seq_forward.10} parent=1 // pred_check_branch
      %68 = sbr.rel (0) target = $region77
    $region76: #{seq2seq_forward.10} parent=1 // pred_region
      _
    $region77: #{seq2seq_forward.10} parent=1 // pred_fallthru
      _
    // Predicated region
    $region78: #{seq2seq_forward.10} parent=1 // pred_check
      _
    $region79: #{seq2seq_forward.10} parent=1 // pred_check_branch
      %70 = sbr.rel (0) target = $region81
    $region80: #{seq2seq_forward.10} parent=1 // pred_region
      _
    $region81: #{seq2seq_forward.10} parent=1 // pred_fallthru
      _
    // Predicated region
    $region82: #{seq2seq_forward.10} parent=1 // pred_check
      _
    $region83: #{seq2seq_forward.10} parent=1 // pred_check_branch
      %72 = sbr.rel (0) target = $region85
    $region84: #{seq2seq_forward.10} parent=1 // pred_region
      _
    $region85: #{seq2seq_forward.10} parent=1 // pred_fallthru
      _
    // Predicated region
    $region86: #{seq2seq_forward.10} parent=1 // pred_check
      _
    $region87: #{seq2seq_forward.10} parent=1 // pred_check_branch
      %74 = sbr.rel (0) target = $region89
    $region88: #{seq2seq_forward.10} parent=1 // pred_region
      _
    $region89: #{seq2seq_forward.10} parent=1 // pred_fallthru
      _
    // Predicated region
    $region90: #{seq2seq_forward.10} parent=1 // pred_check
      _
    $region91: #{seq2seq_forward.10} parent=1 // pred_check_branch
      %76 = sbr.rel (0) target = $region93
    $region92: #{seq2seq_forward.10} parent=1 // pred_region
      %s78 = ssub.s32 16, 16
      %79 = vsyncadd [#allocation3], %s78
      %s81 = sshll.u32 [#allocation2], 4
      %s82 = int_to_ptr.vmem [resolvable:$true] %s81
      %84 = dma.hbm_to_vmem [thread:$0]  %s22, 16, %s82, [#allocation3]
    $region93: #{seq2seq_forward.10} parent=1 // pred_fallthru
      _
    // Predicated region
    $region94: #{seq2seq_forward.10} parent=1 // pred_check
      _
    $region95: #{seq2seq_forward.10} parent=1 // pred_check_branch
      %86 = sbr.rel (0) target = $region97
    $region96: #{seq2seq_forward.10} parent=1 // pred_region
      %s88 = ssub.s32 16, 16
      %89 = vsyncadd [#allocation5], %s88
      %s91 = sshll.u32 [#allocation4], 4
      %s92 = int_to_ptr.vmem [resolvable:$true] %s91
      %94 = dma.hbm_to_vmem [thread:$0]  %s23, 16, %s92, [#allocation5]
    $region97: #{seq2seq_forward.10} parent=1 // pred_fallthru
      _
    // Predicated region
    $region98: #{seq2seq_forward.10} parent=1 // pred_check
      _
    $region99: #{seq2seq_forward.10} parent=1 // pred_check_branch
      %96 = sbr.rel (0) target = $region101
    $region100: #{seq2seq_forward.10} parent=1 // pred_region
      %97 = dma.done [#allocation3], 16
    $region101: #{seq2seq_forward.10} parent=1 // pred_fallthru
      _
    // Predicated region
    $region102: #{seq2seq_forward.10} parent=1 // pred_check
      _
    $region103: #{seq2seq_forward.10} parent=1 // pred_check_branch
      %99 = sbr.rel (0) target = $region105
    $region104: #{seq2seq_forward.10} parent=1 // pred_region
      %100 = dma.done [#allocation5], 16
    $region105: #{seq2seq_forward.10} parent=1 // pred_fallthru
      _
    %v102 = vld [vmem:[%s0] sm:$0xff]
    %v103 = vld [vmem:[%s0 + $0x8] sm:$0xff]
    %v104 = vld [vmem:[%s1] sm:$0xff]
    %v105 = vld [vmem:[%s1 + $0x8] sm:$0xff]
    %v106 = vld [vmem:[%s1 + $0x10] sm:$0xf]
    %v107 = vld [vmem:[%s4] sm:$0xff]
    %v108 = vld [vmem:[%s4 + $0x8] sm:$0xf]
    %v109 = vld [vmem:[%s4 + $0xc] sm:$0xff]
    %v110 = vld [vmem:[%s4 + $0x14] sm:$0xf]
    %v111 = vld [vmem:[%s4 + $0x18] sm:$0xff]
    %v112 = vld [vmem:[%s4 + $0x20] sm:$0xf]
    %v113 = vld [vmem:[%s4 + $0x24] sm:$0xff]
    %v114 = vld [vmem:[%s4 + $0x2c] sm:$0xf]
    %v115 = vld [vmem:[%s4 + $0x30] sm:$0xff]
    %v116 = vld [vmem:[%s4 + $0x38] sm:$0xf]
    %v117 = vld [vmem:[%s4 + $0x3c] sm:$0xff]
    %v118 = vld [vmem:[%s4 + $0x44] sm:$0xf]
    %v119 = vld [vmem:[%s4 + $0x48] sm:$0xff]
    %v120 = vld [vmem:[%s4 + $0x50] sm:$0xf]
    %v121 = vld [vmem:[%s4 + $0x54] sm:$0xff]
    %v122 = vld [vmem:[%s4 + $0x5c] sm:$0xf]
    %v123 = vld [vmem:[%s4 + $0x60] sm:$0xff]
    %v124 = vld [vmem:[%s4 + $0x68] sm:$0xf]
    %v125 = vld [vmem:[%s4 + $0x6c] sm:$0xff]
    %v126 = vld [vmem:[%s4 + $0x74] sm:$0xf]
    %v127 = vld [vmem:[%s4 + $0x78] sm:$0xff]
    %v128 = vld [vmem:[%s4 + $0x80] sm:$0xf]
    %v129 = vld [vmem:[%s4 + $0x84] sm:$0xff]
    %v130 = vld [vmem:[%s4 + $0x8c] sm:$0xf]
    %v131 = vld [vmem:[%s4 + $0x90] sm:$0xff]
    %v132 = vld [vmem:[%s4 + $0x98] sm:$0xf]
    %v133 = vld [vmem:[%s4 + $0x9c] sm:$0xff]
    %v134 = vld [vmem:[%s4 + $0xa4] sm:$0xf]
    %v135 = vld [vmem:[%s4 + $0xa8] sm:$0xff]
    %v136 = vld [vmem:[%s4 + $0xb0] sm:$0xf]
    %v137 = vld [vmem:[%s4 + $0xb4] sm:$0xff]
    %v138 = vld [vmem:[%s4 + $0xbc] sm:$0xf]
    %v139 = vld [vmem:[%s5] sm:$0x7]
    %v140 = vpack.c.bf16 %v103, %v102
    %v142 = vlaneseq
    %v143 = vshrl.u32 %v142, 7
    %v144 = vsub.s32 0, %v143
    %v145 = vrot.slane %v139, %v144
    %v146 = vlaneseq
    %v147 = vshrl.u32 %v146, 7
    %v148 = vsub.s32 1, %v147
    %v149 = vrot.slane %v139, %v148
    %v150 = vlaneseq
    %v151 = vshrl.u32 %v150, 7
    %v152 = vsub.s32 2, %v151
    %v153 = vrot.slane %v139, %v152
    %v189 = vunpack.c.l.b16 %v107
    %v190 = vunpack.c.h.b16 %v107
    %v191 = vunpack.c.l.b16 %v108
    %v192 = vunpack.c.l.b16 %v109
    %v193 = vunpack.c.h.b16 %v109
    %v194 = vunpack.c.l.b16 %v110
    %v195 = vunpack.c.l.b16 %v111
    %v196 = vunpack.c.h.b16 %v111
    %v197 = vunpack.c.l.b16 %v112
    %v198 = vunpack.c.l.b16 %v113
    %v199 = vunpack.c.h.b16 %v113
    %v200 = vunpack.c.l.b16 %v114
    %v201 = vunpack.c.l.b16 %v115
    %v202 = vunpack.c.h.b16 %v115
    %v203 = vunpack.c.l.b16 %v116
    %v204 = vunpack.c.l.b16 %v117
    %v205 = vunpack.c.h.b16 %v117
    %v206 = vunpack.c.l.b16 %v118
    %v207 = vunpack.c.l.b16 %v119
    %v208 = vunpack.c.h.b16 %v119
    %v209 = vunpack.c.l.b16 %v120
    %v210 = vunpack.c.l.b16 %v121
    %v211 = vunpack.c.h.b16 %v121
    %v212 = vunpack.c.l.b16 %v122
    %v213 = vunpack.c.l.b16 %v123
    %v214 = vunpack.c.h.b16 %v123
    %v215 = vunpack.c.l.b16 %v124
    %v216 = vunpack.c.l.b16 %v125
    %v217 = vunpack.c.h.b16 %v125
    %v218 = vunpack.c.l.b16 %v126
    %v219 = vunpack.c.l.b16 %v127
    %v220 = vunpack.c.h.b16 %v127
    %v221 = vunpack.c.l.b16 %v128
    %v222 = vunpack.c.l.b16 %v129
    %v223 = vunpack.c.h.b16 %v129
    %v224 = vunpack.c.l.b16 %v130
    %v225 = vunpack.c.l.b16 %v131
    %v226 = vunpack.c.h.b16 %v131
    %v227 = vunpack.c.l.b16 %v132
    %v228 = vunpack.c.l.b16 %v133
    %v229 = vunpack.c.h.b16 %v133
    %v230 = vunpack.c.l.b16 %v134
    %v231 = vunpack.c.l.b16 %v135
    %v232 = vunpack.c.h.b16 %v135
    %v233 = vunpack.c.l.b16 %v136
    %v234 = vunpack.c.l.b16 %v137
    %v235 = vunpack.c.h.b16 %v137
    %v236 = vunpack.c.l.b16 %v138
    %v237 = vpack.c.b16 %v192, %v189
    %v238 = vpack.c.b16 %v193, %v190
    %v239 = vpack.c.b16 %v194, %v191
    %v240 = vpack.c.b16 %v198, %v195
    %v241 = vpack.c.b16 %v199, %v196
    %v242 = vpack.c.b16 %v200, %v197
    %v243 = vpack.c.b16 %v204, %v201
    %v244 = vpack.c.b16 %v205, %v202
    %v245 = vpack.c.b16 %v206, %v203
    %v246 = vpack.c.b16 %v210, %v207
    %v247 = vpack.c.b16 %v211, %v208
    %v248 = vpack.c.b16 %v212, %v209
    %v249 = vpack.c.b16 %v216, %v213
    %v250 = vpack.c.b16 %v217, %v214
    %v251 = vpack.c.b16 %v218, %v215
    %v252 = vpack.c.b16 %v222, %v219
    %v253 = vpack.c.b16 %v223, %v220
    %v254 = vpack.c.b16 %v224, %v221
    %v255 = vpack.c.b16 %v228, %v225
    %v256 = vpack.c.b16 %v229, %v226
    %v257 = vpack.c.b16 %v230, %v227
    %v258 = vpack.c.b16 %v234, %v231
    %v259 = vpack.c.b16 %v235, %v232
    %v260 = vpack.c.b16 %v236, %v233
    %285 = vmatprep.subr.bf16.mxu0 %v238
    %286 = vmatpush1.bf16.msra.mxu0 %v237
    %287 = vmatprep.subr.bf16.mxu0 %v241
    %288 = vmatpush1.bf16.msra.mxu0 %v240
    %289 = vmatprep.subr.bf16.mxu0 %v244
    %290 = vmatpush1.bf16.msra.mxu0 %v243
    %291 = vmatprep.subr.bf16.mxu0 %v247
    %292 = vmatpush1.bf16.msra.mxu0 %v246
    %293 = vmatprep.subr.bf16.mxu0 %v250
    %294 = vmatpush1.bf16.msra.mxu0 %v249
    %295 = vmatprep.subr.bf16.mxu0 %v253
    %296 = vmatpush1.bf16.msra.mxu0 %v252
    %297 = vmatprep.subr.bf16.mxu0 %v256
    %298 = vmatpush1.bf16.msra.mxu0 %v255
    %299 = vmatprep.subr.bf16.mxu0 %v259
    %300 = vmatpush1.bf16.msra.mxu0 %v258
    %301 = vmatprep.subr.bf16.mxu0 0
    %302 = vmatpush1.bf16.msra.mxu0 0
    %303 = vmatprep.subr.bf16.mxu0 0
    %304 = vmatpush1.bf16.msra.mxu0 0
    %305 = vmatprep.subr.bf16.mxu0 0
    %306 = vmatpush1.bf16.msra.mxu0 0
    %307 = vmatprep.subr.bf16.mxu0 0
    %308 = vmatpush1.bf16.msra.mxu0 0
    %309 = vmatprep.subr.bf16.mxu0 0
    %310 = vmatpush1.bf16.msra.mxu0 0
    %311 = vmatprep.subr.bf16.mxu0 0
    %312 = vmatpush1.bf16.msra.mxu0 0
    %313 = vmatprep.subr.bf16.mxu0 0
    %314 = vmatpush1.bf16.msra.mxu0 0
    %315 = vmatprep.subr.bf16.mxu0 0
    %316 = vmatpush1.bf16.msra.mxu0 0
    %317 = vmatprep.mubr.bf16.mxu0 0
    %318 = vmatmul.mubr.bf16.gmra.mrb[0].mxu0 %v140
    %v319 = vpop.f32.mrb[0].mxu0
    %v320 = vadd.f32 %v145, %v319
    %v321 = vpop.f32.mrb[0].mxu0
    %v322 = vadd.f32 %v149, %v321
    %v323 = vpop.f32.mrb[0].mxu0
    %v324 = vadd.f32 %v145, %v323
    %v325 = vpop.f32.mrb[0].mxu0
    %v326 = vadd.f32 %v149, %v325
    %327 = vdwg.mxu0
    %328 = vmatprep.subr.bf16.mxu0 0
    %329 = vmatpush1.bf16.msra.mxu0 %v239
    %330 = vmatprep.subr.bf16.mxu0 0
    %331 = vmatpush1.bf16.msra.mxu0 %v242
    %332 = vmatprep.subr.bf16.mxu0 0
    %333 = vmatpush1.bf16.msra.mxu0 %v245
    %334 = vmatprep.subr.bf16.mxu0 0
    %335 = vmatpush1.bf16.msra.mxu0 %v248
    %336 = vmatprep.subr.bf16.mxu0 0
    %337 = vmatpush1.bf16.msra.mxu0 %v251
    %338 = vmatprep.subr.bf16.mxu0 0
    %339 = vmatpush1.bf16.msra.mxu0 %v254
    %340 = vmatprep.subr.bf16.mxu0 0
    %341 = vmatpush1.bf16.msra.mxu0 %v257
    %342 = vmatprep.subr.bf16.mxu0 0
    %343 = vmatpush1.bf16.msra.mxu0 %v260
    %344 = vmatprep.subr.bf16.mxu0 0
    %345 = vmatpush1.bf16.msra.mxu0 0
    %346 = vmatprep.subr.bf16.mxu0 0
    %347 = vmatpush1.bf16.msra.mxu0 0
    %348 = vmatprep.subr.bf16.mxu0 0
    %349 = vmatpush1.bf16.msra.mxu0 0
    %350 = vmatprep.subr.bf16.mxu0 0
    %351 = vmatpush1.bf16.msra.mxu0 0
    %352 = vmatprep.subr.bf16.mxu0 0
    %353 = vmatpush1.bf16.msra.mxu0 0
    %354 = vmatprep.subr.bf16.mxu0 0
    %355 = vmatpush1.bf16.msra.mxu0 0
    %356 = vmatprep.subr.bf16.mxu0 0
    %357 = vmatpush1.bf16.msra.mxu0 0
    %358 = vmatprep.subr.bf16.mxu0 0
    %359 = vmatpush1.bf16.msra.mxu0 0
    %360 = vmatprep.mubr.bf16.mxu0 0
    %361 = vmatmul.mubr.bf16.gmra.mrb[0].mxu0 %v140
    %v362 = vpop.f32.mrb[0].mxu0
    %v363 = vadd.f32 %v153, %v362
    %v364 = vpop.f32.mrb[0].mxu0
    %v365 = vpop.f32.mrb[0].mxu0
    %v366 = vadd.f32 %v153, %v365
    %v367 = vpop.f32.mrb[0].mxu0
    %368 = vdwg.mxu0
    %v369 = vmul.f32 %v320, 0.17677669
    %v370 = vmul.f32 %v324, 0.17677669
    %v371 = vld [vmem:[%s2] sm:$0xff]
    %v372 = vld [vmem:[%s2 + $0x8] sm:$0xff]
    %v373 = vld [vmem:[%s6] sm:$0xf]
    %v374 = vld [vmem:[%s6 + $0x4] sm:$0xf]
    %v375 = vld [vmem:[%s6 + $0x8] sm:$0xf]
    %v376 = vld [vmem:[%s6 + $0xc] sm:$0xf]
    %v377 = vld [vmem:[%s6 + $0x10] sm:$0xf]
    %v378 = vld [vmem:[%s6 + $0x14] sm:$0xf]
    %v379 = vld [vmem:[%s6 + $0x18] sm:$0xf]
    %v380 = vld [vmem:[%s6 + $0x1c] sm:$0xf]
    %v381 = vld [vmem:[%s6 + $0x20] sm:$0xf]
    %v382 = vld [vmem:[%s6 + $0x24] sm:$0xf]
    %v383 = vld [vmem:[%s6 + $0x28] sm:$0xf]
    %v384 = vld [vmem:[%s6 + $0x2c] sm:$0xf]
    %v385 = vld [vmem:[%s6 + $0x30] sm:$0xf]
    %v386 = vld [vmem:[%s6 + $0x34] sm:$0xf]
    %v387 = vld [vmem:[%s6 + $0x38] sm:$0xf]
    %v388 = vld [vmem:[%s6 + $0x3c] sm:$0xf]
    %v389 = vld [vmem:[%s7] sm:$0x1]
    %v390 = vpack.c.bf16 %v370, %v369
    %v391 = vpack.c.bf16 %v326, %v322
    %v392 = vpack.c.bf16 %v366, %v363
    %vm393 = vcmask 261120
    %v395 = vsel %vm393, %v390, 0
    %v398 = vsel %vm393, %v391, 0
    %400 = vmatprep.subr.bf16.mxu0 0
    %401 = vmatpush1.bf16.xpose.msra.mxu0 %v398
    %402 = vmatprep.subr.bf16.mxu0 0
    %403 = vmatpush1.bf16.xpose.msra.mxu0 0
    %404 = vmatprep.subr.bf16.mxu0 0
    %405 = vmatpush1.bf16.xpose.msra.mxu0 0
    %406 = vmatprep.subr.bf16.mxu0 0
    %407 = vmatpush1.bf16.xpose.msra.mxu0 0
    %408 = vmatprep.subr.bf16.mxu0 0
    %409 = vmatpush1.bf16.xpose.msra.mxu0 0
    %410 = vmatprep.subr.bf16.mxu0 0
    %411 = vmatpush1.bf16.xpose.msra.mxu0 0
    %412 = vmatprep.subr.bf16.mxu0 0
    %413 = vmatpush1.bf16.xpose.msra.mxu0 0
    %414 = vmatprep.subr.bf16.mxu0 0
    %415 = vmatpush1.bf16.xpose.msra.mxu0 0
    %416 = vmatprep.subr.bf16.mxu0 0
    %417 = vmatpush1.bf16.xpose.msra.mxu0 0
    %418 = vmatprep.subr.bf16.mxu0 0
    %419 = vmatpush1.bf16.xpose.msra.mxu0 0
    %420 = vmatprep.subr.bf16.mxu0 0
    %421 = vmatpush1.bf16.xpose.msra.mxu0 0
    %422 = vmatprep.subr.bf16.mxu0 0
    %423 = vmatpush1.bf16.xpose.msra.mxu0 0
    %424 = vmatprep.subr.bf16.mxu0 0
    %425 = vmatpush1.bf16.xpose.msra.mxu0 0
    %426 = vmatprep.subr.bf16.mxu0 0
    %427 = vmatpush1.bf16.xpose.msra.mxu0 0
    %428 = vmatprep.subr.bf16.mxu0 0
    %429 = vmatpush1.bf16.xpose.msra.mxu0 0
    %430 = vmatprep.subr.bf16.mxu0 0
    %431 = vmatpush1.bf16.xpose.msra.mxu0 0
    %432 = vmatprep.mubr.bf16.mxu0 0
    %433 = vmatmul.mubr.bf16.gmra.mrb[0].mxu0 %v395
    %v434 = vpop.f32.mrb[0].mxu0
    %v435 = vadd.f32 %v371, %v434
    %v436 = vpop.f32.mrb[0].mxu0
    %v437 = vpop.f32.mrb[0].mxu0
    %v438 = vadd.f32 %v372, %v437
    %v439 = vpop.f32.mrb[0].mxu0
    %440 = vdwg.mxu0
    %vm441 = vcmask 130048
    %v442 = vsel %vm441, %v435, -inf
    %443 = vmax.xlane.f32.xlu0 %v442
    %v444 = vpop.xlane.xlu0 %443
    %v445 = vsel %vm441, %v438, -inf
    %446 = vmax.xlane.f32.xlu0 %v445
    %v447 = vpop.xlane.xlu0 %446
    %v448 = vsub.f32 %v435, %v444
    %v449 = vsub.f32 %v438, %v447
    %v450 = vmul.f32 %v448, 1.442695
    %v451 = vpow.pop %v450
    %v452 = vmul.f32 %v449, 1.442695
    %v453 = vpow.pop %v452
    %v454 = vsel %vm441, %v451, 0.0
    %455 = vadd.xlane.f32.xlu0 %v454
    %v456 = vpop.xlane.xlu0 %455
    %v457 = vsel %vm441, %v453, 0.0
    %458 = vadd.xlane.f32.xlu0 %v457
    %v459 = vpop.xlane.xlu0 %458
    %v460 = vrcp.pop %v456
    %v461 = vrcp.pop %v459
    %v462 = vmul.f32 %v451, %v460
    %v463 = vmul.f32 %v453, %v461
    %v464 = vpack.c.bf16 %v463, %v462
    %v466 = vsel %vm441, %v464, 0
    %468 = vmatprep.subr.bf16.mxu0 0
    %469 = vmatpush1.bf16.msra.mxu0 %v392
    %470 = vmatprep.subr.bf16.mxu0 0
    %471 = vmatpush1.bf16.msra.mxu0 0
    %472 = vmatprep.subr.bf16.mxu0 0
    %473 = vmatpush1.bf16.msra.mxu0 0
    %474 = vmatprep.subr.bf16.mxu0 0
    %475 = vmatpush1.bf16.msra.mxu0 0
    %476 = vmatprep.subr.bf16.mxu0 0
    %477 = vmatpush1.bf16.msra.mxu0 0
    %478 = vmatprep.subr.bf16.mxu0 0
    %479 = vmatpush1.bf16.msra.mxu0 0
    %480 = vmatprep.subr.bf16.mxu0 0
    %481 = vmatpush1.bf16.msra.mxu0 0
    %482 = vmatprep.subr.bf16.mxu0 0
    %483 = vmatpush1.bf16.msra.mxu0 0
    %484 = vmatprep.subr.bf16.mxu0 0
    %485 = vmatpush1.bf16.msra.mxu0 0
    %486 = vmatprep.subr.bf16.mxu0 0
    %487 = vmatpush1.bf16.msra.mxu0 0
    %488 = vmatprep.subr.bf16.mxu0 0
    %489 = vmatpush1.bf16.msra.mxu0 0
    %490 = vmatprep.subr.bf16.mxu0 0
    %491 = vmatpush1.bf16.msra.mxu0 0
    %492 = vmatprep.subr.bf16.mxu0 0
    %493 = vmatpush1.bf16.msra.mxu0 0
    %494 = vmatprep.subr.bf16.mxu0 0
    %495 = vmatpush1.bf16.msra.mxu0 0
    %496 = vmatprep.subr.bf16.mxu0 0
    %497 = vmatpush1.bf16.msra.mxu0 0
    %498 = vmatprep.subr.bf16.mxu0 0
    %499 = vmatpush1.bf16.msra.mxu0 0
    %500 = vmatprep.mubr.bf16.mxu0 0
    %501 = vmatmul.mubr.bf16.gmra.mrb[0].mxu0 %v466
    %v502 = vpop.f32.mrb[0].mxu0
    %v503 = vadd.f32 0.0, %v502
    %v504 = vpop.f32.mrb[0].mxu0
    %v505 = vpop.f32.mrb[0].mxu0
    %v506 = vadd.f32 0.0, %v505
    %v507 = vpop.f32.mrb[0].mxu0
    %508 = vdwg.mxu0
    %510 = vrot.lane.b32.xlu0 %v390, 96
    %v511 = vpop.permute.xlu0 %510
    %513 = vrot.lane.b32.xlu0 %v391, 96
    %v514 = vpop.permute.xlu0 %513
    %v516 = vsel %vm393, %v511, 0
    %v519 = vsel %vm393, %v514, 0
    %521 = vmatprep.subr.bf16.mxu0 0
    %522 = vmatpush1.bf16.xpose.msra.mxu0 %v519
    %523 = vmatprep.subr.bf16.mxu0 0
    %524 = vmatpush1.bf16.xpose.msra.mxu0 0
    %525 = vmatprep.subr.bf16.mxu0 0
    %526 = vmatpush1.bf16.xpose.msra.mxu0 0
    %527 = vmatprep.subr.bf16.mxu0 0
    %528 = vmatpush1.bf16.xpose.msra.mxu0 0
    %529 = vmatprep.subr.bf16.mxu0 0
    %530 = vmatpush1.bf16.xpose.msra.mxu0 0
    %531 = vmatprep.subr.bf16.mxu0 0
    %532 = vmatpush1.bf16.xpose.msra.mxu0 0
    %533 = vmatprep.subr.bf16.mxu0 0
    %534 = vmatpush1.bf16.xpose.msra.mxu0 0
    %535 = vmatprep.subr.bf16.mxu0 0
    %536 = vmatpush1.bf16.xpose.msra.mxu0 0
    %537 = vmatprep.subr.bf16.mxu0 0
    %538 = vmatpush1.bf16.xpose.msra.mxu0 0
    %539 = vmatprep.subr.bf16.mxu0 0
    %540 = vmatpush1.bf16.xpose.msra.mxu0 0
    %541 = vmatprep.subr.bf16.mxu0 0
    %542 = vmatpush1.bf16.xpose.msra.mxu0 0
    %543 = vmatprep.subr.bf16.mxu0 0
    %544 = vmatpush1.bf16.xpose.msra.mxu0 0
    %545 = vmatprep.subr.bf16.mxu0 0
    %546 = vmatpush1.bf16.xpose.msra.mxu0 0
    %547 = vmatprep.subr.bf16.mxu0 0
    %548 = vmatpush1.bf16.xpose.msra.mxu0 0
    %549 = vmatprep.subr.bf16.mxu0 0
    %550 = vmatpush1.bf16.xpose.msra.mxu0 0
    %551 = vmatprep.subr.bf16.mxu0 0
    %552 = vmatpush1.bf16.xpose.msra.mxu0 0
    %553 = vmatprep.mubr.bf16.mxu0 0
    %554 = vmatmul.mubr.bf16.gmra.mrb[0].mxu0 %v516
    %v555 = vpop.f32.mrb[0].mxu0
    %v556 = vadd.f32 %v371, %v555
    %v557 = vpop.f32.mrb[0].mxu0
    %v558 = vpop.f32.mrb[0].mxu0
    %v559 = vadd.f32 %v372, %v558
    %v560 = vpop.f32.mrb[0].mxu0
    %561 = vdwg.mxu0
    %v562 = vsel %vm441, %v556, -inf
    %563 = vmax.xlane.f32.xlu0 %v562
    %v564 = vpop.xlane.xlu0 %563
    %v565 = vsel %vm441, %v559, -inf
    %566 = vmax.xlane.f32.xlu0 %v565
    %v567 = vpop.xlane.xlu0 %566
    %v568 = vsub.f32 %v556, %v564
    %v569 = vsub.f32 %v559, %v567
    %v570 = vmul.f32 %v568, 1.442695
    %v571 = vpow.pop %v570
    %v572 = vmul.f32 %v569, 1.442695
    %v573 = vpow.pop %v572
    %v574 = vsel %vm441, %v571, 0.0
    %575 = vadd.xlane.f32.xlu0 %v574
    %v576 = vpop.xlane.xlu0 %575
    %v577 = vsel %vm441, %v573, 0.0
    %578 = vadd.xlane.f32.xlu0 %v577
    %v579 = vpop.xlane.xlu0 %578
    %v580 = vrcp.pop %v576
    %v581 = vrcp.pop %v579
    %v582 = vmul.f32 %v571, %v580
    %v583 = vmul.f32 %v573, %v581
    %v584 = vpack.c.bf16 %v583, %v582
    %586 = vrot.lane.b32.xlu0 %v392, 96
    %v587 = vpop.permute.xlu0 %586
    %v590 = vsel %vm441, %v584, 0
    %592 = vmatprep.subr.bf16.mxu0 0
    %593 = vmatpush1.bf16.msra.mxu0 %v587
    %594 = vmatprep.subr.bf16.mxu0 0
    %595 = vmatpush1.bf16.msra.mxu0 0
    %596 = vmatprep.subr.bf16.mxu0 0
    %597 = vmatpush1.bf16.msra.mxu0 0
    %598 = vmatprep.subr.bf16.mxu0 0
    %599 = vmatpush1.bf16.msra.mxu0 0
    %600 = vmatprep.subr.bf16.mxu0 0
    %601 = vmatpush1.bf16.msra.mxu0 0
    %602 = vmatprep.subr.bf16.mxu0 0
    %603 = vmatpush1.bf16.msra.mxu0 0
    %604 = vmatprep.subr.bf16.mxu0 0
    %605 = vmatpush1.bf16.msra.mxu0 0
    %606 = vmatprep.subr.bf16.mxu0 0
    %607 = vmatpush1.bf16.msra.mxu0 0
    %608 = vmatprep.subr.bf16.mxu0 0
    %609 = vmatpush1.bf16.msra.mxu0 0
    %610 = vmatprep.subr.bf16.mxu0 0
    %611 = vmatpush1.bf16.msra.mxu0 0
    %612 = vmatprep.subr.bf16.mxu0 0
    %613 = vmatpush1.bf16.msra.mxu0 0
    %614 = vmatprep.subr.bf16.mxu0 0
    %615 = vmatpush1.bf16.msra.mxu0 0
    %616 = vmatprep.subr.bf16.mxu0 0
    %617 = vmatpush1.bf16.msra.mxu0 0
    %618 = vmatprep.subr.bf16.mxu0 0
    %619 = vmatpush1.bf16.msra.mxu0 0
    %620 = vmatprep.subr.bf16.mxu0 0
    %621 = vmatpush1.bf16.msra.mxu0 0
    %622 = vmatprep.subr.bf16.mxu0 0
    %623 = vmatpush1.bf16.msra.mxu0 0
    %624 = vmatprep.mubr.bf16.mxu0 0
    %625 = vmatmul.mubr.bf16.gmra.mrb[0].mxu0 %v590
    %v626 = vpop.f32.mrb[0].mxu0
    %v627 = vadd.f32 0.0, %v626
    %v628 = vpop.f32.mrb[0].mxu0
    %v629 = vpop.f32.mrb[0].mxu0
    %v630 = vadd.f32 0.0, %v629
    %v631 = vpop.f32.mrb[0].mxu0
    %632 = vdwg.mxu0
    %633 = vrot.lane.b32.xlu0 %v390, 64
    %v634 = vpop.permute.xlu0 %633
    %635 = vrot.lane.b32.xlu0 %v391, 64
    %v636 = vpop.permute.xlu0 %635
    %v638 = vsel %vm393, %v634, 0
    %v641 = vsel %vm393, %v636, 0
    %643 = vmatprep.subr.bf16.mxu0 0
    %644 = vmatpush1.bf16.xpose.msra.mxu0 %v641
    %645 = vmatprep.subr.bf16.mxu0 0
    %646 = vmatpush1.bf16.xpose.msra.mxu0 0
    %647 = vmatprep.subr.bf16.mxu0 0
    %648 = vmatpush1.bf16.xpose.msra.mxu0 0
    %649 = vmatprep.subr.bf16.mxu0 0
    %650 = vmatpush1.bf16.xpose.msra.mxu0 0
    %651 = vmatprep.subr.bf16.mxu0 0
    %652 = vmatpush1.bf16.xpose.msra.mxu0 0
    %653 = vmatprep.subr.bf16.mxu0 0
    %654 = vmatpush1.bf16.xpose.msra.mxu0 0
    %655 = vmatprep.subr.bf16.mxu0 0
    %656 = vmatpush1.bf16.xpose.msra.mxu0 0
    %657 = vmatprep.subr.bf16.mxu0 0
    %658 = vmatpush1.bf16.xpose.msra.mxu0 0
    %659 = vmatprep.subr.bf16.mxu0 0
    %660 = vmatpush1.bf16.xpose.msra.mxu0 0
    %661 = vmatprep.subr.bf16.mxu0 0
    %662 = vmatpush1.bf16.xpose.msra.mxu0 0
    %663 = vmatprep.subr.bf16.mxu0 0
    %664 = vmatpush1.bf16.xpose.msra.mxu0 0
    %665 = vmatprep.subr.bf16.mxu0 0
    %666 = vmatpush1.bf16.xpose.msra.mxu0 0
    %667 = vmatprep.subr.bf16.mxu0 0
    %668 = vmatpush1.bf16.xpose.msra.mxu0 0
    %669 = vmatprep.subr.bf16.mxu0 0
    %670 = vmatpush1.bf16.xpose.msra.mxu0 0
    %671 = vmatprep.subr.bf16.mxu0 0
    %672 = vmatpush1.bf16.xpose.msra.mxu0 0
    %673 = vmatprep.subr.bf16.mxu0 0
    %674 = vmatpush1.bf16.xpose.msra.mxu0 0
    %675 = vmatprep.mubr.bf16.mxu0 0
    %676 = vmatmul.mubr.bf16.gmra.mrb[0].mxu0 %v638
    %v677 = vpop.f32.mrb[0].mxu0
    %v678 = vadd.f32 %v371, %v677
    %v679 = vpop.f32.mrb[0].mxu0
    %v680 = vpop.f32.mrb[0].mxu0
    %v681 = vadd.f32 %v372, %v680
    %v682 = vpop.f32.mrb[0].mxu0
    %683 = vdwg.mxu0
    %v684 = vsel %vm441, %v678, -inf
    %685 = vmax.xlane.f32.xlu0 %v684
    %v686 = vpop.xlane.xlu0 %685
    %v687 = vsel %vm441, %v681, -inf
    %688 = vmax.xlane.f32.xlu0 %v687
    %v689 = vpop.xlane.xlu0 %688
    %v690 = vsub.f32 %v678, %v686
    %v691 = vsub.f32 %v681, %v689
    %v692 = vmul.f32 %v690, 1.442695
    %v693 = vpow.pop %v692
    %v694 = vmul.f32 %v691, 1.442695
    %v695 = vpow.pop %v694
    %v696 = vsel %vm441, %v693, 0.0
    %697 = vadd.xlane.f32.xlu0 %v696
    %v698 = vpop.xlane.xlu0 %697
    %v699 = vsel %vm441, %v695, 0.0
    %700 = vadd.xlane.f32.xlu0 %v699
    %v701 = vpop.xlane.xlu0 %700
    %v702 = vrcp.pop %v698
    %v703 = vrcp.pop %v701
    %v704 = vmul.f32 %v693, %v702
    %v705 = vmul.f32 %v695, %v703
    %v706 = vpack.c.bf16 %v705, %v704
    %707 = vrot.lane.b32.xlu0 %v392, 64
    %v708 = vpop.permute.xlu0 %707
    %v711 = vsel %vm441, %v706, 0
    %713 = vmatprep.subr.bf16.mxu0 0
    %714 = vmatpush1.bf16.msra.mxu0 %v708
    %715 = vmatprep.subr.bf16.mxu0 0
    %716 = vmatpush1.bf16.msra.mxu0 0
    %717 = vmatprep.subr.bf16.mxu0 0
    %718 = vmatpush1.bf16.msra.mxu0 0
    %719 = vmatprep.subr.bf16.mxu0 0
    %720 = vmatpush1.bf16.msra.mxu0 0
    %721 = vmatprep.subr.bf16.mxu0 0
    %722 = vmatpush1.bf16.msra.mxu0 0
    %723 = vmatprep.subr.bf16.mxu0 0
    %724 = vmatpush1.bf16.msra.mxu0 0
    %725 = vmatprep.subr.bf16.mxu0 0
    %726 = vmatpush1.bf16.msra.mxu0 0
    %727 = vmatprep.subr.bf16.mxu0 0
    %728 = vmatpush1.bf16.msra.mxu0 0
    %729 = vmatprep.subr.bf16.mxu0 0
    %730 = vmatpush1.bf16.msra.mxu0 0
    %731 = vmatprep.subr.bf16.mxu0 0
    %732 = vmatpush1.bf16.msra.mxu0 0
    %733 = vmatprep.subr.bf16.mxu0 0
    %734 = vmatpush1.bf16.msra.mxu0 0
    %735 = vmatprep.subr.bf16.mxu0 0
    %736 = vmatpush1.bf16.msra.mxu0 0
    %737 = vmatprep.subr.bf16.mxu0 0
    %738 = vmatpush1.bf16.msra.mxu0 0
    %739 = vmatprep.subr.bf16.mxu0 0
    %740 = vmatpush1.bf16.msra.mxu0 0
    %741 = vmatprep.subr.bf16.mxu0 0
    %742 = vmatpush1.bf16.msra.mxu0 0
    %743 = vmatprep.subr.bf16.mxu0 0
    %744 = vmatpush1.bf16.msra.mxu0 0
    %745 = vmatprep.mubr.bf16.mxu0 0
    %746 = vmatmul.mubr.bf16.gmra.mrb[0].mxu0 %v711
    %v747 = vpop.f32.mrb[0].mxu0
    %v748 = vadd.f32 0.0, %v747
    %v749 = vpop.f32.mrb[0].mxu0
    %v750 = vpop.f32.mrb[0].mxu0
    %v751 = vadd.f32 0.0, %v750
    %v752 = vpop.f32.mrb[0].mxu0
    %753 = vdwg.mxu0
    %754 = vrot.lane.b32.xlu0 %v390, 32
    %v755 = vpop.permute.xlu0 %754
    %756 = vrot.lane.b32.xlu0 %v391, 32
    %v757 = vpop.permute.xlu0 %756
    %v759 = vsel %vm393, %v755, 0
    %v762 = vsel %vm393, %v757, 0
    %764 = vmatprep.subr.bf16.mxu0 0
    %765 = vmatpush1.bf16.xpose.msra.mxu0 %v762
    %766 = vmatprep.subr.bf16.mxu0 0
    %767 = vmatpush1.bf16.xpose.msra.mxu0 0
    %768 = vmatprep.subr.bf16.mxu0 0
    %769 = vmatpush1.bf16.xpose.msra.mxu0 0
    %770 = vmatprep.subr.bf16.mxu0 0
    %771 = vmatpush1.bf16.xpose.msra.mxu0 0
    %772 = vmatprep.subr.bf16.mxu0 0
    %773 = vmatpush1.bf16.xpose.msra.mxu0 0
    %774 = vmatprep.subr.bf16.mxu0 0
    %775 = vmatpush1.bf16.xpose.msra.mxu0 0
    %776 = vmatprep.subr.bf16.mxu0 0
    %777 = vmatpush1.bf16.xpose.msra.mxu0 0
    %778 = vmatprep.subr.bf16.mxu0 0
    %779 = vmatpush1.bf16.xpose.msra.mxu0 0
    %780 = vmatprep.subr.bf16.mxu0 0
    %781 = vmatpush1.bf16.xpose.msra.mxu0 0
    %782 = vmatprep.subr.bf16.mxu0 0
    %783 = vmatpush1.bf16.xpose.msra.mxu0 0
    %784 = vmatprep.subr.bf16.mxu0 0
    %785 = vmatpush1.bf16.xpose.msra.mxu0 0
    %786 = vmatprep.subr.bf16.mxu0 0
    %787 = vmatpush1.bf16.xpose.msra.mxu0 0
    %788 = vmatprep.subr.bf16.mxu0 0
    %789 = vmatpush1.bf16.xpose.msra.mxu0 0
    %790 = vmatprep.subr.bf16.mxu0 0
    %791 = vmatpush1.bf16.xpose.msra.mxu0 0
    %792 = vmatprep.subr.bf16.mxu0 0
    %793 = vmatpush1.bf16.xpose.msra.mxu0 0
    %794 = vmatprep.subr.bf16.mxu0 0
    %795 = vmatpush1.bf16.xpose.msra.mxu0 0
    %796 = vmatprep.mubr.bf16.mxu0 0
    %797 = vmatmul.mubr.bf16.gmra.mrb[0].mxu0 %v759
    %v798 = vpop.f32.mrb[0].mxu0
    %v799 = vadd.f32 %v371, %v798
    %v800 = vpop.f32.mrb[0].mxu0
    %v801 = vpop.f32.mrb[0].mxu0
    %v802 = vadd.f32 %v372, %v801
    %v803 = vpop.f32.mrb[0].mxu0
    %804 = vdwg.mxu0
    %v805 = vsel %vm441, %v799, -inf
    %806 = vmax.xlane.f32.xlu0 %v805
    %v807 = vpop.xlane.xlu0 %806
    %v808 = vsel %vm441, %v802, -inf
    %809 = vmax.xlane.f32.xlu0 %v808
    %v810 = vpop.xlane.xlu0 %809
    %v811 = vsub.f32 %v799, %v807
    %v812 = vsub.f32 %v802, %v810
    %v813 = vmul.f32 %v811, 1.442695
    %v814 = vpow.pop %v813
    %v815 = vmul.f32 %v812, 1.442695
    %v816 = vpow.pop %v815
    %v817 = vsel %vm441, %v814, 0.0
    %818 = vadd.xlane.f32.xlu0 %v817
    %v819 = vpop.xlane.xlu0 %818
    %v820 = vsel %vm441, %v816, 0.0
    %821 = vadd.xlane.f32.xlu0 %v820
    %v822 = vpop.xlane.xlu0 %821
    %v823 = vrcp.pop %v819
    %v824 = vrcp.pop %v822
    %v825 = vmul.f32 %v814, %v823
    %v826 = vmul.f32 %v816, %v824
    %v827 = vpack.c.bf16 %v826, %v825
    %828 = vrot.lane.b32.xlu0 %v392, 32
    %v829 = vpop.permute.xlu0 %828
    %v832 = vsel %vm441, %v827, 0
    %834 = vmatprep.subr.bf16.mxu0 0
    %835 = vmatpush1.bf16.msra.mxu0 %v829
    %836 = vmatprep.subr.bf16.mxu0 0
    %837 = vmatpush1.bf16.msra.mxu0 0
    %838 = vmatprep.subr.bf16.mxu0 0
    %839 = vmatpush1.bf16.msra.mxu0 0
    %840 = vmatprep.subr.bf16.mxu0 0
    %841 = vmatpush1.bf16.msra.mxu0 0
    %842 = vmatprep.subr.bf16.mxu0 0
    %843 = vmatpush1.bf16.msra.mxu0 0
    %844 = vmatprep.subr.bf16.mxu0 0
    %845 = vmatpush1.bf16.msra.mxu0 0
    %846 = vmatprep.subr.bf16.mxu0 0
    %847 = vmatpush1.bf16.msra.mxu0 0
    %848 = vmatprep.subr.bf16.mxu0 0
    %849 = vmatpush1.bf16.msra.mxu0 0
    %850 = vmatprep.subr.bf16.mxu0 0
    %851 = vmatpush1.bf16.msra.mxu0 0
    %852 = vmatprep.subr.bf16.mxu0 0
    %853 = vmatpush1.bf16.msra.mxu0 0
    %854 = vmatprep.subr.bf16.mxu0 0
    %855 = vmatpush1.bf16.msra.mxu0 0
    %856 = vmatprep.subr.bf16.mxu0 0
    %857 = vmatpush1.bf16.msra.mxu0 0
    %858 = vmatprep.subr.bf16.mxu0 0
    %859 = vmatpush1.bf16.msra.mxu0 0
    %860 = vmatprep.subr.bf16.mxu0 0
    %861 = vmatpush1.bf16.msra.mxu0 0
    %862 = vmatprep.subr.bf16.mxu0 0
    %863 = vmatpush1.bf16.msra.mxu0 0
    %864 = vmatprep.subr.bf16.mxu0 0
    %865 = vmatpush1.bf16.msra.mxu0 0
    %866 = vmatprep.mubr.bf16.mxu0 0
    %867 = vmatmul.mubr.bf16.gmra.mrb[0].mxu0 %v832
    %v868 = vpop.f32.mrb[0].mxu0
    %v869 = vadd.f32 0.0, %v868
    %v870 = vpop.f32.mrb[0].mxu0
    %v871 = vpop.f32.mrb[0].mxu0
    %v872 = vadd.f32 0.0, %v871
    %v873 = vpop.f32.mrb[0].mxu0
    %874 = vdwg.mxu0
    %877 = vrot.lane.b32.xlu0 %v627, 32
    %v878 = vpop.permute.xlu0 %877
    %879 = vrot.lane.b32.xlu0 %v630, 32
    %v880 = vpop.permute.xlu0 %879
    %885 = vrot.lane.b32.xlu0 %v748, 64
    %v886 = vpop.permute.xlu0 %885
    %887 = vrot.lane.b32.xlu0 %v751, 64
    %v888 = vpop.permute.xlu0 %887
    %893 = vrot.lane.b32.xlu0 %v869, 96
    %v894 = vpop.permute.xlu0 %893
    %895 = vrot.lane.b32.xlu0 %v872, 96
    %v896 = vpop.permute.xlu0 %895
    %v899 = vsel %vm393, %v503, %v878
    %v900 = vsel %vm393, %v506, %v880
    %vm901 = vcmask 523264
    %v902 = vsel %vm901, %v899, %v886
    %v903 = vsel %vm901, %v900, %v888
    %vm904 = vcmask 785408
    %v905 = vsel %vm904, %v902, %v894
    %v906 = vsel %vm904, %v903, %v896
    %v907 = vpack.c.bf16 %v906, %v905
    %v909 = vlaneseq
    %v910 = vshrl.u32 %v909, 7
    %v911 = vsub.s32 0, %v910
    %v912 = vrot.slane %v389, %v911
    %v930 = vunpack.c.l.b16 %v373
    %v931 = vunpack.c.l.b16 %v374
    %v932 = vunpack.c.l.b16 %v375
    %v933 = vunpack.c.l.b16 %v376
    %v934 = vunpack.c.l.b16 %v377
    %v935 = vunpack.c.l.b16 %v378
    %v936 = vunpack.c.l.b16 %v379
    %v937 = vunpack.c.l.b16 %v380
    %v938 = vunpack.c.l.b16 %v381
    %v939 = vunpack.c.l.b16 %v382
    %v940 = vunpack.c.l.b16 %v383
    %v941 = vunpack.c.l.b16 %v384
    %v942 = vunpack.c.l.b16 %v385
    %v943 = vunpack.c.l.b16 %v386
    %v944 = vunpack.c.l.b16 %v387
    %v945 = vunpack.c.l.b16 %v388
    %v946 = vpack.c.b16 %v931, %v930
    %v947 = vpack.c.b16 %v933, %v932
    %v948 = vpack.c.b16 %v935, %v934
    %v949 = vpack.c.b16 %v937, %v936
    %v950 = vpack.c.b16 %v939, %v938
    %v951 = vpack.c.b16 %v941, %v940
    %v952 = vpack.c.b16 %v943, %v942
    %v953 = vpack.c.b16 %v945, %v944
    %962 = vmatprep.subr.bf16.mxu0 0
    %963 = vmatpush1.bf16.msra.mxu0 %v946
    %964 = vmatprep.subr.bf16.mxu0 0
    %965 = vmatpush1.bf16.msra.mxu0 %v947
    %966 = vmatprep.subr.bf16.mxu0 0
    %967 = vmatpush1.bf16.msra.mxu0 %v948
    %968 = vmatprep.subr.bf16.mxu0 0
    %969 = vmatpush1.bf16.msra.mxu0 %v949
    %970 = vmatprep.subr.bf16.mxu0 0
    %971 = vmatpush1.bf16.msra.mxu0 %v950
    %972 = vmatprep.subr.bf16.mxu0 0
    %973 = vmatpush1.bf16.msra.mxu0 %v951
    %974 = vmatprep.subr.bf16.mxu0 0
    %975 = vmatpush1.bf16.msra.mxu0 %v952
    %976 = vmatprep.subr.bf16.mxu0 0
    %977 = vmatpush1.bf16.msra.mxu0 %v953
    %978 = vmatprep.subr.bf16.mxu0 0
    %979 = vmatpush1.bf16.msra.mxu0 0
    %980 = vmatprep.subr.bf16.mxu0 0
    %981 = vmatpush1.bf16.msra.mxu0 0
    %982 = vmatprep.subr.bf16.mxu0 0
    %983 = vmatpush1.bf16.msra.mxu0 0
    %984 = vmatprep.subr.bf16.mxu0 0
    %985 = vmatpush1.bf16.msra.mxu0 0
    %986 = vmatprep.subr.bf16.mxu0 0
    %987 = vmatpush1.bf16.msra.mxu0 0
    %988 = vmatprep.subr.bf16.mxu0 0
    %989 = vmatpush1.bf16.msra.mxu0 0
    %990 = vmatprep.subr.bf16.mxu0 0
    %991 = vmatpush1.bf16.msra.mxu0 0
    %992 = vmatprep.subr.bf16.mxu0 0
    %993 = vmatpush1.bf16.msra.mxu0 0
    %994 = vmatprep.mubr.bf16.mxu0 0
    %995 = vmatmul.mubr.bf16.gmra.mrb[0].mxu0 %v907
    %v996 = vpop.f32.mrb[0].mxu0
    %v997 = vadd.f32 %v912, %v996
    %v998 = vpop.f32.mrb[0].mxu0
    %v999 = vpop.f32.mrb[0].mxu0
    %v1000 = vadd.f32 %v912, %v999
    %v1001 = vpop.f32.mrb[0].mxu0
    %1002 = vdwg.mxu0
    %v1003 = vadd.f32 %v102, %v997
    %v1004 = vadd.f32 %v103, %v1000
    %v1005 = vld [vmem:[%s8] sm:$0x1]
    %v1006 = vld [vmem:[%s9] sm:$0x1]
    %1007 = vadd.xlane.f32.xlu0 %v1003
    %v1008 = vpop.xlane.xlu0 %1007
    %1009 = vadd.xlane.f32.xlu0 %v1004
    %v1010 = vpop.xlane.xlu0 %1009
    %v1011 = vrcp.pop 128.0
    %v1012 = vmul.f32 %v1008, %v1011
    %v1013 = vmul.f32 %v1010, %v1011
    %v1014 = vsub.f32 %v1003, %v1012
    %v1015 = vsub.f32 %v1004, %v1013
    %v1016 = vmul.f32 %v1014, %v1014
    %v1017 = vmul.f32 %v1015, %v1015
    %1018 = vadd.xlane.f32.xlu0 %v1016
    %v1019 = vpop.xlane.xlu0 %1018
    %1020 = vadd.xlane.f32.xlu0 %v1017
    %v1021 = vpop.xlane.xlu0 %1020
    %v1022 = vmul.f32 %v1019, %v1011
    %v1023 = vmul.f32 %v1021, %v1011
    %v1024 = vadd.f32 %v1022, 1e-05
    %v1025 = vadd.f32 %v1023, 1e-05
    %v1026 = vrsqrt.pop %v1024
    %v1027 = vrsqrt.pop %v1025
    %v1028 = vmul.f32 %v1014, %v1026
    %v1029 = vmul.f32 %v1015, %v1027
    %v1031 = vlaneseq
    %v1032 = vshrl.u32 %v1031, 7
    %v1033 = vsub.s32 0, %v1032
    %v1034 = vrot.slane %v1005, %v1033
    %v1036 = vmul.f32 %v1028, %v1034
    %v1037 = vmul.f32 %v1029, %v1034
    %v1039 = vlaneseq
    %v1040 = vshrl.u32 %v1039, 7
    %v1041 = vsub.s32 0, %v1040
    %v1042 = vrot.slane %v1006, %v1041
    %v1044 = vadd.f32 %v1036, %v1042
    %v1045 = vadd.f32 %v1037, %v1042
    %v1046 = vld [vmem:[%s10] sm:$0xf]
    %v1047 = vld [vmem:[%s10 + $0x4] sm:$0xf]
    %v1048 = vld [vmem:[%s10 + $0x8] sm:$0xf]
    %v1049 = vld [vmem:[%s10 + $0xc] sm:$0xf]
    %v1050 = vld [vmem:[%s10 + $0x10] sm:$0xf]
    %v1051 = vld [vmem:[%s10 + $0x14] sm:$0xf]
    %v1052 = vld [vmem:[%s10 + $0x18] sm:$0xf]
    %v1053 = vld [vmem:[%s10 + $0x1c] sm:$0xf]
    %v1054 = vld [vmem:[%s10 + $0x20] sm:$0xf]
    %v1055 = vld [vmem:[%s10 + $0x24] sm:$0xf]
    %v1056 = vld [vmem:[%s10 + $0x28] sm:$0xf]
    %v1057 = vld [vmem:[%s10 + $0x2c] sm:$0xf]
    %v1058 = vld [vmem:[%s10 + $0x30] sm:$0xf]
    %v1059 = vld [vmem:[%s10 + $0x34] sm:$0xf]
    %v1060 = vld [vmem:[%s10 + $0x38] sm:$0xf]
    %v1061 = vld [vmem:[%s10 + $0x3c] sm:$0xf]
    %v1062 = vld [vmem:[%s11] sm:$0x1]
    %v1063 = vpack.c.bf16 %v1045, %v1044
    %v1065 = vlaneseq
    %v1066 = vshrl.u32 %v1065, 7
    %v1067 = vsub.s32 0, %v1066
    %v1068 = vrot.slane %v1062, %v1067
    %v1086 = vunpack.c.l.b16 %v1046
    %v1087 = vunpack.c.l.b16 %v1047
    %v1088 = vunpack.c.l.b16 %v1048
    %v1089 = vunpack.c.l.b16 %v1049
    %v1090 = vunpack.c.l.b16 %v1050
    %v1091 = vunpack.c.l.b16 %v1051
    %v1092 = vunpack.c.l.b16 %v1052
    %v1093 = vunpack.c.l.b16 %v1053
    %v1094 = vunpack.c.l.b16 %v1054
    %v1095 = vunpack.c.l.b16 %v1055
    %v1096 = vunpack.c.l.b16 %v1056
    %v1097 = vunpack.c.l.b16 %v1057
    %v1098 = vunpack.c.l.b16 %v1058
    %v1099 = vunpack.c.l.b16 %v1059
    %v1100 = vunpack.c.l.b16 %v1060
    %v1101 = vunpack.c.l.b16 %v1061
    %v1102 = vpack.c.b16 %v1087, %v1086
    %v1103 = vpack.c.b16 %v1089, %v1088
    %v1104 = vpack.c.b16 %v1091, %v1090
    %v1105 = vpack.c.b16 %v1093, %v1092
    %v1106 = vpack.c.b16 %v1095, %v1094
    %v1107 = vpack.c.b16 %v1097, %v1096
    %v1108 = vpack.c.b16 %v1099, %v1098
    %v1109 = vpack.c.b16 %v1101, %v1100
    %1118 = vmatprep.subr.bf16.mxu0 0
    %1119 = vmatpush1.bf16.msra.mxu0 %v1102
    %1120 = vmatprep.subr.bf16.mxu0 0
    %1121 = vmatpush1.bf16.msra.mxu0 %v1103
    %1122 = vmatprep.subr.bf16.mxu0 0
    %1123 = vmatpush1.bf16.msra.mxu0 %v1104
    %1124 = vmatprep.subr.bf16.mxu0 0
    %1125 = vmatpush1.bf16.msra.mxu0 %v1105
    %1126 = vmatprep.subr.bf16.mxu0 0
    %1127 = vmatpush1.bf16.msra.mxu0 %v1106
    %1128 = vmatprep.subr.bf16.mxu0 0
    %1129 = vmatpush1.bf16.msra.mxu0 %v1107
    %1130 = vmatprep.subr.bf16.mxu0 0
    %1131 = vmatpush1.bf16.msra.mxu0 %v1108
    %1132 = vmatprep.subr.bf16.mxu0 0
    %1133 = vmatpush1.bf16.msra.mxu0 %v1109
    %1134 = vmatprep.subr.bf16.mxu0 0
    %1135 = vmatpush1.bf16.msra.mxu0 0
    %1136 = vmatprep.subr.bf16.mxu0 0
    %1137 = vmatpush1.bf16.msra.mxu0 0
    %1138 = vmatprep.subr.bf16.mxu0 0
    %1139 = vmatpush1.bf16.msra.mxu0 0
    %1140 = vmatprep.subr.bf16.mxu0 0
    %1141 = vmatpush1.bf16.msra.mxu0 0
    %1142 = vmatprep.subr.bf16.mxu0 0
    %1143 = vmatpush1.bf16.msra.mxu0 0
    %1144 = vmatprep.subr.bf16.mxu0 0
    %1145 = vmatpush1.bf16.msra.mxu0 0
    %1146 = vmatprep.subr.bf16.mxu0 0
    %1147 = vmatpush1.bf16.msra.mxu0 0
    %1148 = vmatprep.subr.bf16.mxu0 0
    %1149 = vmatpush1.bf16.msra.mxu0 0
    %1150 = vmatprep.mubr.bf16.mxu0 0
    %1151 = vmatmul.mubr.bf16.gmra.mrb[0].mxu0 %v1063
    %v1152 = vpop.f32.mrb[0].mxu0
    %v1153 = vadd.f32 %v1068, %v1152
    %v1154 = vpop.f32.mrb[0].mxu0
    %v1155 = vpop.f32.mrb[0].mxu0
    %v1156 = vadd.f32 %v1068, %v1155
    %v1157 = vpop.f32.mrb[0].mxu0
    %1158 = vdwg.mxu0
    %v1159 = vmul.f32 %v1153, 0.17677669
    %v1160 = vmul.f32 %v1156, 0.17677669
    %v1161 = vld [vmem:[%s12] sm:$0xff]
    %v1162 = vld [vmem:[%s12 + $0x8] sm:$0xff]
    %v1163 = vld [vmem:[%s12 + $0x10] sm:$0xff]
    %v1164 = vld [vmem:[%s12 + $0x18] sm:$0xff]
    %v1165 = vld [vmem:[%s12 + $0x20] sm:$0xff]
    %v1166 = vld [vmem:[%s12 + $0x28] sm:$0xff]
    %v1167 = vld [vmem:[%s12 + $0x30] sm:$0xff]
    %v1168 = vld [vmem:[%s12 + $0x38] sm:$0xff]
    %v1169 = vld [vmem:[%s12 + $0x40] sm:$0xff]
    %v1170 = vld [vmem:[%s12 + $0x48] sm:$0xff]
    %v1171 = vld [vmem:[%s12 + $0x50] sm:$0xff]
    %v1172 = vld [vmem:[%s12 + $0x58] sm:$0xff]
    %v1173 = vld [vmem:[%s12 + $0x60] sm:$0xff]
    %v1174 = vld [vmem:[%s12 + $0x68] sm:$0xff]
    %v1175 = vld [vmem:[%s12 + $0x70] sm:$0xff]
    %v1176 = vld [vmem:[%s12 + $0x78] sm:$0xff]
    %v1177 = vld [vmem:[%s13] sm:$0x3]
    %v1178 = vpack.c.bf16 %v105, %v104
    %v1179 = vpack.c.bf16 %v106, %v106
    %v1181 = vlaneseq
    %v1182 = vshrl.u32 %v1181, 7
    %v1183 = vsub.s32 0, %v1182
    %v1184 = vrot.slane %v1177, %v1183
    %v1185 = vlaneseq
    %v1186 = vshrl.u32 %v1185, 7
    %v1187 = vsub.s32 1, %v1186
    %v1188 = vrot.slane %v1177, %v1187
    %v1207 = vunpack.c.l.b16 %v1161
    %v1208 = vunpack.c.h.b16 %v1161
    %v1209 = vunpack.c.l.b16 %v1162
    %v1210 = vunpack.c.h.b16 %v1162
    %v1211 = vunpack.c.l.b16 %v1163
    %v1212 = vunpack.c.h.b16 %v1163
    %v1213 = vunpack.c.l.b16 %v1164
    %v1214 = vunpack.c.h.b16 %v1164
    %v1215 = vunpack.c.l.b16 %v1165
    %v1216 = vunpack.c.h.b16 %v1165
    %v1217 = vunpack.c.l.b16 %v1166
    %v1218 = vunpack.c.h.b16 %v1166
    %v1219 = vunpack.c.l.b16 %v1167
    %v1220 = vunpack.c.h.b16 %v1167
    %v1221 = vunpack.c.l.b16 %v1168
    %v1222 = vunpack.c.h.b16 %v1168
    %v1223 = vunpack.c.l.b16 %v1169
    %v1224 = vunpack.c.h.b16 %v1169
    %v1225 = vunpack.c.l.b16 %v1170
    %v1226 = vunpack.c.h.b16 %v1170
    %v1227 = vunpack.c.l.b16 %v1171
    %v1228 = vunpack.c.h.b16 %v1171
    %v1229 = vunpack.c.l.b16 %v1172
    %v1230 = vunpack.c.h.b16 %v1172
    %v1231 = vunpack.c.l.b16 %v1173
    %v1232 = vunpack.c.h.b16 %v1173
    %v1233 = vunpack.c.l.b16 %v1174
    %v1234 = vunpack.c.h.b16 %v1174
    %v1235 = vunpack.c.l.b16 %v1175
    %v1236 = vunpack.c.h.b16 %v1175
    %v1237 = vunpack.c.l.b16 %v1176
    %v1238 = vunpack.c.h.b16 %v1176
    %v1239 = vpack.c.b16 %v1209, %v1207
    %v1240 = vpack.c.b16 %v1210, %v1208
    %v1241 = vpack.c.b16 %v1213, %v1211
    %v1242 = vpack.c.b16 %v1214, %v1212
    %v1243 = vpack.c.b16 %v1217, %v1215
    %v1244 = vpack.c.b16 %v1218, %v1216
    %v1245 = vpack.c.b16 %v1221, %v1219
    %v1246 = vpack.c.b16 %v1222, %v1220
    %v1247 = vpack.c.b16 %v1225, %v1223
    %v1248 = vpack.c.b16 %v1226, %v1224
    %v1249 = vpack.c.b16 %v1229, %v1227
    %v1250 = vpack.c.b16 %v1230, %v1228
    %v1251 = vpack.c.b16 %v1233, %v1231
    %v1252 = vpack.c.b16 %v1234, %v1232
    %v1253 = vpack.c.b16 %v1237, %v1235
    %v1254 = vpack.c.b16 %v1238, %v1236
    %1271 = vmatprep.subr.bf16.mxu0 %v1240
    %1272 = vmatpush1.bf16.msra.mxu0 %v1239
    %1273 = vmatprep.subr.bf16.mxu0 %v1242
    %1274 = vmatpush1.bf16.msra.mxu0 %v1241
    %1275 = vmatprep.subr.bf16.mxu0 %v1244
    %1276 = vmatpush1.bf16.msra.mxu0 %v1243
    %1277 = vmatprep.subr.bf16.mxu0 %v1246
    %1278 = vmatpush1.bf16.msra.mxu0 %v1245
    %1279 = vmatprep.subr.bf16.mxu0 %v1248
    %1280 = vmatpush1.bf16.msra.mxu0 %v1247
    %1281 = vmatprep.subr.bf16.mxu0 %v1250
    %1282 = vmatpush1.bf16.msra.mxu0 %v1249
    %1283 = vmatprep.subr.bf16.mxu0 %v1252
    %1284 = vmatpush1.bf16.msra.mxu0 %v1251
    %1285 = vmatprep.subr.bf16.mxu0 %v1254
    %1286 = vmatpush1.bf16.msra.mxu0 %v1253
    %1287 = vmatprep.subr.bf16.mxu0 0
    %1288 = vmatpush1.bf16.msra.mxu0 0
    %1289 = vmatprep.subr.bf16.mxu0 0
    %1290 = vmatpush1.bf16.msra.mxu0 0
    %1291 = vmatprep.subr.bf16.mxu0 0
    %1292 = vmatpush1.bf16.msra.mxu0 0
    %1293 = vmatprep.subr.bf16.mxu0 0
    %1294 = vmatpush1.bf16.msra.mxu0 0
    %1295 = vmatprep.subr.bf16.mxu0 0
    %1296 = vmatpush1.bf16.msra.mxu0 0
    %1297 = vmatprep.subr.bf16.mxu0 0
    %1298 = vmatpush1.bf16.msra.mxu0 0
    %1299 = vmatprep.subr.bf16.mxu0 0
    %1300 = vmatpush1.bf16.msra.mxu0 0
    %1301 = vmatprep.subr.bf16.mxu0 0
    %1302 = vmatpush1.bf16.msra.mxu0 0
    %1303 = vmatprep.mubr.bf16.mxu0 0
    %1304 = vmatmul.mubr.bf16.gmra.mrb[0].mxu0 %v1178
    %v1305 = vpop.f32.mrb[0].mxu0
    %v1306 = vadd.f32 %v1184, %v1305
    %v1307 = vpop.f32.mrb[0].mxu0
    %v1308 = vadd.f32 %v1188, %v1307
    %v1309 = vpop.f32.mrb[0].mxu0
    %v1310 = vadd.f32 %v1184, %v1309
    %v1311 = vpop.f32.mrb[0].mxu0
    %v1312 = vadd.f32 %v1188, %v1311
    %1313 = vmatprep.mubr.bf16.mxu0 0
    %1314 = vmatmul.mubr.bf16.gmra.mrb[0].mxu0 %v1179
    %v1315 = vpop.f32.mrb[0].mxu0
    %v1316 = vadd.f32 %v1184, %v1315
    %v1317 = vpop.f32.mrb[0].mxu0
    %v1318 = vadd.f32 %v1188, %v1317
    %v1319 = vpop.f32.mrb[0].mxu0
    %v1320 = vpop.f32.mrb[0].mxu0
    %1321 = vdwg.mxu0
    %v1322 = vld [vmem:[%s3] sm:$0xff]
    %v1323 = vld [vmem:[%s3 + $0x8] sm:$0xff]
    %v1324 = vld [vmem:[%s14] sm:$0xf]
    %v1325 = vld [vmem:[%s14 + $0x4] sm:$0xf]
    %v1326 = vld [vmem:[%s14 + $0x8] sm:$0xf]
    %v1327 = vld [vmem:[%s14 + $0xc] sm:$0xf]
    %v1328 = vld [vmem:[%s14 + $0x10] sm:$0xf]
    %v1329 = vld [vmem:[%s14 + $0x14] sm:$0xf]
    %v1330 = vld [vmem:[%s14 + $0x18] sm:$0xf]
    %v1331 = vld [vmem:[%s14 + $0x1c] sm:$0xf]
    %v1332 = vld [vmem:[%s14 + $0x20] sm:$0xf]
    %v1333 = vld [vmem:[%s14 + $0x24] sm:$0xf]
    %v1334 = vld [vmem:[%s14 + $0x28] sm:$0xf]
    %v1335 = vld [vmem:[%s14 + $0x2c] sm:$0xf]
    %v1336 = vld [vmem:[%s14 + $0x30] sm:$0xf]
    %v1337 = vld [vmem:[%s14 + $0x34] sm:$0xf]
    %v1338 = vld [vmem:[%s14 + $0x38] sm:$0xf]
    %v1339 = vld [vmem:[%s14 + $0x3c] sm:$0xf]
    %v1340 = vld [vmem:[%s15] sm:$0x1]
    %v1341 = vpack.c.bf16 %v1160, %v1159
    %v1342 = vpack.c.bf16 %v1310, %v1306
    %v1343 = vpack.c.bf16 %v1316, %v1316
    %v1344 = vpack.c.bf16 %v1312, %v1308
    %v1345 = vpack.c.bf16 %v1318, %v1318
    %v1347 = vsel %vm393, %v1341, 0
    %v1350 = vsel %vm393, %v1342, 0
    %v1353 = vsel %vm393, %v1343, 0
    %1355 = vmatprep.subr.bf16.mxu0 0
    %1356 = vmatpush1.bf16.xpose.msra.mxu0 %v1350
    %1357 = vmatprep.subr.bf16.mxu0 0
    %1358 = vmatpush1.bf16.xpose.msra.mxu0 %v1353
    %1359 = vmatprep.subr.bf16.mxu0 0
    %1360 = vmatpush1.bf16.xpose.msra.mxu0 0
    %1361 = vmatprep.subr.bf16.mxu0 0
    %1362 = vmatpush1.bf16.xpose.msra.mxu0 0
    %1363 = vmatprep.subr.bf16.mxu0 0
    %1364 = vmatpush1.bf16.xpose.msra.mxu0 0
    %1365 = vmatprep.subr.bf16.mxu0 0
    %1366 = vmatpush1.bf16.xpose.msra.mxu0 0
    %1367 = vmatprep.subr.bf16.mxu0 0
    %1368 = vmatpush1.bf16.xpose.msra.mxu0 0
    %1369 = vmatprep.subr.bf16.mxu0 0
    %1370 = vmatpush1.bf16.xpose.msra.mxu0 0
    %1371 = vmatprep.subr.bf16.mxu0 0
    %1372 = vmatpush1.bf16.xpose.msra.mxu0 0
    %1373 = vmatprep.subr.bf16.mxu0 0
    %1374 = vmatpush1.bf16.xpose.msra.mxu0 0
    %1375 = vmatprep.subr.bf16.mxu0 0
    %1376 = vmatpush1.bf16.xpose.msra.mxu0 0
    %1377 = vmatprep.subr.bf16.mxu0 0
    %1378 = vmatpush1.bf16.xpose.msra.mxu0 0
    %1379 = vmatprep.subr.bf16.mxu0 0
    %1380 = vmatpush1.bf16.xpose.msra.mxu0 0
    %1381 = vmatprep.subr.bf16.mxu0 0
    %1382 = vmatpush1.bf16.xpose.msra.mxu0 0
    %1383 = vmatprep.subr.bf16.mxu0 0
    %1384 = vmatpush1.bf16.xpose.msra.mxu0 0
    %1385 = vmatprep.subr.bf16.mxu0 0
    %1386 = vmatpush1.bf16.xpose.msra.mxu0 0
    %1387 = vmatprep.mubr.bf16.mxu0 0
    %1388 = vmatmul.mubr.bf16.gmra.mrb[0].mxu0 %v1347
    %v1389 = vpop.f32.mrb[0].mxu0
    %v1390 = vadd.f32 %v1322, %v1389
    %v1391 = vpop.f32.mrb[0].mxu0
    %v1392 = vpop.f32.mrb[0].mxu0
    %v1393 = vadd.f32 %v1323, %v1392
    %v1394 = vpop.f32.mrb[0].mxu0
    %1395 = vdwg.mxu0
    %vm1396 = vcmask 162816
    %v1397 = vsel %vm1396, %v1390, -inf
    %1398 = vmax.xlane.f32.xlu0 %v1397
    %v1399 = vpop.xlane.xlu0 %1398
    %v1400 = vsel %vm1396, %v1393, -inf
    %1401 = vmax.xlane.f32.xlu0 %v1400
    %v1402 = vpop.xlane.xlu0 %1401
    %v1403 = vsub.f32 %v1390, %v1399
    %v1404 = vsub.f32 %v1393, %v1402
    %v1405 = vmul.f32 %v1403, 1.442695
    %v1406 = vpow.pop %v1405
    %v1407 = vmul.f32 %v1404, 1.442695
    %v1408 = vpow.pop %v1407
    %v1409 = vsel %vm1396, %v1406, 0.0
    %1410 = vadd.xlane.f32.xlu0 %v1409
    %v1411 = vpop.xlane.xlu0 %1410
    %v1412 = vsel %vm1396, %v1408, 0.0
    %1413 = vadd.xlane.f32.xlu0 %v1412
    %v1414 = vpop.xlane.xlu0 %1413
    %v1415 = vrcp.pop %v1411
    %v1416 = vrcp.pop %v1414
    %v1417 = vmul.f32 %v1406, %v1415
    %v1418 = vmul.f32 %v1408, %v1416
    %v1419 = vpack.c.bf16 %v1418, %v1417
    %v1421 = vsel %vm1396, %v1419, 0
    %vm1423 = vcmask 1041408
    %v1425 = vsel %vm1423, %v1345, 0
    %1427 = vmatprep.subr.bf16.mxu0 0
    %1428 = vmatpush1.bf16.msra.mxu0 %v1344
    %1429 = vmatprep.subr.bf16.mxu0 0
    %1430 = vmatpush1.bf16.msra.mxu0 %v1425
    %1431 = vmatprep.subr.bf16.mxu0 0
    %1432 = vmatpush1.bf16.msra.mxu0 0
    %1433 = vmatprep.subr.bf16.mxu0 0
    %1434 = vmatpush1.bf16.msra.mxu0 0
    %1435 = vmatprep.subr.bf16.mxu0 0
    %1436 = vmatpush1.bf16.msra.mxu0 0
    %1437 = vmatprep.subr.bf16.mxu0 0
    %1438 = vmatpush1.bf16.msra.mxu0 0
    %1439 = vmatprep.subr.bf16.mxu0 0
    %1440 = vmatpush1.bf16.msra.mxu0 0
    %1441 = vmatprep.subr.bf16.mxu0 0
    %1442 = vmatpush1.bf16.msra.mxu0 0
    %1443 = vmatprep.subr.bf16.mxu0 0
    %1444 = vmatpush1.bf16.msra.mxu0 0
    %1445 = vmatprep.subr.bf16.mxu0 0
    %1446 = vmatpush1.bf16.msra.mxu0 0
    %1447 = vmatprep.subr.bf16.mxu0 0
    %1448 = vmatpush1.bf16.msra.mxu0 0
    %1449 = vmatprep.subr.bf16.mxu0 0
    %1450 = vmatpush1.bf16.msra.mxu0 0
    %1451 = vmatprep.subr.bf16.mxu0 0
    %1452 = vmatpush1.bf16.msra.mxu0 0
    %1453 = vmatprep.subr.bf16.mxu0 0
    %1454 = vmatpush1.bf16.msra.mxu0 0
    %1455 = vmatprep.subr.bf16.mxu0 0
    %1456 = vmatpush1.bf16.msra.mxu0 0
    %1457 = vmatprep.subr.bf16.mxu0 0
    %1458 = vmatpush1.bf16.msra.mxu0 0
    %1459 = vmatprep.mubr.bf16.mxu0 0
    %1460 = vmatmul.mubr.bf16.gmra.mrb[0].mxu0 %v1421
    %v1461 = vpop.f32.mrb[0].mxu0
    %v1462 = vadd.f32 0.0, %v1461
    %v1463 = vpop.f32.mrb[0].mxu0
    %v1464 = vpop.f32.mrb[0].mxu0
    %v1465 = vadd.f32 0.0, %v1464
    %v1466 = vpop.f32.mrb[0].mxu0
    %1467 = vdwg.mxu0
    %1469 = vrot.lane.b32.xlu0 %v1341, 96
    %v1470 = vpop.permute.xlu0 %1469
    %1473 = vrot.lane.b32.xlu0 %v1342, 96
    %v1474 = vpop.permute.xlu0 %1473
    %1475 = vrot.lane.b32.xlu0 %v1343, 96
    %v1476 = vpop.permute.xlu0 %1475
    %v1478 = vsel %vm393, %v1470, 0
    %v1481 = vsel %vm393, %v1474, 0
    %v1484 = vsel %vm393, %v1476, 0
    %1486 = vmatprep.subr.bf16.mxu0 0
    %1487 = vmatpush1.bf16.xpose.msra.mxu0 %v1481
    %1488 = vmatprep.subr.bf16.mxu0 0
    %1489 = vmatpush1.bf16.xpose.msra.mxu0 %v1484
    %1490 = vmatprep.subr.bf16.mxu0 0
    %1491 = vmatpush1.bf16.xpose.msra.mxu0 0
    %1492 = vmatprep.subr.bf16.mxu0 0
    %1493 = vmatpush1.bf16.xpose.msra.mxu0 0
    %1494 = vmatprep.subr.bf16.mxu0 0
    %1495 = vmatpush1.bf16.xpose.msra.mxu0 0
    %1496 = vmatprep.subr.bf16.mxu0 0
    %1497 = vmatpush1.bf16.xpose.msra.mxu0 0
    %1498 = vmatprep.subr.bf16.mxu0 0
    %1499 = vmatpush1.bf16.xpose.msra.mxu0 0
    %1500 = vmatprep.subr.bf16.mxu0 0
    %1501 = vmatpush1.bf16.xpose.msra.mxu0 0
    %1502 = vmatprep.subr.bf16.mxu0 0
    %1503 = vmatpush1.bf16.xpose.msra.mxu0 0
    %1504 = vmatprep.subr.bf16.mxu0 0
    %1505 = vmatpush1.bf16.xpose.msra.mxu0 0
    %1506 = vmatprep.subr.bf16.mxu0 0
    %1507 = vmatpush1.bf16.xpose.msra.mxu0 0
    %1508 = vmatprep.subr.bf16.mxu0 0
    %1509 = vmatpush1.bf16.xpose.msra.mxu0 0
    %1510 = vmatprep.subr.bf16.mxu0 0
    %1511 = vmatpush1.bf16.xpose.msra.mxu0 0
    %1512 = vmatprep.subr.bf16.mxu0 0
    %1513 = vmatpush1.bf16.xpose.msra.mxu0 0
    %1514 = vmatprep.subr.bf16.mxu0 0
    %1515 = vmatpush1.bf16.xpose.msra.mxu0 0
    %1516 = vmatprep.subr.bf16.mxu0 0
    %1517 = vmatpush1.bf16.xpose.msra.mxu0 0
    %1518 = vmatprep.mubr.bf16.mxu0 0
    %1519 = vmatmul.mubr.bf16.gmra.mrb[0].mxu0 %v1478
    %v1520 = vpop.f32.mrb[0].mxu0
    %v1521 = vadd.f32 %v1322, %v1520
    %v1522 = vpop.f32.mrb[0].mxu0
    %v1523 = vpop.f32.mrb[0].mxu0
    %v1524 = vadd.f32 %v1323, %v1523
    %v1525 = vpop.f32.mrb[0].mxu0
    %1526 = vdwg.mxu0
    %v1527 = vsel %vm1396, %v1521, -inf
    %1528 = vmax.xlane.f32.xlu0 %v1527
    %v1529 = vpop.xlane.xlu0 %1528
    %v1530 = vsel %vm1396, %v1524, -inf
    %1531 = vmax.xlane.f32.xlu0 %v1530
    %v1532 = vpop.xlane.xlu0 %1531
    %v1533 = vsub.f32 %v1521, %v1529
    %v1534 = vsub.f32 %v1524, %v1532
    %v1535 = vmul.f32 %v1533, 1.442695
    %v1536 = vpow.pop %v1535
    %v1537 = vmul.f32 %v1534, 1.442695
    %v1538 = vpow.pop %v1537
    %v1539 = vsel %vm1396, %v1536, 0.0
    %1540 = vadd.xlane.f32.xlu0 %v1539
    %v1541 = vpop.xlane.xlu0 %1540
    %v1542 = vsel %vm1396, %v1538, 0.0
    %1543 = vadd.xlane.f32.xlu0 %v1542
    %v1544 = vpop.xlane.xlu0 %1543
    %v1545 = vrcp.pop %v1541
    %v1546 = vrcp.pop %v1544
    %v1547 = vmul.f32 %v1536, %v1545
    %v1548 = vmul.f32 %v1538, %v1546
    %v1549 = vpack.c.bf16 %v1548, %v1547
    %1552 = vrot.lane.b32.xlu0 %v1344, 96
    %v1553 = vpop.permute.xlu0 %1552
    %1554 = vrot.lane.b32.xlu0 %v1345, 96
    %v1555 = vpop.permute.xlu0 %1554
    %v1558 = vsel %vm1396, %v1549, 0
    %v1561 = vsel %vm1423, %v1555, 0
    %1563 = vmatprep.subr.bf16.mxu0 0
    %1564 = vmatpush1.bf16.msra.mxu0 %v1553
    %1565 = vmatprep.subr.bf16.mxu0 0
    %1566 = vmatpush1.bf16.msra.mxu0 %v1561
    %1567 = vmatprep.subr.bf16.mxu0 0
    %1568 = vmatpush1.bf16.msra.mxu0 0
    %1569 = vmatprep.subr.bf16.mxu0 0
    %1570 = vmatpush1.bf16.msra.mxu0 0
    %1571 = vmatprep.subr.bf16.mxu0 0
    %1572 = vmatpush1.bf16.msra.mxu0 0
    %1573 = vmatprep.subr.bf16.mxu0 0
    %1574 = vmatpush1.bf16.msra.mxu0 0
    %1575 = vmatprep.subr.bf16.mxu0 0
    %1576 = vmatpush1.bf16.msra.mxu0 0
    %1577 = vmatprep.subr.bf16.mxu0 0
    %1578 = vmatpush1.bf16.msra.mxu0 0
    %1579 = vmatprep.subr.bf16.mxu0 0
    %1580 = vmatpush1.bf16.msra.mxu0 0
    %1581 = vmatprep.subr.bf16.mxu0 0
    %1582 = vmatpush1.bf16.msra.mxu0 0
    %1583 = vmatprep.subr.bf16.mxu0 0
    %1584 = vmatpush1.bf16.msra.mxu0 0
    %1585 = vmatprep.subr.bf16.mxu0 0
    %1586 = vmatpush1.bf16.msra.mxu0 0
    %1587 = vmatprep.subr.bf16.mxu0 0
    %1588 = vmatpush1.bf16.msra.mxu0 0
    %1589 = vmatprep.subr.bf16.mxu0 0
    %1590 = vmatpush1.bf16.msra.mxu0 0
    %1591 = vmatprep.subr.bf16.mxu0 0
    %1592 = vmatpush1.bf16.msra.mxu0 0
    %1593 = vmatprep.subr.bf16.mxu0 0
    %1594 = vmatpush1.bf16.msra.mxu0 0
    %1595 = vmatprep.mubr.bf16.mxu0 0
    %1596 = vmatmul.mubr.bf16.gmra.mrb[0].mxu0 %v1558
    %v1597 = vpop.f32.mrb[0].mxu0
    %v1598 = vadd.f32 0.0, %v1597
    %v1599 = vpop.f32.mrb[0].mxu0
    %v1600 = vpop.f32.mrb[0].mxu0
    %v1601 = vadd.f32 0.0, %v1600
    %v1602 = vpop.f32.mrb[0].mxu0
    %1603 = vdwg.mxu0
    %1604 = vrot.lane.b32.xlu0 %v1341, 64
    %v1605 = vpop.permute.xlu0 %1604
    %1606 = vrot.lane.b32.xlu0 %v1342, 64
    %v1607 = vpop.permute.xlu0 %1606
    %1608 = vrot.lane.b32.xlu0 %v1343, 64
    %v1609 = vpop.permute.xlu0 %1608
    %v1611 = vsel %vm393, %v1605, 0
    %v1614 = vsel %vm393, %v1607, 0
    %v1617 = vsel %vm393, %v1609, 0
    %1619 = vmatprep.subr.bf16.mxu0 0
    %1620 = vmatpush1.bf16.xpose.msra.mxu0 %v1614
    %1621 = vmatprep.subr.bf16.mxu0 0
    %1622 = vmatpush1.bf16.xpose.msra.mxu0 %v1617
    %1623 = vmatprep.subr.bf16.mxu0 0
    %1624 = vmatpush1.bf16.xpose.msra.mxu0 0
    %1625 = vmatprep.subr.bf16.mxu0 0
    %1626 = vmatpush1.bf16.xpose.msra.mxu0 0
    %1627 = vmatprep.subr.bf16.mxu0 0
    %1628 = vmatpush1.bf16.xpose.msra.mxu0 0
    %1629 = vmatprep.subr.bf16.mxu0 0
    %1630 = vmatpush1.bf16.xpose.msra.mxu0 0
    %1631 = vmatprep.subr.bf16.mxu0 0
    %1632 = vmatpush1.bf16.xpose.msra.mxu0 0
    %1633 = vmatprep.subr.bf16.mxu0 0
    %1634 = vmatpush1.bf16.xpose.msra.mxu0 0
    %1635 = vmatprep.subr.bf16.mxu0 0
    %1636 = vmatpush1.bf16.xpose.msra.mxu0 0
    %1637 = vmatprep.subr.bf16.mxu0 0
    %1638 = vmatpush1.bf16.xpose.msra.mxu0 0
    %1639 = vmatprep.subr.bf16.mxu0 0
    %1640 = vmatpush1.bf16.xpose.msra.mxu0 0
    %1641 = vmatprep.subr.bf16.mxu0 0
    %1642 = vmatpush1.bf16.xpose.msra.mxu0 0
    %1643 = vmatprep.subr.bf16.mxu0 0
    %1644 = vmatpush1.bf16.xpose.msra.mxu0 0
    %1645 = vmatprep.subr.bf16.mxu0 0
    %1646 = vmatpush1.bf16.xpose.msra.mxu0 0
    %1647 = vmatprep.subr.bf16.mxu0 0
    %1648 = vmatpush1.bf16.xpose.msra.mxu0 0
    %1649 = vmatprep.subr.bf16.mxu0 0
    %1650 = vmatpush1.bf16.xpose.msra.mxu0 0
    %1651 = vmatprep.mubr.bf16.mxu0 0
    %1652 = vmatmul.mubr.bf16.gmra.mrb[0].mxu0 %v1611
    %v1653 = vpop.f32.mrb[0].mxu0
    %v1654 = vadd.f32 %v1322, %v1653
    %v1655 = vpop.f32.mrb[0].mxu0
    %v1656 = vpop.f32.mrb[0].mxu0
    %v1657 = vadd.f32 %v1323, %v1656
    %v1658 = vpop.f32.mrb[0].mxu0
    %1659 = vdwg.mxu0
    %v1660 = vsel %vm1396, %v1654, -inf
    %1661 = vmax.xlane.f32.xlu0 %v1660
    %v1662 = vpop.xlane.xlu0 %1661
    %v1663 = vsel %vm1396, %v1657, -inf
    %1664 = vmax.xlane.f32.xlu0 %v1663
    %v1665 = vpop.xlane.xlu0 %1664
    %v1666 = vsub.f32 %v1654, %v1662
    %v1667 = vsub.f32 %v1657, %v1665
    %v1668 = vmul.f32 %v1666, 1.442695
    %v1669 = vpow.pop %v1668
    %v1670 = vmul.f32 %v1667, 1.442695
    %v1671 = vpow.pop %v1670
    %v1672 = vsel %vm1396, %v1669, 0.0
    %1673 = vadd.xlane.f32.xlu0 %v1672
    %v1674 = vpop.xlane.xlu0 %1673
    %v1675 = vsel %vm1396, %v1671, 0.0
    %1676 = vadd.xlane.f32.xlu0 %v1675
    %v1677 = vpop.xlane.xlu0 %1676
    %v1678 = vrcp.pop %v1674
    %v1679 = vrcp.pop %v1677
    %v1680 = vmul.f32 %v1669, %v1678
    %v1681 = vmul.f32 %v1671, %v1679
    %v1682 = vpack.c.bf16 %v1681, %v1680
    %1683 = vrot.lane.b32.xlu0 %v1344, 64
    %v1684 = vpop.permute.xlu0 %1683
    %1685 = vrot.lane.b32.xlu0 %v1345, 64
    %v1686 = vpop.permute.xlu0 %1685
    %v1689 = vsel %vm1396, %v1682, 0
    %v1692 = vsel %vm1423, %v1686, 0
    %1694 = vmatprep.subr.bf16.mxu0 0
    %1695 = vmatpush1.bf16.msra.mxu0 %v1684
    %1696 = vmatprep.subr.bf16.mxu0 0
    %1697 = vmatpush1.bf16.msra.mxu0 %v1692
    %1698 = vmatprep.subr.bf16.mxu0 0
    %1699 = vmatpush1.bf16.msra.mxu0 0
    %1700 = vmatprep.subr.bf16.mxu0 0
    %1701 = vmatpush1.bf16.msra.mxu0 0
    %1702 = vmatprep.subr.bf16.mxu0 0
    %1703 = vmatpush1.bf16.msra.mxu0 0
    %1704 = vmatprep.subr.bf16.mxu0 0
    %1705 = vmatpush1.bf16.msra.mxu0 0
    %1706 = vmatprep.subr.bf16.mxu0 0
    %1707 = vmatpush1.bf16.msra.mxu0 0
    %1708 = vmatprep.subr.bf16.mxu0 0
    %1709 = vmatpush1.bf16.msra.mxu0 0
    %1710 = vmatprep.subr.bf16.mxu0 0
    %1711 = vmatpush1.bf16.msra.mxu0 0
    %1712 = vmatprep.subr.bf16.mxu0 0
    %1713 = vmatpush1.bf16.msra.mxu0 0
    %1714 = vmatprep.subr.bf16.mxu0 0
    %1715 = vmatpush1.bf16.msra.mxu0 0
    %1716 = vmatprep.subr.bf16.mxu0 0
    %1717 = vmatpush1.bf16.msra.mxu0 0
    %1718 = vmatprep.subr.bf16.mxu0 0
    %1719 = vmatpush1.bf16.msra.mxu0 0
    %1720 = vmatprep.subr.bf16.mxu0 0
    %1721 = vmatpush1.bf16.msra.mxu0 0
    %1722 = vmatprep.subr.bf16.mxu0 0
    %1723 = vmatpush1.bf16.msra.mxu0 0
    %1724 = vmatprep.subr.bf16.mxu0 0
    %1725 = vmatpush1.bf16.msra.mxu0 0
    %1726 = vmatprep.mubr.bf16.mxu0 0
    %1727 = vmatmul.mubr.bf16.gmra.mrb[0].mxu0 %v1689
    %v1728 = vpop.f32.mrb[0].mxu0
    %v1729 = vadd.f32 0.0, %v1728
    %v1730 = vpop.f32.mrb[0].mxu0
    %v1731 = vpop.f32.mrb[0].mxu0
    %v1732 = vadd.f32 0.0, %v1731
    %v1733 = vpop.f32.mrb[0].mxu0
    %1734 = vdwg.mxu0
    %1735 = vrot.lane.b32.xlu0 %v1341, 32
    %v1736 = vpop.permute.xlu0 %1735
    %1737 = vrot.lane.b32.xlu0 %v1342, 32
    %v1738 = vpop.permute.xlu0 %1737
    %1739 = vrot.lane.b32.xlu0 %v1343, 32
    %v1740 = vpop.permute.xlu0 %1739
    %v1742 = vsel %vm393, %v1736, 0
    %v1745 = vsel %vm393, %v1738, 0
    %v1748 = vsel %vm393, %v1740, 0
    %1750 = vmatprep.subr.bf16.mxu0 0
    %1751 = vmatpush1.bf16.xpose.msra.mxu0 %v1745
    %1752 = vmatprep.subr.bf16.mxu0 0
    %1753 = vmatpush1.bf16.xpose.msra.mxu0 %v1748
    %1754 = vmatprep.subr.bf16.mxu0 0
    %1755 = vmatpush1.bf16.xpose.msra.mxu0 0
    %1756 = vmatprep.subr.bf16.mxu0 0
    %1757 = vmatpush1.bf16.xpose.msra.mxu0 0
    %1758 = vmatprep.subr.bf16.mxu0 0
    %1759 = vmatpush1.bf16.xpose.msra.mxu0 0
    %1760 = vmatprep.subr.bf16.mxu0 0
    %1761 = vmatpush1.bf16.xpose.msra.mxu0 0
    %1762 = vmatprep.subr.bf16.mxu0 0
    %1763 = vmatpush1.bf16.xpose.msra.mxu0 0
    %1764 = vmatprep.subr.bf16.mxu0 0
    %1765 = vmatpush1.bf16.xpose.msra.mxu0 0
    %1766 = vmatprep.subr.bf16.mxu0 0
    %1767 = vmatpush1.bf16.xpose.msra.mxu0 0
    %1768 = vmatprep.subr.bf16.mxu0 0
    %1769 = vmatpush1.bf16.xpose.msra.mxu0 0
    %1770 = vmatprep.subr.bf16.mxu0 0
    %1771 = vmatpush1.bf16.xpose.msra.mxu0 0
    %1772 = vmatprep.subr.bf16.mxu0 0
    %1773 = vmatpush1.bf16.xpose.msra.mxu0 0
    %1774 = vmatprep.subr.bf16.mxu0 0
    %1775 = vmatpush1.bf16.xpose.msra.mxu0 0
    %1776 = vmatprep.subr.bf16.mxu0 0
    %1777 = vmatpush1.bf16.xpose.msra.mxu0 0
    %1778 = vmatprep.subr.bf16.mxu0 0
    %1779 = vmatpush1.bf16.xpose.msra.mxu0 0
    %1780 = vmatprep.subr.bf16.mxu0 0
    %1781 = vmatpush1.bf16.xpose.msra.mxu0 0
    %1782 = vmatprep.mubr.bf16.mxu0 0
    %1783 = vmatmul.mubr.bf16.gmra.mrb[0].mxu0 %v1742
    %v1784 = vpop.f32.mrb[0].mxu0
    %v1785 = vadd.f32 %v1322, %v1784
    %v1786 = vpop.f32.mrb[0].mxu0
    %v1787 = vpop.f32.mrb[0].mxu0
    %v1788 = vadd.f32 %v1323, %v1787
    %v1789 = vpop.f32.mrb[0].mxu0
    %1790 = vdwg.mxu0
    %v1791 = vsel %vm1396, %v1785, -inf
    %1792 = vmax.xlane.f32.xlu0 %v1791
    %v1793 = vpop.xlane.xlu0 %1792
    %v1794 = vsel %vm1396, %v1788, -inf
    %1795 = vmax.xlane.f32.xlu0 %v1794
    %v1796 = vpop.xlane.xlu0 %1795
    %v1797 = vsub.f32 %v1785, %v1793
    %v1798 = vsub.f32 %v1788, %v1796
    %v1799 = vmul.f32 %v1797, 1.442695
    %v1800 = vpow.pop %v1799
    %v1801 = vmul.f32 %v1798, 1.442695
    %v1802 = vpow.pop %v1801
    %v1803 = vsel %vm1396, %v1800, 0.0
    %1804 = vadd.xlane.f32.xlu0 %v1803
    %v1805 = vpop.xlane.xlu0 %1804
    %v1806 = vsel %vm1396, %v1802, 0.0
    %1807 = vadd.xlane.f32.xlu0 %v1806
    %v1808 = vpop.xlane.xlu0 %1807
    %v1809 = vrcp.pop %v1805
    %v1810 = vrcp.pop %v1808
    %v1811 = vmul.f32 %v1800, %v1809
    %v1812 = vmul.f32 %v1802, %v1810
    %v1813 = vpack.c.bf16 %v1812, %v1811
    %1814 = vrot.lane.b32.xlu0 %v1344, 32
    %v1815 = vpop.permute.xlu0 %1814
    %1816 = vrot.lane.b32.xlu0 %v1345, 32
    %v1817 = vpop.permute.xlu0 %1816
    %v1820 = vsel %vm1396, %v1813, 0
    %v1823 = vsel %vm1423, %v1817, 0
    %1825 = vmatprep.subr.bf16.mxu0 0
    %1826 = vmatpush1.bf16.msra.mxu0 %v1815
    %1827 = vmatprep.subr.bf16.mxu0 0
    %1828 = vmatpush1.bf16.msra.mxu0 %v1823
    %1829 = vmatprep.subr.bf16.mxu0 0
    %1830 = vmatpush1.bf16.msra.mxu0 0
    %1831 = vmatprep.subr.bf16.mxu0 0
    %1832 = vmatpush1.bf16.msra.mxu0 0
    %1833 = vmatprep.subr.bf16.mxu0 0
    %1834 = vmatpush1.bf16.msra.mxu0 0
    %1835 = vmatprep.subr.bf16.mxu0 0
    %1836 = vmatpush1.bf16.msra.mxu0 0
    %1837 = vmatprep.subr.bf16.mxu0 0
    %1838 = vmatpush1.bf16.msra.mxu0 0
    %1839 = vmatprep.subr.bf16.mxu0 0
    %1840 = vmatpush1.bf16.msra.mxu0 0
    %1841 = vmatprep.subr.bf16.mxu0 0
    %1842 = vmatpush1.bf16.msra.mxu0 0
    %1843 = vmatprep.subr.bf16.mxu0 0
    %1844 = vmatpush1.bf16.msra.mxu0 0
    %1845 = vmatprep.subr.bf16.mxu0 0
    %1846 = vmatpush1.bf16.msra.mxu0 0
    %1847 = vmatprep.subr.bf16.mxu0 0
    %1848 = vmatpush1.bf16.msra.mxu0 0
    %1849 = vmatprep.subr.bf16.mxu0 0
    %1850 = vmatpush1.bf16.msra.mxu0 0
    %1851 = vmatprep.subr.bf16.mxu0 0
    %1852 = vmatpush1.bf16.msra.mxu0 0
    %1853 = vmatprep.subr.bf16.mxu0 0
    %1854 = vmatpush1.bf16.msra.mxu0 0
    %1855 = vmatprep.subr.bf16.mxu0 0
    %1856 = vmatpush1.bf16.msra.mxu0 0
    %1857 = vmatprep.mubr.bf16.mxu0 0
    %1858 = vmatmul.mubr.bf16.gmra.mrb[0].mxu0 %v1820
    %v1859 = vpop.f32.mrb[0].mxu0
    %v1860 = vadd.f32 0.0, %v1859
    %v1861 = vpop.f32.mrb[0].mxu0
    %v1862 = vpop.f32.mrb[0].mxu0
    %v1863 = vadd.f32 0.0, %v1862
    %v1864 = vpop.f32.mrb[0].mxu0
    %1865 = vdwg.mxu0
    %1868 = vrot.lane.b32.xlu0 %v1598, 32
    %v1869 = vpop.permute.xlu0 %1868
    %1870 = vrot.lane.b32.xlu0 %v1601, 32
    %v1871 = vpop.permute.xlu0 %1870
    %1876 = vrot.lane.b32.xlu0 %v1729, 64
    %v1877 = vpop.permute.xlu0 %1876
    %1878 = vrot.lane.b32.xlu0 %v1732, 64
    %v1879 = vpop.permute.xlu0 %1878
    %1884 = vrot.lane.b32.xlu0 %v1860, 96
    %v1885 = vpop.permute.xlu0 %1884
    %1886 = vrot.lane.b32.xlu0 %v1863, 96
    %v1887 = vpop.permute.xlu0 %1886
    %v1890 = vsel %vm393, %v1462, %v1869
    %v1891 = vsel %vm393, %v1465, %v1871
    %v1892 = vsel %vm901, %v1890, %v1877
    %v1893 = vsel %vm901, %v1891, %v1879
    %v1894 = vsel %vm904, %v1892, %v1885
    %v1895 = vsel %vm904, %v1893, %v1887
    %v1896 = vpack.c.bf16 %v1895, %v1894
    %v1898 = vlaneseq
    %v1899 = vshrl.u32 %v1898, 7
    %v1900 = vsub.s32 0, %v1899
    %v1901 = vrot.slane %v1340, %v1900
    %v1919 = vunpack.c.l.b16 %v1324
    %v1920 = vunpack.c.l.b16 %v1325
    %v1921 = vunpack.c.l.b16 %v1326
    %v1922 = vunpack.c.l.b16 %v1327
    %v1923 = vunpack.c.l.b16 %v1328
    %v1924 = vunpack.c.l.b16 %v1329
    %v1925 = vunpack.c.l.b16 %v1330
    %v1926 = vunpack.c.l.b16 %v1331
    %v1927 = vunpack.c.l.b16 %v1332
    %v1928 = vunpack.c.l.b16 %v1333
    %v1929 = vunpack.c.l.b16 %v1334
    %v1930 = vunpack.c.l.b16 %v1335
    %v1931 = vunpack.c.l.b16 %v1336
    %v1932 = vunpack.c.l.b16 %v1337
    %v1933 = vunpack.c.l.b16 %v1338
    %v1934 = vunpack.c.l.b16 %v1339
    %v1935 = vpack.c.b16 %v1920, %v1919
    %v1936 = vpack.c.b16 %v1922, %v1921
    %v1937 = vpack.c.b16 %v1924, %v1923
    %v1938 = vpack.c.b16 %v1926, %v1925
    %v1939 = vpack.c.b16 %v1928, %v1927
    %v1940 = vpack.c.b16 %v1930, %v1929
    %v1941 = vpack.c.b16 %v1932, %v1931
    %v1942 = vpack.c.b16 %v1934, %v1933
    %1951 = vmatprep.subr.bf16.mxu0 0
    %1952 = vmatpush1.bf16.msra.mxu0 %v1935
    %1953 = vmatprep.subr.bf16.mxu0 0
    %1954 = vmatpush1.bf16.msra.mxu0 %v1936
    %1955 = vmatprep.subr.bf16.mxu0 0
    %1956 = vmatpush1.bf16.msra.mxu0 %v1937
    %1957 = vmatprep.subr.bf16.mxu0 0
    %1958 = vmatpush1.bf16.msra.mxu0 %v1938
    %1959 = vmatprep.subr.bf16.mxu0 0
    %1960 = vmatpush1.bf16.msra.mxu0 %v1939
    %1961 = vmatprep.subr.bf16.mxu0 0
    %1962 = vmatpush1.bf16.msra.mxu0 %v1940
    %1963 = vmatprep.subr.bf16.mxu0 0
    %1964 = vmatpush1.bf16.msra.mxu0 %v1941
    %1965 = vmatprep.subr.bf16.mxu0 0
    %1966 = vmatpush1.bf16.msra.mxu0 %v1942
    %1967 = vmatprep.subr.bf16.mxu0 0
    %1968 = vmatpush1.bf16.msra.mxu0 0
    %1969 = vmatprep.subr.bf16.mxu0 0
    %1970 = vmatpush1.bf16.msra.mxu0 0
    %1971 = vmatprep.subr.bf16.mxu0 0
    %1972 = vmatpush1.bf16.msra.mxu0 0
    %1973 = vmatprep.subr.bf16.mxu0 0
    %1974 = vmatpush1.bf16.msra.mxu0 0
    %1975 = vmatprep.subr.bf16.mxu0 0
    %1976 = vmatpush1.bf16.msra.mxu0 0
    %1977 = vmatprep.subr.bf16.mxu0 0
    %1978 = vmatpush1.bf16.msra.mxu0 0
    %1979 = vmatprep.subr.bf16.mxu0 0
    %1980 = vmatpush1.bf16.msra.mxu0 0
    %1981 = vmatprep.subr.bf16.mxu0 0
    %1982 = vmatpush1.bf16.msra.mxu0 0
    %1983 = vmatprep.mubr.bf16.mxu0 0
    %1984 = vmatmul.mubr.bf16.gmra.mrb[0].mxu0 %v1896
    %v1985 = vpop.f32.mrb[0].mxu0
    %v1986 = vadd.f32 %v1901, %v1985
    %v1987 = vpop.f32.mrb[0].mxu0
    %v1988 = vpop.f32.mrb[0].mxu0
    %v1989 = vadd.f32 %v1901, %v1988
    %v1990 = vpop.f32.mrb[0].mxu0
    %1991 = vdwg.mxu0
    %v1992 = vadd.f32 %v1044, %v1986
    %v1993 = vadd.f32 %v1045, %v1989
    %v1994 = vld [vmem:[%s16] sm:$0x1]
    %v1995 = vld [vmem:[%s17] sm:$0x1]
    %1996 = vadd.xlane.f32.xlu0 %v1992
    %v1997 = vpop.xlane.xlu0 %1996
    %1998 = vadd.xlane.f32.xlu0 %v1993
    %v1999 = vpop.xlane.xlu0 %1998
    %v2000 = vmul.f32 %v1997, %v1011
    %v2001 = vmul.f32 %v1999, %v1011
    %v2002 = vsub.f32 %v1992, %v2000
    %v2003 = vsub.f32 %v1993, %v2001
    %v2004 = vmul.f32 %v2002, %v2002
    %v2005 = vmul.f32 %v2003, %v2003
    %2006 = vadd.xlane.f32.xlu0 %v2004
    %v2007 = vpop.xlane.xlu0 %2006
    %2008 = vadd.xlane.f32.xlu0 %v2005
    %v2009 = vpop.xlane.xlu0 %2008
    %v2010 = vmul.f32 %v2007, %v1011
    %v2011 = vmul.f32 %v2009, %v1011
    %v2012 = vadd.f32 %v2010, 1e-05
    %v2013 = vadd.f32 %v2011, 1e-05
    %v2014 = vrsqrt.pop %v2012
    %v2015 = vrsqrt.pop %v2013
    %v2016 = vmul.f32 %v2002, %v2014
    %v2017 = vmul.f32 %v2003, %v2015
    %v2019 = vlaneseq
    %v2020 = vshrl.u32 %v2019, 7
    %v2021 = vsub.s32 0, %v2020
    %v2022 = vrot.slane %v1994, %v2021
    %v2024 = vmul.f32 %v2016, %v2022
    %v2025 = vmul.f32 %v2017, %v2022
    %v2027 = vlaneseq
    %v2028 = vshrl.u32 %v2027, 7
    %v2029 = vsub.s32 0, %v2028
    %v2030 = vrot.slane %v1995, %v2029
    %v2032 = vadd.f32 %v2024, %v2030
    %v2033 = vadd.f32 %v2025, %v2030
    %v2034 = vld [vmem:[%s18] sm:$0xf]
    %v2035 = vld [vmem:[%s18 + $0x4] sm:$0xf]
    %v2036 = vld [vmem:[%s18 + $0x8] sm:$0xf]
    %v2037 = vld [vmem:[%s18 + $0xc] sm:$0xf]
    %v2038 = vld [vmem:[%s18 + $0x10] sm:$0xf]
    %v2039 = vld [vmem:[%s18 + $0x14] sm:$0xf]
    %v2040 = vld [vmem:[%s18 + $0x18] sm:$0xf]
    %v2041 = vld [vmem:[%s18 + $0x1c] sm:$0xf]
    %v2042 = vld [vmem:[%s18 + $0x20] sm:$0xf]
    %v2043 = vld [vmem:[%s18 + $0x24] sm:$0xf]
    %v2044 = vld [vmem:[%s18 + $0x28] sm:$0xf]
    %v2045 = vld [vmem:[%s18 + $0x2c] sm:$0xf]
    %v2046 = vld [vmem:[%s18 + $0x30] sm:$0xf]
    %v2047 = vld [vmem:[%s18 + $0x34] sm:$0xf]
    %v2048 = vld [vmem:[%s18 + $0x38] sm:$0xf]
    %v2049 = vld [vmem:[%s18 + $0x3c] sm:$0xf]
    %v2050 = vld [vmem:[%s19] sm:$0x1]
    %v2051 = vpack.c.bf16 %v2033, %v2032
    %v2053 = vlaneseq
    %v2054 = vshrl.u32 %v2053, 7
    %v2055 = vsub.s32 0, %v2054
    %v2056 = vrot.slane %v2050, %v2055
    %v2074 = vunpack.c.l.b16 %v2034
    %v2075 = vunpack.c.l.b16 %v2035
    %v2076 = vunpack.c.l.b16 %v2036
    %v2077 = vunpack.c.l.b16 %v2037
    %v2078 = vunpack.c.l.b16 %v2038
    %v2079 = vunpack.c.l.b16 %v2039
    %v2080 = vunpack.c.l.b16 %v2040
    %v2081 = vunpack.c.l.b16 %v2041
    %v2082 = vunpack.c.l.b16 %v2042
    %v2083 = vunpack.c.l.b16 %v2043
    %v2084 = vunpack.c.l.b16 %v2044
    %v2085 = vunpack.c.l.b16 %v2045
    %v2086 = vunpack.c.l.b16 %v2046
    %v2087 = vunpack.c.l.b16 %v2047
    %v2088 = vunpack.c.l.b16 %v2048
    %v2089 = vunpack.c.l.b16 %v2049
    %v2090 = vpack.c.b16 %v2075, %v2074
    %v2091 = vpack.c.b16 %v2077, %v2076
    %v2092 = vpack.c.b16 %v2079, %v2078
    %v2093 = vpack.c.b16 %v2081, %v2080
    %v2094 = vpack.c.b16 %v2083, %v2082
    %v2095 = vpack.c.b16 %v2085, %v2084
    %v2096 = vpack.c.b16 %v2087, %v2086
    %v2097 = vpack.c.b16 %v2089, %v2088
    %2106 = vmatprep.subr.bf16.mxu0 0
    %2107 = vmatpush1.bf16.msra.mxu0 %v2090
    %2108 = vmatprep.subr.bf16.mxu0 0
    %2109 = vmatpush1.bf16.msra.mxu0 %v2091
    %2110 = vmatprep.subr.bf16.mxu0 0
    %2111 = vmatpush1.bf16.msra.mxu0 %v2092
    %2112 = vmatprep.subr.bf16.mxu0 0
    %2113 = vmatpush1.bf16.msra.mxu0 %v2093
    %2114 = vmatprep.subr.bf16.mxu0 0
    %2115 = vmatpush1.bf16.msra.mxu0 %v2094
    %2116 = vmatprep.subr.bf16.mxu0 0
    %2117 = vmatpush1.bf16.msra.mxu0 %v2095
    %2118 = vmatprep.subr.bf16.mxu0 0
    %2119 = vmatpush1.bf16.msra.mxu0 %v2096
    %2120 = vmatprep.subr.bf16.mxu0 0
    %2121 = vmatpush1.bf16.msra.mxu0 %v2097
    %2122 = vmatprep.subr.bf16.mxu0 0
    %2123 = vmatpush1.bf16.msra.mxu0 0
    %2124 = vmatprep.subr.bf16.mxu0 0
    %2125 = vmatpush1.bf16.msra.mxu0 0
    %2126 = vmatprep.subr.bf16.mxu0 0
    %2127 = vmatpush1.bf16.msra.mxu0 0
    %2128 = vmatprep.subr.bf16.mxu0 0
    %2129 = vmatpush1.bf16.msra.mxu0 0
    %2130 = vmatprep.subr.bf16.mxu0 0
    %2131 = vmatpush1.bf16.msra.mxu0 0
    %2132 = vmatprep.subr.bf16.mxu0 0
    %2133 = vmatpush1.bf16.msra.mxu0 0
    %2134 = vmatprep.subr.bf16.mxu0 0
    %2135 = vmatpush1.bf16.msra.mxu0 0
    %2136 = vmatprep.subr.bf16.mxu0 0
    %2137 = vmatpush1.bf16.msra.mxu0 0
    %2138 = vmatprep.mubr.bf16.mxu0 0
    %2139 = vmatmul.mubr.bf16.gmra.mrb[0].mxu0 %v2051
    %v2140 = vpop.f32.mrb[0].mxu0
    %v2141 = vadd.f32 %v2056, %v2140
    %v2142 = vpop.f32.mrb[0].mxu0
    %v2143 = vpop.f32.mrb[0].mxu0
    %v2144 = vadd.f32 %v2056, %v2143
    %v2145 = vpop.f32.mrb[0].mxu0
    %2146 = vdwg.mxu0
    %v2147 = vmax.f32 %v2141, 0.0
    %v2148 = vmax.f32 %v2144, 0.0
    %v2149 = vld [vmem:[%s20] sm:$0xf]
    %v2150 = vld [vmem:[%s20 + $0x4] sm:$0xf]
    %v2151 = vld [vmem:[%s20 + $0x8] sm:$0xf]
    %v2152 = vld [vmem:[%s20 + $0xc] sm:$0xf]
    %v2153 = vld [vmem:[%s20 + $0x10] sm:$0xf]
    %v2154 = vld [vmem:[%s20 + $0x14] sm:$0xf]
    %v2155 = vld [vmem:[%s20 + $0x18] sm:$0xf]
    %v2156 = vld [vmem:[%s20 + $0x1c] sm:$0xf]
    %v2157 = vld [vmem:[%s20 + $0x20] sm:$0xf]
    %v2158 = vld [vmem:[%s20 + $0x24] sm:$0xf]
    %v2159 = vld [vmem:[%s20 + $0x28] sm:$0xf]
    %v2160 = vld [vmem:[%s20 + $0x2c] sm:$0xf]
    %v2161 = vld [vmem:[%s20 + $0x30] sm:$0xf]
    %v2162 = vld [vmem:[%s20 + $0x34] sm:$0xf]
    %v2163 = vld [vmem:[%s20 + $0x38] sm:$0xf]
    %v2164 = vld [vmem:[%s20 + $0x3c] sm:$0xf]
    %v2165 = vld [vmem:[%s21] sm:$0x1]
    %v2166 = vpack.c.bf16 %v2148, %v2147
    %v2168 = vlaneseq
    %v2169 = vshrl.u32 %v2168, 7
    %v2170 = vsub.s32 0, %v2169
    %v2171 = vrot.slane %v2165, %v2170
    %v2189 = vunpack.c.l.b16 %v2149
    %v2190 = vunpack.c.l.b16 %v2150
    %v2191 = vunpack.c.l.b16 %v2151
    %v2192 = vunpack.c.l.b16 %v2152
    %v2193 = vunpack.c.l.b16 %v2153
    %v2194 = vunpack.c.l.b16 %v2154
    %v2195 = vunpack.c.l.b16 %v2155
    %v2196 = vunpack.c.l.b16 %v2156
    %v2197 = vunpack.c.l.b16 %v2157
    %v2198 = vunpack.c.l.b16 %v2158
    %v2199 = vunpack.c.l.b16 %v2159
    %v2200 = vunpack.c.l.b16 %v2160
    %v2201 = vunpack.c.l.b16 %v2161
    %v2202 = vunpack.c.l.b16 %v2162
    %v2203 = vunpack.c.l.b16 %v2163
    %v2204 = vunpack.c.l.b16 %v2164
    %v2205 = vpack.c.b16 %v2190, %v2189
    %v2206 = vpack.c.b16 %v2192, %v2191
    %v2207 = vpack.c.b16 %v2194, %v2193
    %v2208 = vpack.c.b16 %v2196, %v2195
    %v2209 = vpack.c.b16 %v2198, %v2197
    %v2210 = vpack.c.b16 %v2200, %v2199
    %v2211 = vpack.c.b16 %v2202, %v2201
    %v2212 = vpack.c.b16 %v2204, %v2203
    %2221 = vmatprep.subr.bf16.mxu0 0
    %2222 = vmatpush1.bf16.msra.mxu0 %v2205
    %2223 = vmatprep.subr.bf16.mxu0 0
    %2224 = vmatpush1.bf16.msra.mxu0 %v2206
    %2225 = vmatprep.subr.bf16.mxu0 0
    %2226 = vmatpush1.bf16.msra.mxu0 %v2207
    %2227 = vmatprep.subr.bf16.mxu0 0
    %2228 = vmatpush1.bf16.msra.mxu0 %v2208
    %2229 = vmatprep.subr.bf16.mxu0 0
    %2230 = vmatpush1.bf16.msra.mxu0 %v2209
    %2231 = vmatprep.subr.bf16.mxu0 0
    %2232 = vmatpush1.bf16.msra.mxu0 %v2210
    %2233 = vmatprep.subr.bf16.mxu0 0
    %2234 = vmatpush1.bf16.msra.mxu0 %v2211
    %2235 = vmatprep.subr.bf16.mxu0 0
    %2236 = vmatpush1.bf16.msra.mxu0 %v2212
    %2237 = vmatprep.subr.bf16.mxu0 0
    %2238 = vmatpush1.bf16.msra.mxu0 0
    %2239 = vmatprep.subr.bf16.mxu0 0
    %2240 = vmatpush1.bf16.msra.mxu0 0
    %2241 = vmatprep.subr.bf16.mxu0 0
    %2242 = vmatpush1.bf16.msra.mxu0 0
    %2243 = vmatprep.subr.bf16.mxu0 0
    %2244 = vmatpush1.bf16.msra.mxu0 0
    %2245 = vmatprep.subr.bf16.mxu0 0
    %2246 = vmatpush1.bf16.msra.mxu0 0
    %2247 = vmatprep.subr.bf16.mxu0 0
    %2248 = vmatpush1.bf16.msra.mxu0 0
    %2249 = vmatprep.subr.bf16.mxu0 0
    %2250 = vmatpush1.bf16.msra.mxu0 0
    %2251 = vmatprep.subr.bf16.mxu0 0
    %2252 = vmatpush1.bf16.msra.mxu0 0
    %2253 = vmatprep.mubr.bf16.mxu0 0
    %2254 = vmatmul.mubr.bf16.gmra.mrb[0].mxu0 %v2166
    %v2255 = vpop.f32.mrb[0].mxu0
    %v2256 = vadd.f32 %v2171, %v2255
    %v2257 = vpop.f32.mrb[0].mxu0
    %v2258 = vpop.f32.mrb[0].mxu0
    %v2259 = vadd.f32 %v2171, %v2258
    %v2260 = vpop.f32.mrb[0].mxu0
    %2261 = vdwg.mxu0
    %v2262 = vadd.f32 %v2032, %v2256
    %v2263 = vadd.f32 %v2033, %v2259
    %v2264 = vld [vmem:[#allocation2] sm:$0x1]
    %v2265 = vld [vmem:[#allocation4] sm:$0x1]
    %2266 = vadd.xlane.f32.xlu0 %v2262
    %v2267 = vpop.xlane.xlu0 %2266
    %2268 = vadd.xlane.f32.xlu0 %v2263
    %v2269 = vpop.xlane.xlu0 %2268
    %v2270 = vmul.f32 %v2267, %v1011
    %v2271 = vmul.f32 %v2269, %v1011
    %v2272 = vsub.f32 %v2262, %v2270
    %v2273 = vsub.f32 %v2263, %v2271
    %v2274 = vmul.f32 %v2272, %v2272
    %v2275 = vmul.f32 %v2273, %v2273
    %2276 = vadd.xlane.f32.xlu0 %v2274
    %v2277 = vpop.xlane.xlu0 %2276
    %2278 = vadd.xlane.f32.xlu0 %v2275
    %v2279 = vpop.xlane.xlu0 %2278
    %v2280 = vmul.f32 %v2277, %v1011
    %v2281 = vmul.f32 %v2279, %v1011
    %v2282 = vadd.f32 %v2280, 1e-05
    %v2283 = vadd.f32 %v2281, 1e-05
    %v2284 = vrsqrt.pop %v2282
    %v2285 = vrsqrt.pop %v2283
    %v2286 = vmul.f32 %v2272, %v2284
    %v2287 = vmul.f32 %v2273, %v2285
    %v2289 = vlaneseq
    %v2290 = vshrl.u32 %v2289, 7
    %v2291 = vsub.s32 0, %v2290
    %v2292 = vrot.slane %v2264, %v2291
    %v2294 = vmul.f32 %v2286, %v2292
    %v2295 = vmul.f32 %v2287, %v2292
    %v2297 = vlaneseq
    %v2298 = vshrl.u32 %v2297, 7
    %v2299 = vsub.s32 0, %v2298
    %v2300 = vrot.slane %v2265, %v2299
    %v2302 = vadd.f32 %v2294, %v2300
    %v2303 = vadd.f32 %v2295, %v2300
    %2304 = vst [vmem:[%s24] sm:$0xff] %v2302
    %2305 = vst [vmem:[%s24 + $0x8] sm:$0xff] %v2303
    // Predicated region
    $region106: #{seq2seq_forward.10} parent=1 // pred_check
      _
    $region107: #{seq2seq_forward.10} parent=1 // pred_check_branch
      %2307 = sbr.rel (0) target = $region109
    $region108: #{seq2seq_forward.10} parent=1 // pred_region
      _
    $region109: #{seq2seq_forward.10} parent=1 // pred_fallthru
      _
    // Predicated region
    $region110: #{seq2seq_forward.10} parent=1 // pred_check
      _
    $region111: #{seq2seq_forward.10} parent=1 // pred_check_branch
      %2309 = sbr.rel (0) target = $region113
    $region112: #{seq2seq_forward.10} parent=1 // pred_region
      _
    $region113: #{seq2seq_forward.10} parent=1 // pred_fallthru
      _
    %2310 = vsyncpa [#allocation3], 1
    %2311 = vsyncpa [#allocation5], 1

// kernel: seq2seq_forward.9
$region0: #{seq2seq_forward.9}
  #allocation0 [shape = 'u32[]', space=smem, size = 0x4, offset = 0x4, fixed_abs, tag = 'smem constant byte address 0x4 - core index']
  #allocation1 [shape = 'u32[144,128]{1,0:T(1,128)}', space=vmem, size = 0x12000, scoped, tag = 'internal scratch']
  %s0 = inlined_call_operand.vmem [shape: f32[16,128], index: 0, kind: input, shape index: {}]
  %s1 = inlined_call_operand.vmem [shape: f32[20,128], index: 1, kind: input, shape index: {}]
  %s2 = inlined_call_operand.vmem [shape: f32[16,16], index: 2, kind: input, shape index: {}]
  %s3 = inlined_call_operand.vmem [shape: f32[16,20], index: 3, kind: input, shape index: {}]
  %s4 = inlined_call_operand.vmem [shape: bf16[128,384], index: 4, kind: input, shape index: {}]
  %s5 = inlined_call_operand.vmem [shape: f32[1,384], index: 5, kind: input, shape index: {}]
  %s6 = inlined_call_operand.vmem [shape: bf16[128,128], index: 6, kind: input, shape index: {}]
  %s7 = inlined_call_operand.vmem [shape: f32[1,128], index: 7, kind: input, shape index: {}]
  %s8 = inlined_call_operand.vmem [shape: f32[1,128], index: 8, kind: input, shape index: {}]
  %s9 = inlined_call_operand.vmem [shape: f32[1,128], index: 9, kind: input, shape index: {}]
  %s10 = inlined_call_operand.vmem [shape: bf16[128,128], index: 10, kind: input, shape index: {}]
  %s11 = inlined_call_operand.vmem [shape: f32[1,128], index: 11, kind: input, shape index: {}]
  %s12 = inlined_call_operand.vmem [shape: bf16[128,256], index: 12, kind: input, shape index: {}]
  %s13 = inlined_call_operand.vmem [shape: f32[1,256], index: 13, kind: input, shape index: {}]
  %s14 = inlined_call_operand.vmem [shape: bf16[128,128], index: 14, kind: input, shape index: {}]
  %s15 = inlined_call_operand.vmem [shape: f32[1,128], index: 15, kind: input, shape index: {}]
  %s16 = inlined_call_operand.vmem [shape: f32[1,128], index: 16, kind: input, shape index: {}]
  %s17 = inlined_call_operand.vmem [shape: f32[1,128], index: 17, kind: input, shape index: {}]
  %s18 = inlined_call_operand.vmem [shape: bf16[128,128], index: 18, kind: input, shape index: {}]
  %s19 = inlined_call_operand.vmem [shape: f32[1,128], index: 19, kind: input, shape index: {}]
  %s20 = inlined_call_operand.vmem [shape: bf16[128,128], index: 20, kind: input, shape index: {}]
  %s21 = inlined_call_operand.vmem [shape: f32[1,128], index: 21, kind: input, shape index: {}]
  %s22 = inlined_call_operand.vmem [shape: f32[1,128], index: 22, kind: input, shape index: {}]
  %s23 = inlined_call_operand.vmem [shape: f32[1,128], index: 23, kind: input, shape index: {}]
  %s24 = inlined_call_operand.vmem [shape: f32[16,128], index: 24, kind: output, shape index: {}]
  %s25 = sld [smem:[#allocation0]]
  $region106: #{seq2seq_forward.9} parent=0
    _
  %s27 = ssub.s32 1, %s25
  %s28 = scalar_select 0, %s27, %s25
  // Predicated region
  $region2: #{seq2seq_forward.9} parent=0 // pred_check
    _
  $region3: #{seq2seq_forward.9} parent=0 // pred_check_branch
    %30 = sbr.rel (0) target = $region5
  $region4: #{seq2seq_forward.9} parent=0 // pred_region
    _
  $region5: #{seq2seq_forward.9} parent=0 // pred_fallthru
    _
  // Predicated region
  $region6: #{seq2seq_forward.9} parent=0 // pred_check
    _
  $region7: #{seq2seq_forward.9} parent=0 // pred_check_branch
    %32 = sbr.rel (0) target = $region9
  $region8: #{seq2seq_forward.9} parent=0 // pred_region
    _
  $region9: #{seq2seq_forward.9} parent=0 // pred_fallthru
    _
  // Predicated region
  $region10: #{seq2seq_forward.9} parent=0 // pred_check
    _
  $region11: #{seq2seq_forward.9} parent=0 // pred_check_branch
    %34 = sbr.rel (0) target = $region13
  $region12: #{seq2seq_forward.9} parent=0 // pred_region
    _
  $region13: #{seq2seq_forward.9} parent=0 // pred_fallthru
    _
  // Predicated region
  $region14: #{seq2seq_forward.9} parent=0 // pred_check
    _
  $region15: #{seq2seq_forward.9} parent=0 // pred_check_branch
    %36 = sbr.rel (0) target = $region17
  $region16: #{seq2seq_forward.9} parent=0 // pred_region
    _
  $region17: #{seq2seq_forward.9} parent=0 // pred_fallthru
    _
  // Predicated region
  $region18: #{seq2seq_forward.9} parent=0 // pred_check
    _
  $region19: #{seq2seq_forward.9} parent=0 // pred_check_branch
    %38 = sbr.rel (0) target = $region21
  $region20: #{seq2seq_forward.9} parent=0 // pred_region
    _
  $region21: #{seq2seq_forward.9} parent=0 // pred_fallthru
    _
  // Predicated region
  $region22: #{seq2seq_forward.9} parent=0 // pred_check
    _
  $region23: #{seq2seq_forward.9} parent=0 // pred_check_branch
    %40 = sbr.rel (0) target = $region25
  $region24: #{seq2seq_forward.9} parent=0 // pred_region
    _
  $region25: #{seq2seq_forward.9} parent=0 // pred_fallthru
    _
  // Predicated region
  $region26: #{seq2seq_forward.9} parent=0 // pred_check
    _
  $region27: #{seq2seq_forward.9} parent=0 // pred_check_branch
    %42 = sbr.rel (0) target = $region29
  $region28: #{seq2seq_forward.9} parent=0 // pred_region
    _
  $region29: #{seq2seq_forward.9} parent=0 // pred_fallthru
    _
  // Predicated region
  $region30: #{seq2seq_forward.9} parent=0 // pred_check
    _
  $region31: #{seq2seq_forward.9} parent=0 // pred_check_branch
    %44 = sbr.rel (0) target = $region33
  $region32: #{seq2seq_forward.9} parent=0 // pred_region
    _
  $region33: #{seq2seq_forward.9} parent=0 // pred_fallthru
    _
  // Predicated region
  $region34: #{seq2seq_forward.9} parent=0 // pred_check
    _
  $region35: #{seq2seq_forward.9} parent=0 // pred_check_branch
    %46 = sbr.rel (0) target = $region37
  $region36: #{seq2seq_forward.9} parent=0 // pred_region
    _
  $region37: #{seq2seq_forward.9} parent=0 // pred_fallthru
    _
  // Predicated region
  $region38: #{seq2seq_forward.9} parent=0 // pred_check
    _
  $region39: #{seq2seq_forward.9} parent=0 // pred_check_branch
    %48 = sbr.rel (0) target = $region41
  $region40: #{seq2seq_forward.9} parent=0 // pred_region
    _
  $region41: #{seq2seq_forward.9} parent=0 // pred_fallthru
    _
  // Predicated region
  $region42: #{seq2seq_forward.9} parent=0 // pred_check
    _
  $region43: #{seq2seq_forward.9} parent=0 // pred_check_branch
    %50 = sbr.rel (0) target = $region45
  $region44: #{seq2seq_forward.9} parent=0 // pred_region
    _
  $region45: #{seq2seq_forward.9} parent=0 // pred_fallthru
    _
  // Predicated region
  $region46: #{seq2seq_forward.9} parent=0 // pred_check
    _
  $region47: #{seq2seq_forward.9} parent=0 // pred_check_branch
    %52 = sbr.rel (0) target = $region49
  $region48: #{seq2seq_forward.9} parent=0 // pred_region
    _
  $region49: #{seq2seq_forward.9} parent=0 // pred_fallthru
    _
  // Predicated region
  $region50: #{seq2seq_forward.9} parent=0 // pred_check
    _
  $region51: #{seq2seq_forward.9} parent=0 // pred_check_branch
    %54 = sbr.rel (0) target = $region53
  $region52: #{seq2seq_forward.9} parent=0 // pred_region
    _
  $region53: #{seq2seq_forward.9} parent=0 // pred_fallthru
    _
  // Predicated region
  $region54: #{seq2seq_forward.9} parent=0 // pred_check
    _
  $region55: #{seq2seq_forward.9} parent=0 // pred_check_branch
    %56 = sbr.rel (0) target = $region57
  $region56: #{seq2seq_forward.9} parent=0 // pred_region
    _
  $region57: #{seq2seq_forward.9} parent=0 // pred_fallthru
    _
  // Predicated region
  $region58: #{seq2seq_forward.9} parent=0 // pred_check
    _
  $region59: #{seq2seq_forward.9} parent=0 // pred_check_branch
    %58 = sbr.rel (0) target = $region61
  $region60: #{seq2seq_forward.9} parent=0 // pred_region
    _
  $region61: #{seq2seq_forward.9} parent=0 // pred_fallthru
    _
  // Predicated region
  $region62: #{seq2seq_forward.9} parent=0 // pred_check
    _
  $region63: #{seq2seq_forward.9} parent=0 // pred_check_branch
    %60 = sbr.rel (0) target = $region65
  $region64: #{seq2seq_forward.9} parent=0 // pred_region
    _
  $region65: #{seq2seq_forward.9} parent=0 // pred_fallthru
    _
  // Predicated region
  $region66: #{seq2seq_forward.9} parent=0 // pred_check
    _
  $region67: #{seq2seq_forward.9} parent=0 // pred_check_branch
    %62 = sbr.rel (0) target = $region69
  $region68: #{seq2seq_forward.9} parent=0 // pred_region
    _
  $region69: #{seq2seq_forward.9} parent=0 // pred_fallthru
    _
  // Predicated region
  $region70: #{seq2seq_forward.9} parent=0 // pred_check
    _
  $region71: #{seq2seq_forward.9} parent=0 // pred_check_branch
    %64 = sbr.rel (0) target = $region73
  $region72: #{seq2seq_forward.9} parent=0 // pred_region
    _
  $region73: #{seq2seq_forward.9} parent=0 // pred_fallthru
    _
  // Predicated region
  $region74: #{seq2seq_forward.9} parent=0 // pred_check
    _
  $region75: #{seq2seq_forward.9} parent=0 // pred_check_branch
    %66 = sbr.rel (0) target = $region77
  $region76: #{seq2seq_forward.9} parent=0 // pred_region
    _
  $region77: #{seq2seq_forward.9} parent=0 // pred_fallthru
    _
  // Predicated region
  $region78: #{seq2seq_forward.9} parent=0 // pred_check
    _
  $region79: #{seq2seq_forward.9} parent=0 // pred_check_branch
    %68 = sbr.rel (0) target = $region81
  $region80: #{seq2seq_forward.9} parent=0 // pred_region
    _
  $region81: #{seq2seq_forward.9} parent=0 // pred_fallthru
    _
  // Predicated region
  $region82: #{seq2seq_forward.9} parent=0 // pred_check
    _
  $region83: #{seq2seq_forward.9} parent=0 // pred_check_branch
    %70 = sbr.rel (0) target = $region85
  $region84: #{seq2seq_forward.9} parent=0 // pred_region
    _
  $region85: #{seq2seq_forward.9} parent=0 // pred_fallthru
    _
  // Predicated region
  $region86: #{seq2seq_forward.9} parent=0 // pred_check
    _
  $region87: #{seq2seq_forward.9} parent=0 // pred_check_branch
    %72 = sbr.rel (0) target = $region89
  $region88: #{seq2seq_forward.9} parent=0 // pred_region
    _
  $region89: #{seq2seq_forward.9} parent=0 // pred_fallthru
    _
  // Predicated region
  $region90: #{seq2seq_forward.9} parent=0 // pred_check
    _
  $region91: #{seq2seq_forward.9} parent=0 // pred_check_branch
    %74 = sbr.rel (0) target = $region93
  $region92: #{seq2seq_forward.9} parent=0 // pred_region
    _
  $region93: #{seq2seq_forward.9} parent=0 // pred_fallthru
    _
  // Predicated region
  $region94: #{seq2seq_forward.9} parent=0 // pred_check
    _
  $region95: #{seq2seq_forward.9} parent=0 // pred_check_branch
    %76 = sbr.rel (0) target = $region97
  $region96: #{seq2seq_forward.9} parent=0 // pred_region
    _
  $region97: #{seq2seq_forward.9} parent=0 // pred_fallthru
    _
  %v78 = vld [vmem:[%s0] sm:$0xff]
  %v79 = vld [vmem:[%s0 + $0x8] sm:$0xff]
  %v80 = vld [vmem:[%s1] sm:$0xff]
  %v81 = vld [vmem:[%s1 + $0x8] sm:$0xff]
  %v82 = vld [vmem:[%s1 + $0x10] sm:$0xf]
  %v83 = vld [vmem:[%s4] sm:$0xff]
  %v84 = vld [vmem:[%s4 + $0x8] sm:$0xf]
  %v85 = vld [vmem:[%s4 + $0xc] sm:$0xff]
  %v86 = vld [vmem:[%s4 + $0x14] sm:$0xf]
  %v87 = vld [vmem:[%s4 + $0x18] sm:$0xff]
  %v88 = vld [vmem:[%s4 + $0x20] sm:$0xf]
  %v89 = vld [vmem:[%s4 + $0x24] sm:$0xff]
  %v90 = vld [vmem:[%s4 + $0x2c] sm:$0xf]
  %v91 = vld [vmem:[%s4 + $0x30] sm:$0xff]
  %v92 = vld [vmem:[%s4 + $0x38] sm:$0xf]
  %v93 = vld [vmem:[%s4 + $0x3c] sm:$0xff]
  %v94 = vld [vmem:[%s4 + $0x44] sm:$0xf]
  %v95 = vld [vmem:[%s4 + $0x48] sm:$0xff]
  %v96 = vld [vmem:[%s4 + $0x50] sm:$0xf]
  %v97 = vld [vmem:[%s4 + $0x54] sm:$0xff]
  %v98 = vld [vmem:[%s4 + $0x5c] sm:$0xf]
  %v99 = vld [vmem:[%s4 + $0x60] sm:$0xff]
  %v100 = vld [vmem:[%s4 + $0x68] sm:$0xf]
  %v101 = vld [vmem:[%s4 + $0x6c] sm:$0xff]
  %v102 = vld [vmem:[%s4 + $0x74] sm:$0xf]
  %v103 = vld [vmem:[%s4 + $0x78] sm:$0xff]
  %v104 = vld [vmem:[%s4 + $0x80] sm:$0xf]
  %v105 = vld [vmem:[%s4 + $0x84] sm:$0xff]
  %v106 = vld [vmem:[%s4 + $0x8c] sm:$0xf]
  %v107 = vld [vmem:[%s4 + $0x90] sm:$0xff]
  %v108 = vld [vmem:[%s4 + $0x98] sm:$0xf]
  %v109 = vld [vmem:[%s4 + $0x9c] sm:$0xff]
  %v110 = vld [vmem:[%s4 + $0xa4] sm:$0xf]
  %v111 = vld [vmem:[%s4 + $0xa8] sm:$0xff]
  %v112 = vld [vmem:[%s4 + $0xb0] sm:$0xf]
  %v113 = vld [vmem:[%s4 + $0xb4] sm:$0xff]
  %v114 = vld [vmem:[%s4 + $0xbc] sm:$0xf]
  %v115 = vld [vmem:[%s5] sm:$0x7]
  %v116 = vpack.c.bf16 %v79, %v78
  %v118 = vlaneseq
  %v119 = vshrl.u32 %v118, 7
  %v120 = vsub.s32 0, %v119
  %v121 = vrot.slane %v115, %v120
  %v122 = vlaneseq
  %v123 = vshrl.u32 %v122, 7
  %v124 = vsub.s32 1, %v123
  %v125 = vrot.slane %v115, %v124
  %v126 = vlaneseq
  %v127 = vshrl.u32 %v126, 7
  %v128 = vsub.s32 2, %v127
  %v129 = vrot.slane %v115, %v128
  %v165 = vunpack.c.l.b16 %v83
  %v166 = vunpack.c.h.b16 %v83
  %v167 = vunpack.c.l.b16 %v84
  %v168 = vunpack.c.l.b16 %v85
  %v169 = vunpack.c.h.b16 %v85
  %v170 = vunpack.c.l.b16 %v86
  %v171 = vunpack.c.l.b16 %v87
  %v172 = vunpack.c.h.b16 %v87
  %v173 = vunpack.c.l.b16 %v88
  %v174 = vunpack.c.l.b16 %v89
  %v175 = vunpack.c.h.b16 %v89
  %v176 = vunpack.c.l.b16 %v90
  %v177 = vunpack.c.l.b16 %v91
  %v178 = vunpack.c.h.b16 %v91
  %v179 = vunpack.c.l.b16 %v92
  %v180 = vunpack.c.l.b16 %v93
  %v181 = vunpack.c.h.b16 %v93
  %v182 = vunpack.c.l.b16 %v94
  %v183 = vunpack.c.l.b16 %v95
  %v184 = vunpack.c.h.b16 %v95
  %v185 = vunpack.c.l.b16 %v96
  %v186 = vunpack.c.l.b16 %v97
  %v187 = vunpack.c.h.b16 %v97
  %v188 = vunpack.c.l.b16 %v98
  %v189 = vunpack.c.l.b16 %v99
  %v190 = vunpack.c.h.b16 %v99
  %v191 = vunpack.c.l.b16 %v100
  %v192 = vunpack.c.l.b16 %v101
  %v193 = vunpack.c.h.b16 %v101
  %v194 = vunpack.c.l.b16 %v102
  %v195 = vunpack.c.l.b16 %v103
  %v196 = vunpack.c.h.b16 %v103
  %v197 = vunpack.c.l.b16 %v104
  %v198 = vunpack.c.l.b16 %v105
  %v199 = vunpack.c.h.b16 %v105
  %v200 = vunpack.c.l.b16 %v106
  %v201 = vunpack.c.l.b16 %v107
  %v202 = vunpack.c.h.b16 %v107
  %v203 = vunpack.c.l.b16 %v108
  %v204 = vunpack.c.l.b16 %v109
  %v205 = vunpack.c.h.b16 %v109
  %v206 = vunpack.c.l.b16 %v110
  %v207 = vunpack.c.l.b16 %v111
  %v208 = vunpack.c.h.b16 %v111
  %v209 = vunpack.c.l.b16 %v112
  %v210 = vunpack.c.l.b16 %v113
  %v211 = vunpack.c.h.b16 %v113
  %v212 = vunpack.c.l.b16 %v114
  %v213 = vpack.c.b16 %v168, %v165
  %v214 = vpack.c.b16 %v169, %v166
  %v215 = vpack.c.b16 %v170, %v167
  %v216 = vpack.c.b16 %v174, %v171
  %v217 = vpack.c.b16 %v175, %v172
  %v218 = vpack.c.b16 %v176, %v173
  %v219 = vpack.c.b16 %v180, %v177
  %v220 = vpack.c.b16 %v181, %v178
  %v221 = vpack.c.b16 %v182, %v179
  %v222 = vpack.c.b16 %v186, %v183
  %v223 = vpack.c.b16 %v187, %v184
  %v224 = vpack.c.b16 %v188, %v185
  %v225 = vpack.c.b16 %v192, %v189
  %v226 = vpack.c.b16 %v193, %v190
  %v227 = vpack.c.b16 %v194, %v191
  %v228 = vpack.c.b16 %v198, %v195
  %v229 = vpack.c.b16 %v199, %v196
  %v230 = vpack.c.b16 %v200, %v197
  %v231 = vpack.c.b16 %v204, %v201
  %v232 = vpack.c.b16 %v205, %v202
  %v233 = vpack.c.b16 %v206, %v203
  %v234 = vpack.c.b16 %v210, %v207
  %v235 = vpack.c.b16 %v211, %v208
  %v236 = vpack.c.b16 %v212, %v209
  %261 = vmatprep.subr.bf16.mxu0 %v214
  %262 = vmatpush1.bf16.msra.mxu0 %v213
  %263 = vmatprep.subr.bf16.mxu0 %v217
  %264 = vmatpush1.bf16.msra.mxu0 %v216
  %265 = vmatprep.subr.bf16.mxu0 %v220
  %266 = vmatpush1.bf16.msra.mxu0 %v219
  %267 = vmatprep.subr.bf16.mxu0 %v223
  %268 = vmatpush1.bf16.msra.mxu0 %v222
  %269 = vmatprep.subr.bf16.mxu0 %v226
  %270 = vmatpush1.bf16.msra.mxu0 %v225
  %271 = vmatprep.subr.bf16.mxu0 %v229
  %272 = vmatpush1.bf16.msra.mxu0 %v228
  %273 = vmatprep.subr.bf16.mxu0 %v232
  %274 = vmatpush1.bf16.msra.mxu0 %v231
  %275 = vmatprep.subr.bf16.mxu0 %v235
  %276 = vmatpush1.bf16.msra.mxu0 %v234
  %277 = vmatprep.subr.bf16.mxu0 0
  %278 = vmatpush1.bf16.msra.mxu0 0
  %279 = vmatprep.subr.bf16.mxu0 0
  %280 = vmatpush1.bf16.msra.mxu0 0
  %281 = vmatprep.subr.bf16.mxu0 0
  %282 = vmatpush1.bf16.msra.mxu0 0
  %283 = vmatprep.subr.bf16.mxu0 0
  %284 = vmatpush1.bf16.msra.mxu0 0
  %285 = vmatprep.subr.bf16.mxu0 0
  %286 = vmatpush1.bf16.msra.mxu0 0
  %287 = vmatprep.subr.bf16.mxu0 0
  %288 = vmatpush1.bf16.msra.mxu0 0
  %289 = vmatprep.subr.bf16.mxu0 0
  %290 = vmatpush1.bf16.msra.mxu0 0
  %291 = vmatprep.subr.bf16.mxu0 0
  %292 = vmatpush1.bf16.msra.mxu0 0
  %293 = vmatprep.mubr.bf16.mxu0 0
  %294 = vmatmul.mubr.bf16.gmra.mrb[0].mxu0 %v116
  %v295 = vpop.f32.mrb[0].mxu0
  %v296 = vadd.f32 %v121, %v295
  %v297 = vpop.f32.mrb[0].mxu0
  %v298 = vadd.f32 %v125, %v297
  %v299 = vpop.f32.mrb[0].mxu0
  %v300 = vadd.f32 %v121, %v299
  %v301 = vpop.f32.mrb[0].mxu0
  %v302 = vadd.f32 %v125, %v301
  %303 = vdwg.mxu0
  %304 = vmatprep.subr.bf16.mxu0 0
  %305 = vmatpush1.bf16.msra.mxu0 %v215
  %306 = vmatprep.subr.bf16.mxu0 0
  %307 = vmatpush1.bf16.msra.mxu0 %v218
  %308 = vmatprep.subr.bf16.mxu0 0
  %309 = vmatpush1.bf16.msra.mxu0 %v221
  %310 = vmatprep.subr.bf16.mxu0 0
  %311 = vmatpush1.bf16.msra.mxu0 %v224
  %312 = vmatprep.subr.bf16.mxu0 0
  %313 = vmatpush1.bf16.msra.mxu0 %v227
  %314 = vmatprep.subr.bf16.mxu0 0
  %315 = vmatpush1.bf16.msra.mxu0 %v230
  %316 = vmatprep.subr.bf16.mxu0 0
  %317 = vmatpush1.bf16.msra.mxu0 %v233
  %318 = vmatprep.subr.bf16.mxu0 0
  %319 = vmatpush1.bf16.msra.mxu0 %v236
  %320 = vmatprep.subr.bf16.mxu0 0
  %321 = vmatpush1.bf16.msra.mxu0 0
  %322 = vmatprep.subr.bf16.mxu0 0
  %323 = vmatpush1.bf16.msra.mxu0 0
  %324 = vmatprep.subr.bf16.mxu0 0
  %325 = vmatpush1.bf16.msra.mxu0 0
  %326 = vmatprep.subr.bf16.mxu0 0
  %327 = vmatpush1.bf16.msra.mxu0 0
  %328 = vmatprep.subr.bf16.mxu0 0
  %329 = vmatpush1.bf16.msra.mxu0 0
  %330 = vmatprep.subr.bf16.mxu0 0
  %331 = vmatpush1.bf16.msra.mxu0 0
  %332 = vmatprep.subr.bf16.mxu0 0
  %333 = vmatpush1.bf16.msra.mxu0 0
  %334 = vmatprep.subr.bf16.mxu0 0
  %335 = vmatpush1.bf16.msra.mxu0 0
  %336 = vmatprep.mubr.bf16.mxu0 0
  %337 = vmatmul.mubr.bf16.gmra.mrb[0].mxu0 %v116
  %v338 = vpop.f32.mrb[0].mxu0
  %v339 = vadd.f32 %v129, %v338
  %v340 = vpop.f32.mrb[0].mxu0
  %v341 = vpop.f32.mrb[0].mxu0
  %v342 = vadd.f32 %v129, %v341
  %v343 = vpop.f32.mrb[0].mxu0
  %344 = vdwg.mxu0
  %v345 = vmul.f32 %v296, 0.17677669
  %v346 = vmul.f32 %v300, 0.17677669
  %v347 = vld [vmem:[%s2] sm:$0xff]
  %v348 = vld [vmem:[%s2 + $0x8] sm:$0xff]
  %v349 = vld [vmem:[%s6] sm:$0xf]
  %v350 = vld [vmem:[%s6 + $0x4] sm:$0xf]
  %v351 = vld [vmem:[%s6 + $0x8] sm:$0xf]
  %v352 = vld [vmem:[%s6 + $0xc] sm:$0xf]
  %v353 = vld [vmem:[%s6 + $0x10] sm:$0xf]
  %v354 = vld [vmem:[%s6 + $0x14] sm:$0xf]
  %v355 = vld [vmem:[%s6 + $0x18] sm:$0xf]
  %v356 = vld [vmem:[%s6 + $0x1c] sm:$0xf]
  %v357 = vld [vmem:[%s6 + $0x20] sm:$0xf]
  %v358 = vld [vmem:[%s6 + $0x24] sm:$0xf]
  %v359 = vld [vmem:[%s6 + $0x28] sm:$0xf]
  %v360 = vld [vmem:[%s6 + $0x2c] sm:$0xf]
  %v361 = vld [vmem:[%s6 + $0x30] sm:$0xf]
  %v362 = vld [vmem:[%s6 + $0x34] sm:$0xf]
  %v363 = vld [vmem:[%s6 + $0x38] sm:$0xf]
  %v364 = vld [vmem:[%s6 + $0x3c] sm:$0xf]
  %v365 = vld [vmem:[%s7] sm:$0x1]
  %v366 = vpack.c.bf16 %v346, %v345
  %v367 = vpack.c.bf16 %v302, %v298
  %v368 = vpack.c.bf16 %v342, %v339
  %vm369 = vcmask 261120
  %v371 = vsel %vm369, %v366, 0
  %v374 = vsel %vm369, %v367, 0
  %376 = vmatprep.subr.bf16.mxu0 0
  %377 = vmatpush1.bf16.xpose.msra.mxu0 %v374
  %378 = vmatprep.subr.bf16.mxu0 0
  %379 = vmatpush1.bf16.xpose.msra.mxu0 0
  %380 = vmatprep.subr.bf16.mxu0 0
  %381 = vmatpush1.bf16.xpose.msra.mxu0 0
  %382 = vmatprep.subr.bf16.mxu0 0
  %383 = vmatpush1.bf16.xpose.msra.mxu0 0
  %384 = vmatprep.subr.bf16.mxu0 0
  %385 = vmatpush1.bf16.xpose.msra.mxu0 0
  %386 = vmatprep.subr.bf16.mxu0 0
  %387 = vmatpush1.bf16.xpose.msra.mxu0 0
  %388 = vmatprep.subr.bf16.mxu0 0
  %389 = vmatpush1.bf16.xpose.msra.mxu0 0
  %390 = vmatprep.subr.bf16.mxu0 0
  %391 = vmatpush1.bf16.xpose.msra.mxu0 0
  %392 = vmatprep.subr.bf16.mxu0 0
  %393 = vmatpush1.bf16.xpose.msra.mxu0 0
  %394 = vmatprep.subr.bf16.mxu0 0
  %395 = vmatpush1.bf16.xpose.msra.mxu0 0
  %396 = vmatprep.subr.bf16.mxu0 0
  %397 = vmatpush1.bf16.xpose.msra.mxu0 0
  %398 = vmatprep.subr.bf16.mxu0 0
  %399 = vmatpush1.bf16.xpose.msra.mxu0 0
  %400 = vmatprep.subr.bf16.mxu0 0
  %401 = vmatpush1.bf16.xpose.msra.mxu0 0
  %402 = vmatprep.subr.bf16.mxu0 0
  %403 = vmatpush1.bf16.xpose.msra.mxu0 0
  %404 = vmatprep.subr.bf16.mxu0 0
  %405 = vmatpush1.bf16.xpose.msra.mxu0 0
  %406 = vmatprep.subr.bf16.mxu0 0
  %407 = vmatpush1.bf16.xpose.msra.mxu0 0
  %408 = vmatprep.mubr.bf16.mxu0 0
  %409 = vmatmul.mubr.bf16.gmra.mrb[0].mxu0 %v371
  %v410 = vpop.f32.mrb[0].mxu0
  %v411 = vadd.f32 %v347, %v410
  %v412 = vpop.f32.mrb[0].mxu0
  %v413 = vpop.f32.mrb[0].mxu0
  %v414 = vadd.f32 %v348, %v413
  %v415 = vpop.f32.mrb[0].mxu0
  %416 = vdwg.mxu0
  %vm417 = vcmask 130048
  %v418 = vsel %vm417, %v411, -inf
  %419 = vmax.xlane.f32.xlu0 %v418
  %v420 = vpop.xlane.xlu0 %419
  %v421 = vsel %vm417, %v414, -inf
  %422 = vmax.xlane.f32.xlu0 %v421
  %v423 = vpop.xlane.xlu0 %422
  %v424 = vsub.f32 %v411, %v420
  %v425 = vsub.f32 %v414, %v423
  %v426 = vmul.f32 %v424, 1.442695
  %v427 = vpow.pop %v426
  %v428 = vmul.f32 %v425, 1.442695
  %v429 = vpow.pop %v428
  %v430 = vsel %vm417, %v427, 0.0
  %431 = vadd.xlane.f32.xlu0 %v430
  %v432 = vpop.xlane.xlu0 %431
  %v433 = vsel %vm417, %v429, 0.0
  %434 = vadd.xlane.f32.xlu0 %v433
  %v435 = vpop.xlane.xlu0 %434
  %v436 = vrcp.pop %v432
  %v437 = vrcp.pop %v435
  %v438 = vmul.f32 %v427, %v436
  %v439 = vmul.f32 %v429, %v437
  %v440 = vpack.c.bf16 %v439, %v438
  %v442 = vsel %vm417, %v440, 0
  %444 = vmatprep.subr.bf16.mxu0 0
  %445 = vmatpush1.bf16.msra.mxu0 %v368
  %446 = vmatprep.subr.bf16.mxu0 0
  %447 = vmatpush1.bf16.msra.mxu0 0
  %448 = vmatprep.subr.bf16.mxu0 0
  %449 = vmatpush1.bf16.msra.mxu0 0
  %450 = vmatprep.subr.bf16.mxu0 0
  %451 = vmatpush1.bf16.msra.mxu0 0
  %452 = vmatprep.subr.bf16.mxu0 0
  %453 = vmatpush1.bf16.msra.mxu0 0
  %454 = vmatprep.subr.bf16.mxu0 0
  %455 = vmatpush1.bf16.msra.mxu0 0
  %456 = vmatprep.subr.bf16.mxu0 0
  %457 = vmatpush1.bf16.msra.mxu0 0
  %458 = vmatprep.subr.bf16.mxu0 0
  %459 = vmatpush1.bf16.msra.mxu0 0
  %460 = vmatprep.subr.bf16.mxu0 0
  %461 = vmatpush1.bf16.msra.mxu0 0
  %462 = vmatprep.subr.bf16.mxu0 0
  %463 = vmatpush1.bf16.msra.mxu0 0
  %464 = vmatprep.subr.bf16.mxu0 0
  %465 = vmatpush1.bf16.msra.mxu0 0
  %466 = vmatprep.subr.bf16.mxu0 0
  %467 = vmatpush1.bf16.msra.mxu0 0
  %468 = vmatprep.subr.bf16.mxu0 0
  %469 = vmatpush1.bf16.msra.mxu0 0
  %470 = vmatprep.subr.bf16.mxu0 0
  %471 = vmatpush1.bf16.msra.mxu0 0
  %472 = vmatprep.subr.bf16.mxu0 0
  %473 = vmatpush1.bf16.msra.mxu0 0
  %474 = vmatprep.subr.bf16.mxu0 0
  %475 = vmatpush1.bf16.msra.mxu0 0
  %476 = vmatprep.mubr.bf16.mxu0 0
  %477 = vmatmul.mubr.bf16.gmra.mrb[0].mxu0 %v442
  %v478 = vpop.f32.mrb[0].mxu0
  %v479 = vadd.f32 0.0, %v478
  %v480 = vpop.f32.mrb[0].mxu0
  %v481 = vpop.f32.mrb[0].mxu0
  %v482 = vadd.f32 0.0, %v481
  %v483 = vpop.f32.mrb[0].mxu0
  %484 = vdwg.mxu0
  %486 = vrot.lane.b32.xlu0 %v366, 96
  %v487 = vpop.permute.xlu0 %486
  %489 = vrot.lane.b32.xlu0 %v367, 96
  %v490 = vpop.permute.xlu0 %489
  %v492 = vsel %vm369, %v487, 0
  %v495 = vsel %vm369, %v490, 0
  %497 = vmatprep.subr.bf16.mxu0 0
  %498 = vmatpush1.bf16.xpose.msra.mxu0 %v495
  %499 = vmatprep.subr.bf16.mxu0 0
  %500 = vmatpush1.bf16.xpose.msra.mxu0 0
  %501 = vmatprep.subr.bf16.mxu0 0
  %502 = vmatpush1.bf16.xpose.msra.mxu0 0
  %503 = vmatprep.subr.bf16.mxu0 0
  %504 = vmatpush1.bf16.xpose.msra.mxu0 0
  %505 = vmatprep.subr.bf16.mxu0 0
  %506 = vmatpush1.bf16.xpose.msra.mxu0 0
  %507 = vmatprep.subr.bf16.mxu0 0
  %508 = vmatpush1.bf16.xpose.msra.mxu0 0
  %509 = vmatprep.subr.bf16.mxu0 0
  %510 = vmatpush1.bf16.xpose.msra.mxu0 0
  %511 = vmatprep.subr.bf16.mxu0 0
  %512 = vmatpush1.bf16.xpose.msra.mxu0 0
  %513 = vmatprep.subr.bf16.mxu0 0
  %514 = vmatpush1.bf16.xpose.msra.mxu0 0
  %515 = vmatprep.subr.bf16.mxu0 0
  %516 = vmatpush1.bf16.xpose.msra.mxu0 0
  %517 = vmatprep.subr.bf16.mxu0 0
  %518 = vmatpush1.bf16.xpose.msra.mxu0 0
  %519 = vmatprep.subr.bf16.mxu0 0
  %520 = vmatpush1.bf16.xpose.msra.mxu0 0
  %521 = vmatprep.subr.bf16.mxu0 0
  %522 = vmatpush1.bf16.xpose.msra.mxu0 0
  %523 = vmatprep.subr.bf16.mxu0 0
  %524 = vmatpush1.bf16.xpose.msra.mxu0 0
  %525 = vmatprep.subr.bf16.mxu0 0
  %526 = vmatpush1.bf16.xpose.msra.mxu0 0
  %527 = vmatprep.subr.bf16.mxu0 0
  %528 = vmatpush1.bf16.xpose.msra.mxu0 0
  %529 = vmatprep.mubr.bf16.mxu0 0
  %530 = vmatmul.mubr.bf16.gmra.mrb[0].mxu0 %v492
  %v531 = vpop.f32.mrb[0].mxu0
  %v532 = vadd.f32 %v347, %v531
  %v533 = vpop.f32.mrb[0].mxu0
  %v534 = vpop.f32.mrb[0].mxu0
  %v535 = vadd.f32 %v348, %v534
  %v536 = vpop.f32.mrb[0].mxu0
  %537 = vdwg.mxu0
  %v538 = vsel %vm417, %v532, -inf
  %539 = vmax.xlane.f32.xlu0 %v538
  %v540 = vpop.xlane.xlu0 %539
  %v541 = vsel %vm417, %v535, -inf
  %542 = vmax.xlane.f32.xlu0 %v541
  %v543 = vpop.xlane.xlu0 %542
  %v544 = vsub.f32 %v532, %v540
  %v545 = vsub.f32 %v535, %v543
  %v546 = vmul.f32 %v544, 1.442695
  %v547 = vpow.pop %v546
  %v548 = vmul.f32 %v545, 1.442695
  %v549 = vpow.pop %v548
  %v550 = vsel %vm417, %v547, 0.0
  %551 = vadd.xlane.f32.xlu0 %v550
  %v552 = vpop.xlane.xlu0 %551
  %v553 = vsel %vm417, %v549, 0.0
  %554 = vadd.xlane.f32.xlu0 %v553
  %v555 = vpop.xlane.xlu0 %554
  %v556 = vrcp.pop %v552
  %v557 = vrcp.pop %v555
  %v558 = vmul.f32 %v547, %v556
  %v559 = vmul.f32 %v549, %v557
  %v560 = vpack.c.bf16 %v559, %v558
  %562 = vrot.lane.b32.xlu0 %v368, 96
  %v563 = vpop.permute.xlu0 %562
  %v566 = vsel %vm417, %v560, 0
  %568 = vmatprep.subr.bf16.mxu0 0
  %569 = vmatpush1.bf16.msra.mxu0 %v563
  %570 = vmatprep.subr.bf16.mxu0 0
  %571 = vmatpush1.bf16.msra.mxu0 0
  %572 = vmatprep.subr.bf16.mxu0 0
  %573 = vmatpush1.bf16.msra.mxu0 0
  %574 = vmatprep.subr.bf16.mxu0 0
  %575 = vmatpush1.bf16.msra.mxu0 0
  %576 = vmatprep.subr.bf16.mxu0 0
  %577 = vmatpush1.bf16.msra.mxu0 0
  %578 = vmatprep.subr.bf16.mxu0 0
  %579 = vmatpush1.bf16.msra.mxu0 0
  %580 = vmatprep.subr.bf16.mxu0 0
  %581 = vmatpush1.bf16.msra.mxu0 0
  %582 = vmatprep.subr.bf16.mxu0 0
  %583 = vmatpush1.bf16.msra.mxu0 0
  %584 = vmatprep.subr.bf16.mxu0 0
  %585 = vmatpush1.bf16.msra.mxu0 0
  %586 = vmatprep.subr.bf16.mxu0 0
  %587 = vmatpush1.bf16.msra.mxu0 0
  %588 = vmatprep.subr.bf16.mxu0 0
  %589 = vmatpush1.bf16.msra.mxu0 0
  %590 = vmatprep.subr.bf16.mxu0 0
  %591 = vmatpush1.bf16.msra.mxu0 0
  %592 = vmatprep.subr.bf16.mxu0 0
  %593 = vmatpush1.bf16.msra.mxu0 0
  %594 = vmatprep.subr.bf16.mxu0 0
  %595 = vmatpush1.bf16.msra.mxu0 0
  %596 = vmatprep.subr.bf16.mxu0 0
  %597 = vmatpush1.bf16.msra.mxu0 0
  %598 = vmatprep.subr.bf16.mxu0 0
  %599 = vmatpush1.bf16.msra.mxu0 0
  %600 = vmatprep.mubr.bf16.mxu0 0
  %601 = vmatmul.mubr.bf16.gmra.mrb[0].mxu0 %v566
  %v602 = vpop.f32.mrb[0].mxu0
  %v603 = vadd.f32 0.0, %v602
  %v604 = vpop.f32.mrb[0].mxu0
  %v605 = vpop.f32.mrb[0].mxu0
  %v606 = vadd.f32 0.0, %v605
  %v607 = vpop.f32.mrb[0].mxu0
  %608 = vdwg.mxu0
  %609 = vrot.lane.b32.xlu0 %v366, 64
  %v610 = vpop.permute.xlu0 %609
  %611 = vrot.lane.b32.xlu0 %v367, 64
  %v612 = vpop.permute.xlu0 %611
  %v614 = vsel %vm369, %v610, 0
  %v617 = vsel %vm369, %v612, 0
  %619 = vmatprep.subr.bf16.mxu0 0
  %620 = vmatpush1.bf16.xpose.msra.mxu0 %v617
  %621 = vmatprep.subr.bf16.mxu0 0
  %622 = vmatpush1.bf16.xpose.msra.mxu0 0
  %623 = vmatprep.subr.bf16.mxu0 0
  %624 = vmatpush1.bf16.xpose.msra.mxu0 0
  %625 = vmatprep.subr.bf16.mxu0 0
  %626 = vmatpush1.bf16.xpose.msra.mxu0 0
  %627 = vmatprep.subr.bf16.mxu0 0
  %628 = vmatpush1.bf16.xpose.msra.mxu0 0
  %629 = vmatprep.subr.bf16.mxu0 0
  %630 = vmatpush1.bf16.xpose.msra.mxu0 0
  %631 = vmatprep.subr.bf16.mxu0 0
  %632 = vmatpush1.bf16.xpose.msra.mxu0 0
  %633 = vmatprep.subr.bf16.mxu0 0
  %634 = vmatpush1.bf16.xpose.msra.mxu0 0
  %635 = vmatprep.subr.bf16.mxu0 0
  %636 = vmatpush1.bf16.xpose.msra.mxu0 0
  %637 = vmatprep.subr.bf16.mxu0 0
  %638 = vmatpush1.bf16.xpose.msra.mxu0 0
  %639 = vmatprep.subr.bf16.mxu0 0
  %640 = vmatpush1.bf16.xpose.msra.mxu0 0
  %641 = vmatprep.subr.bf16.mxu0 0
  %642 = vmatpush1.bf16.xpose.msra.mxu0 0
  %643 = vmatprep.subr.bf16.mxu0 0
  %644 = vmatpush1.bf16.xpose.msra.mxu0 0
  %645 = vmatprep.subr.bf16.mxu0 0
  %646 = vmatpush1.bf16.xpose.msra.mxu0 0
  %647 = vmatprep.subr.bf16.mxu0 0
  %648 = vmatpush1.bf16.xpose.msra.mxu0 0
  %649 = vmatprep.subr.bf16.mxu0 0
  %650 = vmatpush1.bf16.xpose.msra.mxu0 0
  %651 = vmatprep.mubr.bf16.mxu0 0
  %652 = vmatmul.mubr.bf16.gmra.mrb[0].mxu0 %v614
  %v653 = vpop.f32.mrb[0].mxu0
  %v654 = vadd.f32 %v347, %v653
  %v655 = vpop.f32.mrb[0].mxu0
  %v656 = vpop.f32.mrb[0].mxu0
  %v657 = vadd.f32 %v348, %v656
  %v658 = vpop.f32.mrb[0].mxu0
  %659 = vdwg.mxu0
  %v660 = vsel %vm417, %v654, -inf
  %661 = vmax.xlane.f32.xlu0 %v660
  %v662 = vpop.xlane.xlu0 %661
  %v663 = vsel %vm417, %v657, -inf
  %664 = vmax.xlane.f32.xlu0 %v663
  %v665 = vpop.xlane.xlu0 %664
  %v666 = vsub.f32 %v654, %v662
  %v667 = vsub.f32 %v657, %v665
  %v668 = vmul.f32 %v666, 1.442695
  %v669 = vpow.pop %v668
  %v670 = vmul.f32 %v667, 1.442695
  %v671 = vpow.pop %v670
  %v672 = vsel %vm417, %v669, 0.0
  %673 = vadd.xlane.f32.xlu0 %v672
  %v674 = vpop.xlane.xlu0 %673
  %v675 = vsel %vm417, %v671, 0.0
  %676 = vadd.xlane.f32.xlu0 %v675
  %v677 = vpop.xlane.xlu0 %676
  %v678 = vrcp.pop %v674
  %v679 = vrcp.pop %v677
  %v680 = vmul.f32 %v669, %v678
  %v681 = vmul.f32 %v671, %v679
  %v682 = vpack.c.bf16 %v681, %v680
  %683 = vrot.lane.b32.xlu0 %v368, 64
  %v684 = vpop.permute.xlu0 %683
  %v687 = vsel %vm417, %v682, 0
  %689 = vmatprep.subr.bf16.mxu0 0
  %690 = vmatpush1.bf16.msra.mxu0 %v684
  %691 = vmatprep.subr.bf16.mxu0 0
  %692 = vmatpush1.bf16.msra.mxu0 0
  %693 = vmatprep.subr.bf16.mxu0 0
  %694 = vmatpush1.bf16.msra.mxu0 0
  %695 = vmatprep.subr.bf16.mxu0 0
  %696 = vmatpush1.bf16.msra.mxu0 0
  %697 = vmatprep.subr.bf16.mxu0 0
  %698 = vmatpush1.bf16.msra.mxu0 0
  %699 = vmatprep.subr.bf16.mxu0 0
  %700 = vmatpush1.bf16.msra.mxu0 0
  %701 = vmatprep.subr.bf16.mxu0 0
  %702 = vmatpush1.bf16.msra.mxu0 0
  %703 = vmatprep.subr.bf16.mxu0 0
  %704 = vmatpush1.bf16.msra.mxu0 0
  %705 = vmatprep.subr.bf16.mxu0 0
  %706 = vmatpush1.bf16.msra.mxu0 0
  %707 = vmatprep.subr.bf16.mxu0 0
  %708 = vmatpush1.bf16.msra.mxu0 0
  %709 = vmatprep.subr.bf16.mxu0 0
  %710 = vmatpush1.bf16.msra.mxu0 0
  %711 = vmatprep.subr.bf16.mxu0 0
  %712 = vmatpush1.bf16.msra.mxu0 0
  %713 = vmatprep.subr.bf16.mxu0 0
  %714 = vmatpush1.bf16.msra.mxu0 0
  %715 = vmatprep.subr.bf16.mxu0 0
  %716 = vmatpush1.bf16.msra.mxu0 0
  %717 = vmatprep.subr.bf16.mxu0 0
  %718 = vmatpush1.bf16.msra.mxu0 0
  %719 = vmatprep.subr.bf16.mxu0 0
  %720 = vmatpush1.bf16.msra.mxu0 0
  %721 = vmatprep.mubr.bf16.mxu0 0
  %722 = vmatmul.mubr.bf16.gmra.mrb[0].mxu0 %v687
  %v723 = vpop.f32.mrb[0].mxu0
  %v724 = vadd.f32 0.0, %v723
  %v725 = vpop.f32.mrb[0].mxu0
  %v726 = vpop.f32.mrb[0].mxu0
  %v727 = vadd.f32 0.0, %v726
  %v728 = vpop.f32.mrb[0].mxu0
  %729 = vdwg.mxu0
  %730 = vrot.lane.b32.xlu0 %v366, 32
  %v731 = vpop.permute.xlu0 %730
  %732 = vrot.lane.b32.xlu0 %v367, 32
  %v733 = vpop.permute.xlu0 %732
  %v735 = vsel %vm369, %v731, 0
  %v738 = vsel %vm369, %v733, 0
  %740 = vmatprep.subr.bf16.mxu0 0
  %741 = vmatpush1.bf16.xpose.msra.mxu0 %v738
  %742 = vmatprep.subr.bf16.mxu0 0
  %743 = vmatpush1.bf16.xpose.msra.mxu0 0
  %744 = vmatprep.subr.bf16.mxu0 0
  %745 = vmatpush1.bf16.xpose.msra.mxu0 0
  %746 = vmatprep.subr.bf16.mxu0 0
  %747 = vmatpush1.bf16.xpose.msra.mxu0 0
  %748 = vmatprep.subr.bf16.mxu0 0
  %749 = vmatpush1.bf16.xpose.msra.mxu0 0
  %750 = vmatprep.subr.bf16.mxu0 0
  %751 = vmatpush1.bf16.xpose.msra.mxu0 0
  %752 = vmatprep.subr.bf16.mxu0 0
  %753 = vmatpush1.bf16.xpose.msra.mxu0 0
  %754 = vmatprep.subr.bf16.mxu0 0
  %755 = vmatpush1.bf16.xpose.msra.mxu0 0
  %756 = vmatprep.subr.bf16.mxu0 0
  %757 = vmatpush1.bf16.xpose.msra.mxu0 0
  %758 = vmatprep.subr.bf16.mxu0 0
  %759 = vmatpush1.bf16.xpose.msra.mxu0 0
  %760 = vmatprep.subr.bf16.mxu0 0
  %761 = vmatpush1.bf16.xpose.msra.mxu0 0
  %762 = vmatprep.subr.bf16.mxu0 0
  %763 = vmatpush1.bf16.xpose.msra.mxu0 0
  %764 = vmatprep.subr.bf16.mxu0 0
  %765 = vmatpush1.bf16.xpose.msra.mxu0 0
  %766 = vmatprep.subr.bf16.mxu0 0
  %767 = vmatpush1.bf16.xpose.msra.mxu0 0
  %768 = vmatprep.subr.bf16.mxu0 0
  %769 = vmatpush1.bf16.xpose.msra.mxu0 0
  %770 = vmatprep.subr.bf16.mxu0 0
  %771 = vmatpush1.bf16.xpose.msra.mxu0 0
  %772 = vmatprep.mubr.bf16.mxu0 0
  %773 = vmatmul.mubr.bf16.gmra.mrb[0].mxu0 %v735
  %v774 = vpop.f32.mrb[0].mxu0
  %v775 = vadd.f32 %v347, %v774
  %v776 = vpop.f32.mrb[0].mxu0
  %v777 = vpop.f32.mrb[0].mxu0
  %v778 = vadd.f32 %v348, %v777
  %v779 = vpop.f32.mrb[0].mxu0
  %780 = vdwg.mxu0
  %v781 = vsel %vm417, %v775, -inf
  %782 = vmax.xlane.f32.xlu0 %v781
  %v783 = vpop.xlane.xlu0 %782
  %v784 = vsel %vm417, %v778, -inf
  %785 = vmax.xlane.f32.xlu0 %v784
  %v786 = vpop.xlane.xlu0 %785
  %v787 = vsub.f32 %v775, %v783
  %v788 = vsub.f32 %v778, %v786
  %v789 = vmul.f32 %v787, 1.442695
  %v790 = vpow.pop %v789
  %v791 = vmul.f32 %v788, 1.442695
  %v792 = vpow.pop %v791
  %v793 = vsel %vm417, %v790, 0.0
  %794 = vadd.xlane.f32.xlu0 %v793
  %v795 = vpop.xlane.xlu0 %794
  %v796 = vsel %vm417, %v792, 0.0
  %797 = vadd.xlane.f32.xlu0 %v796
  %v798 = vpop.xlane.xlu0 %797
  %v799 = vrcp.pop %v795
  %v800 = vrcp.pop %v798
  %v801 = vmul.f32 %v790, %v799
  %v802 = vmul.f32 %v792, %v800
  %v803 = vpack.c.bf16 %v802, %v801
  %804 = vrot.lane.b32.xlu0 %v368, 32
  %v805 = vpop.permute.xlu0 %804
  %v808 = vsel %vm417, %v803, 0
  %810 = vmatprep.subr.bf16.mxu0 0
  %811 = vmatpush1.bf16.msra.mxu0 %v805
  %812 = vmatprep.subr.bf16.mxu0 0
  %813 = vmatpush1.bf16.msra.mxu0 0
  %814 = vmatprep.subr.bf16.mxu0 0
  %815 = vmatpush1.bf16.msra.mxu0 0
  %816 = vmatprep.subr.bf16.mxu0 0
  %817 = vmatpush1.bf16.msra.mxu0 0
  %818 = vmatprep.subr.bf16.mxu0 0
  %819 = vmatpush1.bf16.msra.mxu0 0
  %820 = vmatprep.subr.bf16.mxu0 0
  %821 = vmatpush1.bf16.msra.mxu0 0
  %822 = vmatprep.subr.bf16.mxu0 0
  %823 = vmatpush1.bf16.msra.mxu0 0
  %824 = vmatprep.subr.bf16.mxu0 0
  %825 = vmatpush1.bf16.msra.mxu0 0
  %826 = vmatprep.subr.bf16.mxu0 0
  %827 = vmatpush1.bf16.msra.mxu0 0
  %828 = vmatprep.subr.bf16.mxu0 0
  %829 = vmatpush1.bf16.msra.mxu0 0
  %830 = vmatprep.subr.bf16.mxu0 0
  %831 = vmatpush1.bf16.msra.mxu0 0
  %832 = vmatprep.subr.bf16.mxu0 0
  %833 = vmatpush1.bf16.msra.mxu0 0
  %834 = vmatprep.subr.bf16.mxu0 0
  %835 = vmatpush1.bf16.msra.mxu0 0
  %836 = vmatprep.subr.bf16.mxu0 0
  %837 = vmatpush1.bf16.msra.mxu0 0
  %838 = vmatprep.subr.bf16.mxu0 0
  %839 = vmatpush1.bf16.msra.mxu0 0
  %840 = vmatprep.subr.bf16.mxu0 0
  %841 = vmatpush1.bf16.msra.mxu0 0
  %842 = vmatprep.mubr.bf16.mxu0 0
  %843 = vmatmul.mubr.bf16.gmra.mrb[0].mxu0 %v808
  %v844 = vpop.f32.mrb[0].mxu0
  %v845 = vadd.f32 0.0, %v844
  %v846 = vpop.f32.mrb[0].mxu0
  %v847 = vpop.f32.mrb[0].mxu0
  %v848 = vadd.f32 0.0, %v847
  %v849 = vpop.f32.mrb[0].mxu0
  %850 = vdwg.mxu0
  %853 = vrot.lane.b32.xlu0 %v603, 32
  %v854 = vpop.permute.xlu0 %853
  %855 = vrot.lane.b32.xlu0 %v606, 32
  %v856 = vpop.permute.xlu0 %855
  %861 = vrot.lane.b32.xlu0 %v724, 64
  %v862 = vpop.permute.xlu0 %861
  %863 = vrot.lane.b32.xlu0 %v727, 64
  %v864 = vpop.permute.xlu0 %863
  %869 = vrot.lane.b32.xlu0 %v845, 96
  %v870 = vpop.permute.xlu0 %869
  %871 = vrot.lane.b32.xlu0 %v848, 96
  %v872 = vpop.permute.xlu0 %871
  %v875 = vsel %vm369, %v479, %v854
  %v876 = vsel %vm369, %v482, %v856
  %vm877 = vcmask 523264
  %v878 = vsel %vm877, %v875, %v862
  %v879 = vsel %vm877, %v876, %v864
  %vm880 = vcmask 785408
  %v881 = vsel %vm880, %v878, %v870
  %v882 = vsel %vm880, %v879, %v872
  %v883 = vpack.c.bf16 %v882, %v881
  %v885 = vlaneseq
  %v886 = vshrl.u32 %v885, 7
  %v887 = vsub.s32 0, %v886
  %v888 = vrot.slane %v365, %v887
  %v906 = vunpack.c.l.b16 %v349
  %v907 = vunpack.c.l.b16 %v350
  %v908 = vunpack.c.l.b16 %v351
  %v909 = vunpack.c.l.b16 %v352
  %v910 = vunpack.c.l.b16 %v353
  %v911 = vunpack.c.l.b16 %v354
  %v912 = vunpack.c.l.b16 %v355
  %v913 = vunpack.c.l.b16 %v356
  %v914 = vunpack.c.l.b16 %v357
  %v915 = vunpack.c.l.b16 %v358
  %v916 = vunpack.c.l.b16 %v359
  %v917 = vunpack.c.l.b16 %v360
  %v918 = vunpack.c.l.b16 %v361
  %v919 = vunpack.c.l.b16 %v362
  %v920 = vunpack.c.l.b16 %v363
  %v921 = vunpack.c.l.b16 %v364
  %v922 = vpack.c.b16 %v907, %v906
  %v923 = vpack.c.b16 %v909, %v908
  %v924 = vpack.c.b16 %v911, %v910
  %v925 = vpack.c.b16 %v913, %v912
  %v926 = vpack.c.b16 %v915, %v914
  %v927 = vpack.c.b16 %v917, %v916
  %v928 = vpack.c.b16 %v919, %v918
  %v929 = vpack.c.b16 %v921, %v920
  %938 = vmatprep.subr.bf16.mxu0 0
  %939 = vmatpush1.bf16.msra.mxu0 %v922
  %940 = vmatprep.subr.bf16.mxu0 0
  %941 = vmatpush1.bf16.msra.mxu0 %v923
  %942 = vmatprep.subr.bf16.mxu0 0
  %943 = vmatpush1.bf16.msra.mxu0 %v924
  %944 = vmatprep.subr.bf16.mxu0 0
  %945 = vmatpush1.bf16.msra.mxu0 %v925
  %946 = vmatprep.subr.bf16.mxu0 0
  %947 = vmatpush1.bf16.msra.mxu0 %v926
  %948 = vmatprep.subr.bf16.mxu0 0
  %949 = vmatpush1.bf16.msra.mxu0 %v927
  %950 = vmatprep.subr.bf16.mxu0 0
  %951 = vmatpush1.bf16.msra.mxu0 %v928
  %952 = vmatprep.subr.bf16.mxu0 0
  %953 = vmatpush1.bf16.msra.mxu0 %v929
  %954 = vmatprep.subr.bf16.mxu0 0
  %955 = vmatpush1.bf16.msra.mxu0 0
  %956 = vmatprep.subr.bf16.mxu0 0
  %957 = vmatpush1.bf16.msra.mxu0 0
  %958 = vmatprep.subr.bf16.mxu0 0
  %959 = vmatpush1.bf16.msra.mxu0 0
  %960 = vmatprep.subr.bf16.mxu0 0
  %961 = vmatpush1.bf16.msra.mxu0 0
  %962 = vmatprep.subr.bf16.mxu0 0
  %963 = vmatpush1.bf16.msra.mxu0 0
  %964 = vmatprep.subr.bf16.mxu0 0
  %965 = vmatpush1.bf16.msra.mxu0 0
  %966 = vmatprep.subr.bf16.mxu0 0
  %967 = vmatpush1.bf16.msra.mxu0 0
  %968 = vmatprep.subr.bf16.mxu0 0
  %969 = vmatpush1.bf16.msra.mxu0 0
  %970 = vmatprep.mubr.bf16.mxu0 0
  %971 = vmatmul.mubr.bf16.gmra.mrb[0].mxu0 %v883
  %v972 = vpop.f32.mrb[0].mxu0
  %v973 = vadd.f32 %v888, %v972
  %v974 = vpop.f32.mrb[0].mxu0
  %v975 = vpop.f32.mrb[0].mxu0
  %v976 = vadd.f32 %v888, %v975
  %v977 = vpop.f32.mrb[0].mxu0
  %978 = vdwg.mxu0
  %v979 = vadd.f32 %v78, %v973
  %v980 = vadd.f32 %v79, %v976
  %v981 = vld [vmem:[%s8] sm:$0x1]
  %v982 = vld [vmem:[%s9] sm:$0x1]
  %983 = vadd.xlane.f32.xlu0 %v979
  %v984 = vpop.xlane.xlu0 %983
  %985 = vadd.xlane.f32.xlu0 %v980
  %v986 = vpop.xlane.xlu0 %985
  %v987 = vrcp.pop 128.0
  %v988 = vmul.f32 %v984, %v987
  %v989 = vmul.f32 %v986, %v987
  %v990 = vsub.f32 %v979, %v988
  %v991 = vsub.f32 %v980, %v989
  %v992 = vmul.f32 %v990, %v990
  %v993 = vmul.f32 %v991, %v991
  %994 = vadd.xlane.f32.xlu0 %v992
  %v995 = vpop.xlane.xlu0 %994
  %996 = vadd.xlane.f32.xlu0 %v993
  %v997 = vpop.xlane.xlu0 %996
  %v998 = vmul.f32 %v995, %v987
  %v999 = vmul.f32 %v997, %v987
  %v1000 = vadd.f32 %v998, 1e-05
  %v1001 = vadd.f32 %v999, 1e-05
  %v1002 = vrsqrt.pop %v1000
  %v1003 = vrsqrt.pop %v1001
  %v1004 = vmul.f32 %v990, %v1002
  %v1005 = vmul.f32 %v991, %v1003
  %v1007 = vlaneseq
  %v1008 = vshrl.u32 %v1007, 7
  %v1009 = vsub.s32 0, %v1008
  %v1010 = vrot.slane %v981, %v1009
  %v1012 = vmul.f32 %v1004, %v1010
  %v1013 = vmul.f32 %v1005, %v1010
  %v1015 = vlaneseq
  %v1016 = vshrl.u32 %v1015, 7
  %v1017 = vsub.s32 0, %v1016
  %v1018 = vrot.slane %v982, %v1017
  %v1020 = vadd.f32 %v1012, %v1018
  %v1021 = vadd.f32 %v1013, %v1018
  %v1022 = vld [vmem:[%s10] sm:$0xf]
  %v1023 = vld [vmem:[%s10 + $0x4] sm:$0xf]
  %v1024 = vld [vmem:[%s10 + $0x8] sm:$0xf]
  %v1025 = vld [vmem:[%s10 + $0xc] sm:$0xf]
  %v1026 = vld [vmem:[%s10 + $0x10] sm:$0xf]
  %v1027 = vld [vmem:[%s10 + $0x14] sm:$0xf]
  %v1028 = vld [vmem:[%s10 + $0x18] sm:$0xf]
  %v1029 = vld [vmem:[%s10 + $0x1c] sm:$0xf]
  %v1030 = vld [vmem:[%s10 + $0x20] sm:$0xf]
  %v1031 = vld [vmem:[%s10 + $0x24] sm:$0xf]
  %v1032 = vld [vmem:[%s10 + $0x28] sm:$0xf]
  %v1033 = vld [vmem:[%s10 + $0x2c] sm:$0xf]
  %v1034 = vld [vmem:[%s10 + $0x30] sm:$0xf]
  %v1035 = vld [vmem:[%s10 + $0x34] sm:$0xf]
  %v1036 = vld [vmem:[%s10 + $0x38] sm:$0xf]
  %v1037 = vld [vmem:[%s10 + $0x3c] sm:$0xf]
  %v1038 = vld [vmem:[%s11] sm:$0x1]
  %v1039 = vpack.c.bf16 %v1021, %v1020
  %v1041 = vlaneseq
  %v1042 = vshrl.u32 %v1041, 7
  %v1043 = vsub.s32 0, %v1042
  %v1044 = vrot.slane %v1038, %v1043
  %v1062 = vunpack.c.l.b16 %v1022
  %v1063 = vunpack.c.l.b16 %v1023
  %v1064 = vunpack.c.l.b16 %v1024
  %v1065 = vunpack.c.l.b16 %v1025
  %v1066 = vunpack.c.l.b16 %v1026
  %v1067 = vunpack.c.l.b16 %v1027
  %v1068 = vunpack.c.l.b16 %v1028
  %v1069 = vunpack.c.l.b16 %v1029
  %v1070 = vunpack.c.l.b16 %v1030
  %v1071 = vunpack.c.l.b16 %v1031
  %v1072 = vunpack.c.l.b16 %v1032
  %v1073 = vunpack.c.l.b16 %v1033
  %v1074 = vunpack.c.l.b16 %v1034
  %v1075 = vunpack.c.l.b16 %v1035
  %v1076 = vunpack.c.l.b16 %v1036
  %v1077 = vunpack.c.l.b16 %v1037
  %v1078 = vpack.c.b16 %v1063, %v1062
  %v1079 = vpack.c.b16 %v1065, %v1064
  %v1080 = vpack.c.b16 %v1067, %v1066
  %v1081 = vpack.c.b16 %v1069, %v1068
  %v1082 = vpack.c.b16 %v1071, %v1070
  %v1083 = vpack.c.b16 %v1073, %v1072
  %v1084 = vpack.c.b16 %v1075, %v1074
  %v1085 = vpack.c.b16 %v1077, %v1076
  %1094 = vmatprep.subr.bf16.mxu0 0
  %1095 = vmatpush1.bf16.msra.mxu0 %v1078
  %1096 = vmatprep.subr.bf16.mxu0 0
  %1097 = vmatpush1.bf16.msra.mxu0 %v1079
  %1098 = vmatprep.subr.bf16.mxu0 0
  %1099 = vmatpush1.bf16.msra.mxu0 %v1080
  %1100 = vmatprep.subr.bf16.mxu0 0
  %1101 = vmatpush1.bf16.msra.mxu0 %v1081
  %1102 = vmatprep.subr.bf16.mxu0 0
  %1103 = vmatpush1.bf16.msra.mxu0 %v1082
  %1104 = vmatprep.subr.bf16.mxu0 0
  %1105 = vmatpush1.bf16.msra.mxu0 %v1083
  %1106 = vmatprep.subr.bf16.mxu0 0
  %1107 = vmatpush1.bf16.msra.mxu0 %v1084
  %1108 = vmatprep.subr.bf16.mxu0 0
  %1109 = vmatpush1.bf16.msra.mxu0 %v1085
  %1110 = vmatprep.subr.bf16.mxu0 0
  %1111 = vmatpush1.bf16.msra.mxu0 0
  %1112 = vmatprep.subr.bf16.mxu0 0
  %1113 = vmatpush1.bf16.msra.mxu0 0
  %1114 = vmatprep.subr.bf16.mxu0 0
  %1115 = vmatpush1.bf16.msra.mxu0 0
  %1116 = vmatprep.subr.bf16.mxu0 0
  %1117 = vmatpush1.bf16.msra.mxu0 0
  %1118 = vmatprep.subr.bf16.mxu0 0
  %1119 = vmatpush1.bf16.msra.mxu0 0
  %1120 = vmatprep.subr.bf16.mxu0 0
  %1121 = vmatpush1.bf16.msra.mxu0 0
  %1122 = vmatprep.subr.bf16.mxu0 0
  %1123 = vmatpush1.bf16.msra.mxu0 0
  %1124 = vmatprep.subr.bf16.mxu0 0
  %1125 = vmatpush1.bf16.msra.mxu0 0
  %1126 = vmatprep.mubr.bf16.mxu0 0
  %1127 = vmatmul.mubr.bf16.gmra.mrb[0].mxu0 %v1039
  %v1128 = vpop.f32.mrb[0].mxu0
  %v1129 = vadd.f32 %v1044, %v1128
  %v1130 = vpop.f32.mrb[0].mxu0
  %v1131 = vpop.f32.mrb[0].mxu0
  %v1132 = vadd.f32 %v1044, %v1131
  %v1133 = vpop.f32.mrb[0].mxu0
  %1134 = vdwg.mxu0
  %v1135 = vmul.f32 %v1129, 0.17677669
  %v1136 = vmul.f32 %v1132, 0.17677669
  %v1137 = vld [vmem:[%s12] sm:$0xff]
  %v1138 = vld [vmem:[%s12 + $0x8] sm:$0xff]
  %v1139 = vld [vmem:[%s12 + $0x10] sm:$0xff]
  %v1140 = vld [vmem:[%s12 + $0x18] sm:$0xff]
  %v1141 = vld [vmem:[%s12 + $0x20] sm:$0xff]
  %v1142 = vld [vmem:[%s12 + $0x28] sm:$0xff]
  %v1143 = vld [vmem:[%s12 + $0x30] sm:$0xff]
  %v1144 = vld [vmem:[%s12 + $0x38] sm:$0xff]
  %v1145 = vld [vmem:[%s12 + $0x40] sm:$0xff]
  %v1146 = vld [vmem:[%s12 + $0x48] sm:$0xff]
  %v1147 = vld [vmem:[%s12 + $0x50] sm:$0xff]
  %v1148 = vld [vmem:[%s12 + $0x58] sm:$0xff]
  %v1149 = vld [vmem:[%s12 + $0x60] sm:$0xff]
  %v1150 = vld [vmem:[%s12 + $0x68] sm:$0xff]
  %v1151 = vld [vmem:[%s12 + $0x70] sm:$0xff]
  %v1152 = vld [vmem:[%s12 + $0x78] sm:$0xff]
  %v1153 = vld [vmem:[%s13] sm:$0x3]
  %v1154 = vpack.c.bf16 %v81, %v80
  %v1155 = vpack.c.bf16 %v82, %v82
  %v1157 = vlaneseq
  %v1158 = vshrl.u32 %v1157, 7
  %v1159 = vsub.s32 0, %v1158
  %v1160 = vrot.slane %v1153, %v1159
  %v1161 = vlaneseq
  %v1162 = vshrl.u32 %v1161, 7
  %v1163 = vsub.s32 1, %v1162
  %v1164 = vrot.slane %v1153, %v1163
  %v1183 = vunpack.c.l.b16 %v1137
  %v1184 = vunpack.c.h.b16 %v1137
  %v1185 = vunpack.c.l.b16 %v1138
  %v1186 = vunpack.c.h.b16 %v1138
  %v1187 = vunpack.c.l.b16 %v1139
  %v1188 = vunpack.c.h.b16 %v1139
  %v1189 = vunpack.c.l.b16 %v1140
  %v1190 = vunpack.c.h.b16 %v1140
  %v1191 = vunpack.c.l.b16 %v1141
  %v1192 = vunpack.c.h.b16 %v1141
  %v1193 = vunpack.c.l.b16 %v1142
  %v1194 = vunpack.c.h.b16 %v1142
  %v1195 = vunpack.c.l.b16 %v1143
  %v1196 = vunpack.c.h.b16 %v1143
  %v1197 = vunpack.c.l.b16 %v1144
  %v1198 = vunpack.c.h.b16 %v1144
  %v1199 = vunpack.c.l.b16 %v1145
  %v1200 = vunpack.c.h.b16 %v1145
  %v1201 = vunpack.c.l.b16 %v1146
  %v1202 = vunpack.c.h.b16 %v1146
  %v1203 = vunpack.c.l.b16 %v1147
  %v1204 = vunpack.c.h.b16 %v1147
  %v1205 = vunpack.c.l.b16 %v1148
  %v1206 = vunpack.c.h.b16 %v1148
  %v1207 = vunpack.c.l.b16 %v1149
  %v1208 = vunpack.c.h.b16 %v1149
  %v1209 = vunpack.c.l.b16 %v1150
  %v1210 = vunpack.c.h.b16 %v1150
  %v1211 = vunpack.c.l.b16 %v1151
  %v1212 = vunpack.c.h.b16 %v1151
  %v1213 = vunpack.c.l.b16 %v1152
  %v1214 = vunpack.c.h.b16 %v1152
  %v1215 = vpack.c.b16 %v1185, %v1183
  %v1216 = vpack.c.b16 %v1186, %v1184
  %v1217 = vpack.c.b16 %v1189, %v1187
  %v1218 = vpack.c.b16 %v1190, %v1188
  %v1219 = vpack.c.b16 %v1193, %v1191
  %v1220 = vpack.c.b16 %v1194, %v1192
  %v1221 = vpack.c.b16 %v1197, %v1195
  %v1222 = vpack.c.b16 %v1198, %v1196
  %v1223 = vpack.c.b16 %v1201, %v1199
  %v1224 = vpack.c.b16 %v1202, %v1200
  %v1225 = vpack.c.b16 %v1205, %v1203
  %v1226 = vpack.c.b16 %v1206, %v1204
  %v1227 = vpack.c.b16 %v1209, %v1207
  %v1228 = vpack.c.b16 %v1210, %v1208
  %v1229 = vpack.c.b16 %v1213, %v1211
  %v1230 = vpack.c.b16 %v1214, %v1212
  %1247 = vmatprep.subr.bf16.mxu0 %v1216
  %1248 = vmatpush1.bf16.msra.mxu0 %v1215
  %1249 = vmatprep.subr.bf16.mxu0 %v1218
  %1250 = vmatpush1.bf16.msra.mxu0 %v1217
  %1251 = vmatprep.subr.bf16.mxu0 %v1220
  %1252 = vmatpush1.bf16.msra.mxu0 %v1219
  %1253 = vmatprep.subr.bf16.mxu0 %v1222
  %1254 = vmatpush1.bf16.msra.mxu0 %v1221
  %1255 = vmatprep.subr.bf16.mxu0 %v1224
  %1256 = vmatpush1.bf16.msra.mxu0 %v1223
  %1257 = vmatprep.subr.bf16.mxu0 %v1226
  %1258 = vmatpush1.bf16.msra.mxu0 %v1225
  %1259 = vmatprep.subr.bf16.mxu0 %v1228
  %1260 = vmatpush1.bf16.msra.mxu0 %v1227
  %1261 = vmatprep.subr.bf16.mxu0 %v1230
  %1262 = vmatpush1.bf16.msra.mxu0 %v1229
  %1263 = vmatprep.subr.bf16.mxu0 0
  %1264 = vmatpush1.bf16.msra.mxu0 0
  %1265 = vmatprep.subr.bf16.mxu0 0
  %1266 = vmatpush1.bf16.msra.mxu0 0
  %1267 = vmatprep.subr.bf16.mxu0 0
  %1268 = vmatpush1.bf16.msra.mxu0 0
  %1269 = vmatprep.subr.bf16.mxu0 0
  %1270 = vmatpush1.bf16.msra.mxu0 0
  %1271 = vmatprep.subr.bf16.mxu0 0
  %1272 = vmatpush1.bf16.msra.mxu0 0
  %1273 = vmatprep.subr.bf16.mxu0 0
  %1274 = vmatpush1.bf16.msra.mxu0 0
  %1275 = vmatprep.subr.bf16.mxu0 0
  %1276 = vmatpush1.bf16.msra.mxu0 0
  %1277 = vmatprep.subr.bf16.mxu0 0
  %1278 = vmatpush1.bf16.msra.mxu0 0
  %1279 = vmatprep.mubr.bf16.mxu0 0
  %1280 = vmatmul.mubr.bf16.gmra.mrb[0].mxu0 %v1154
  %v1281 = vpop.f32.mrb[0].mxu0
  %v1282 = vadd.f32 %v1160, %v1281
  %v1283 = vpop.f32.mrb[0].mxu0
  %v1284 = vadd.f32 %v1164, %v1283
  %v1285 = vpop.f32.mrb[0].mxu0
  %v1286 = vadd.f32 %v1160, %v1285
  %v1287 = vpop.f32.mrb[0].mxu0
  %v1288 = vadd.f32 %v1164, %v1287
  %1289 = vmatprep.mubr.bf16.mxu0 0
  %1290 = vmatmul.mubr.bf16.gmra.mrb[0].mxu0 %v1155
  %v1291 = vpop.f32.mrb[0].mxu0
  %v1292 = vadd.f32 %v1160, %v1291
  %v1293 = vpop.f32.mrb[0].mxu0
  %v1294 = vadd.f32 %v1164, %v1293
  %v1295 = vpop.f32.mrb[0].mxu0
  %v1296 = vpop.f32.mrb[0].mxu0
  %1297 = vdwg.mxu0
  %v1298 = vld [vmem:[%s3] sm:$0xff]
  %v1299 = vld [vmem:[%s3 + $0x8] sm:$0xff]
  %v1300 = vld [vmem:[%s14] sm:$0xf]
  %v1301 = vld [vmem:[%s14 + $0x4] sm:$0xf]
  %v1302 = vld [vmem:[%s14 + $0x8] sm:$0xf]
  %v1303 = vld [vmem:[%s14 + $0xc] sm:$0xf]
  %v1304 = vld [vmem:[%s14 + $0x10] sm:$0xf]
  %v1305 = vld [vmem:[%s14 + $0x14] sm:$0xf]
  %v1306 = vld [vmem:[%s14 + $0x18] sm:$0xf]
  %v1307 = vld [vmem:[%s14 + $0x1c] sm:$0xf]
  %v1308 = vld [vmem:[%s14 + $0x20] sm:$0xf]
  %v1309 = vld [vmem:[%s14 + $0x24] sm:$0xf]
  %v1310 = vld [vmem:[%s14 + $0x28] sm:$0xf]
  %v1311 = vld [vmem:[%s14 + $0x2c] sm:$0xf]
  %v1312 = vld [vmem:[%s14 + $0x30] sm:$0xf]
  %v1313 = vld [vmem:[%s14 + $0x34] sm:$0xf]
  %v1314 = vld [vmem:[%s14 + $0x38] sm:$0xf]
  %v1315 = vld [vmem:[%s14 + $0x3c] sm:$0xf]
  %v1316 = vld [vmem:[%s15] sm:$0x1]
  %v1317 = vpack.c.bf16 %v1136, %v1135
  %v1318 = vpack.c.bf16 %v1286, %v1282
  %v1319 = vpack.c.bf16 %v1292, %v1292
  %v1320 = vpack.c.bf16 %v1288, %v1284
  %v1321 = vpack.c.bf16 %v1294, %v1294
  %v1323 = vsel %vm369, %v1317, 0
  %v1326 = vsel %vm369, %v1318, 0
  %v1329 = vsel %vm369, %v1319, 0
  %1331 = vmatprep.subr.bf16.mxu0 0
  %1332 = vmatpush1.bf16.xpose.msra.mxu0 %v1326
  %1333 = vmatprep.subr.bf16.mxu0 0
  %1334 = vmatpush1.bf16.xpose.msra.mxu0 %v1329
  %1335 = vmatprep.subr.bf16.mxu0 0
  %1336 = vmatpush1.bf16.xpose.msra.mxu0 0
  %1337 = vmatprep.subr.bf16.mxu0 0
  %1338 = vmatpush1.bf16.xpose.msra.mxu0 0
  %1339 = vmatprep.subr.bf16.mxu0 0
  %1340 = vmatpush1.bf16.xpose.msra.mxu0 0
  %1341 = vmatprep.subr.bf16.mxu0 0
  %1342 = vmatpush1.bf16.xpose.msra.mxu0 0
  %1343 = vmatprep.subr.bf16.mxu0 0
  %1344 = vmatpush1.bf16.xpose.msra.mxu0 0
  %1345 = vmatprep.subr.bf16.mxu0 0
  %1346 = vmatpush1.bf16.xpose.msra.mxu0 0
  %1347 = vmatprep.subr.bf16.mxu0 0
  %1348 = vmatpush1.bf16.xpose.msra.mxu0 0
  %1349 = vmatprep.subr.bf16.mxu0 0
  %1350 = vmatpush1.bf16.xpose.msra.mxu0 0
  %1351 = vmatprep.subr.bf16.mxu0 0
  %1352 = vmatpush1.bf16.xpose.msra.mxu0 0
  %1353 = vmatprep.subr.bf16.mxu0 0
  %1354 = vmatpush1.bf16.xpose.msra.mxu0 0
  %1355 = vmatprep.subr.bf16.mxu0 0
  %1356 = vmatpush1.bf16.xpose.msra.mxu0 0
  %1357 = vmatprep.subr.bf16.mxu0 0
  %1358 = vmatpush1.bf16.xpose.msra.mxu0 0
  %1359 = vmatprep.subr.bf16.mxu0 0
  %1360 = vmatpush1.bf16.xpose.msra.mxu0 0
  %1361 = vmatprep.subr.bf16.mxu0 0
  %1362 = vmatpush1.bf16.xpose.msra.mxu0 0
  %1363 = vmatprep.mubr.bf16.mxu0 0
  %1364 = vmatmul.mubr.bf16.gmra.mrb[0].mxu0 %v1323
  %v1365 = vpop.f32.mrb[0].mxu0
  %v1366 = vadd.f32 %v1298, %v1365
  %v1367 = vpop.f32.mrb[0].mxu0
  %v1368 = vpop.f32.mrb[0].mxu0
  %v1369 = vadd.f32 %v1299, %v1368
  %v1370 = vpop.f32.mrb[0].mxu0
  %1371 = vdwg.mxu0
  %vm1372 = vcmask 162816
  %v1373 = vsel %vm1372, %v1366, -inf
  %1374 = vmax.xlane.f32.xlu0 %v1373
  %v1375 = vpop.xlane.xlu0 %1374
  %v1376 = vsel %vm1372, %v1369, -inf
  %1377 = vmax.xlane.f32.xlu0 %v1376
  %v1378 = vpop.xlane.xlu0 %1377
  %v1379 = vsub.f32 %v1366, %v1375
  %v1380 = vsub.f32 %v1369, %v1378
  %v1381 = vmul.f32 %v1379, 1.442695
  %v1382 = vpow.pop %v1381
  %v1383 = vmul.f32 %v1380, 1.442695
  %v1384 = vpow.pop %v1383
  %v1385 = vsel %vm1372, %v1382, 0.0
  %1386 = vadd.xlane.f32.xlu0 %v1385
  %v1387 = vpop.xlane.xlu0 %1386
  %v1388 = vsel %vm1372, %v1384, 0.0
  %1389 = vadd.xlane.f32.xlu0 %v1388
  %v1390 = vpop.xlane.xlu0 %1389
  %v1391 = vrcp.pop %v1387
  %v1392 = vrcp.pop %v1390
  %v1393 = vmul.f32 %v1382, %v1391
  %v1394 = vmul.f32 %v1384, %v1392
  %v1395 = vpack.c.bf16 %v1394, %v1393
  %v1397 = vsel %vm1372, %v1395, 0
  %vm1399 = vcmask 1041408
  %v1401 = vsel %vm1399, %v1321, 0
  %1403 = vmatprep.subr.bf16.mxu0 0
  %1404 = vmatpush1.bf16.msra.mxu0 %v1320
  %1405 = vmatprep.subr.bf16.mxu0 0
  %1406 = vmatpush1.bf16.msra.mxu0 %v1401
  %1407 = vmatprep.subr.bf16.mxu0 0
  %1408 = vmatpush1.bf16.msra.mxu0 0
  %1409 = vmatprep.subr.bf16.mxu0 0
  %1410 = vmatpush1.bf16.msra.mxu0 0
  %1411 = vmatprep.subr.bf16.mxu0 0
  %1412 = vmatpush1.bf16.msra.mxu0 0
  %1413 = vmatprep.subr.bf16.mxu0 0
  %1414 = vmatpush1.bf16.msra.mxu0 0
  %1415 = vmatprep.subr.bf16.mxu0 0
  %1416 = vmatpush1.bf16.msra.mxu0 0
  %1417 = vmatprep.subr.bf16.mxu0 0
  %1418 = vmatpush1.bf16.msra.mxu0 0
  %1419 = vmatprep.subr.bf16.mxu0 0
  %1420 = vmatpush1.bf16.msra.mxu0 0
  %1421 = vmatprep.subr.bf16.mxu0 0
  %1422 = vmatpush1.bf16.msra.mxu0 0
  %1423 = vmatprep.subr.bf16.mxu0 0
  %1424 = vmatpush1.bf16.msra.mxu0 0
  %1425 = vmatprep.subr.bf16.mxu0 0
  %1426 = vmatpush1.bf16.msra.mxu0 0
  %1427 = vmatprep.subr.bf16.mxu0 0
  %1428 = vmatpush1.bf16.msra.mxu0 0
  %1429 = vmatprep.subr.bf16.mxu0 0
  %1430 = vmatpush1.bf16.msra.mxu0 0
  %1431 = vmatprep.subr.bf16.mxu0 0
  %1432 = vmatpush1.bf16.msra.mxu0 0
  %1433 = vmatprep.subr.bf16.mxu0 0
  %1434 = vmatpush1.bf16.msra.mxu0 0
  %1435 = vmatprep.mubr.bf16.mxu0 0
  %1436 = vmatmul.mubr.bf16.gmra.mrb[0].mxu0 %v1397
  %v1437 = vpop.f32.mrb[0].mxu0
  %v1438 = vadd.f32 0.0, %v1437
  %v1439 = vpop.f32.mrb[0].mxu0
  %v1440 = vpop.f32.mrb[0].mxu0
  %v1441 = vadd.f32 0.0, %v1440
  %v1442 = vpop.f32.mrb[0].mxu0
  %1443 = vdwg.mxu0
  %1445 = vrot.lane.b32.xlu0 %v1317, 96
  %v1446 = vpop.permute.xlu0 %1445
  %1449 = vrot.lane.b32.xlu0 %v1318, 96
  %v1450 = vpop.permute.xlu0 %1449
  %1451 = vrot.lane.b32.xlu0 %v1319, 96
  %v1452 = vpop.permute.xlu0 %1451
  %v1454 = vsel %vm369, %v1446, 0
  %v1457 = vsel %vm369, %v1450, 0
  %v1460 = vsel %vm369, %v1452, 0
  %1462 = vmatprep.subr.bf16.mxu0 0
  %1463 = vmatpush1.bf16.xpose.msra.mxu0 %v1457
  %1464 = vmatprep.subr.bf16.mxu0 0
  %1465 = vmatpush1.bf16.xpose.msra.mxu0 %v1460
  %1466 = vmatprep.subr.bf16.mxu0 0
  %1467 = vmatpush1.bf16.xpose.msra.mxu0 0
  %1468 = vmatprep.subr.bf16.mxu0 0
  %1469 = vmatpush1.bf16.xpose.msra.mxu0 0
  %1470 = vmatprep.subr.bf16.mxu0 0
  %1471 = vmatpush1.bf16.xpose.msra.mxu0 0
  %1472 = vmatprep.subr.bf16.mxu0 0
  %1473 = vmatpush1.bf16.xpose.msra.mxu0 0
  %1474 = vmatprep.subr.bf16.mxu0 0
  %1475 = vmatpush1.bf16.xpose.msra.mxu0 0
  %1476 = vmatprep.subr.bf16.mxu0 0
  %1477 = vmatpush1.bf16.xpose.msra.mxu0 0
  %1478 = vmatprep.subr.bf16.mxu0 0
  %1479 = vmatpush1.bf16.xpose.msra.mxu0 0
  %1480 = vmatprep.subr.bf16.mxu0 0
  %1481 = vmatpush1.bf16.xpose.msra.mxu0 0
  %1482 = vmatprep.subr.bf16.mxu0 0
  %1483 = vmatpush1.bf16.xpose.msra.mxu0 0
  %1484 = vmatprep.subr.bf16.mxu0 0
  %1485 = vmatpush1.bf16.xpose.msra.mxu0 0
  %1486 = vmatprep.subr.bf16.mxu0 0
  %1487 = vmatpush1.bf16.xpose.msra.mxu0 0
  %1488 = vmatprep.subr.bf16.mxu0 0
  %1489 = vmatpush1.bf16.xpose.msra.mxu0 0
  %1490 = vmatprep.subr.bf16.mxu0 0
  %1491 = vmatpush1.bf16.xpose.msra.mxu0 0
  %1492 = vmatprep.subr.bf16.mxu0 0
  %1493 = vmatpush1.bf16.xpose.msra.mxu0 0
  %1494 = vmatprep.mubr.bf16.mxu0 0
  %1495 = vmatmul.mubr.bf16.gmra.mrb[0].mxu0 %v1454
  %v1496 = vpop.f32.mrb[0].mxu0
  %v1497 = vadd.f32 %v1298, %v1496
  %v1498 = vpop.f32.mrb[0].mxu0
  %v1499 = vpop.f32.mrb[0].mxu0
  %v1500 = vadd.f32 %v1299, %v1499
  %v1501 = vpop.f32.mrb[0].mxu0
  %1502 = vdwg.mxu0
  %v1503 = vsel %vm1372, %v1497, -inf
  %1504 = vmax.xlane.f32.xlu0 %v1503
  %v1505 = vpop.xlane.xlu0 %1504
  %v1506 = vsel %vm1372, %v1500, -inf
  %1507 = vmax.xlane.f32.xlu0 %v1506
  %v1508 = vpop.xlane.xlu0 %1507
  %v1509 = vsub.f32 %v1497, %v1505
  %v1510 = vsub.f32 %v1500, %v1508
  %v1511 = vmul.f32 %v1509, 1.442695
  %v1512 = vpow.pop %v1511
  %v1513 = vmul.f32 %v1510, 1.442695
  %v1514 = vpow.pop %v1513
  %v1515 = vsel %vm1372, %v1512, 0.0
  %1516 = vadd.xlane.f32.xlu0 %v1515
  %v1517 = vpop.xlane.xlu0 %1516
  %v1518 = vsel %vm1372, %v1514, 0.0
  %1519 = vadd.xlane.f32.xlu0 %v1518
  %v1520 = vpop.xlane.xlu0 %1519
  %v1521 = vrcp.pop %v1517
  %v1522 = vrcp.pop %v1520
  %v1523 = vmul.f32 %v1512, %v1521
  %v1524 = vmul.f32 %v1514, %v1522
  %v1525 = vpack.c.bf16 %v1524, %v1523
  %1528 = vrot.lane.b32.xlu0 %v1320, 96
  %v1529 = vpop.permute.xlu0 %1528
  %1530 = vrot.lane.b32.xlu0 %v1321, 96
  %v1531 = vpop.permute.xlu0 %1530
  %v1534 = vsel %vm1372, %v1525, 0
  %v1537 = vsel %vm1399, %v1531, 0
  %1539 = vmatprep.subr.bf16.mxu0 0
  %1540 = vmatpush1.bf16.msra.mxu0 %v1529
  %1541 = vmatprep.subr.bf16.mxu0 0
  %1542 = vmatpush1.bf16.msra.mxu0 %v1537
  %1543 = vmatprep.subr.bf16.mxu0 0
  %1544 = vmatpush1.bf16.msra.mxu0 0
  %1545 = vmatprep.subr.bf16.mxu0 0
  %1546 = vmatpush1.bf16.msra.mxu0 0
  %1547 = vmatprep.subr.bf16.mxu0 0
  %1548 = vmatpush1.bf16.msra.mxu0 0
  %1549 = vmatprep.subr.bf16.mxu0 0
  %1550 = vmatpush1.bf16.msra.mxu0 0
  %1551 = vmatprep.subr.bf16.mxu0 0
  %1552 = vmatpush1.bf16.msra.mxu0 0
  %1553 = vmatprep.subr.bf16.mxu0 0
  %1554 = vmatpush1.bf16.msra.mxu0 0
  %1555 = vmatprep.subr.bf16.mxu0 0
  %1556 = vmatpush1.bf16.msra.mxu0 0
  %1557 = vmatprep.subr.bf16.mxu0 0
  %1558 = vmatpush1.bf16.msra.mxu0 0
  %1559 = vmatprep.subr.bf16.mxu0 0
  %1560 = vmatpush1.bf16.msra.mxu0 0
  %1561 = vmatprep.subr.bf16.mxu0 0
  %1562 = vmatpush1.bf16.msra.mxu0 0
  %1563 = vmatprep.subr.bf16.mxu0 0
  %1564 = vmatpush1.bf16.msra.mxu0 0
  %1565 = vmatprep.subr.bf16.mxu0 0
  %1566 = vmatpush1.bf16.msra.mxu0 0
  %1567 = vmatprep.subr.bf16.mxu0 0
  %1568 = vmatpush1.bf16.msra.mxu0 0
  %1569 = vmatprep.subr.bf16.mxu0 0
  %1570 = vmatpush1.bf16.msra.mxu0 0
  %1571 = vmatprep.mubr.bf16.mxu0 0
  %1572 = vmatmul.mubr.bf16.gmra.mrb[0].mxu0 %v1534
  %v1573 = vpop.f32.mrb[0].mxu0
  %v1574 = vadd.f32 0.0, %v1573
  %v1575 = vpop.f32.mrb[0].mxu0
  %v1576 = vpop.f32.mrb[0].mxu0
  %v1577 = vadd.f32 0.0, %v1576
  %v1578 = vpop.f32.mrb[0].mxu0
  %1579 = vdwg.mxu0
  %1580 = vrot.lane.b32.xlu0 %v1317, 64
  %v1581 = vpop.permute.xlu0 %1580
  %1582 = vrot.lane.b32.xlu0 %v1318, 64
  %v1583 = vpop.permute.xlu0 %1582
  %1584 = vrot.lane.b32.xlu0 %v1319, 64
  %v1585 = vpop.permute.xlu0 %1584
  %v1587 = vsel %vm369, %v1581, 0
  %v1590 = vsel %vm369, %v1583, 0
  %v1593 = vsel %vm369, %v1585, 0
  %1595 = vmatprep.subr.bf16.mxu0 0
  %1596 = vmatpush1.bf16.xpose.msra.mxu0 %v1590
  %1597 = vmatprep.subr.bf16.mxu0 0
  %1598 = vmatpush1.bf16.xpose.msra.mxu0 %v1593
  %1599 = vmatprep.subr.bf16.mxu0 0
  %1600 = vmatpush1.bf16.xpose.msra.mxu0 0
  %1601 = vmatprep.subr.bf16.mxu0 0
  %1602 = vmatpush1.bf16.xpose.msra.mxu0 0
  %1603 = vmatprep.subr.bf16.mxu0 0
  %1604 = vmatpush1.bf16.xpose.msra.mxu0 0
  %1605 = vmatprep.subr.bf16.mxu0 0
  %1606 = vmatpush1.bf16.xpose.msra.mxu0 0
  %1607 = vmatprep.subr.bf16.mxu0 0
  %1608 = vmatpush1.bf16.xpose.msra.mxu0 0
  %1609 = vmatprep.subr.bf16.mxu0 0
  %1610 = vmatpush1.bf16.xpose.msra.mxu0 0
  %1611 = vmatprep.subr.bf16.mxu0 0
  %1612 = vmatpush1.bf16.xpose.msra.mxu0 0
  %1613 = vmatprep.subr.bf16.mxu0 0
  %1614 = vmatpush1.bf16.xpose.msra.mxu0 0
  %1615 = vmatprep.subr.bf16.mxu0 0
  %1616 = vmatpush1.bf16.xpose.msra.mxu0 0
  %1617 = vmatprep.subr.bf16.mxu0 0
  %1618 = vmatpush1.bf16.xpose.msra.mxu0 0
  %1619 = vmatprep.subr.bf16.mxu0 0
  %1620 = vmatpush1.bf16.xpose.msra.mxu0 0
  %1621 = vmatprep.subr.bf16.mxu0 0
  %1622 = vmatpush1.bf16.xpose.msra.mxu0 0
  %1623 = vmatprep.subr.bf16.mxu0 0
  %1624 = vmatpush1.bf16.xpose.msra.mxu0 0
  %1625 = vmatprep.subr.bf16.mxu0 0
  %1626 = vmatpush1.bf16.xpose.msra.mxu0 0
  %1627 = vmatprep.mubr.bf16.mxu0 0
  %1628 = vmatmul.mubr.bf16.gmra.mrb[0].mxu0 %v1587
  %v1629 = vpop.f32.mrb[0].mxu0
  %v1630 = vadd.f32 %v1298, %v1629
  %v1631 = vpop.f32.mrb[0].mxu0
  %v1632 = vpop.f32.mrb[0].mxu0
  %v1633 = vadd.f32 %v1299, %v1632
  %v1634 = vpop.f32.mrb[0].mxu0
  %1635 = vdwg.mxu0
  %v1636 = vsel %vm1372, %v1630, -inf
  %1637 = vmax.xlane.f32.xlu0 %v1636
  %v1638 = vpop.xlane.xlu0 %1637
  %v1639 = vsel %vm1372, %v1633, -inf
  %1640 = vmax.xlane.f32.xlu0 %v1639
  %v1641 = vpop.xlane.xlu0 %1640
  %v1642 = vsub.f32 %v1630, %v1638
  %v1643 = vsub.f32 %v1633, %v1641
  %v1644 = vmul.f32 %v1642, 1.442695
  %v1645 = vpow.pop %v1644
  %v1646 = vmul.f32 %v1643, 1.442695
  %v1647 = vpow.pop %v1646
  %v1648 = vsel %vm1372, %v1645, 0.0
  %1649 = vadd.xlane.f32.xlu0 %v1648
  %v1650 = vpop.xlane.xlu0 %1649
  %v1651 = vsel %vm1372, %v1647, 0.0
  %1652 = vadd.xlane.f32.xlu0 %v1651
  %v1653 = vpop.xlane.xlu0 %1652
  %v1654 = vrcp.pop %v1650
  %v1655 = vrcp.pop %v1653
  %v1656 = vmul.f32 %v1645, %v1654
  %v1657 = vmul.f32 %v1647, %v1655
  %v1658 = vpack.c.bf16 %v1657, %v1656
  %1659 = vrot.lane.b32.xlu0 %v1320, 64
  %v1660 = vpop.permute.xlu0 %1659
  %1661 = vrot.lane.b32.xlu0 %v1321, 64
  %v1662 = vpop.permute.xlu0 %1661
  %v1665 = vsel %vm1372, %v1658, 0
  %v1668 = vsel %vm1399, %v1662, 0
  %1670 = vmatprep.subr.bf16.mxu0 0
  %1671 = vmatpush1.bf16.msra.mxu0 %v1660
  %1672 = vmatprep.subr.bf16.mxu0 0
  %1673 = vmatpush1.bf16.msra.mxu0 %v1668
  %1674 = vmatprep.subr.bf16.mxu0 0
  %1675 = vmatpush1.bf16.msra.mxu0 0
  %1676 = vmatprep.subr.bf16.mxu0 0
  %1677 = vmatpush1.bf16.msra.mxu0 0
  %1678 = vmatprep.subr.bf16.mxu0 0
  %1679 = vmatpush1.bf16.msra.mxu0 0
  %1680 = vmatprep.subr.bf16.mxu0 0
  %1681 = vmatpush1.bf16.msra.mxu0 0
  %1682 = vmatprep.subr.bf16.mxu0 0
  %1683 = vmatpush1.bf16.msra.mxu0 0
  %1684 = vmatprep.subr.bf16.mxu0 0
  %1685 = vmatpush1.bf16.msra.mxu0 0
  %1686 = vmatprep.subr.bf16.mxu0 0
  %1687 = vmatpush1.bf16.msra.mxu0 0
  %1688 = vmatprep.subr.bf16.mxu0 0
  %1689 = vmatpush1.bf16.msra.mxu0 0
  %1690 = vmatprep.subr.bf16.mxu0 0
  %1691 = vmatpush1.bf16.msra.mxu0 0
  %1692 = vmatprep.subr.bf16.mxu0 0
  %1693 = vmatpush1.bf16.msra.mxu0 0
  %1694 = vmatprep.subr.bf16.mxu0 0
  %1695 = vmatpush1.bf16.msra.mxu0 0
  %1696 = vmatprep.subr.bf16.mxu0 0
  %1697 = vmatpush1.bf16.msra.mxu0 0
  %1698 = vmatprep.subr.bf16.mxu0 0
  %1699 = vmatpush1.bf16.msra.mxu0 0
  %1700 = vmatprep.subr.bf16.mxu0 0
  %1701 = vmatpush1.bf16.msra.mxu0 0
  %1702 = vmatprep.mubr.bf16.mxu0 0
  %1703 = vmatmul.mubr.bf16.gmra.mrb[0].mxu0 %v1665
  %v1704 = vpop.f32.mrb[0].mxu0
  %v1705 = vadd.f32 0.0, %v1704
  %v1706 = vpop.f32.mrb[0].mxu0
  %v1707 = vpop.f32.mrb[0].mxu0
  %v1708 = vadd.f32 0.0, %v1707
  %v1709 = vpop.f32.mrb[0].mxu0
  %1710 = vdwg.mxu0
  %1711 = vrot.lane.b32.xlu0 %v1317, 32
  %v1712 = vpop.permute.xlu0 %1711
  %1713 = vrot.lane.b32.xlu0 %v1318, 32
  %v1714 = vpop.permute.xlu0 %1713
  %1715 = vrot.lane.b32.xlu0 %v1319, 32
  %v1716 = vpop.permute.xlu0 %1715
  %v1718 = vsel %vm369, %v1712, 0
  %v1721 = vsel %vm369, %v1714, 0
  %v1724 = vsel %vm369, %v1716, 0
  %1726 = vmatprep.subr.bf16.mxu0 0
  %1727 = vmatpush1.bf16.xpose.msra.mxu0 %v1721
  %1728 = vmatprep.subr.bf16.mxu0 0
  %1729 = vmatpush1.bf16.xpose.msra.mxu0 %v1724
  %1730 = vmatprep.subr.bf16.mxu0 0
  %1731 = vmatpush1.bf16.xpose.msra.mxu0 0
  %1732 = vmatprep.subr.bf16.mxu0 0
  %1733 = vmatpush1.bf16.xpose.msra.mxu0 0
  %1734 = vmatprep.subr.bf16.mxu0 0
  %1735 = vmatpush1.bf16.xpose.msra.mxu0 0
  %1736 = vmatprep.subr.bf16.mxu0 0
  %1737 = vmatpush1.bf16.xpose.msra.mxu0 0
  %1738 = vmatprep.subr.bf16.mxu0 0
  %1739 = vmatpush1.bf16.xpose.msra.mxu0 0
  %1740 = vmatprep.subr.bf16.mxu0 0
  %1741 = vmatpush1.bf16.xpose.msra.mxu0 0
  %1742 = vmatprep.subr.bf16.mxu0 0
  %1743 = vmatpush1.bf16.xpose.msra.mxu0 0
  %1744 = vmatprep.subr.bf16.mxu0 0
  %1745 = vmatpush1.bf16.xpose.msra.mxu0 0
  %1746 = vmatprep.subr.bf16.mxu0 0
  %1747 = vmatpush1.bf16.xpose.msra.mxu0 0
  %1748 = vmatprep.subr.bf16.mxu0 0
  %1749 = vmatpush1.bf16.xpose.msra.mxu0 0
  %1750 = vmatprep.subr.bf16.mxu0 0
  %1751 = vmatpush1.bf16.xpose.msra.mxu0 0
  %1752 = vmatprep.subr.bf16.mxu0 0
  %1753 = vmatpush1.bf16.xpose.msra.mxu0 0
  %1754 = vmatprep.subr.bf16.mxu0 0
  %1755 = vmatpush1.bf16.xpose.msra.mxu0 0
  %1756 = vmatprep.subr.bf16.mxu0 0
  %1757 = vmatpush1.bf16.xpose.msra.mxu0 0
  %1758 = vmatprep.mubr.bf16.mxu0 0
  %1759 = vmatmul.mubr.bf16.gmra.mrb[0].mxu0 %v1718
  %v1760 = vpop.f32.mrb[0].mxu0
  %v1761 = vadd.f32 %v1298, %v1760
  %v1762 = vpop.f32.mrb[0].mxu0
  %v1763 = vpop.f32.mrb[0].mxu0
  %v1764 = vadd.f32 %v1299, %v1763
  %v1765 = vpop.f32.mrb[0].mxu0
  %1766 = vdwg.mxu0
  %v1767 = vsel %vm1372, %v1761, -inf
  %1768 = vmax.xlane.f32.xlu0 %v1767
  %v1769 = vpop.xlane.xlu0 %1768
  %v1770 = vsel %vm1372, %v1764, -inf
  %1771 = vmax.xlane.f32.xlu0 %v1770
  %v1772 = vpop.xlane.xlu0 %1771
  %v1773 = vsub.f32 %v1761, %v1769
  %v1774 = vsub.f32 %v1764, %v1772
  %v1775 = vmul.f32 %v1773, 1.442695
  %v1776 = vpow.pop %v1775
  %v1777 = vmul.f32 %v1774, 1.442695
  %v1778 = vpow.pop %v1777
  %v1779 = vsel %vm1372, %v1776, 0.0
  %1780 = vadd.xlane.f32.xlu0 %v1779
  %v1781 = vpop.xlane.xlu0 %1780
  %v1782 = vsel %vm1372, %v1778, 0.0
  %1783 = vadd.xlane.f32.xlu0 %v1782
  %v1784 = vpop.xlane.xlu0 %1783
  %v1785 = vrcp.pop %v1781
  %v1786 = vrcp.pop %v1784
  %v1787 = vmul.f32 %v1776, %v1785
  %v1788 = vmul.f32 %v1778, %v1786
  %v1789 = vpack.c.bf16 %v1788, %v1787
  %1790 = vrot.lane.b32.xlu0 %v1320, 32
  %v1791 = vpop.permute.xlu0 %1790
  %1792 = vrot.lane.b32.xlu0 %v1321, 32
  %v1793 = vpop.permute.xlu0 %1792
  %v1796 = vsel %vm1372, %v1789, 0
  %v1799 = vsel %vm1399, %v1793, 0
  %1801 = vmatprep.subr.bf16.mxu0 0
  %1802 = vmatpush1.bf16.msra.mxu0 %v1791
  %1803 = vmatprep.subr.bf16.mxu0 0
  %1804 = vmatpush1.bf16.msra.mxu0 %v1799
  %1805 = vmatprep.subr.bf16.mxu0 0
  %1806 = vmatpush1.bf16.msra.mxu0 0
  %1807 = vmatprep.subr.bf16.mxu0 0
  %1808 = vmatpush1.bf16.msra.mxu0 0
  %1809 = vmatprep.subr.bf16.mxu0 0
  %1810 = vmatpush1.bf16.msra.mxu0 0
  %1811 = vmatprep.subr.bf16.mxu0 0
  %1812 = vmatpush1.bf16.msra.mxu0 0
  %1813 = vmatprep.subr.bf16.mxu0 0
  %1814 = vmatpush1.bf16.msra.mxu0 0
  %1815 = vmatprep.subr.bf16.mxu0 0
  %1816 = vmatpush1.bf16.msra.mxu0 0
  %1817 = vmatprep.subr.bf16.mxu0 0
  %1818 = vmatpush1.bf16.msra.mxu0 0
  %1819 = vmatprep.subr.bf16.mxu0 0
  %1820 = vmatpush1.bf16.msra.mxu0 0
  %1821 = vmatprep.subr.bf16.mxu0 0
  %1822 = vmatpush1.bf16.msra.mxu0 0
  %1823 = vmatprep.subr.bf16.mxu0 0
  %1824 = vmatpush1.bf16.msra.mxu0 0
  %1825 = vmatprep.subr.bf16.mxu0 0
  %1826 = vmatpush1.bf16.msra.mxu0 0
  %1827 = vmatprep.subr.bf16.mxu0 0
  %1828 = vmatpush1.bf16.msra.mxu0 0
  %1829 = vmatprep.subr.bf16.mxu0 0
  %1830 = vmatpush1.bf16.msra.mxu0 0
  %1831 = vmatprep.subr.bf16.mxu0 0
  %1832 = vmatpush1.bf16.msra.mxu0 0
  %1833 = vmatprep.mubr.bf16.mxu0 0
  %1834 = vmatmul.mubr.bf16.gmra.mrb[0].mxu0 %v1796
  %v1835 = vpop.f32.mrb[0].mxu0
  %v1836 = vadd.f32 0.0, %v1835
  %v1837 = vpop.f32.mrb[0].mxu0
  %v1838 = vpop.f32.mrb[0].mxu0
  %v1839 = vadd.f32 0.0, %v1838
  %v1840 = vpop.f32.mrb[0].mxu0
  %1841 = vdwg.mxu0
  %1844 = vrot.lane.b32.xlu0 %v1574, 32
  %v1845 = vpop.permute.xlu0 %1844
  %1846 = vrot.lane.b32.xlu0 %v1577, 32
  %v1847 = vpop.permute.xlu0 %1846
  %1852 = vrot.lane.b32.xlu0 %v1705, 64
  %v1853 = vpop.permute.xlu0 %1852
  %1854 = vrot.lane.b32.xlu0 %v1708, 64
  %v1855 = vpop.permute.xlu0 %1854
  %1860 = vrot.lane.b32.xlu0 %v1836, 96
  %v1861 = vpop.permute.xlu0 %1860
  %1862 = vrot.lane.b32.xlu0 %v1839, 96
  %v1863 = vpop.permute.xlu0 %1862
  %v1866 = vsel %vm369, %v1438, %v1845
  %v1867 = vsel %vm369, %v1441, %v1847
  %v1868 = vsel %vm877, %v1866, %v1853
  %v1869 = vsel %vm877, %v1867, %v1855
  %v1870 = vsel %vm880, %v1868, %v1861
  %v1871 = vsel %vm880, %v1869, %v1863
  %v1872 = vpack.c.bf16 %v1871, %v1870
  %v1874 = vlaneseq
  %v1875 = vshrl.u32 %v1874, 7
  %v1876 = vsub.s32 0, %v1875
  %v1877 = vrot.slane %v1316, %v1876
  %v1895 = vunpack.c.l.b16 %v1300
  %v1896 = vunpack.c.l.b16 %v1301
  %v1897 = vunpack.c.l.b16 %v1302
  %v1898 = vunpack.c.l.b16 %v1303
  %v1899 = vunpack.c.l.b16 %v1304
  %v1900 = vunpack.c.l.b16 %v1305
  %v1901 = vunpack.c.l.b16 %v1306
  %v1902 = vunpack.c.l.b16 %v1307
  %v1903 = vunpack.c.l.b16 %v1308
  %v1904 = vunpack.c.l.b16 %v1309
  %v1905 = vunpack.c.l.b16 %v1310
  %v1906 = vunpack.c.l.b16 %v1311
  %v1907 = vunpack.c.l.b16 %v1312
  %v1908 = vunpack.c.l.b16 %v1313
  %v1909 = vunpack.c.l.b16 %v1314
  %v1910 = vunpack.c.l.b16 %v1315
  %v1911 = vpack.c.b16 %v1896, %v1895
  %v1912 = vpack.c.b16 %v1898, %v1897
  %v1913 = vpack.c.b16 %v1900, %v1899
  %v1914 = vpack.c.b16 %v1902, %v1901
  %v1915 = vpack.c.b16 %v1904, %v1903
  %v1916 = vpack.c.b16 %v1906, %v1905
  %v1917 = vpack.c.b16 %v1908, %v1907
  %v1918 = vpack.c.b16 %v1910, %v1909
  %1927 = vmatprep.subr.bf16.mxu0 0
  %1928 = vmatpush1.bf16.msra.mxu0 %v1911
  %1929 = vmatprep.subr.bf16.mxu0 0
  %1930 = vmatpush1.bf16.msra.mxu0 %v1912
  %1931 = vmatprep.subr.bf16.mxu0 0
  %1932 = vmatpush1.bf16.msra.mxu0 %v1913
  %1933 = vmatprep.subr.bf16.mxu0 0
  %1934 = vmatpush1.bf16.msra.mxu0 %v1914
  %1935 = vmatprep.subr.bf16.mxu0 0
  %1936 = vmatpush1.bf16.msra.mxu0 %v1915
  %1937 = vmatprep.subr.bf16.mxu0 0
  %1938 = vmatpush1.bf16.msra.mxu0 %v1916
  %1939 = vmatprep.subr.bf16.mxu0 0
  %1940 = vmatpush1.bf16.msra.mxu0 %v1917
  %1941 = vmatprep.subr.bf16.mxu0 0
  %1942 = vmatpush1.bf16.msra.mxu0 %v1918
  %1943 = vmatprep.subr.bf16.mxu0 0
  %1944 = vmatpush1.bf16.msra.mxu0 0
  %1945 = vmatprep.subr.bf16.mxu0 0
  %1946 = vmatpush1.bf16.msra.mxu0 0
  %1947 = vmatprep.subr.bf16.mxu0 0
  %1948 = vmatpush1.bf16.msra.mxu0 0
  %1949 = vmatprep.subr.bf16.mxu0 0
  %1950 = vmatpush1.bf16.msra.mxu0 0
  %1951 = vmatprep.subr.bf16.mxu0 0
  %1952 = vmatpush1.bf16.msra.mxu0 0
  %1953 = vmatprep.subr.bf16.mxu0 0
  %1954 = vmatpush1.bf16.msra.mxu0 0
  %1955 = vmatprep.subr.bf16.mxu0 0
  %1956 = vmatpush1.bf16.msra.mxu0 0
  %1957 = vmatprep.subr.bf16.mxu0 0
  %1958 = vmatpush1.bf16.msra.mxu0 0
  %1959 = vmatprep.mubr.bf16.mxu0 0
  %1960 = vmatmul.mubr.bf16.gmra.mrb[0].mxu0 %v1872
  %v1961 = vpop.f32.mrb[0].mxu0
  %v1962 = vadd.f32 %v1877, %v1961
  %v1963 = vpop.f32.mrb[0].mxu0
  %v1964 = vpop.f32.mrb[0].mxu0
  %v1965 = vadd.f32 %v1877, %v1964
  %v1966 = vpop.f32.mrb[0].mxu0
  %1967 = vdwg.mxu0
  %v1968 = vadd.f32 %v1020, %v1962
  %v1969 = vadd.f32 %v1021, %v1965
  %v1970 = vld [vmem:[%s16] sm:$0x1]
  %v1971 = vld [vmem:[%s17] sm:$0x1]
  %1972 = vadd.xlane.f32.xlu0 %v1968
  %v1973 = vpop.xlane.xlu0 %1972
  %1974 = vadd.xlane.f32.xlu0 %v1969
  %v1975 = vpop.xlane.xlu0 %1974
  %v1976 = vmul.f32 %v1973, %v987
  %v1977 = vmul.f32 %v1975, %v987
  %v1978 = vsub.f32 %v1968, %v1976
  %v1979 = vsub.f32 %v1969, %v1977
  %v1980 = vmul.f32 %v1978, %v1978
  %v1981 = vmul.f32 %v1979, %v1979
  %1982 = vadd.xlane.f32.xlu0 %v1980
  %v1983 = vpop.xlane.xlu0 %1982
  %1984 = vadd.xlane.f32.xlu0 %v1981
  %v1985 = vpop.xlane.xlu0 %1984
  %v1986 = vmul.f32 %v1983, %v987
  %v1987 = vmul.f32 %v1985, %v987
  %v1988 = vadd.f32 %v1986, 1e-05
  %v1989 = vadd.f32 %v1987, 1e-05
  %v1990 = vrsqrt.pop %v1988
  %v1991 = vrsqrt.pop %v1989
  %v1992 = vmul.f32 %v1978, %v1990
  %v1993 = vmul.f32 %v1979, %v1991
  %v1995 = vlaneseq
  %v1996 = vshrl.u32 %v1995, 7
  %v1997 = vsub.s32 0, %v1996
  %v1998 = vrot.slane %v1970, %v1997
  %v2000 = vmul.f32 %v1992, %v1998
  %v2001 = vmul.f32 %v1993, %v1998
  %v2003 = vlaneseq
  %v2004 = vshrl.u32 %v2003, 7
  %v2005 = vsub.s32 0, %v2004
  %v2006 = vrot.slane %v1971, %v2005
  %v2008 = vadd.f32 %v2000, %v2006
  %v2009 = vadd.f32 %v2001, %v2006
  %v2010 = vld [vmem:[%s18] sm:$0xf]
  %v2011 = vld [vmem:[%s18 + $0x4] sm:$0xf]
  %v2012 = vld [vmem:[%s18 + $0x8] sm:$0xf]
  %v2013 = vld [vmem:[%s18 + $0xc] sm:$0xf]
  %v2014 = vld [vmem:[%s18 + $0x10] sm:$0xf]
  %v2015 = vld [vmem:[%s18 + $0x14] sm:$0xf]
  %v2016 = vld [vmem:[%s18 + $0x18] sm:$0xf]
  %v2017 = vld [vmem:[%s18 + $0x1c] sm:$0xf]
  %v2018 = vld [vmem:[%s18 + $0x20] sm:$0xf]
  %v2019 = vld [vmem:[%s18 + $0x24] sm:$0xf]
  %v2020 = vld [vmem:[%s18 + $0x28] sm:$0xf]
  %v2021 = vld [vmem:[%s18 + $0x2c] sm:$0xf]
  %v2022 = vld [vmem:[%s18 + $0x30] sm:$0xf]
  %v2023 = vld [vmem:[%s18 + $0x34] sm:$0xf]
  %v2024 = vld [vmem:[%s18 + $0x38] sm:$0xf]
  %v2025 = vld [vmem:[%s18 + $0x3c] sm:$0xf]
  %v2026 = vld [vmem:[%s19] sm:$0x1]
  %v2027 = vpack.c.bf16 %v2009, %v2008
  %v2029 = vlaneseq
  %v2030 = vshrl.u32 %v2029, 7
  %v2031 = vsub.s32 0, %v2030
  %v2032 = vrot.slane %v2026, %v2031
  %v2050 = vunpack.c.l.b16 %v2010
  %v2051 = vunpack.c.l.b16 %v2011
  %v2052 = vunpack.c.l.b16 %v2012
  %v2053 = vunpack.c.l.b16 %v2013
  %v2054 = vunpack.c.l.b16 %v2014
  %v2055 = vunpack.c.l.b16 %v2015
  %v2056 = vunpack.c.l.b16 %v2016
  %v2057 = vunpack.c.l.b16 %v2017
  %v2058 = vunpack.c.l.b16 %v2018
  %v2059 = vunpack.c.l.b16 %v2019
  %v2060 = vunpack.c.l.b16 %v2020
  %v2061 = vunpack.c.l.b16 %v2021
  %v2062 = vunpack.c.l.b16 %v2022
  %v2063 = vunpack.c.l.b16 %v2023
  %v2064 = vunpack.c.l.b16 %v2024
  %v2065 = vunpack.c.l.b16 %v2025
  %v2066 = vpack.c.b16 %v2051, %v2050
  %v2067 = vpack.c.b16 %v2053, %v2052
  %v2068 = vpack.c.b16 %v2055, %v2054
  %v2069 = vpack.c.b16 %v2057, %v2056
  %v2070 = vpack.c.b16 %v2059, %v2058
  %v2071 = vpack.c.b16 %v2061, %v2060
  %v2072 = vpack.c.b16 %v2063, %v2062
  %v2073 = vpack.c.b16 %v2065, %v2064
  %2082 = vmatprep.subr.bf16.mxu0 0
  %2083 = vmatpush1.bf16.msra.mxu0 %v2066
  %2084 = vmatprep.subr.bf16.mxu0 0
  %2085 = vmatpush1.bf16.msra.mxu0 %v2067
  %2086 = vmatprep.subr.bf16.mxu0 0
  %2087 = vmatpush1.bf16.msra.mxu0 %v2068
  %2088 = vmatprep.subr.bf16.mxu0 0
  %2089 = vmatpush1.bf16.msra.mxu0 %v2069
  %2090 = vmatprep.subr.bf16.mxu0 0
  %2091 = vmatpush1.bf16.msra.mxu0 %v2070
  %2092 = vmatprep.subr.bf16.mxu0 0
  %2093 = vmatpush1.bf16.msra.mxu0 %v2071
  %2094 = vmatprep.subr.bf16.mxu0 0
  %2095 = vmatpush1.bf16.msra.mxu0 %v2072
  %2096 = vmatprep.subr.bf16.mxu0 0
  %2097 = vmatpush1.bf16.msra.mxu0 %v2073
  %2098 = vmatprep.subr.bf16.mxu0 0
  %2099 = vmatpush1.bf16.msra.mxu0 0
  %2100 = vmatprep.subr.bf16.mxu0 0
  %2101 = vmatpush1.bf16.msra.mxu0 0
  %2102 = vmatprep.subr.bf16.mxu0 0
  %2103 = vmatpush1.bf16.msra.mxu0 0
  %2104 = vmatprep.subr.bf16.mxu0 0
  %2105 = vmatpush1.bf16.msra.mxu0 0
  %2106 = vmatprep.subr.bf16.mxu0 0
  %2107 = vmatpush1.bf16.msra.mxu0 0
  %2108 = vmatprep.subr.bf16.mxu0 0
  %2109 = vmatpush1.bf16.msra.mxu0 0
  %2110 = vmatprep.subr.bf16.mxu0 0
  %2111 = vmatpush1.bf16.msra.mxu0 0
  %2112 = vmatprep.subr.bf16.mxu0 0
  %2113 = vmatpush1.bf16.msra.mxu0 0
  %2114 = vmatprep.mubr.bf16.mxu0 0
  %2115 = vmatmul.mubr.bf16.gmra.mrb[0].mxu0 %v2027
  %v2116 = vpop.f32.mrb[0].mxu0
  %v2117 = vadd.f32 %v2032, %v2116
  %v2118 = vpop.f32.mrb[0].mxu0
  %v2119 = vpop.f32.mrb[0].mxu0
  %v2120 = vadd.f32 %v2032, %v2119
  %v2121 = vpop.f32.mrb[0].mxu0
  %2122 = vdwg.mxu0
  %v2123 = vmax.f32 %v2117, 0.0
  %v2124 = vmax.f32 %v2120, 0.0
  %v2125 = vld [vmem:[%s20] sm:$0xf]
  %v2126 = vld [vmem:[%s20 + $0x4] sm:$0xf]
  %v2127 = vld [vmem:[%s20 + $0x8] sm:$0xf]
  %v2128 = vld [vmem:[%s20 + $0xc] sm:$0xf]
  %v2129 = vld [vmem:[%s20 + $0x10] sm:$0xf]
  %v2130 = vld [vmem:[%s20 + $0x14] sm:$0xf]
  %v2131 = vld [vmem:[%s20 + $0x18] sm:$0xf]
  %v2132 = vld [vmem:[%s20 + $0x1c] sm:$0xf]
  %v2133 = vld [vmem:[%s20 + $0x20] sm:$0xf]
  %v2134 = vld [vmem:[%s20 + $0x24] sm:$0xf]
  %v2135 = vld [vmem:[%s20 + $0x28] sm:$0xf]
  %v2136 = vld [vmem:[%s20 + $0x2c] sm:$0xf]
  %v2137 = vld [vmem:[%s20 + $0x30] sm:$0xf]
  %v2138 = vld [vmem:[%s20 + $0x34] sm:$0xf]
  %v2139 = vld [vmem:[%s20 + $0x38] sm:$0xf]
  %v2140 = vld [vmem:[%s20 + $0x3c] sm:$0xf]
  %v2141 = vld [vmem:[%s21] sm:$0x1]
  %v2142 = vpack.c.bf16 %v2124, %v2123
  %v2144 = vlaneseq
  %v2145 = vshrl.u32 %v2144, 7
  %v2146 = vsub.s32 0, %v2145
  %v2147 = vrot.slane %v2141, %v2146
  %v2165 = vunpack.c.l.b16 %v2125
  %v2166 = vunpack.c.l.b16 %v2126
  %v2167 = vunpack.c.l.b16 %v2127
  %v2168 = vunpack.c.l.b16 %v2128
  %v2169 = vunpack.c.l.b16 %v2129
  %v2170 = vunpack.c.l.b16 %v2130
  %v2171 = vunpack.c.l.b16 %v2131
  %v2172 = vunpack.c.l.b16 %v2132
  %v2173 = vunpack.c.l.b16 %v2133
  %v2174 = vunpack.c.l.b16 %v2134
  %v2175 = vunpack.c.l.b16 %v2135
  %v2176 = vunpack.c.l.b16 %v2136
  %v2177 = vunpack.c.l.b16 %v2137
  %v2178 = vunpack.c.l.b16 %v2138
  %v2179 = vunpack.c.l.b16 %v2139
  %v2180 = vunpack.c.l.b16 %v2140
  %v2181 = vpack.c.b16 %v2166, %v2165
  %v2182 = vpack.c.b16 %v2168, %v2167
  %v2183 = vpack.c.b16 %v2170, %v2169
  %v2184 = vpack.c.b16 %v2172, %v2171
  %v2185 = vpack.c.b16 %v2174, %v2173
  %v2186 = vpack.c.b16 %v2176, %v2175
  %v2187 = vpack.c.b16 %v2178, %v2177
  %v2188 = vpack.c.b16 %v2180, %v2179
  %2197 = vmatprep.subr.bf16.mxu0 0
  %2198 = vmatpush1.bf16.msra.mxu0 %v2181
  %2199 = vmatprep.subr.bf16.mxu0 0
  %2200 = vmatpush1.bf16.msra.mxu0 %v2182
  %2201 = vmatprep.subr.bf16.mxu0 0
  %2202 = vmatpush1.bf16.msra.mxu0 %v2183
  %2203 = vmatprep.subr.bf16.mxu0 0
  %2204 = vmatpush1.bf16.msra.mxu0 %v2184
  %2205 = vmatprep.subr.bf16.mxu0 0
  %2206 = vmatpush1.bf16.msra.mxu0 %v2185
  %2207 = vmatprep.subr.bf16.mxu0 0
  %2208 = vmatpush1.bf16.msra.mxu0 %v2186
  %2209 = vmatprep.subr.bf16.mxu0 0
  %2210 = vmatpush1.bf16.msra.mxu0 %v2187
  %2211 = vmatprep.subr.bf16.mxu0 0
  %2212 = vmatpush1.bf16.msra.mxu0 %v2188
  %2213 = vmatprep.subr.bf16.mxu0 0
  %2214 = vmatpush1.bf16.msra.mxu0 0
  %2215 = vmatprep.subr.bf16.mxu0 0
  %2216 = vmatpush1.bf16.msra.mxu0 0
  %2217 = vmatprep.subr.bf16.mxu0 0
  %2218 = vmatpush1.bf16.msra.mxu0 0
  %2219 = vmatprep.subr.bf16.mxu0 0
  %2220 = vmatpush1.bf16.msra.mxu0 0
  %2221 = vmatprep.subr.bf16.mxu0 0
  %2222 = vmatpush1.bf16.msra.mxu0 0
  %2223 = vmatprep.subr.bf16.mxu0 0
  %2224 = vmatpush1.bf16.msra.mxu0 0
  %2225 = vmatprep.subr.bf16.mxu0 0
  %2226 = vmatpush1.bf16.msra.mxu0 0
  %2227 = vmatprep.subr.bf16.mxu0 0
  %2228 = vmatpush1.bf16.msra.mxu0 0
  %2229 = vmatprep.mubr.bf16.mxu0 0
  %2230 = vmatmul.mubr.bf16.gmra.mrb[0].mxu0 %v2142
  %v2231 = vpop.f32.mrb[0].mxu0
  %v2232 = vadd.f32 %v2147, %v2231
  %v2233 = vpop.f32.mrb[0].mxu0
  %v2234 = vpop.f32.mrb[0].mxu0
  %v2235 = vadd.f32 %v2147, %v2234
  %v2236 = vpop.f32.mrb[0].mxu0
  %2237 = vdwg.mxu0
  %v2238 = vadd.f32 %v2008, %v2232
  %v2239 = vadd.f32 %v2009, %v2235
  %v2240 = vld [vmem:[%s22] sm:$0x1]
  %v2241 = vld [vmem:[%s23] sm:$0x1]
  %2242 = vadd.xlane.f32.xlu0 %v2238
  %v2243 = vpop.xlane.xlu0 %2242
  %2244 = vadd.xlane.f32.xlu0 %v2239
  %v2245 = vpop.xlane.xlu0 %2244
  %v2246 = vmul.f32 %v2243, %v987
  %v2247 = vmul.f32 %v2245, %v987
  %v2248 = vsub.f32 %v2238, %v2246
  %v2249 = vsub.f32 %v2239, %v2247
  %v2250 = vmul.f32 %v2248, %v2248
  %v2251 = vmul.f32 %v2249, %v2249
  %2252 = vadd.xlane.f32.xlu0 %v2250
  %v2253 = vpop.xlane.xlu0 %2252
  %2254 = vadd.xlane.f32.xlu0 %v2251
  %v2255 = vpop.xlane.xlu0 %2254
  %v2256 = vmul.f32 %v2253, %v987
  %v2257 = vmul.f32 %v2255, %v987
  %v2258 = vadd.f32 %v2256, 1e-05
  %v2259 = vadd.f32 %v2257, 1e-05
  %v2260 = vrsqrt.pop %v2258
  %v2261 = vrsqrt.pop %v2259
  %v2262 = vmul.f32 %v2248, %v2260
  %v2263 = vmul.f32 %v2249, %v2261
  %v2265 = vlaneseq
  %v2266 = vshrl.u32 %v2265, 7
  %v2267 = vsub.s32 0, %v2266
  %v2268 = vrot.slane %v2240, %v2267
  %v2270 = vmul.f32 %v2262, %v2268
  %v2271 = vmul.f32 %v2263, %v2268
  %v2273 = vlaneseq
  %v2274 = vshrl.u32 %v2273, 7
  %v2275 = vsub.s32 0, %v2274
  %v2276 = vrot.slane %v2241, %v2275
  %v2278 = vadd.f32 %v2270, %v2276
  %v2279 = vadd.f32 %v2271, %v2276
  %2280 = vst [vmem:[%s24] sm:$0xff] %v2278
  %2281 = vst [vmem:[%s24 + $0x8] sm:$0xff] %v2279
  // Predicated region
  $region98: #{seq2seq_forward.9} parent=0 // pred_check
    _
  $region99: #{seq2seq_forward.9} parent=0 // pred_check_branch
    %2283 = sbr.rel (0) target = $region101
  $region100: #{seq2seq_forward.9} parent=0 // pred_region
    _
  $region101: #{seq2seq_forward.9} parent=0 // pred_fallthru
    _
  // Predicated region
  $region102: #{seq2seq_forward.9} parent=0 // pred_check
    _
  $region103: #{seq2seq_forward.9} parent=0 // pred_check_branch
    %2285 = sbr.rel (0) target = $region105
  $region104: #{seq2seq_forward.9} parent=0 // pred_region
    _
  $region105: #{seq2seq_forward.9} parent=0 // pred_fallthru
    _

</llo_original>
